<compile_context>
chip_gen: v7x
topology: tpu7x:2x2x1
jax: 0.10.0
libtpu: 0.0.40
codegen_flags: <defaults>
</compile_context>

<pallas_src>
import functools

import jax
import jax.numpy as jnp
from jax.experimental import pallas as pl
from jax.experimental.pallas import tpu as pltpu


# --------------------------------------------------------------------------
# Fused ConvLSTM cell kernels.
# Conv weights are gate-packed along the lane axis with gates [i, f, c, o],
# so each cell needs a single lane-dense (rows, 4*K) MXU matmul.
# --------------------------------------------------------------------------
def _cell_first_kernel(xcol_ref, wx_ref, b_ref, wco_ref, *out_refs, K, emit_c):
    # state is None => h_prev = 0 and c_prev = 0:
    #   * the hidden conv of zeros contributes only its bias (folded into b),
    #   * the i/f peephole terms and f*c_prev are exactly zero,
    # so only the input conv and the o-gate peephole are computed.
    pre = jnp.dot(xcol_ref[...], wx_ref[...],
                  preferred_element_type=jnp.float32) + b_ref[...]
    i = jax.nn.sigmoid(pre[:, 0 * K:1 * K])
    c_new = i * jnp.tanh(pre[:, 2 * K:3 * K])
    o = jax.nn.sigmoid(pre[:, 3 * K:4 * K] + c_new * wco_ref[...])
    out_refs[0][...] = (o * jnp.tanh(c_new)).astype(out_refs[0].dtype)
    if emit_c:
        out_refs[1][...] = c_new


def _cell_kernel(xcol_ref, c_ref, w_ref, b_ref, wpeep_ref, *out_refs, K, emit_c):
    # Layers i>0: h_prev is the layer input, so x@wx + h@wh == x@(wx+wh) and a
    # single matmul with the folded weight suffices.
    pre = jnp.dot(xcol_ref[...], w_ref[...],
                  preferred_element_type=jnp.float32) + b_ref[...]
    c = c_ref[...]
    wci = wpeep_ref[:, 0 * K:1 * K]
    wcf = wpeep_ref[:, 1 * K:2 * K]
    wco = wpeep_ref[:, 2 * K:3 * K]
    i = jax.nn.sigmoid(pre[:, 0 * K:1 * K] + c * wci)
    f = jax.nn.sigmoid(pre[:, 1 * K:2 * K] + c * wcf)
    c_new = f * c + i * jnp.tanh(pre[:, 2 * K:3 * K])
    o = jax.nn.sigmoid(pre[:, 3 * K:4 * K] + c_new * wco)
    out_refs[0][...] = (o * jnp.tanh(c_new)).astype(out_refs[0].dtype)
    if emit_c:
        out_refs[1][...] = c_new


def _im2col3x3(x):
    """x: (B, D, D, C) NHWC -> (B*D*D, 9*C) for a 3x3 'same' conv (pad=1)."""
    B, D, _, C = x.shape
    xp = jnp.pad(x, ((0, 0), (1, 1), (1, 1), (0, 0)))
    cols = [xp[:, dy:dy + D, dx:dx + D, :] for dy in range(3) for dx in range(3)]
    return jnp.concatenate(cols, axis=-1).reshape(B * D * D, 9 * C)


def conv_lstm_cell(x_nhwc, c_prev, p, *, first, last):
    """One ConvLSTMCell step. x_nhwc: (B, D, D, Cin). Returns (h_flat, c_flat)."""
    B, D, _, Cin = x_nhwc.shape
    K = p["b"].shape[-1] // 4
    DD = D * D
    M = B * DD

    # TODO(synk): im2col still goes through an XLA pad+concat in HBM; an
    # in-kernel 9-shift formulation would cut that traffic further.
    xcol = _im2col3x3(x_nhwc.astype(jnp.bfloat16))       # (M, 9*Cin) bf16

    row = lambda b: (b, 0)       # per-image tile
    const = lambda b: (0, 0)     # resident (weights / bias / peephole)
    emit_c = not last            # the last layer's c is never consumed
    out_shape = [jax.ShapeDtypeStruct((M, K), jnp.bfloat16)]   # h (matmul feed)
    out_specs = [pl.BlockSpec((DD, K), row)]
    if emit_c:
        out_shape.append(jax.ShapeDtypeStruct((M, K), jnp.float32))
        out_specs.append(pl.BlockSpec((DD, K), row))
    # grid=(B,) parallel: lets v7x shard the two images across its TCs; per
    # review, at this size a single 512-row step would also be fine.
    cparams = pltpu.CompilerParams(dimension_semantics=("parallel",))

    if first:
        outs = pl.pallas_call(
            functools.partial(_cell_first_kernel, K=K, emit_c=emit_c),
            out_shape=tuple(out_shape),
            grid_spec=pltpu.PrefetchScalarGridSpec(
                num_scalar_prefetch=0,
                grid=(B,),
                in_specs=[pl.BlockSpec((DD, 9 * Cin), row),       # xcol
                          pl.BlockSpec((9 * Cin, 4 * K), const),  # wx packed
                          pl.BlockSpec((1, 4 * K), const),        # bias
                          pl.BlockSpec((DD, K), const)],          # W_co
                out_specs=tuple(out_specs)),
            compiler_params=cparams,
        )(xcol, p["wx"], p["b"], p["wco"])
    else:
        outs = pl.pallas_call(
            functools.partial(_cell_kernel, K=K, emit_c=emit_c),
            out_shape=tuple(out_shape),
            grid_spec=pltpu.PrefetchScalarGridSpec(
                num_scalar_prefetch=0,
                grid=(B,),
                in_specs=[pl.BlockSpec((DD, 9 * K), row),         # shared im2col
                          pl.BlockSpec((DD, K), row),             # c_prev
                          pl.BlockSpec((9 * K, 4 * K), const),    # wx+wh packed
                          pl.BlockSpec((1, 4 * K), const),        # bias
                          pl.BlockSpec((DD, 3 * K), const)],      # [Wci|Wcf|Wco]
                out_specs=tuple(out_specs)),
            compiler_params=cparams,
        )(xcol, c_prev, p["w_comb"], p["b"], p["wpeep"])

    h_flat = outs[0]
    c_flat = outs[1] if emit_c else None
    # TODO(synk): Dropout2d (H_drop/C_drop) treated as identity (eval mode).
    return h_flat, c_flat


# --------------------------------------------------------------------------
# FC head kernel: Flatten -> Linear(F, 1024) -> Linear(1024, 1), fused.
# fc1 weight is int8 (per-output-column f32 scale): the 16 MiB bf16 weight
# stream that dominates the forward is halved; dequant is in-kernel.
# --------------------------------------------------------------------------
def _fc_kernel(a_ref, w1_ref, s1_ref, b1_ref, w2_ref, b2_ref, o_ref, acc_ref):
    k = pl.program_id(0)

    @pl.when(k == 0)
    def _():
        acc_ref[...] = jnp.zeros_like(acc_ref)

    # int8 -> bf16 is exact (|q| <= 127); MXU runs a bf16 x bf16 pass and the
    # per-column scale is applied once to the f32 accumulator at the end.
    acc_ref[...] += jnp.dot(a_ref[...], w1_ref[...].astype(jnp.bfloat16),
                            preferred_element_type=jnp.float32)

    @pl.when(k == pl.num_programs(0) - 1)
    def _():
        h1 = acc_ref[...] * s1_ref[...] + b1_ref[...]
        # (B, 1024) x (1024, 1) done as a VPU reduction: avoids an MXU pass
        # with a fully masked 1-lane output on the critical tail.
        o_ref[...] = (jnp.sum(h1 * w2_ref[...], axis=-1, keepdims=True)
                      + b2_ref[...])


def fc_output(a, w1_q, w1_scale, b1, w2_row, b2, *, tk=2048):
    B, F = a.shape
    H1 = w1_q.shape[1]
    tk = min(tk, F)
    assert F % tk == 0
    # VMEM: double-buffered (tk, H1) int8 tiles = 2 x 2 MiB at tk=2048, well
    # under v5e's 16 MiB default scoped limit; no vmem_limit override needed.
    return pl.pallas_call(
        _fc_kernel,
        out_shape=jax.ShapeDtypeStruct((B, 1), jnp.float32),
        grid_spec=pltpu.PrefetchScalarGridSpec(
            num_scalar_prefetch=0,
            grid=(F // tk,),
            in_specs=[pl.BlockSpec((B, tk), lambda k: (0, k)),     # activations
                      pl.BlockSpec((tk, H1), lambda k: (k, 0)),    # fc1 int8
                      pl.BlockSpec((1, H1), lambda k: (0, 0)),     # fc1 scale
                      pl.BlockSpec((1, H1), lambda k: (0, 0)),     # fc1 bias
                      pl.BlockSpec((1, H1), lambda k: (0, 0)),     # fc2 weight row
                      pl.BlockSpec((1, 1), lambda k: (0, 0))],     # fc2 bias
            out_specs=pl.BlockSpec((B, 1), lambda k: (0, 0)),
            scratch_shapes=[pltpu.VMEM((B, H1), jnp.float32)]),
        compiler_params=pltpu.CompilerParams(
            dimension_semantics=("arbitrary",)),
    )(a.astype(jnp.bfloat16), w1_q, w1_scale, b1, w2_row, b2)


# --------------------------------------------------------------------------
# Parameter setup (deterministic, synthetic -- matches module shapes)
# --------------------------------------------------------------------------
def _xavier_normal(key, shape, fan_in, fan_out):
    std = (2.0 / (fan_in + fan_out)) ** 0.5
    return std * jax.random.normal(key, shape, jnp.float32)


def init_cell_params(key, cin, k, d, *, first):
    ks = jax.random.split(key, 8)
    # torch Conv2d weights: (K, Cin, 3, 3), xavier_normal. Stored gate-packed
    # as (9*Cin, 4*K) / (9*K, 4*K) matching the im2col column ordering, gates
    # [i, f, c, o] along the lane axis; bf16 for the MXU.
    wx = _xavier_normal(ks[0], (9 * cin, 4 * k), fan_in=cin * 9, fan_out=k * 9)
    wh = _xavier_normal(ks[1], (9 * k, 4 * k), fan_in=k * 9, fan_out=k * 9)
    bx = jax.random.uniform(ks[2], (4 * k,), jnp.float32)     # nn.init.uniform_
    bh = jax.random.uniform(ks[3], (4 * k,), jnp.float32)

    # HadamardProduct weights: torch state_shape (1, K, D, D); synthetic values
    # stored as (D*D, K) in NHWC-flat order.
    def had(kk):
        w = 0.1 * jax.random.normal(kk, (1, k, d, d), jnp.float32)
        return jnp.transpose(w[0], (1, 2, 0)).reshape(d * d, k)

    wci, wcf, wco = had(ks[4]), had(ks[5]), had(ks[6])
    p = {"b": (bx + bh)[None, :]}                 # conv_x bias + conv_h bias, f32
    if first:
        # state=None path: the hidden conv of zeros is just its bias (already
        # folded into b); only wx and the o-gate peephole are ever touched.
        p["wx"] = wx.astype(jnp.bfloat16)
        p["wco"] = wco
    else:
        # h_prev handed to layer i>0 is always that layer's own input, so the
        # two convs collapse into one folded weight (f32 sum, single bf16 cast).
        p["w_comb"] = (wx + wh).astype(jnp.bfloat16)
        p["wpeep"] = jnp.concatenate([wci, wcf, wco], axis=-1)   # (D*D, 3*K)
    return p


def init_model_params(key, input_bands, input_dim, kernels, num_layers):
    keys = jax.random.split(key, num_layers + 2)
    layers = []
    for i in range(num_layers):
        cin = input_bands if i == 0 else kernels
        layers.append(init_cell_params(keys[i], cin, kernels, input_dim,
                                       first=(i == 0)))
    D, K = input_dim, kernels
    F = K * D * D
    fc1_w = _xavier_normal(keys[num_layers], (F, 1024), fan_in=F, fan_out=1024)
    # Permute fc1 rows once so it consumes the NHWC-flat feature order directly
    # (torch flattens NCHW: old row = c*D*D + (y*D+x); new row = (y*D+x)*K + c),
    # deleting the runtime NCHW transpose of the feature tensor.
    idx = jnp.arange(F)
    perm = (idx % K) * (D * D) + idx // K
    fc1_w = fc1_w[perm, :]
    # int8 quantization with per-output-column scale (halves the fc1 HBM stream).
    amax = jnp.max(jnp.abs(fc1_w), axis=0, keepdims=True)             # (1, 1024)
    fc1_scale = jnp.maximum(amax, 1e-8) / 127.0
    fc1_q = jnp.clip(jnp.round(fc1_w / fc1_scale), -127, 127).astype(jnp.int8)

    fc2_w = _xavier_normal(keys[num_layers + 1], (1024, 1), fan_in=1024, fan_out=1)
    fc1_b = jax.random.uniform(jax.random.fold_in(key, 101), (1, 1024), jnp.float32)
    fc2_b = jax.random.uniform(jax.random.fold_in(key, 102), (1, 1), jnp.float32)
    return {"layers_fwd": layers,
            "fc1_w_q": fc1_q, "fc1_scale": fc1_scale, "fc1_b": fc1_b,
            "fc2_w": fc2_w.T,                     # stored as a (1, 1024) row vector
            "fc2_b": fc2_b}


# --------------------------------------------------------------------------
# Full ConvLSTM.forward
# --------------------------------------------------------------------------
def convlstm_forward(x, params):
    """x: (Batch, Seq, Band, Dim, Dim) -- same layout as the torch module."""
    B, S, _, D, _ = x.shape
    layers = params["layers_fwd"]
    n = len(layers)
    K = layers[0]["b"].shape[-1] // 4

    # The reference resets `states = None` at every time step and only the
    # last step's hidden state feeds the FC head, so steps 0..S-2 are dead
    # compute; running only the last step is structurally identical.
    x_t = jnp.transpose(x[:, S - 1], (0, 2, 3, 1))         # NCHW -> NHWC

    h_flat, c_flat = conv_lstm_cell(x_t, None, layers[0], first=True, last=(n == 1))
    for li in range(1, n):
        h_nhwc = h_flat.reshape(B, D, D, K)                # free reshape
        h_flat, c_flat = conv_lstm_cell(h_nhwc, c_flat, layers[li],
                                        first=False, last=(li == n - 1))

    # TODO(synk): bidirectional branch not implemented (bidirectional=False).
    # Features are already NHWC-flat; fc1 rows were permuted at init to match,
    # so this reshape is layout-free (no transpose, no HBM round trip).
    feat = h_flat.reshape(B, D * D * K)
    return fc_output(feat, params["fc1_w_q"], params["fc1_scale"],
                     params["fc1_b"], params["fc2_w"], params["fc2_b"])


if __name__ == "__main__":
    batch, seq, bands, dim, kernels, num_layers = 2, 8, 4, 16, 32, 2

    key = jax.random.PRNGKey(0)
    k_params, k_x = jax.random.split(key)
    params = init_model_params(k_params, bands, dim, kernels, num_layers)
    x = jax.random.normal(k_x, (batch, seq, bands, dim, dim), jnp.float32)

    fwd = jax.jit(convlstm_forward)
    out = jax.block_until_ready(fwd(x, params))
    assert out.shape == (batch, 1) and out.dtype == jnp.float32
    print("KERNEL_OK")
</pallas_src>

<mosaic_0001>
module attributes {stable_mosaic.version = 11 : i64} {
  func.func @_cell_first_kernel(%arg0: i32, %arg1: memref<256x36xbf16, #tpu.memory_space<vmem>>, %arg2: memref<36x128xbf16, #tpu.memory_space<vmem>>, %arg3: memref<1x128xf32, #tpu.memory_space<vmem>>, %arg4: memref<256x32xf32, #tpu.memory_space<vmem>>, %arg5: memref<256x32xbf16, #tpu.memory_space<vmem>>, %arg6: memref<256x32xf32, #tpu.memory_space<vmem>>) attributes {dimension_semantics = [#tpu.dimension_semantics<parallel>], iteration_bounds = array<i64: 2>, scalar_prefetch = 0 : i64, scratch_operands = 0 : i64, tpu.core_type = #tpu.core_type<tc>, window_params = [{transform_indices = @transform_0, window_bounds = array<i64: 256, 36>}, {pipeline_mode = #tpu.pipeline_mode<synchronous>, transform_indices = @transform_1, window_bounds = array<i64: 36, 128>}, {pipeline_mode = #tpu.pipeline_mode<synchronous>, transform_indices = @transform_2, window_bounds = array<i64: 1, 128>}, {pipeline_mode = #tpu.pipeline_mode<synchronous>, transform_indices = @transform_3, window_bounds = array<i64: 256, 32>}, {transform_indices = @transform_4, window_bounds = array<i64: 256, 32>}, {transform_indices = @transform_5, window_bounds = array<i64: 256, 32>}]} {
    %c0 = arith.constant 0 : index
    %c0_0 = arith.constant 0 : index
    %0 = vector.load %arg1[%c0, %c0_0] : memref<256x36xbf16, #tpu.memory_space<vmem>>, vector<256x36xbf16>
    %c0_1 = arith.constant 0 : index
    %c0_2 = arith.constant 0 : index
    %1 = vector.load %arg2[%c0_1, %c0_2] : memref<36x128xbf16, #tpu.memory_space<vmem>>, vector<36x128xbf16>
    %cst = arith.constant dense<0.000000e+00> : vector<256x128xf32>
    %2 = tpu.matmul %0, %1, %cst {dimension_numbers = #tpu.dot_dimension_numbers<[1], [0], [0], [1], [0, 0, 1, 1], [], []>} : vector<256x36xbf16>, vector<36x128xbf16>, vector<256x128xf32> -> vector<256x128xf32>
    %c0_3 = arith.constant 0 : index
    %c0_4 = arith.constant 0 : index
    %3 = vector.load %arg3[%c0_3, %c0_4] : memref<1x128xf32, #tpu.memory_space<vmem>>, vector<1x128xf32>
    %4 = vector.broadcast %3 : vector<1x128xf32> to vector<256x128xf32>
    %5 = arith.addf %2, %4 : vector<256x128xf32>
    %6 = vector.extract_strided_slice %5 {offsets = [0, 0], sizes = [256, 32], strides = [1, 1]} : vector<256x128xf32> to vector<256x32xf32>
    %7 = arith.negf %6 : vector<256x32xf32>
    %8 = math.exp %7 : vector<256x32xf32>
    %cst_5 = arith.constant 1.000000e+00 : f32
    %9 = vector.broadcast %cst_5 : f32 to vector<256x32xf32>
    %10 = arith.addf %9, %8 : vector<256x32xf32>
    %11 = arith.divf %9, %10 : vector<256x32xf32>
    %12 = vector.extract_strided_slice %5 {offsets = [0, 64], sizes = [256, 32], strides = [1, 1]} : vector<256x128xf32> to vector<256x32xf32>
    %13 = math.tanh %12 : vector<256x32xf32>
    %14 = arith.mulf %11, %13 : vector<256x32xf32>
    %15 = vector.extract_strided_slice %5 {offsets = [0, 96], sizes = [256, 32], strides = [1, 1]} : vector<256x128xf32> to vector<256x32xf32>
    %c0_6 = arith.constant 0 : index
    %c0_7 = arith.constant 0 : index
    %16 = vector.load %arg4[%c0_6, %c0_7] : memref<256x32xf32, #tpu.memory_space<vmem>>, vector<256x32xf32>
    %17 = arith.mulf %14, %16 : vector<256x32xf32>
    %18 = arith.addf %15, %17 : vector<256x32xf32>
    %19 = arith.negf %18 : vector<256x32xf32>
    %20 = math.exp %19 : vector<256x32xf32>
    %cst_8 = arith.constant 1.000000e+00 : f32
    %21 = vector.broadcast %cst_8 : f32 to vector<256x32xf32>
    %22 = arith.addf %21, %20 : vector<256x32xf32>
    %23 = arith.divf %21, %22 : vector<256x32xf32>
    %24 = math.tanh %14 : vector<256x32xf32>
    %25 = arith.mulf %23, %24 : vector<256x32xf32>
    %26 = arith.truncf %25 : vector<256x32xf32> to vector<256x32xbf16>
    %c0_9 = arith.constant 0 : index
    %c0_10 = arith.constant 0 : index
    %27 = vector.load %arg5[%c0_9, %c0_10] : memref<256x32xbf16, #tpu.memory_space<vmem>>, vector<256x32xbf16>
    tpu.vector_store %arg5[%c0_9, %c0_10], %26 {strides = array<i32>} : memref<256x32xbf16, #tpu.memory_space<vmem>>, vector<256x32xbf16>,
    %c0_11 = arith.constant 0 : index
    %c0_12 = arith.constant 0 : index
    %28 = vector.load %arg6[%c0_11, %c0_12] : memref<256x32xf32, #tpu.memory_space<vmem>>, vector<256x32xf32>
    tpu.vector_store %arg6[%c0_11, %c0_12], %14 {strides = array<i32>} : memref<256x32xf32, #tpu.memory_space<vmem>>, vector<256x32xf32>,
    return
  }
  func.func @transform_0(%arg0: i32) -> (i32, i32) {
    %c0_i32 = arith.constant 0 : i32
    %c0_i32_0 = arith.constant 0 : i32
    return %arg0, %c0_i32 : i32, i32
  }
  func.func @transform_1(%arg0: i32) -> (i32, i32) {
    %c0_i32 = arith.constant 0 : i32
    %c0_i32_0 = arith.constant 0 : i32
    %c0_i32_1 = arith.constant 0 : i32
    return %c0_i32, %c0_i32_0 : i32, i32
  }
  func.func @transform_2(%arg0: i32) -> (i32, i32) {
    %c0_i32 = arith.constant 0 : i32
    %c0_i32_0 = arith.constant 0 : i32
    %c0_i32_1 = arith.constant 0 : i32
    return %c0_i32, %c0_i32_0 : i32, i32
  }
  func.func @transform_3(%arg0: i32) -> (i32, i32) {
    %c0_i32 = arith.constant 0 : i32
    %c0_i32_0 = arith.constant 0 : i32
    %c0_i32_1 = arith.constant 0 : i32
    return %c0_i32, %c0_i32_0 : i32, i32
  }
  func.func @transform_4(%arg0: i32) -> (i32, i32) {
    %c0_i32 = arith.constant 0 : i32
    %c0_i32_0 = arith.constant 0 : i32
    return %arg0, %c0_i32 : i32, i32
  }
  func.func @transform_5(%arg0: i32) -> (i32, i32) {
    %c0_i32 = arith.constant 0 : i32
    %c0_i32_0 = arith.constant 0 : i32
    return %arg0, %c0_i32 : i32, i32
  }
}

module attributes {stable_mosaic.version = 11 : i64} {
  func.func @_cell_kernel(%arg0: i32, %arg1: memref<256x288xbf16, #tpu.memory_space<vmem>>, %arg2: memref<256x32xf32, #tpu.memory_space<vmem>>, %arg3: memref<288x128xbf16, #tpu.memory_space<vmem>>, %arg4: memref<1x128xf32, #tpu.memory_space<vmem>>, %arg5: memref<256x96xf32, #tpu.memory_space<vmem>>, %arg6: memref<256x32xbf16, #tpu.memory_space<vmem>>) attributes {dimension_semantics = [#tpu.dimension_semantics<parallel>], iteration_bounds = array<i64: 2>, scalar_prefetch = 0 : i64, scratch_operands = 0 : i64, tpu.core_type = #tpu.core_type<tc>, window_params = [{transform_indices = @transform_0, window_bounds = array<i64: 256, 288>}, {transform_indices = @transform_1, window_bounds = array<i64: 256, 32>}, {pipeline_mode = #tpu.pipeline_mode<synchronous>, transform_indices = @transform_2, window_bounds = array<i64: 288, 128>}, {pipeline_mode = #tpu.pipeline_mode<synchronous>, transform_indices = @transform_3, window_bounds = array<i64: 1, 128>}, {pipeline_mode = #tpu.pipeline_mode<synchronous>, transform_indices = @transform_4, window_bounds = array<i64: 256, 96>}, {transform_indices = @transform_5, window_bounds = array<i64: 256, 32>}]} {
    %c0 = arith.constant 0 : index
    %c0_0 = arith.constant 0 : index
    %0 = vector.load %arg1[%c0, %c0_0] : memref<256x288xbf16, #tpu.memory_space<vmem>>, vector<256x288xbf16>
    %c0_1 = arith.constant 0 : index
    %c0_2 = arith.constant 0 : index
    %1 = vector.load %arg3[%c0_1, %c0_2] : memref<288x128xbf16, #tpu.memory_space<vmem>>, vector<288x128xbf16>
    %cst = arith.constant dense<0.000000e+00> : vector<256x128xf32>
    %2 = tpu.matmul %0, %1, %cst {dimension_numbers = #tpu.dot_dimension_numbers<[1], [0], [0], [1], [0, 0, 1, 1], [], []>} : vector<256x288xbf16>, vector<288x128xbf16>, vector<256x128xf32> -> vector<256x128xf32>
    %c0_3 = arith.constant 0 : index
    %c0_4 = arith.constant 0 : index
    %3 = vector.load %arg4[%c0_3, %c0_4] : memref<1x128xf32, #tpu.memory_space<vmem>>, vector<1x128xf32>
    %4 = vector.broadcast %3 : vector<1x128xf32> to vector<256x128xf32>
    %5 = arith.addf %2, %4 : vector<256x128xf32>
    %c0_5 = arith.constant 0 : index
    %c0_6 = arith.constant 0 : index
    %6 = vector.load %arg2[%c0_5, %c0_6] : memref<256x32xf32, #tpu.memory_space<vmem>>, vector<256x32xf32>
    %c0_7 = arith.constant 0 : index
    %c0_8 = arith.constant 0 : index
    %7 = vector.load %arg5[%c0_7, %c0_8] : memref<256x96xf32, #tpu.memory_space<vmem>>, vector<256x32xf32>
    %c0_9 = arith.constant 0 : index
    %c32 = arith.constant 32 : index
    %8 = vector.load %arg5[%c0_9, %c32] : memref<256x96xf32, #tpu.memory_space<vmem>>, vector<256x32xf32>
    %c0_10 = arith.constant 0 : index
    %c64 = arith.constant 64 : index
    %9 = vector.load %arg5[%c0_10, %c64] : memref<256x96xf32, #tpu.memory_space<vmem>>, vector<256x32xf32>
    %10 = vector.extract_strided_slice %5 {offsets = [0, 0], sizes = [256, 32], strides = [1, 1]} : vector<256x128xf32> to vector<256x32xf32>
    %11 = arith.mulf %6, %7 : vector<256x32xf32>
    %12 = arith.addf %10, %11 : vector<256x32xf32>
    %13 = arith.negf %12 : vector<256x32xf32>
    %14 = math.exp %13 : vector<256x32xf32>
    %cst_11 = arith.constant 1.000000e+00 : f32
    %15 = vector.broadcast %cst_11 : f32 to vector<256x32xf32>
    %16 = arith.addf %15, %14 : vector<256x32xf32>
    %17 = arith.divf %15, %16 : vector<256x32xf32>
    %18 = vector.extract_strided_slice %5 {offsets = [0, 32], sizes = [256, 32], strides = [1, 1]} : vector<256x128xf32> to vector<256x32xf32>
    %19 = arith.mulf %6, %8 : vector<256x32xf32>
    %20 = arith.addf %18, %19 : vector<256x32xf32>
    %21 = arith.negf %20 : vector<256x32xf32>
    %22 = math.exp %21 : vector<256x32xf32>
    %cst_12 = arith.constant 1.000000e+00 : f32
    %23 = vector.broadcast %cst_12 : f32 to vector<256x32xf32>
    %24 = arith.addf %23, %22 : vector<256x32xf32>
    %25 = arith.divf %23, %24 : vector<256x32xf32>
    %26 = arith.mulf %25, %6 : vector<256x32xf32>
    %27 = vector.extract_strided_slice %5 {offsets = [0, 64], sizes = [256, 32], strides = [1, 1]} : vector<256x128xf32> to vector<256x32xf32>
    %28 = math.tanh %27 : vector<256x32xf32>
    %29 = arith.mulf %17, %28 : vector<256x32xf32>
    %30 = arith.addf %26, %29 : vector<256x32xf32>
    %31 = vector.extract_strided_slice %5 {offsets = [0, 96], sizes = [256, 32], strides = [1, 1]} : vector<256x128xf32> to vector<256x32xf32>
    %32 = arith.mulf %30, %9 : vector<256x32xf32>
    %33 = arith.addf %31, %32 : vector<256x32xf32>
    %34 = arith.negf %33 : vector<256x32xf32>
    %35 = math.exp %34 : vector<256x32xf32>
    %cst_13 = arith.constant 1.000000e+00 : f32
    %36 = vector.broadcast %cst_13 : f32 to vector<256x32xf32>
    %37 = arith.addf %36, %35 : vector<256x32xf32>
    %38 = arith.divf %36, %37 : vector<256x32xf32>
    %39 = math.tanh %30 : vector<256x32xf32>
    %40 = arith.mulf %38, %39 : vector<256x32xf32>
    %41 = arith.truncf %40 : vector<256x32xf32> to vector<256x32xbf16>
    %c0_14 = arith.constant 0 : index
    %c0_15 = arith.constant 0 : index
    %42 = vector.load %arg6[%c0_14, %c0_15] : memref<256x32xbf16, #tpu.memory_space<vmem>>, vector<256x32xbf16>
    tpu.vector_store %arg6[%c0_14, %c0_15], %41 {strides = array<i32>} : memref<256x32xbf16, #tpu.memory_space<vmem>>, vector<256x32xbf16>,
    return
  }
  func.func @transform_0(%arg0: i32) -> (i32, i32) {
    %c0_i32 = arith.constant 0 : i32
    %c0_i32_0 = arith.constant 0 : i32
    return %arg0, %c0_i32 : i32, i32
  }
  func.func @transform_1(%arg0: i32) -> (i32, i32) {
    %c0_i32 = arith.constant 0 : i32
    %c0_i32_0 = arith.constant 0 : i32
    return %arg0, %c0_i32 : i32, i32
  }
  func.func @transform_2(%arg0: i32) -> (i32, i32) {
    %c0_i32 = arith.constant 0 : i32
    %c0_i32_0 = arith.constant 0 : i32
    %c0_i32_1 = arith.constant 0 : i32
    return %c0_i32, %c0_i32_0 : i32, i32
  }
  func.func @transform_3(%arg0: i32) -> (i32, i32) {
    %c0_i32 = arith.constant 0 : i32
    %c0_i32_0 = arith.constant 0 : i32
    %c0_i32_1 = arith.constant 0 : i32
    return %c0_i32, %c0_i32_0 : i32, i32
  }
  func.func @transform_4(%arg0: i32) -> (i32, i32) {
    %c0_i32 = arith.constant 0 : i32
    %c0_i32_0 = arith.constant 0 : i32
    %c0_i32_1 = arith.constant 0 : i32
    return %c0_i32, %c0_i32_0 : i32, i32
  }
  func.func @transform_5(%arg0: i32) -> (i32, i32) {
    %c0_i32 = arith.constant 0 : i32
    %c0_i32_0 = arith.constant 0 : i32
    return %arg0, %c0_i32 : i32, i32
  }
}

module attributes {stable_mosaic.version = 11 : i64} {
  func.func @_fc_kernel(%arg0: i32, %arg1: memref<2x2048xbf16, #tpu.memory_space<vmem>>, %arg2: memref<2048x1024xi8, #tpu.memory_space<vmem>>, %arg3: memref<1x1024xf32, #tpu.memory_space<vmem>>, %arg4: memref<1x1024xf32, #tpu.memory_space<vmem>>, %arg5: memref<1x1024xf32, #tpu.memory_space<vmem>>, %arg6: memref<1x1xf32, #tpu.memory_space<vmem>>, %arg7: memref<2x1xf32, #tpu.memory_space<vmem>>, %arg8: memref<2x1024xf32, #tpu.memory_space<vmem>>) attributes {dimension_semantics = [#tpu.dimension_semantics<arbitrary>], iteration_bounds = array<i64: 4>, scalar_prefetch = 0 : i64, scratch_operands = 1 : i64, tpu.core_type = #tpu.core_type<tc>, window_params = [{transform_indices = @transform_0, window_bounds = array<i64: 2, 2048>}, {transform_indices = @transform_1, window_bounds = array<i64: 2048, 1024>}, {pipeline_mode = #tpu.pipeline_mode<synchronous>, transform_indices = @transform_2, window_bounds = array<i64: 1, 1024>}, {pipeline_mode = #tpu.pipeline_mode<synchronous>, transform_indices = @transform_3, window_bounds = array<i64: 1, 1024>}, {pipeline_mode = #tpu.pipeline_mode<synchronous>, transform_indices = @transform_4, window_bounds = array<i64: 1, 1024>}, {pipeline_mode = #tpu.pipeline_mode<synchronous>, transform_indices = @transform_5, window_bounds = array<i64: 1, 1>}, {pipeline_mode = #tpu.pipeline_mode<synchronous>, transform_indices = @transform_6, window_bounds = array<i64: 2, 1>}]} {
    %c0_i32 = arith.constant 0 : i32
    %0 = arith.cmpi eq, %arg0, %c0_i32 : i32
    %1 = arith.extui %0 : i1 to i32
    %c0_i32_0 = arith.constant 0 : i32
    %2 = arith.cmpi ne, %1, %c0_i32_0 : i32
    scf.if %2 {
      %cst_9 = arith.constant 0.000000e+00 : f32
      %13 = vector.broadcast %cst_9 : f32 to vector<2x1024xf32>
      %c0_10 = arith.constant 0 : index
      %c0_11 = arith.constant 0 : index
      %14 = vector.load %arg8[%c0_10, %c0_11] : memref<2x1024xf32, #tpu.memory_space<vmem>>, vector<2x1024xf32>
      tpu.vector_store %arg8[%c0_10, %c0_11], %13 {strides = array<i32>} : memref<2x1024xf32, #tpu.memory_space<vmem>>, vector<2x1024xf32>,
    } else {
    }
    %c0 = arith.constant 0 : index
    %c0_1 = arith.constant 0 : index
    %3 = vector.load %arg8[%c0, %c0_1] : memref<2x1024xf32, #tpu.memory_space<vmem>>, vector<2x1024xf32>
    %c0_2 = arith.constant 0 : index
    %c0_3 = arith.constant 0 : index
    %4 = vector.load %arg1[%c0_2, %c0_3] : memref<2x2048xbf16, #tpu.memory_space<vmem>>, vector<2x2048xbf16>
    %c0_4 = arith.constant 0 : index
    %c0_5 = arith.constant 0 : index
    %5 = vector.load %arg2[%c0_4, %c0_5] : memref<2048x1024xi8, #tpu.memory_space<vmem>>, vector<2048x1024xi8>
    %6 = arith.sitofp %5 : vector<2048x1024xi8> to vector<2048x1024xbf16>
    %cst = arith.constant dense<0.000000e+00> : vector<2x1024xf32>
    %7 = tpu.matmul %4, %6, %cst {dimension_numbers = #tpu.dot_dimension_numbers<[1], [0], [0], [1], [0, 0, 1, 1], [], []>} : vector<2x2048xbf16>, vector<2048x1024xbf16>, vector<2x1024xf32> -> vector<2x1024xf32>
    %8 = arith.addf %3, %7 : vector<2x1024xf32>
    %c0_6 = arith.constant 0 : index
    %c0_7 = arith.constant 0 : index
    %9 = vector.load %arg8[%c0_6, %c0_7] : memref<2x1024xf32, #tpu.memory_space<vmem>>, vector<2x1024xf32>
    tpu.vector_store %arg8[%c0_6, %c0_7], %8 {strides = array<i32>} : memref<2x1024xf32, #tpu.memory_space<vmem>>, vector<2x1024xf32>,
    %c3_i32 = arith.constant 3 : i32
    %10 = arith.cmpi eq, %arg0, %c3_i32 : i32
    %11 = arith.extui %10 : i1 to i32
    %c0_i32_8 = arith.constant 0 : i32
    %12 = arith.cmpi ne, %11, %c0_i32_8 : i32
    scf.if %12 {
      %c0_9 = arith.constant 0 : index
      %c0_10 = arith.constant 0 : index
      %13 = vector.load %arg8[%c0_9, %c0_10] : memref<2x1024xf32, #tpu.memory_space<vmem>>, vector<2x1024xf32>
      %c0_11 = arith.constant 0 : index
      %c0_12 = arith.constant 0 : index
      %14 = vector.load %arg3[%c0_11, %c0_12] : memref<1x1024xf32, #tpu.memory_space<vmem>>, vector<1x1024xf32>
      %15 = vector.broadcast %14 : vector<1x1024xf32> to vector<2x1024xf32>
      %16 = arith.mulf %13, %15 : vector<2x1024xf32>
      %c0_13 = arith.constant 0 : index
      %c0_14 = arith.constant 0 : index
      %17 = vector.load %arg4[%c0_13, %c0_14] : memref<1x1024xf32, #tpu.memory_space<vmem>>, vector<1x1024xf32>
      %18 = vector.broadcast %17 : vector<1x1024xf32> to vector<2x1024xf32>
      %19 = arith.addf %16, %18 : vector<2x1024xf32>
      %c0_15 = arith.constant 0 : index
      %c0_16 = arith.constant 0 : index
      %20 = vector.load %arg5[%c0_15, %c0_16] : memref<1x1024xf32, #tpu.memory_space<vmem>>, vector<1x1024xf32>
      %21 = vector.broadcast %20 : vector<1x1024xf32> to vector<2x1024xf32>
      %22 = arith.mulf %19, %21 : vector<2x1024xf32>
      %cst_17 = arith.constant dense<0.000000e+00> : vector<2xf32>
      %23 = vector.multi_reduction <add>, %22, %cst_17 [1] : vector<2x1024xf32> to vector<2xf32>
      %24 = vector.shape_cast %23 : vector<2xf32> to vector<2x1xf32>
      %c0_18 = arith.constant 0 : index
      %c0_19 = arith.constant 0 : index
      %25 = vector.load %arg6[%c0_18, %c0_19] : memref<1x1xf32, #tpu.memory_space<vmem>>, vector<1x1xf32>
      %26 = vector.broadcast %25 : vector<1x1xf32> to vector<2x1xf32>
      %27 = arith.addf %24, %26 : vector<2x1xf32>
      %c0_20 = arith.constant 0 : index
      %c0_21 = arith.constant 0 : index
      %28 = vector.load %arg7[%c0_20, %c0_21] : memref<2x1xf32, #tpu.memory_space<vmem>>, vector<2x1xf32>
      tpu.vector_store %arg7[%c0_20, %c0_21], %27 {strides = array<i32>} : memref<2x1xf32, #tpu.memory_space<vmem>>, vector<2x1xf32>,
    } else {
    }
    return
  }
  func.func @transform_0(%arg0: i32) -> (i32, i32) {
    %c0_i32 = arith.constant 0 : i32
    %c0_i32_0 = arith.constant 0 : i32
    return %c0_i32, %arg0 : i32, i32
  }
  func.func @transform_1(%arg0: i32) -> (i32, i32) {
    %c0_i32 = arith.constant 0 : i32
    %c0_i32_0 = arith.constant 0 : i32
    return %arg0, %c0_i32 : i32, i32
  }
  func.func @transform_2(%arg0: i32) -> (i32, i32) {
    %c0_i32 = arith.constant 0 : i32
    %c0_i32_0 = arith.constant 0 : i32
    %c0_i32_1 = arith.constant 0 : i32
    return %c0_i32, %c0_i32_0 : i32, i32
  }
  func.func @transform_3(%arg0: i32) -> (i32, i32) {
    %c0_i32 = arith.constant 0 : i32
    %c0_i32_0 = arith.constant 0 : i32
    %c0_i32_1 = arith.constant 0 : i32
    return %c0_i32, %c0_i32_0 : i32, i32
  }
  func.func @transform_4(%arg0: i32) -> (i32, i32) {
    %c0_i32 = arith.constant 0 : i32
    %c0_i32_0 = arith.constant 0 : i32
    %c0_i32_1 = arith.constant 0 : i32
    return %c0_i32, %c0_i32_0 : i32, i32
  }
  func.func @transform_5(%arg0: i32) -> (i32, i32) {
    %c0_i32 = arith.constant 0 : i32
    %c0_i32_0 = arith.constant 0 : i32
    %c0_i32_1 = arith.constant 0 : i32
    return %c0_i32, %c0_i32_0 : i32, i32
  }
  func.func @transform_6(%arg0: i32) -> (i32, i32) {
    %c0_i32 = arith.constant 0 : i32
    %c0_i32_0 = arith.constant 0 : i32
    %c0_i32_1 = arith.constant 0 : i32
    return %c0_i32, %c0_i32_0 : i32, i32
  }
}

</mosaic_0001>

<llo_original>
// kernel: convlstm_forward.3
$region0: #{convlstm_forward.3}
  #allocation0 [shape = 'u32[]', space=smem, size = 0x4, offset = 0x4, fixed_abs, tag = 'smem constant byte address 0x4 - core index']
  #allocation1 [shape = 'u32[144,128]{1,0:T(1,128)}', space=vmem, size = 0x12000, scoped, tag = 'internal scratch']
  %s0 = inlined_call_operand.vmem [shape: bf16[512,36], index: 0, kind: input, shape index: {}]
  %s1 = inlined_call_operand.hbm [shape: bf16[36,128], index: 1, kind: input, shape index: {}]
  %s2 = inlined_call_operand.hbm [shape: f32[1,128], index: 2, kind: input, shape index: {}]
  %s3 = inlined_call_operand.vmem [shape: f32[256,32], index: 3, kind: input, shape index: {}]
  %s4 = inlined_call_operand.vmem [shape: bf16[512,32], index: 4, kind: output, shape index: {0}]
  %s5 = inlined_call_operand.vmem [shape: f32[512,32], index: 5, kind: output, shape index: {1}]
  %6 = xla_tuple %s4, %s5
  %s7 = sld [smem:[#allocation0]]
  $region65: #{convlstm_forward.3} parent=0
    _
  %s9 = ssub.s32 1, %s7
  %s10 = scalar_select 0, %s9, %s7
  $region1: #{convlstm_forward.3} parent=0
    #allocation2 [shape = 'u8[10240]{0}', space=vmem, size = 0x2800, scoped, tag = 'input window, operand 1, single buffered']
    #allocation3 [shape = 's32[2]{0}', space=sflag, size = 0x8, scoped, tag = 'scoped memory for convlstm_forward.3']
    #allocation4 [shape = 'u8[512]{0}', space=vmem, size = 0x400, scoped, tag = 'input window, operand 2, single buffered']
    #allocation5 [shape = 's32[1]{0}', space=sflag, size = 0x4, scoped, tag = 'scoped memory for convlstm_forward.3']
    %11 = vsyncpa [#allocation3], 0
    %12 = vsyncpa [#allocation5], 0
    loop: start=0, step=1, limit=4
    $region2: #{convlstm_forward.3} parent=1 // loop_pre_header
      _
    $region3: #{convlstm_forward.3} parent=1 // loop_header
      %s14 = sphi 0, %s18
      %p15 = scmp.ge.s32.totalorder %s14, 4
      %s24 = sphi 0, %s26
      %s27 = sphi 0, %s24
      %s28 = sphi 0, %s27
      %s44 = sphi 0, %s28
      %s48 = sphi 0, %s48
      %s50 = sphi 0, %s48
      %s51 = sphi 0, %s50
      %s65 = sphi 0, %s51
      %s69 = sphi 0, %s69
      %s71 = sphi 0, %s69
      %s72 = sphi 0, %s71
      %s86 = sphi 0, %s72
      %s90 = sphi 0, %s90
      %s92 = sphi 0, %s90
      %s93 = sphi 0, %s92
      %s107 = sphi 0, %s93
      %s113 = sphi 0, %s115
      %s116 = sphi 0, %s113
      %s117 = sphi 0, %s116
      %s133 = sphi 0, %s117
      %s139 = sphi 0, %s141
      %s142 = sphi 0, %s139
      %s143 = sphi 0, %s142
      %s159 = sphi 0, %s143
    $region4: #{convlstm_forward.3} parent=1 // loop_header_branch
      %17 = sbr.rel (%p15) target = $region8
    $region5: #{convlstm_forward.3} parent=1 // loop_body
      %s19 = ssub.s32 %s14, 1
      %s20 = ssub.s32 %s14, 2
      %s21 = sadd.s32 %s14, 1
      %s22 = ssub.s32 %s14, %s21
      %p23 = scmp.eq.s32.totalorder %s22, 0
      %s25 = sadd.s32 %s24, 1
      %s26 = scalar_select %p23, %s24, %s25
      %p29 = pneg %p23
      %p30 = scmp.eq.s32.totalorder %s14, 1
      %p31 = por %p29, %p30
      %p32 = scmp.ne.s32.totalorder %s24, %s27
      %p33 = scmp.eq.s32.totalorder %s14, 0
      %p34 = por %p32, %p33
      %p35 = scmp.ne.s32.totalorder %s24, %s27
      %p36 = scmp.eq.s32.totalorder %s19, 1
      %p37 = por %p35, %p36
      %p38 = scmp.ne.s32.totalorder %s27, %s28
      %p39 = scmp.eq.s32.totalorder %s19, 0
      %p40 = por %p38, %p39
      %p41 = scmp.ne.s32.totalorder %s27, %s28
      %p42 = scmp.eq.s32.totalorder %s20, 1
      %p43 = por %p41, %p42
      %p45 = scmp.ne.s32.totalorder %s28, %s44
      %p46 = scmp.eq.s32.totalorder %s20, 0
      %p47 = por %p45, %p46
      %s49 = sadd.s32 %s48, 1
      %p52 = scmp.eq.s32.totalorder %s14, 1
      %p53 = scmp.ne.s32.totalorder %s48, %s50
      %p54 = scmp.eq.s32.totalorder %s14, 0
      %p55 = por %p53, %p54
      %p56 = scmp.ne.s32.totalorder %s48, %s50
      %p57 = scmp.eq.s32.totalorder %s19, 1
      %p58 = por %p56, %p57
      %p59 = scmp.ne.s32.totalorder %s50, %s51
      %p60 = scmp.eq.s32.totalorder %s19, 0
      %p61 = por %p59, %p60
      %p62 = scmp.ne.s32.totalorder %s50, %s51
      %p63 = scmp.eq.s32.totalorder %s20, 1
      %p64 = por %p62, %p63
      %p66 = scmp.ne.s32.totalorder %s51, %s65
      %p67 = scmp.eq.s32.totalorder %s20, 0
      %p68 = por %p66, %p67
      %s70 = sadd.s32 %s69, 1
      %p73 = scmp.eq.s32.totalorder %s14, 1
      %p74 = scmp.ne.s32.totalorder %s69, %s71
      %p75 = scmp.eq.s32.totalorder %s14, 0
      %p76 = por %p74, %p75
      %p77 = scmp.ne.s32.totalorder %s69, %s71
      %p78 = scmp.eq.s32.totalorder %s19, 1
      %p79 = por %p77, %p78
      %p80 = scmp.ne.s32.totalorder %s71, %s72
      %p81 = scmp.eq.s32.totalorder %s19, 0
      %p82 = por %p80, %p81
      %p83 = scmp.ne.s32.totalorder %s71, %s72
      %p84 = scmp.eq.s32.totalorder %s20, 1
      %p85 = por %p83, %p84
      %p87 = scmp.ne.s32.totalorder %s72, %s86
      %p88 = scmp.eq.s32.totalorder %s20, 0
      %p89 = por %p87, %p88
      %s91 = sadd.s32 %s90, 1
      %p94 = scmp.eq.s32.totalorder %s14, 1
      %p95 = scmp.ne.s32.totalorder %s90, %s92
      %p96 = scmp.eq.s32.totalorder %s14, 0
      %p97 = por %p95, %p96
      %p98 = scmp.ne.s32.totalorder %s90, %s92
      %p99 = scmp.eq.s32.totalorder %s19, 1
      %p100 = por %p98, %p99
      %p101 = scmp.ne.s32.totalorder %s92, %s93
      %p102 = scmp.eq.s32.totalorder %s19, 0
      %p103 = por %p101, %p102
      %p104 = scmp.ne.s32.totalorder %s92, %s93
      %p105 = scmp.eq.s32.totalorder %s20, 1
      %p106 = por %p104, %p105
      %p108 = scmp.ne.s32.totalorder %s93, %s107
      %p109 = scmp.eq.s32.totalorder %s20, 0
      %p110 = por %p108, %p109
      %s111 = ssub.s32 %s14, %s21
      %p112 = scmp.eq.s32.totalorder %s111, 0
      %s114 = sadd.s32 %s113, 1
      %s115 = scalar_select %p112, %s113, %s114
      %p118 = pneg %p112
      %p119 = scmp.eq.s32.totalorder %s14, 1
      %p120 = por %p118, %p119
      %p121 = scmp.ne.s32.totalorder %s113, %s116
      %p122 = scmp.eq.s32.totalorder %s14, 0
      %p123 = por %p121, %p122
      %p124 = scmp.ne.s32.totalorder %s113, %s116
      %p125 = scmp.eq.s32.totalorder %s19, 1
      %p126 = por %p124, %p125
      %p127 = scmp.ne.s32.totalorder %s116, %s117
      %p128 = scmp.eq.s32.totalorder %s19, 0
      %p129 = por %p127, %p128
      %p130 = scmp.ne.s32.totalorder %s116, %s117
      %p131 = scmp.eq.s32.totalorder %s20, 1
      %p132 = por %p130, %p131
      %p134 = scmp.ne.s32.totalorder %s117, %s133
      %p135 = scmp.eq.s32.totalorder %s20, 0
      %p136 = por %p134, %p135
      %s137 = ssub.s32 %s14, %s21
      %p138 = scmp.eq.s32.totalorder %s137, 0
      %s140 = sadd.s32 %s139, 1
      %s141 = scalar_select %p138, %s139, %s140
      %p144 = pneg %p138
      %p145 = scmp.eq.s32.totalorder %s14, 1
      %p146 = por %p144, %p145
      %p147 = scmp.ne.s32.totalorder %s139, %s142
      %p148 = scmp.eq.s32.totalorder %s14, 0
      %p149 = por %p147, %p148
      %p150 = scmp.ne.s32.totalorder %s139, %s142
      %p151 = scmp.eq.s32.totalorder %s19, 1
      %p152 = por %p150, %p151
      %p153 = scmp.ne.s32.totalorder %s142, %s143
      %p154 = scmp.eq.s32.totalorder %s19, 0
      %p155 = por %p153, %p154
      %p156 = scmp.ne.s32.totalorder %s142, %s143
      %p157 = scmp.eq.s32.totalorder %s20, 1
      %p158 = por %p156, %p157
      %p160 = scmp.ne.s32.totalorder %s143, %s159
      %p161 = scmp.eq.s32.totalorder %s20, 0
      %p162 = por %p160, %p161
      %p163 = scmp.le.s32.totalorder 1, %s14
      %p164 = scmp.lt.s32.totalorder %s14, 3
      %p165 = pnand %p163, %p164
      %p166 = pneg %p165
      // Predicated region
      $region9: #{convlstm_forward.3} parent=5 // pred_check
        _
      $region10: #{convlstm_forward.3} parent=5 // pred_check_branch
        %168 = sbr.rel (%p165) target = $region12
      $region11: #{convlstm_forward.3} parent=5 // pred_region
        %s169 = ssub.s32 %s14, 1
        // Predicated region
        $region13: #{convlstm_forward.3} parent=11 // pred_check
          %p170 = pneg %p61
        $region14: #{convlstm_forward.3} parent=11 // pred_check_branch
          %172 = sbr.rel (%p170) target = $region16
        $region15: #{convlstm_forward.3} parent=11 // pred_region
          %s174 = ssub.s32 320, 320
          %175 = vsyncadd [#allocation3], %s174
          %s176 = sshll.u32 [#allocation2], 4
          %s177 = int_to_ptr.vmem [resolvable:$true] %s176
          %182 = dma.hbm_to_vmem [thread:$0]  %s1, 320, %s177, [#allocation3], 64, 64, 4
        $region16: #{convlstm_forward.3} parent=11 // pred_fallthru
          _
        // Predicated region
        $region17: #{convlstm_forward.3} parent=11 // pred_check
          %p183 = pneg %p82
        $region18: #{convlstm_forward.3} parent=11 // pred_check_branch
          %185 = sbr.rel (%p183) target = $region20
        $region19: #{convlstm_forward.3} parent=11 // pred_region
          %s187 = ssub.s32 16, 16
          %188 = vsyncadd [#allocation5], %s187
          %s190 = sshll.u32 [#allocation4], 4
          %s191 = int_to_ptr.vmem [resolvable:$true] %s190
          %193 = dma.hbm_to_vmem [thread:$0]  %s2, 16, %s191, [#allocation5]
        $region20: #{convlstm_forward.3} parent=11 // pred_fallthru
          _
        // Predicated region
        $region21: #{convlstm_forward.3} parent=11 // pred_check
          %p194 = pneg %p103
        $region22: #{convlstm_forward.3} parent=11 // pred_check_branch
          %196 = sbr.rel (%p194) target = $region24
        $region23: #{convlstm_forward.3} parent=11 // pred_region
          _
        $region24: #{convlstm_forward.3} parent=11 // pred_fallthru
          _
      $region12: #{convlstm_forward.3} parent=5 // pred_fallthru
        _
      %p197 = scmp.lt.s32.totalorder %s14, 2
      // Predicated region
      $region25: #{convlstm_forward.3} parent=5 // pred_check
        %p198 = pneg %p197
      $region26: #{convlstm_forward.3} parent=5 // pred_check_branch
        %200 = sbr.rel (%p198) target = $region28
      $region27: #{convlstm_forward.3} parent=5 // pred_region
        // Predicated region
        $region29: #{convlstm_forward.3} parent=27 // pred_check
          %p201 = pneg %p34
        $region30: #{convlstm_forward.3} parent=27 // pred_check_branch
          %203 = sbr.rel (%p201) target = $region32
        $region31: #{convlstm_forward.3} parent=27 // pred_region
          %s204 = smul.u32 32, %s14
          %p205 = scmp.lt.s32.totalorder %s204, 63
          %s206 = scalar_select %p205, %s204, 63
          %s207 = smul.addr %s206, 4
          %s208 = scalar_lea.vmem %s0, %s207
          %s209 = smul.u32 32, %s14
        $region32: #{convlstm_forward.3} parent=27 // pred_fallthru
          _
      $region28: #{convlstm_forward.3} parent=5 // pred_fallthru
        _
      %p210 = scmp.le.s32.totalorder 1, %s14
      %p211 = scmp.lt.s32.totalorder %s14, 3
      %p212 = pnand %p210, %p211
      %p213 = pneg %p212
      // Predicated region
      $region33: #{convlstm_forward.3} parent=5 // pred_check
        _
      $region34: #{convlstm_forward.3} parent=5 // pred_check_branch
        %215 = sbr.rel (%p212) target = $region36
      $region35: #{convlstm_forward.3} parent=5 // pred_region
        %s216 = ssub.s32 %s14, 1
        // Predicated region
        $region37: #{convlstm_forward.3} parent=35 // pred_check
          %p217 = pneg %p61
        $region38: #{convlstm_forward.3} parent=35 // pred_check_branch
          %219 = sbr.rel (%p217) target = $region40
        $region39: #{convlstm_forward.3} parent=35 // pred_region
          %220 = dma.done [#allocation3], 320
        $region40: #{convlstm_forward.3} parent=35 // pred_fallthru
          _
        // Predicated region
        $region41: #{convlstm_forward.3} parent=35 // pred_check
          %p221 = pneg %p82
        $region42: #{convlstm_forward.3} parent=35 // pred_check_branch
          %223 = sbr.rel (%p221) target = $region44
        $region43: #{convlstm_forward.3} parent=35 // pred_region
          %224 = dma.done [#allocation5], 16
        $region44: #{convlstm_forward.3} parent=35 // pred_fallthru
          _
        %s225 = smul.u32 32, %s19
        %p226 = scmp.lt.s32.totalorder %s225, 63
        %s227 = scalar_select %p226, %s225, 63
        %s228 = smul.addr %s227, 4
        %s229 = scalar_lea.vmem %s0, %s228
        %p230 = pneg %p40
        %p231 = pneg %p37
        %p232 = pneg %p61
        %p233 = pneg %p58
        %p234 = pneg %p82
        %p235 = pneg %p79
        %p236 = pneg %p103
        %p237 = pneg %p100
        %p238 = pneg %p129
        %p239 = pneg %p126
        %s240 = smul.u32 32, %s19
        %p241 = scmp.lt.s32.totalorder %s240, 63
        %s242 = scalar_select %p241, %s240, 63
        %s243 = smul.addr %s242, 4
        %s244 = scalar_lea.vmem %s4, %s243
        %p245 = pneg %p155
        %p246 = pneg %p152
        %s247 = smul.u32 32, %s19
        %p248 = scmp.lt.s32.totalorder %s247, 63
        %s249 = scalar_select %p248, %s247, 63
        %s250 = smul.addr %s249, 8
        %s251 = scalar_lea.vmem %s5, %s250
        %s252 = smul.u32 32, %s19
        %p253 = scmp.lt.s32.totalorder %s252, 63
        %s254 = scalar_select %p253, %s252, 63
        %s255 = smul.addr %s254, 4
        %s256 = scalar_lea.vmem %s0, %s255
        %s257 = smul.u32 32, %s19
        %s258 = smul.u32 32, %s19
        %p259 = scmp.lt.s32.totalorder %s258, 63
        %s260 = scalar_select %p259, %s258, 63
        %s261 = smul.addr %s260, 4
        %s262 = scalar_lea.vmem %s4, %s261
        %s263 = smul.u32 32, %s19
        %s264 = smul.u32 32, %s19
        %p265 = scmp.lt.s32.totalorder %s264, 63
        %s266 = scalar_select %p265, %s264, 63
        %s267 = smul.addr %s266, 8
        %s268 = scalar_lea.vmem %s5, %s267
        %s269 = smul.u32 32, %s19
        %v271 = vld [vmem:[%s256] sm:$0xf]
        %v272 = vld [vmem:[%s256 + $0x4] sm:$0xf]
        %v273 = vld [vmem:[%s256 + $0x8] sm:$0xf]
        %v274 = vld [vmem:[%s256 + $0xc] sm:$0xf]
        %v275 = vld [vmem:[%s256 + $0x10] sm:$0xf]
        %v276 = vld [vmem:[%s256 + $0x14] sm:$0xf]
        %v277 = vld [vmem:[%s256 + $0x18] sm:$0xf]
        %v278 = vld [vmem:[%s256 + $0x1c] sm:$0xf]
        %v279 = vld [vmem:[%s256 + $0x20] sm:$0xf]
        %v280 = vld [vmem:[%s256 + $0x24] sm:$0xf]
        %v281 = vld [vmem:[%s256 + $0x28] sm:$0xf]
        %v282 = vld [vmem:[%s256 + $0x2c] sm:$0xf]
        %v283 = vld [vmem:[%s256 + $0x30] sm:$0xf]
        %v284 = vld [vmem:[%s256 + $0x34] sm:$0xf]
        %v285 = vld [vmem:[%s256 + $0x38] sm:$0xf]
        %v286 = vld [vmem:[%s256 + $0x3c] sm:$0xf]
        %v287 = vld [vmem:[%s256 + $0x40] sm:$0xf]
        %v288 = vld [vmem:[%s256 + $0x44] sm:$0xf]
        %v289 = vld [vmem:[%s256 + $0x48] sm:$0xf]
        %v290 = vld [vmem:[%s256 + $0x4c] sm:$0xf]
        %v291 = vld [vmem:[%s256 + $0x50] sm:$0xf]
        %v292 = vld [vmem:[%s256 + $0x54] sm:$0xf]
        %v293 = vld [vmem:[%s256 + $0x58] sm:$0xf]
        %v294 = vld [vmem:[%s256 + $0x5c] sm:$0xf]
        %v295 = vld [vmem:[%s256 + $0x60] sm:$0xf]
        %v296 = vld [vmem:[%s256 + $0x64] sm:$0xf]
        %v297 = vld [vmem:[%s256 + $0x68] sm:$0xf]
        %v298 = vld [vmem:[%s256 + $0x6c] sm:$0xf]
        %v299 = vld [vmem:[%s256 + $0x70] sm:$0xf]
        %v300 = vld [vmem:[%s256 + $0x74] sm:$0xf]
        %v301 = vld [vmem:[%s256 + $0x78] sm:$0xf]
        %v302 = vld [vmem:[%s256 + $0x7c] sm:$0xf]
        %v303 = vld [vmem:[#allocation2] sm:$0xf]
        %v304 = vld [vmem:[#allocation2 + $0x4] sm:$0xf]
        %v305 = vld [vmem:[#allocation2 + $0x8] sm:$0xf]
        %v306 = vld [vmem:[#allocation2 + $0xc] sm:$0xf]
        %v307 = vld [vmem:[#allocation2 + $0x10] sm:$0x3]
        %v308 = vld [vmem:[#allocation4] sm:$0x1]
        %v310 = vlaneseq
        %v311 = vshrl.u32 %v310, 7
        %v312 = vsub.s32 0, %v311
        %v313 = vrot.slane %v308, %v312
        %v347 = vunpack.c.l.b16 %v271
        %v348 = vunpack.c.l.b16 %v272
        %v349 = vunpack.c.l.b16 %v273
        %v350 = vunpack.c.l.b16 %v274
        %v351 = vunpack.c.l.b16 %v275
        %v352 = vunpack.c.l.b16 %v276
        %v353 = vunpack.c.l.b16 %v277
        %v354 = vunpack.c.l.b16 %v278
        %v355 = vunpack.c.l.b16 %v279
        %v356 = vunpack.c.l.b16 %v280
        %v357 = vunpack.c.l.b16 %v281
        %v358 = vunpack.c.l.b16 %v282
        %v359 = vunpack.c.l.b16 %v283
        %v360 = vunpack.c.l.b16 %v284
        %v361 = vunpack.c.l.b16 %v285
        %v362 = vunpack.c.l.b16 %v286
        %v363 = vunpack.c.l.b16 %v287
        %v364 = vunpack.c.l.b16 %v288
        %v365 = vunpack.c.l.b16 %v289
        %v366 = vunpack.c.l.b16 %v290
        %v367 = vunpack.c.l.b16 %v291
        %v368 = vunpack.c.l.b16 %v292
        %v369 = vunpack.c.l.b16 %v293
        %v370 = vunpack.c.l.b16 %v294
        %v371 = vunpack.c.l.b16 %v295
        %v372 = vunpack.c.l.b16 %v296
        %v373 = vunpack.c.l.b16 %v297
        %v374 = vunpack.c.l.b16 %v298
        %v375 = vunpack.c.l.b16 %v299
        %v376 = vunpack.c.l.b16 %v300
        %v377 = vunpack.c.l.b16 %v301
        %v378 = vunpack.c.l.b16 %v302
        %v379 = vpack.c.b16 %v348, %v347
        %v380 = vpack.c.b16 %v350, %v349
        %v381 = vpack.c.b16 %v352, %v351
        %v382 = vpack.c.b16 %v354, %v353
        %v383 = vpack.c.b16 %v356, %v355
        %v384 = vpack.c.b16 %v358, %v357
        %v385 = vpack.c.b16 %v360, %v359
        %v386 = vpack.c.b16 %v362, %v361
        %v387 = vpack.c.b16 %v364, %v363
        %v388 = vpack.c.b16 %v366, %v365
        %v389 = vpack.c.b16 %v368, %v367
        %v390 = vpack.c.b16 %v370, %v369
        %v391 = vpack.c.b16 %v372, %v371
        %v392 = vpack.c.b16 %v374, %v373
        %v393 = vpack.c.b16 %v376, %v375
        %v394 = vpack.c.b16 %v378, %v377
        %v400 = vunpack.c.l.b16 %v303
        %v401 = vunpack.c.l.b16 %v304
        %v402 = vunpack.c.l.b16 %v305
        %v403 = vunpack.c.l.b16 %v306
        %v404 = vunpack.c.l.b16 %v307
        %v405 = vpack.c.b16 %v401, %v400
        %v406 = vpack.c.b16 %v403, %v402
        %v407 = vpack.c.b16 %v404, %v404
        %vm410 = vcmask 293888
        %v412 = vsel %vm410, %v379, 0
        %v415 = vsel %vm410, %v380, 0
        %v418 = vsel %vm410, %v381, 0
        %v421 = vsel %vm410, %v382, 0
        %v424 = vsel %vm410, %v383, 0
        %v427 = vsel %vm410, %v384, 0
        %v430 = vsel %vm410, %v385, 0
        %v433 = vsel %vm410, %v386, 0
        %v436 = vsel %vm410, %v387, 0
        %v439 = vsel %vm410, %v388, 0
        %v442 = vsel %vm410, %v389, 0
        %v445 = vsel %vm410, %v390, 0
        %v448 = vsel %vm410, %v391, 0
        %v451 = vsel %vm410, %v392, 0
        %v454 = vsel %vm410, %v393, 0
        %v457 = vsel %vm410, %v394, 0
        %vm459 = vcmask 1041408
        %v461 = vsel %vm459, %v407, 0
        %463 = vmatprep.subr.bf16.mxu0 0
        %464 = vmatpush1.bf16.msra.mxu0 %v405
        %465 = vmatprep.subr.bf16.mxu0 0
        %466 = vmatpush1.bf16.msra.mxu0 %v406
        %467 = vmatprep.subr.bf16.mxu0 0
        %468 = vmatpush1.bf16.msra.mxu0 %v461
        %469 = vmatprep.subr.bf16.mxu0 0
        %470 = vmatpush1.bf16.msra.mxu0 0
        %471 = vmatprep.subr.bf16.mxu0 0
        %472 = vmatpush1.bf16.msra.mxu0 0
        %473 = vmatprep.subr.bf16.mxu0 0
        %474 = vmatpush1.bf16.msra.mxu0 0
        %475 = vmatprep.subr.bf16.mxu0 0
        %476 = vmatpush1.bf16.msra.mxu0 0
        %477 = vmatprep.subr.bf16.mxu0 0
        %478 = vmatpush1.bf16.msra.mxu0 0
        %479 = vmatprep.subr.bf16.mxu0 0
        %480 = vmatpush1.bf16.msra.mxu0 0
        %481 = vmatprep.subr.bf16.mxu0 0
        %482 = vmatpush1.bf16.msra.mxu0 0
        %483 = vmatprep.subr.bf16.mxu0 0
        %484 = vmatpush1.bf16.msra.mxu0 0
        %485 = vmatprep.subr.bf16.mxu0 0
        %486 = vmatpush1.bf16.msra.mxu0 0
        %487 = vmatprep.subr.bf16.mxu0 0
        %488 = vmatpush1.bf16.msra.mxu0 0
        %489 = vmatprep.subr.bf16.mxu0 0
        %490 = vmatpush1.bf16.msra.mxu0 0
        %491 = vmatprep.subr.bf16.mxu0 0
        %492 = vmatpush1.bf16.msra.mxu0 0
        %493 = vmatprep.subr.bf16.mxu0 0
        %494 = vmatpush1.bf16.msra.mxu0 0
        %495 = vmatprep.mubr.bf16.mxu0 0
        %496 = vmatmul.mubr.bf16.gmra.mrb[0].mxu0 %v412
        %v497 = vpop.f32.mrb[0].mxu0
        %v498 = vadd.f32 %v313, %v497
        %v499 = vpop.f32.mrb[0].mxu0
        %v500 = vpop.f32.mrb[0].mxu0
        %v501 = vadd.f32 %v313, %v500
        %v502 = vpop.f32.mrb[0].mxu0
        %503 = vmatprep.mubr.bf16.mxu0 0
        %504 = vmatmul.mubr.bf16.gmra.mrb[0].mxu0 %v415
        %v505 = vpop.f32.mrb[0].mxu0
        %v506 = vadd.f32 %v313, %v505
        %v507 = vpop.f32.mrb[0].mxu0
        %v508 = vpop.f32.mrb[0].mxu0
        %v509 = vadd.f32 %v313, %v508
        %v510 = vpop.f32.mrb[0].mxu0
        %511 = vmatprep.mubr.bf16.mxu0 0
        %512 = vmatmul.mubr.bf16.gmra.mrb[0].mxu0 %v418
        %v513 = vpop.f32.mrb[0].mxu0
        %v514 = vadd.f32 %v313, %v513
        %v515 = vpop.f32.mrb[0].mxu0
        %v516 = vpop.f32.mrb[0].mxu0
        %v517 = vadd.f32 %v313, %v516
        %v518 = vpop.f32.mrb[0].mxu0
        %519 = vmatprep.mubr.bf16.mxu0 0
        %520 = vmatmul.mubr.bf16.gmra.mrb[0].mxu0 %v421
        %v521 = vpop.f32.mrb[0].mxu0
        %v522 = vadd.f32 %v313, %v521
        %v523 = vpop.f32.mrb[0].mxu0
        %v524 = vpop.f32.mrb[0].mxu0
        %v525 = vadd.f32 %v313, %v524
        %v526 = vpop.f32.mrb[0].mxu0
        %527 = vmatprep.mubr.bf16.mxu0 0
        %528 = vmatmul.mubr.bf16.gmra.mrb[0].mxu0 %v424
        %v529 = vpop.f32.mrb[0].mxu0
        %v530 = vadd.f32 %v313, %v529
        %v531 = vpop.f32.mrb[0].mxu0
        %v532 = vpop.f32.mrb[0].mxu0
        %v533 = vadd.f32 %v313, %v532
        %v534 = vpop.f32.mrb[0].mxu0
        %535 = vmatprep.mubr.bf16.mxu0 0
        %536 = vmatmul.mubr.bf16.gmra.mrb[0].mxu0 %v427
        %v537 = vpop.f32.mrb[0].mxu0
        %v538 = vadd.f32 %v313, %v537
        %v539 = vpop.f32.mrb[0].mxu0
        %v540 = vpop.f32.mrb[0].mxu0
        %v541 = vadd.f32 %v313, %v540
        %v542 = vpop.f32.mrb[0].mxu0
        %543 = vmatprep.mubr.bf16.mxu0 0
        %544 = vmatmul.mubr.bf16.gmra.mrb[0].mxu0 %v430
        %v545 = vpop.f32.mrb[0].mxu0
        %v546 = vadd.f32 %v313, %v545
        %v547 = vpop.f32.mrb[0].mxu0
        %v548 = vpop.f32.mrb[0].mxu0
        %v549 = vadd.f32 %v313, %v548
        %v550 = vpop.f32.mrb[0].mxu0
        %551 = vmatprep.mubr.bf16.mxu0 0
        %552 = vmatmul.mubr.bf16.gmra.mrb[0].mxu0 %v433
        %v553 = vpop.f32.mrb[0].mxu0
        %v554 = vadd.f32 %v313, %v553
        %v555 = vpop.f32.mrb[0].mxu0
        %v556 = vpop.f32.mrb[0].mxu0
        %v557 = vadd.f32 %v313, %v556
        %v558 = vpop.f32.mrb[0].mxu0
        %559 = vmatprep.mubr.bf16.mxu0 0
        %560 = vmatmul.mubr.bf16.gmra.mrb[0].mxu0 %v436
        %v561 = vpop.f32.mrb[0].mxu0
        %v562 = vadd.f32 %v313, %v561
        %v563 = vpop.f32.mrb[0].mxu0
        %v564 = vpop.f32.mrb[0].mxu0
        %v565 = vadd.f32 %v313, %v564
        %v566 = vpop.f32.mrb[0].mxu0
        %567 = vmatprep.mubr.bf16.mxu0 0
        %568 = vmatmul.mubr.bf16.gmra.mrb[0].mxu0 %v439
        %v569 = vpop.f32.mrb[0].mxu0
        %v570 = vadd.f32 %v313, %v569
        %v571 = vpop.f32.mrb[0].mxu0
        %v572 = vpop.f32.mrb[0].mxu0
        %v573 = vadd.f32 %v313, %v572
        %v574 = vpop.f32.mrb[0].mxu0
        %575 = vmatprep.mubr.bf16.mxu0 0
        %576 = vmatmul.mubr.bf16.gmra.mrb[0].mxu0 %v442
        %v577 = vpop.f32.mrb[0].mxu0
        %v578 = vadd.f32 %v313, %v577
        %v579 = vpop.f32.mrb[0].mxu0
        %v580 = vpop.f32.mrb[0].mxu0
        %v581 = vadd.f32 %v313, %v580
        %v582 = vpop.f32.mrb[0].mxu0
        %583 = vmatprep.mubr.bf16.mxu0 0
        %584 = vmatmul.mubr.bf16.gmra.mrb[0].mxu0 %v445
        %v585 = vpop.f32.mrb[0].mxu0
        %v586 = vadd.f32 %v313, %v585
        %v587 = vpop.f32.mrb[0].mxu0
        %v588 = vpop.f32.mrb[0].mxu0
        %v589 = vadd.f32 %v313, %v588
        %v590 = vpop.f32.mrb[0].mxu0
        %591 = vmatprep.mubr.bf16.mxu0 0
        %592 = vmatmul.mubr.bf16.gmra.mrb[0].mxu0 %v448
        %v593 = vpop.f32.mrb[0].mxu0
        %v594 = vadd.f32 %v313, %v593
        %v595 = vpop.f32.mrb[0].mxu0
        %v596 = vpop.f32.mrb[0].mxu0
        %v597 = vadd.f32 %v313, %v596
        %v598 = vpop.f32.mrb[0].mxu0
        %599 = vmatprep.mubr.bf16.mxu0 0
        %600 = vmatmul.mubr.bf16.gmra.mrb[0].mxu0 %v451
        %v601 = vpop.f32.mrb[0].mxu0
        %v602 = vadd.f32 %v313, %v601
        %v603 = vpop.f32.mrb[0].mxu0
        %v604 = vpop.f32.mrb[0].mxu0
        %v605 = vadd.f32 %v313, %v604
        %v606 = vpop.f32.mrb[0].mxu0
        %607 = vmatprep.mubr.bf16.mxu0 0
        %608 = vmatmul.mubr.bf16.gmra.mrb[0].mxu0 %v454
        %v609 = vpop.f32.mrb[0].mxu0
        %v610 = vadd.f32 %v313, %v609
        %v611 = vpop.f32.mrb[0].mxu0
        %v612 = vpop.f32.mrb[0].mxu0
        %v613 = vadd.f32 %v313, %v612
        %v614 = vpop.f32.mrb[0].mxu0
        %615 = vmatprep.mubr.bf16.mxu0 0
        %616 = vmatmul.mubr.bf16.gmra.mrb[0].mxu0 %v457
        %v617 = vpop.f32.mrb[0].mxu0
        %v618 = vadd.f32 %v313, %v617
        %v619 = vpop.f32.mrb[0].mxu0
        %v620 = vpop.f32.mrb[0].mxu0
        %v621 = vadd.f32 %v313, %v620
        %v622 = vpop.f32.mrb[0].mxu0
        %623 = vdwg.mxu0
        %v624 = vxor.u32 %v498, 2147483648
        %v625 = vxor.u32 %v501, 2147483648
        %v626 = vxor.u32 %v506, 2147483648
        %v627 = vxor.u32 %v509, 2147483648
        %v628 = vxor.u32 %v514, 2147483648
        %v629 = vxor.u32 %v517, 2147483648
        %v630 = vxor.u32 %v522, 2147483648
        %v631 = vxor.u32 %v525, 2147483648
        %v632 = vxor.u32 %v530, 2147483648
        %v633 = vxor.u32 %v533, 2147483648
        %v634 = vxor.u32 %v538, 2147483648
        %v635 = vxor.u32 %v541, 2147483648
        %v636 = vxor.u32 %v546, 2147483648
        %v637 = vxor.u32 %v549, 2147483648
        %v638 = vxor.u32 %v554, 2147483648
        %v639 = vxor.u32 %v557, 2147483648
        %v640 = vxor.u32 %v562, 2147483648
        %v641 = vxor.u32 %v565, 2147483648
        %v642 = vxor.u32 %v570, 2147483648
        %v643 = vxor.u32 %v573, 2147483648
        %v644 = vxor.u32 %v578, 2147483648
        %v645 = vxor.u32 %v581, 2147483648
        %v646 = vxor.u32 %v586, 2147483648
        %v647 = vxor.u32 %v589, 2147483648
        %v648 = vxor.u32 %v594, 2147483648
        %v649 = vxor.u32 %v597, 2147483648
        %v650 = vxor.u32 %v602, 2147483648
        %v651 = vxor.u32 %v605, 2147483648
        %v652 = vxor.u32 %v610, 2147483648
        %v653 = vxor.u32 %v613, 2147483648
        %v654 = vxor.u32 %v618, 2147483648
        %v655 = vxor.u32 %v621, 2147483648
        %v656 = vmul.f32 %v624, 1.442695
        %v657 = vpow.pop %v656
        %v658 = vmul.f32 %v625, 1.442695
        %v659 = vpow.pop %v658
        %v660 = vmul.f32 %v626, 1.442695
        %v661 = vpow.pop %v660
        %v662 = vmul.f32 %v627, 1.442695
        %v663 = vpow.pop %v662
        %v664 = vmul.f32 %v628, 1.442695
        %v665 = vpow.pop %v664
        %v666 = vmul.f32 %v629, 1.442695
        %v667 = vpow.pop %v666
        %v668 = vmul.f32 %v630, 1.442695
        %v669 = vpow.pop %v668
        %v670 = vmul.f32 %v631, 1.442695
        %v671 = vpow.pop %v670
        %v672 = vmul.f32 %v632, 1.442695
        %v673 = vpow.pop %v672
        %v674 = vmul.f32 %v633, 1.442695
        %v675 = vpow.pop %v674
        %v676 = vmul.f32 %v634, 1.442695
        %v677 = vpow.pop %v676
        %v678 = vmul.f32 %v635, 1.442695
        %v679 = vpow.pop %v678
        %v680 = vmul.f32 %v636, 1.442695
        %v681 = vpow.pop %v680
        %v682 = vmul.f32 %v637, 1.442695
        %v683 = vpow.pop %v682
        %v684 = vmul.f32 %v638, 1.442695
        %v685 = vpow.pop %v684
        %v686 = vmul.f32 %v639, 1.442695
        %v687 = vpow.pop %v686
        %v688 = vmul.f32 %v640, 1.442695
        %v689 = vpow.pop %v688
        %v690 = vmul.f32 %v641, 1.442695
        %v691 = vpow.pop %v690
        %v692 = vmul.f32 %v642, 1.442695
        %v693 = vpow.pop %v692
        %v694 = vmul.f32 %v643, 1.442695
        %v695 = vpow.pop %v694
        %v696 = vmul.f32 %v644, 1.442695
        %v697 = vpow.pop %v696
        %v698 = vmul.f32 %v645, 1.442695
        %v699 = vpow.pop %v698
        %v700 = vmul.f32 %v646, 1.442695
        %v701 = vpow.pop %v700
        %v702 = vmul.f32 %v647, 1.442695
        %v703 = vpow.pop %v702
        %v704 = vmul.f32 %v648, 1.442695
        %v705 = vpow.pop %v704
        %v706 = vmul.f32 %v649, 1.442695
        %v707 = vpow.pop %v706
        %v708 = vmul.f32 %v650, 1.442695
        %v709 = vpow.pop %v708
        %v710 = vmul.f32 %v651, 1.442695
        %v711 = vpow.pop %v710
        %v712 = vmul.f32 %v652, 1.442695
        %v713 = vpow.pop %v712
        %v714 = vmul.f32 %v653, 1.442695
        %v715 = vpow.pop %v714
        %v716 = vmul.f32 %v654, 1.442695
        %v717 = vpow.pop %v716
        %v718 = vmul.f32 %v655, 1.442695
        %v719 = vpow.pop %v718
        %v720 = vadd.f32 %v657, 1.0
        %v721 = vadd.f32 %v659, 1.0
        %v722 = vadd.f32 %v661, 1.0
        %v723 = vadd.f32 %v663, 1.0
        %v724 = vadd.f32 %v665, 1.0
        %v725 = vadd.f32 %v667, 1.0
        %v726 = vadd.f32 %v669, 1.0
        %v727 = vadd.f32 %v671, 1.0
        %v728 = vadd.f32 %v673, 1.0
        %v729 = vadd.f32 %v675, 1.0
        %v730 = vadd.f32 %v677, 1.0
        %v731 = vadd.f32 %v679, 1.0
        %v732 = vadd.f32 %v681, 1.0
        %v733 = vadd.f32 %v683, 1.0
        %v734 = vadd.f32 %v685, 1.0
        %v735 = vadd.f32 %v687, 1.0
        %v736 = vadd.f32 %v689, 1.0
        %v737 = vadd.f32 %v691, 1.0
        %v738 = vadd.f32 %v693, 1.0
        %v739 = vadd.f32 %v695, 1.0
        %v740 = vadd.f32 %v697, 1.0
        %v741 = vadd.f32 %v699, 1.0
        %v742 = vadd.f32 %v701, 1.0
        %v743 = vadd.f32 %v703, 1.0
        %v744 = vadd.f32 %v705, 1.0
        %v745 = vadd.f32 %v707, 1.0
        %v746 = vadd.f32 %v709, 1.0
        %v747 = vadd.f32 %v711, 1.0
        %v748 = vadd.f32 %v713, 1.0
        %v749 = vadd.f32 %v715, 1.0
        %v750 = vadd.f32 %v717, 1.0
        %v751 = vadd.f32 %v719, 1.0
        %v752 = vrcp.pop %v720
        %v753 = vmul.f32 1.0, %v752
        %v754 = vrcp.pop %v721
        %v755 = vmul.f32 1.0, %v754
        %v756 = vrcp.pop %v722
        %v757 = vmul.f32 1.0, %v756
        %v758 = vrcp.pop %v723
        %v759 = vmul.f32 1.0, %v758
        %v760 = vrcp.pop %v724
        %v761 = vmul.f32 1.0, %v760
        %v762 = vrcp.pop %v725
        %v763 = vmul.f32 1.0, %v762
        %v764 = vrcp.pop %v726
        %v765 = vmul.f32 1.0, %v764
        %v766 = vrcp.pop %v727
        %v767 = vmul.f32 1.0, %v766
        %v768 = vrcp.pop %v728
        %v769 = vmul.f32 1.0, %v768
        %v770 = vrcp.pop %v729
        %v771 = vmul.f32 1.0, %v770
        %v772 = vrcp.pop %v730
        %v773 = vmul.f32 1.0, %v772
        %v774 = vrcp.pop %v731
        %v775 = vmul.f32 1.0, %v774
        %v776 = vrcp.pop %v732
        %v777 = vmul.f32 1.0, %v776
        %v778 = vrcp.pop %v733
        %v779 = vmul.f32 1.0, %v778
        %v780 = vrcp.pop %v734
        %v781 = vmul.f32 1.0, %v780
        %v782 = vrcp.pop %v735
        %v783 = vmul.f32 1.0, %v782
        %v784 = vrcp.pop %v736
        %v785 = vmul.f32 1.0, %v784
        %v786 = vrcp.pop %v737
        %v787 = vmul.f32 1.0, %v786
        %v788 = vrcp.pop %v738
        %v789 = vmul.f32 1.0, %v788
        %v790 = vrcp.pop %v739
        %v791 = vmul.f32 1.0, %v790
        %v792 = vrcp.pop %v740
        %v793 = vmul.f32 1.0, %v792
        %v794 = vrcp.pop %v741
        %v795 = vmul.f32 1.0, %v794
        %v796 = vrcp.pop %v742
        %v797 = vmul.f32 1.0, %v796
        %v798 = vrcp.pop %v743
        %v799 = vmul.f32 1.0, %v798
        %v800 = vrcp.pop %v744
        %v801 = vmul.f32 1.0, %v800
        %v802 = vrcp.pop %v745
        %v803 = vmul.f32 1.0, %v802
        %v804 = vrcp.pop %v746
        %v805 = vmul.f32 1.0, %v804
        %v806 = vrcp.pop %v747
        %v807 = vmul.f32 1.0, %v806
        %v808 = vrcp.pop %v748
        %v809 = vmul.f32 1.0, %v808
        %v810 = vrcp.pop %v749
        %v811 = vmul.f32 1.0, %v810
        %v812 = vrcp.pop %v750
        %v813 = vmul.f32 1.0, %v812
        %v814 = vrcp.pop %v751
        %v815 = vmul.f32 1.0, %v814
        %v816 = vtanh.pop %v498
        %v817 = vtanh.pop %v501
        %v818 = vtanh.pop %v506
        %v819 = vtanh.pop %v509
        %v820 = vtanh.pop %v514
        %v821 = vtanh.pop %v517
        %v822 = vtanh.pop %v522
        %v823 = vtanh.pop %v525
        %v824 = vtanh.pop %v530
        %v825 = vtanh.pop %v533
        %v826 = vtanh.pop %v538
        %v827 = vtanh.pop %v541
        %v828 = vtanh.pop %v546
        %v829 = vtanh.pop %v549
        %v830 = vtanh.pop %v554
        %v831 = vtanh.pop %v557
        %v832 = vtanh.pop %v562
        %v833 = vtanh.pop %v565
        %v834 = vtanh.pop %v570
        %v835 = vtanh.pop %v573
        %v836 = vtanh.pop %v578
        %v837 = vtanh.pop %v581
        %v838 = vtanh.pop %v586
        %v839 = vtanh.pop %v589
        %v840 = vtanh.pop %v594
        %v841 = vtanh.pop %v597
        %v842 = vtanh.pop %v602
        %v843 = vtanh.pop %v605
        %v844 = vtanh.pop %v610
        %v845 = vtanh.pop %v613
        %v846 = vtanh.pop %v618
        %v847 = vtanh.pop %v621
        %880 = vrot.lane.b32.xlu0 %v816, 64
        %v881 = vpop.permute.xlu0 %880
        %882 = vrot.lane.b32.xlu0 %v817, 64
        %v883 = vpop.permute.xlu0 %882
        %884 = vrot.lane.b32.xlu0 %v818, 64
        %v885 = vpop.permute.xlu0 %884
        %886 = vrot.lane.b32.xlu0 %v819, 64
        %v887 = vpop.permute.xlu0 %886
        %888 = vrot.lane.b32.xlu0 %v820, 64
        %v889 = vpop.permute.xlu0 %888
        %890 = vrot.lane.b32.xlu0 %v821, 64
        %v891 = vpop.permute.xlu0 %890
        %892 = vrot.lane.b32.xlu0 %v822, 64
        %v893 = vpop.permute.xlu0 %892
        %894 = vrot.lane.b32.xlu0 %v823, 64
        %v895 = vpop.permute.xlu0 %894
        %896 = vrot.lane.b32.xlu0 %v824, 64
        %v897 = vpop.permute.xlu0 %896
        %898 = vrot.lane.b32.xlu0 %v825, 64
        %v899 = vpop.permute.xlu0 %898
        %900 = vrot.lane.b32.xlu0 %v826, 64
        %v901 = vpop.permute.xlu0 %900
        %902 = vrot.lane.b32.xlu0 %v827, 64
        %v903 = vpop.permute.xlu0 %902
        %904 = vrot.lane.b32.xlu0 %v828, 64
        %v905 = vpop.permute.xlu0 %904
        %906 = vrot.lane.b32.xlu0 %v829, 64
        %v907 = vpop.permute.xlu0 %906
        %908 = vrot.lane.b32.xlu0 %v830, 64
        %v909 = vpop.permute.xlu0 %908
        %910 = vrot.lane.b32.xlu0 %v831, 64
        %v911 = vpop.permute.xlu0 %910
        %912 = vrot.lane.b32.xlu0 %v832, 64
        %v913 = vpop.permute.xlu0 %912
        %914 = vrot.lane.b32.xlu0 %v833, 64
        %v915 = vpop.permute.xlu0 %914
        %916 = vrot.lane.b32.xlu0 %v834, 64
        %v917 = vpop.permute.xlu0 %916
        %918 = vrot.lane.b32.xlu0 %v835, 64
        %v919 = vpop.permute.xlu0 %918
        %920 = vrot.lane.b32.xlu0 %v836, 64
        %v921 = vpop.permute.xlu0 %920
        %922 = vrot.lane.b32.xlu0 %v837, 64
        %v923 = vpop.permute.xlu0 %922
        %924 = vrot.lane.b32.xlu0 %v838, 64
        %v925 = vpop.permute.xlu0 %924
        %926 = vrot.lane.b32.xlu0 %v839, 64
        %v927 = vpop.permute.xlu0 %926
        %928 = vrot.lane.b32.xlu0 %v840, 64
        %v929 = vpop.permute.xlu0 %928
        %930 = vrot.lane.b32.xlu0 %v841, 64
        %v931 = vpop.permute.xlu0 %930
        %932 = vrot.lane.b32.xlu0 %v842, 64
        %v933 = vpop.permute.xlu0 %932
        %934 = vrot.lane.b32.xlu0 %v843, 64
        %v935 = vpop.permute.xlu0 %934
        %936 = vrot.lane.b32.xlu0 %v844, 64
        %v937 = vpop.permute.xlu0 %936
        %938 = vrot.lane.b32.xlu0 %v845, 64
        %v939 = vpop.permute.xlu0 %938
        %940 = vrot.lane.b32.xlu0 %v846, 64
        %v941 = vpop.permute.xlu0 %940
        %942 = vrot.lane.b32.xlu0 %v847, 64
        %v943 = vpop.permute.xlu0 %942
        %v976 = vmul.f32 %v753, %v881
        %v977 = vmul.f32 %v755, %v883
        %v978 = vmul.f32 %v757, %v885
        %v979 = vmul.f32 %v759, %v887
        %v980 = vmul.f32 %v761, %v889
        %v981 = vmul.f32 %v763, %v891
        %v982 = vmul.f32 %v765, %v893
        %v983 = vmul.f32 %v767, %v895
        %v984 = vmul.f32 %v769, %v897
        %v985 = vmul.f32 %v771, %v899
        %v986 = vmul.f32 %v773, %v901
        %v987 = vmul.f32 %v775, %v903
        %v988 = vmul.f32 %v777, %v905
        %v989 = vmul.f32 %v779, %v907
        %v990 = vmul.f32 %v781, %v909
        %v991 = vmul.f32 %v783, %v911
        %v992 = vmul.f32 %v785, %v913
        %v993 = vmul.f32 %v787, %v915
        %v994 = vmul.f32 %v789, %v917
        %v995 = vmul.f32 %v791, %v919
        %v996 = vmul.f32 %v793, %v921
        %v997 = vmul.f32 %v795, %v923
        %v998 = vmul.f32 %v797, %v925
        %v999 = vmul.f32 %v799, %v927
        %v1000 = vmul.f32 %v801, %v929
        %v1001 = vmul.f32 %v803, %v931
        %v1002 = vmul.f32 %v805, %v933
        %v1003 = vmul.f32 %v807, %v935
        %v1004 = vmul.f32 %v809, %v937
        %v1005 = vmul.f32 %v811, %v939
        %v1006 = vmul.f32 %v813, %v941
        %v1007 = vmul.f32 %v815, %v943
        %v1008 = vld [vmem:[%s3] sm:$0xff]
        %v1009 = vld [vmem:[%s3 + $0x8] sm:$0xff]
        %v1010 = vld [vmem:[%s3 + $0x10] sm:$0xff]
        %v1011 = vld [vmem:[%s3 + $0x18] sm:$0xff]
        %v1012 = vld [vmem:[%s3 + $0x20] sm:$0xff]
        %v1013 = vld [vmem:[%s3 + $0x28] sm:$0xff]
        %v1014 = vld [vmem:[%s3 + $0x30] sm:$0xff]
        %v1015 = vld [vmem:[%s3 + $0x38] sm:$0xff]
        %v1016 = vld [vmem:[%s3 + $0x40] sm:$0xff]
        %v1017 = vld [vmem:[%s3 + $0x48] sm:$0xff]
        %v1018 = vld [vmem:[%s3 + $0x50] sm:$0xff]
        %v1019 = vld [vmem:[%s3 + $0x58] sm:$0xff]
        %v1020 = vld [vmem:[%s3 + $0x60] sm:$0xff]
        %v1021 = vld [vmem:[%s3 + $0x68] sm:$0xff]
        %v1022 = vld [vmem:[%s3 + $0x70] sm:$0xff]
        %v1023 = vld [vmem:[%s3 + $0x78] sm:$0xff]
        %v1024 = vld [vmem:[%s3 + $0x80] sm:$0xff]
        %v1025 = vld [vmem:[%s3 + $0x88] sm:$0xff]
        %v1026 = vld [vmem:[%s3 + $0x90] sm:$0xff]
        %v1027 = vld [vmem:[%s3 + $0x98] sm:$0xff]
        %v1028 = vld [vmem:[%s3 + $0xa0] sm:$0xff]
        %v1029 = vld [vmem:[%s3 + $0xa8] sm:$0xff]
        %v1030 = vld [vmem:[%s3 + $0xb0] sm:$0xff]
        %v1031 = vld [vmem:[%s3 + $0xb8] sm:$0xff]
        %v1032 = vld [vmem:[%s3 + $0xc0] sm:$0xff]
        %v1033 = vld [vmem:[%s3 + $0xc8] sm:$0xff]
        %v1034 = vld [vmem:[%s3 + $0xd0] sm:$0xff]
        %v1035 = vld [vmem:[%s3 + $0xd8] sm:$0xff]
        %v1036 = vld [vmem:[%s3 + $0xe0] sm:$0xff]
        %v1037 = vld [vmem:[%s3 + $0xe8] sm:$0xff]
        %v1038 = vld [vmem:[%s3 + $0xf0] sm:$0xff]
        %v1039 = vld [vmem:[%s3 + $0xf8] sm:$0xff]
        %v1040 = vmul.f32 %v976, %v1008
        %v1041 = vmul.f32 %v977, %v1009
        %v1042 = vmul.f32 %v978, %v1010
        %v1043 = vmul.f32 %v979, %v1011
        %v1044 = vmul.f32 %v980, %v1012
        %v1045 = vmul.f32 %v981, %v1013
        %v1046 = vmul.f32 %v982, %v1014
        %v1047 = vmul.f32 %v983, %v1015
        %v1048 = vmul.f32 %v984, %v1016
        %v1049 = vmul.f32 %v985, %v1017
        %v1050 = vmul.f32 %v986, %v1018
        %v1051 = vmul.f32 %v987, %v1019
        %v1052 = vmul.f32 %v988, %v1020
        %v1053 = vmul.f32 %v989, %v1021
        %v1054 = vmul.f32 %v990, %v1022
        %v1055 = vmul.f32 %v991, %v1023
        %v1056 = vmul.f32 %v992, %v1024
        %v1057 = vmul.f32 %v993, %v1025
        %v1058 = vmul.f32 %v994, %v1026
        %v1059 = vmul.f32 %v995, %v1027
        %v1060 = vmul.f32 %v996, %v1028
        %v1061 = vmul.f32 %v997, %v1029
        %v1062 = vmul.f32 %v998, %v1030
        %v1063 = vmul.f32 %v999, %v1031
        %v1064 = vmul.f32 %v1000, %v1032
        %v1065 = vmul.f32 %v1001, %v1033
        %v1066 = vmul.f32 %v1002, %v1034
        %v1067 = vmul.f32 %v1003, %v1035
        %v1068 = vmul.f32 %v1004, %v1036
        %v1069 = vmul.f32 %v1005, %v1037
        %v1070 = vmul.f32 %v1006, %v1038
        %v1071 = vmul.f32 %v1007, %v1039
        %1104 = vrot.lane.b32.xlu0 %v1040, 96
        %v1105 = vpop.permute.xlu0 %1104
        %1106 = vrot.lane.b32.xlu0 %v1041, 96
        %v1107 = vpop.permute.xlu0 %1106
        %1108 = vrot.lane.b32.xlu0 %v1042, 96
        %v1109 = vpop.permute.xlu0 %1108
        %1110 = vrot.lane.b32.xlu0 %v1043, 96
        %v1111 = vpop.permute.xlu0 %1110
        %1112 = vrot.lane.b32.xlu0 %v1044, 96
        %v1113 = vpop.permute.xlu0 %1112
        %1114 = vrot.lane.b32.xlu0 %v1045, 96
        %v1115 = vpop.permute.xlu0 %1114
        %1116 = vrot.lane.b32.xlu0 %v1046, 96
        %v1117 = vpop.permute.xlu0 %1116
        %1118 = vrot.lane.b32.xlu0 %v1047, 96
        %v1119 = vpop.permute.xlu0 %1118
        %1120 = vrot.lane.b32.xlu0 %v1048, 96
        %v1121 = vpop.permute.xlu0 %1120
        %1122 = vrot.lane.b32.xlu0 %v1049, 96
        %v1123 = vpop.permute.xlu0 %1122
        %1124 = vrot.lane.b32.xlu0 %v1050, 96
        %v1125 = vpop.permute.xlu0 %1124
        %1126 = vrot.lane.b32.xlu0 %v1051, 96
        %v1127 = vpop.permute.xlu0 %1126
        %1128 = vrot.lane.b32.xlu0 %v1052, 96
        %v1129 = vpop.permute.xlu0 %1128
        %1130 = vrot.lane.b32.xlu0 %v1053, 96
        %v1131 = vpop.permute.xlu0 %1130
        %1132 = vrot.lane.b32.xlu0 %v1054, 96
        %v1133 = vpop.permute.xlu0 %1132
        %1134 = vrot.lane.b32.xlu0 %v1055, 96
        %v1135 = vpop.permute.xlu0 %1134
        %1136 = vrot.lane.b32.xlu0 %v1056, 96
        %v1137 = vpop.permute.xlu0 %1136
        %1138 = vrot.lane.b32.xlu0 %v1057, 96
        %v1139 = vpop.permute.xlu0 %1138
        %1140 = vrot.lane.b32.xlu0 %v1058, 96
        %v1141 = vpop.permute.xlu0 %1140
        %1142 = vrot.lane.b32.xlu0 %v1059, 96
        %v1143 = vpop.permute.xlu0 %1142
        %1144 = vrot.lane.b32.xlu0 %v1060, 96
        %v1145 = vpop.permute.xlu0 %1144
        %1146 = vrot.lane.b32.xlu0 %v1061, 96
        %v1147 = vpop.permute.xlu0 %1146
        %1148 = vrot.lane.b32.xlu0 %v1062, 96
        %v1149 = vpop.permute.xlu0 %1148
        %1150 = vrot.lane.b32.xlu0 %v1063, 96
        %v1151 = vpop.permute.xlu0 %1150
        %1152 = vrot.lane.b32.xlu0 %v1064, 96
        %v1153 = vpop.permute.xlu0 %1152
        %1154 = vrot.lane.b32.xlu0 %v1065, 96
        %v1155 = vpop.permute.xlu0 %1154
        %1156 = vrot.lane.b32.xlu0 %v1066, 96
        %v1157 = vpop.permute.xlu0 %1156
        %1158 = vrot.lane.b32.xlu0 %v1067, 96
        %v1159 = vpop.permute.xlu0 %1158
        %1160 = vrot.lane.b32.xlu0 %v1068, 96
        %v1161 = vpop.permute.xlu0 %1160
        %1162 = vrot.lane.b32.xlu0 %v1069, 96
        %v1163 = vpop.permute.xlu0 %1162
        %1164 = vrot.lane.b32.xlu0 %v1070, 96
        %v1165 = vpop.permute.xlu0 %1164
        %1166 = vrot.lane.b32.xlu0 %v1071, 96
        %v1167 = vpop.permute.xlu0 %1166
        %v1200 = vadd.f32 %v498, %v1105
        %v1201 = vadd.f32 %v501, %v1107
        %v1202 = vadd.f32 %v506, %v1109
        %v1203 = vadd.f32 %v509, %v1111
        %v1204 = vadd.f32 %v514, %v1113
        %v1205 = vadd.f32 %v517, %v1115
        %v1206 = vadd.f32 %v522, %v1117
        %v1207 = vadd.f32 %v525, %v1119
        %v1208 = vadd.f32 %v530, %v1121
        %v1209 = vadd.f32 %v533, %v1123
        %v1210 = vadd.f32 %v538, %v1125
        %v1211 = vadd.f32 %v541, %v1127
        %v1212 = vadd.f32 %v546, %v1129
        %v1213 = vadd.f32 %v549, %v1131
        %v1214 = vadd.f32 %v554, %v1133
        %v1215 = vadd.f32 %v557, %v1135
        %v1216 = vadd.f32 %v562, %v1137
        %v1217 = vadd.f32 %v565, %v1139
        %v1218 = vadd.f32 %v570, %v1141
        %v1219 = vadd.f32 %v573, %v1143
        %v1220 = vadd.f32 %v578, %v1145
        %v1221 = vadd.f32 %v581, %v1147
        %v1222 = vadd.f32 %v586, %v1149
        %v1223 = vadd.f32 %v589, %v1151
        %v1224 = vadd.f32 %v594, %v1153
        %v1225 = vadd.f32 %v597, %v1155
        %v1226 = vadd.f32 %v602, %v1157
        %v1227 = vadd.f32 %v605, %v1159
        %v1228 = vadd.f32 %v610, %v1161
        %v1229 = vadd.f32 %v613, %v1163
        %v1230 = vadd.f32 %v618, %v1165
        %v1231 = vadd.f32 %v621, %v1167
        %v1232 = vxor.u32 %v1200, 2147483648
        %v1233 = vxor.u32 %v1201, 2147483648
        %v1234 = vxor.u32 %v1202, 2147483648
        %v1235 = vxor.u32 %v1203, 2147483648
        %v1236 = vxor.u32 %v1204, 2147483648
        %v1237 = vxor.u32 %v1205, 2147483648
        %v1238 = vxor.u32 %v1206, 2147483648
        %v1239 = vxor.u32 %v1207, 2147483648
        %v1240 = vxor.u32 %v1208, 2147483648
        %v1241 = vxor.u32 %v1209, 2147483648
        %v1242 = vxor.u32 %v1210, 2147483648
        %v1243 = vxor.u32 %v1211, 2147483648
        %v1244 = vxor.u32 %v1212, 2147483648
        %v1245 = vxor.u32 %v1213, 2147483648
        %v1246 = vxor.u32 %v1214, 2147483648
        %v1247 = vxor.u32 %v1215, 2147483648
        %v1248 = vxor.u32 %v1216, 2147483648
        %v1249 = vxor.u32 %v1217, 2147483648
        %v1250 = vxor.u32 %v1218, 2147483648
        %v1251 = vxor.u32 %v1219, 2147483648
        %v1252 = vxor.u32 %v1220, 2147483648
        %v1253 = vxor.u32 %v1221, 2147483648
        %v1254 = vxor.u32 %v1222, 2147483648
        %v1255 = vxor.u32 %v1223, 2147483648
        %v1256 = vxor.u32 %v1224, 2147483648
        %v1257 = vxor.u32 %v1225, 2147483648
        %v1258 = vxor.u32 %v1226, 2147483648
        %v1259 = vxor.u32 %v1227, 2147483648
        %v1260 = vxor.u32 %v1228, 2147483648
        %v1261 = vxor.u32 %v1229, 2147483648
        %v1262 = vxor.u32 %v1230, 2147483648
        %v1263 = vxor.u32 %v1231, 2147483648
        %v1264 = vmul.f32 %v1232, 1.442695
        %v1265 = vpow.pop %v1264
        %v1266 = vmul.f32 %v1233, 1.442695
        %v1267 = vpow.pop %v1266
        %v1268 = vmul.f32 %v1234, 1.442695
        %v1269 = vpow.pop %v1268
        %v1270 = vmul.f32 %v1235, 1.442695
        %v1271 = vpow.pop %v1270
        %v1272 = vmul.f32 %v1236, 1.442695
        %v1273 = vpow.pop %v1272
        %v1274 = vmul.f32 %v1237, 1.442695
        %v1275 = vpow.pop %v1274
        %v1276 = vmul.f32 %v1238, 1.442695
        %v1277 = vpow.pop %v1276
        %v1278 = vmul.f32 %v1239, 1.442695
        %v1279 = vpow.pop %v1278
        %v1280 = vmul.f32 %v1240, 1.442695
        %v1281 = vpow.pop %v1280
        %v1282 = vmul.f32 %v1241, 1.442695
        %v1283 = vpow.pop %v1282
        %v1284 = vmul.f32 %v1242, 1.442695
        %v1285 = vpow.pop %v1284
        %v1286 = vmul.f32 %v1243, 1.442695
        %v1287 = vpow.pop %v1286
        %v1288 = vmul.f32 %v1244, 1.442695
        %v1289 = vpow.pop %v1288
        %v1290 = vmul.f32 %v1245, 1.442695
        %v1291 = vpow.pop %v1290
        %v1292 = vmul.f32 %v1246, 1.442695
        %v1293 = vpow.pop %v1292
        %v1294 = vmul.f32 %v1247, 1.442695
        %v1295 = vpow.pop %v1294
        %v1296 = vmul.f32 %v1248, 1.442695
        %v1297 = vpow.pop %v1296
        %v1298 = vmul.f32 %v1249, 1.442695
        %v1299 = vpow.pop %v1298
        %v1300 = vmul.f32 %v1250, 1.442695
        %v1301 = vpow.pop %v1300
        %v1302 = vmul.f32 %v1251, 1.442695
        %v1303 = vpow.pop %v1302
        %v1304 = vmul.f32 %v1252, 1.442695
        %v1305 = vpow.pop %v1304
        %v1306 = vmul.f32 %v1253, 1.442695
        %v1307 = vpow.pop %v1306
        %v1308 = vmul.f32 %v1254, 1.442695
        %v1309 = vpow.pop %v1308
        %v1310 = vmul.f32 %v1255, 1.442695
        %v1311 = vpow.pop %v1310
        %v1312 = vmul.f32 %v1256, 1.442695
        %v1313 = vpow.pop %v1312
        %v1314 = vmul.f32 %v1257, 1.442695
        %v1315 = vpow.pop %v1314
        %v1316 = vmul.f32 %v1258, 1.442695
        %v1317 = vpow.pop %v1316
        %v1318 = vmul.f32 %v1259, 1.442695
        %v1319 = vpow.pop %v1318
        %v1320 = vmul.f32 %v1260, 1.442695
        %v1321 = vpow.pop %v1320
        %v1322 = vmul.f32 %v1261, 1.442695
        %v1323 = vpow.pop %v1322
        %v1324 = vmul.f32 %v1262, 1.442695
        %v1325 = vpow.pop %v1324
        %v1326 = vmul.f32 %v1263, 1.442695
        %v1327 = vpow.pop %v1326
        %v1328 = vadd.f32 %v1265, 1.0
        %v1329 = vadd.f32 %v1267, 1.0
        %v1330 = vadd.f32 %v1269, 1.0
        %v1331 = vadd.f32 %v1271, 1.0
        %v1332 = vadd.f32 %v1273, 1.0
        %v1333 = vadd.f32 %v1275, 1.0
        %v1334 = vadd.f32 %v1277, 1.0
        %v1335 = vadd.f32 %v1279, 1.0
        %v1336 = vadd.f32 %v1281, 1.0
        %v1337 = vadd.f32 %v1283, 1.0
        %v1338 = vadd.f32 %v1285, 1.0
        %v1339 = vadd.f32 %v1287, 1.0
        %v1340 = vadd.f32 %v1289, 1.0
        %v1341 = vadd.f32 %v1291, 1.0
        %v1342 = vadd.f32 %v1293, 1.0
        %v1343 = vadd.f32 %v1295, 1.0
        %v1344 = vadd.f32 %v1297, 1.0
        %v1345 = vadd.f32 %v1299, 1.0
        %v1346 = vadd.f32 %v1301, 1.0
        %v1347 = vadd.f32 %v1303, 1.0
        %v1348 = vadd.f32 %v1305, 1.0
        %v1349 = vadd.f32 %v1307, 1.0
        %v1350 = vadd.f32 %v1309, 1.0
        %v1351 = vadd.f32 %v1311, 1.0
        %v1352 = vadd.f32 %v1313, 1.0
        %v1353 = vadd.f32 %v1315, 1.0
        %v1354 = vadd.f32 %v1317, 1.0
        %v1355 = vadd.f32 %v1319, 1.0
        %v1356 = vadd.f32 %v1321, 1.0
        %v1357 = vadd.f32 %v1323, 1.0
        %v1358 = vadd.f32 %v1325, 1.0
        %v1359 = vadd.f32 %v1327, 1.0
        %v1360 = vrcp.pop %v1328
        %v1361 = vmul.f32 1.0, %v1360
        %v1362 = vrcp.pop %v1329
        %v1363 = vmul.f32 1.0, %v1362
        %v1364 = vrcp.pop %v1330
        %v1365 = vmul.f32 1.0, %v1364
        %v1366 = vrcp.pop %v1331
        %v1367 = vmul.f32 1.0, %v1366
        %v1368 = vrcp.pop %v1332
        %v1369 = vmul.f32 1.0, %v1368
        %v1370 = vrcp.pop %v1333
        %v1371 = vmul.f32 1.0, %v1370
        %v1372 = vrcp.pop %v1334
        %v1373 = vmul.f32 1.0, %v1372
        %v1374 = vrcp.pop %v1335
        %v1375 = vmul.f32 1.0, %v1374
        %v1376 = vrcp.pop %v1336
        %v1377 = vmul.f32 1.0, %v1376
        %v1378 = vrcp.pop %v1337
        %v1379 = vmul.f32 1.0, %v1378
        %v1380 = vrcp.pop %v1338
        %v1381 = vmul.f32 1.0, %v1380
        %v1382 = vrcp.pop %v1339
        %v1383 = vmul.f32 1.0, %v1382
        %v1384 = vrcp.pop %v1340
        %v1385 = vmul.f32 1.0, %v1384
        %v1386 = vrcp.pop %v1341
        %v1387 = vmul.f32 1.0, %v1386
        %v1388 = vrcp.pop %v1342
        %v1389 = vmul.f32 1.0, %v1388
        %v1390 = vrcp.pop %v1343
        %v1391 = vmul.f32 1.0, %v1390
        %v1392 = vrcp.pop %v1344
        %v1393 = vmul.f32 1.0, %v1392
        %v1394 = vrcp.pop %v1345
        %v1395 = vmul.f32 1.0, %v1394
        %v1396 = vrcp.pop %v1346
        %v1397 = vmul.f32 1.0, %v1396
        %v1398 = vrcp.pop %v1347
        %v1399 = vmul.f32 1.0, %v1398
        %v1400 = vrcp.pop %v1348
        %v1401 = vmul.f32 1.0, %v1400
        %v1402 = vrcp.pop %v1349
        %v1403 = vmul.f32 1.0, %v1402
        %v1404 = vrcp.pop %v1350
        %v1405 = vmul.f32 1.0, %v1404
        %v1406 = vrcp.pop %v1351
        %v1407 = vmul.f32 1.0, %v1406
        %v1408 = vrcp.pop %v1352
        %v1409 = vmul.f32 1.0, %v1408
        %v1410 = vrcp.pop %v1353
        %v1411 = vmul.f32 1.0, %v1410
        %v1412 = vrcp.pop %v1354
        %v1413 = vmul.f32 1.0, %v1412
        %v1414 = vrcp.pop %v1355
        %v1415 = vmul.f32 1.0, %v1414
        %v1416 = vrcp.pop %v1356
        %v1417 = vmul.f32 1.0, %v1416
        %v1418 = vrcp.pop %v1357
        %v1419 = vmul.f32 1.0, %v1418
        %v1420 = vrcp.pop %v1358
        %v1421 = vmul.f32 1.0, %v1420
        %v1422 = vrcp.pop %v1359
        %v1423 = vmul.f32 1.0, %v1422
        %v1424 = vtanh.pop %v976
        %v1425 = vtanh.pop %v977
        %v1426 = vtanh.pop %v978
        %v1427 = vtanh.pop %v979
        %v1428 = vtanh.pop %v980
        %v1429 = vtanh.pop %v981
        %v1430 = vtanh.pop %v982
        %v1431 = vtanh.pop %v983
        %v1432 = vtanh.pop %v984
        %v1433 = vtanh.pop %v985
        %v1434 = vtanh.pop %v986
        %v1435 = vtanh.pop %v987
        %v1436 = vtanh.pop %v988
        %v1437 = vtanh.pop %v989
        %v1438 = vtanh.pop %v990
        %v1439 = vtanh.pop %v991
        %v1440 = vtanh.pop %v992
        %v1441 = vtanh.pop %v993
        %v1442 = vtanh.pop %v994
        %v1443 = vtanh.pop %v995
        %v1444 = vtanh.pop %v996
        %v1445 = vtanh.pop %v997
        %v1446 = vtanh.pop %v998
        %v1447 = vtanh.pop %v999
        %v1448 = vtanh.pop %v1000
        %v1449 = vtanh.pop %v1001
        %v1450 = vtanh.pop %v1002
        %v1451 = vtanh.pop %v1003
        %v1452 = vtanh.pop %v1004
        %v1453 = vtanh.pop %v1005
        %v1454 = vtanh.pop %v1006
        %v1455 = vtanh.pop %v1007
        %1488 = vrot.lane.b32.xlu0 %v1424, 96
        %v1489 = vpop.permute.xlu0 %1488
        %1490 = vrot.lane.b32.xlu0 %v1425, 96
        %v1491 = vpop.permute.xlu0 %1490
        %1492 = vrot.lane.b32.xlu0 %v1426, 96
        %v1493 = vpop.permute.xlu0 %1492
        %1494 = vrot.lane.b32.xlu0 %v1427, 96
        %v1495 = vpop.permute.xlu0 %1494
        %1496 = vrot.lane.b32.xlu0 %v1428, 96
        %v1497 = vpop.permute.xlu0 %1496
        %1498 = vrot.lane.b32.xlu0 %v1429, 96
        %v1499 = vpop.permute.xlu0 %1498
        %1500 = vrot.lane.b32.xlu0 %v1430, 96
        %v1501 = vpop.permute.xlu0 %1500
        %1502 = vrot.lane.b32.xlu0 %v1431, 96
        %v1503 = vpop.permute.xlu0 %1502
        %1504 = vrot.lane.b32.xlu0 %v1432, 96
        %v1505 = vpop.permute.xlu0 %1504
        %1506 = vrot.lane.b32.xlu0 %v1433, 96
        %v1507 = vpop.permute.xlu0 %1506
        %1508 = vrot.lane.b32.xlu0 %v1434, 96
        %v1509 = vpop.permute.xlu0 %1508
        %1510 = vrot.lane.b32.xlu0 %v1435, 96
        %v1511 = vpop.permute.xlu0 %1510
        %1512 = vrot.lane.b32.xlu0 %v1436, 96
        %v1513 = vpop.permute.xlu0 %1512
        %1514 = vrot.lane.b32.xlu0 %v1437, 96
        %v1515 = vpop.permute.xlu0 %1514
        %1516 = vrot.lane.b32.xlu0 %v1438, 96
        %v1517 = vpop.permute.xlu0 %1516
        %1518 = vrot.lane.b32.xlu0 %v1439, 96
        %v1519 = vpop.permute.xlu0 %1518
        %1520 = vrot.lane.b32.xlu0 %v1440, 96
        %v1521 = vpop.permute.xlu0 %1520
        %1522 = vrot.lane.b32.xlu0 %v1441, 96
        %v1523 = vpop.permute.xlu0 %1522
        %1524 = vrot.lane.b32.xlu0 %v1442, 96
        %v1525 = vpop.permute.xlu0 %1524
        %1526 = vrot.lane.b32.xlu0 %v1443, 96
        %v1527 = vpop.permute.xlu0 %1526
        %1528 = vrot.lane.b32.xlu0 %v1444, 96
        %v1529 = vpop.permute.xlu0 %1528
        %1530 = vrot.lane.b32.xlu0 %v1445, 96
        %v1531 = vpop.permute.xlu0 %1530
        %1532 = vrot.lane.b32.xlu0 %v1446, 96
        %v1533 = vpop.permute.xlu0 %1532
        %1534 = vrot.lane.b32.xlu0 %v1447, 96
        %v1535 = vpop.permute.xlu0 %1534
        %1536 = vrot.lane.b32.xlu0 %v1448, 96
        %v1537 = vpop.permute.xlu0 %1536
        %1538 = vrot.lane.b32.xlu0 %v1449, 96
        %v1539 = vpop.permute.xlu0 %1538
        %1540 = vrot.lane.b32.xlu0 %v1450, 96
        %v1541 = vpop.permute.xlu0 %1540
        %1542 = vrot.lane.b32.xlu0 %v1451, 96
        %v1543 = vpop.permute.xlu0 %1542
        %1544 = vrot.lane.b32.xlu0 %v1452, 96
        %v1545 = vpop.permute.xlu0 %1544
        %1546 = vrot.lane.b32.xlu0 %v1453, 96
        %v1547 = vpop.permute.xlu0 %1546
        %1548 = vrot.lane.b32.xlu0 %v1454, 96
        %v1549 = vpop.permute.xlu0 %1548
        %1550 = vrot.lane.b32.xlu0 %v1455, 96
        %v1551 = vpop.permute.xlu0 %1550
        %v1584 = vmul.f32 %v1361, %v1489
        %v1585 = vmul.f32 %v1363, %v1491
        %v1586 = vmul.f32 %v1365, %v1493
        %v1587 = vmul.f32 %v1367, %v1495
        %v1588 = vmul.f32 %v1369, %v1497
        %v1589 = vmul.f32 %v1371, %v1499
        %v1590 = vmul.f32 %v1373, %v1501
        %v1591 = vmul.f32 %v1375, %v1503
        %v1592 = vmul.f32 %v1377, %v1505
        %v1593 = vmul.f32 %v1379, %v1507
        %v1594 = vmul.f32 %v1381, %v1509
        %v1595 = vmul.f32 %v1383, %v1511
        %v1596 = vmul.f32 %v1385, %v1513
        %v1597 = vmul.f32 %v1387, %v1515
        %v1598 = vmul.f32 %v1389, %v1517
        %v1599 = vmul.f32 %v1391, %v1519
        %v1600 = vmul.f32 %v1393, %v1521
        %v1601 = vmul.f32 %v1395, %v1523
        %v1602 = vmul.f32 %v1397, %v1525
        %v1603 = vmul.f32 %v1399, %v1527
        %v1604 = vmul.f32 %v1401, %v1529
        %v1605 = vmul.f32 %v1403, %v1531
        %v1606 = vmul.f32 %v1405, %v1533
        %v1607 = vmul.f32 %v1407, %v1535
        %v1608 = vmul.f32 %v1409, %v1537
        %v1609 = vmul.f32 %v1411, %v1539
        %v1610 = vmul.f32 %v1413, %v1541
        %v1611 = vmul.f32 %v1415, %v1543
        %v1612 = vmul.f32 %v1417, %v1545
        %v1613 = vmul.f32 %v1419, %v1547
        %v1614 = vmul.f32 %v1421, %v1549
        %v1615 = vmul.f32 %v1423, %v1551
        %v1616 = vpack.c.bf16 %v1585, %v1584
        %v1617 = vpack.c.bf16 %v1587, %v1586
        %v1618 = vpack.c.bf16 %v1589, %v1588
        %v1619 = vpack.c.bf16 %v1591, %v1590
        %v1620 = vpack.c.bf16 %v1593, %v1592
        %v1621 = vpack.c.bf16 %v1595, %v1594
        %v1622 = vpack.c.bf16 %v1597, %v1596
        %v1623 = vpack.c.bf16 %v1599, %v1598
        %v1624 = vpack.c.bf16 %v1601, %v1600
        %v1625 = vpack.c.bf16 %v1603, %v1602
        %v1626 = vpack.c.bf16 %v1605, %v1604
        %v1627 = vpack.c.bf16 %v1607, %v1606
        %v1628 = vpack.c.bf16 %v1609, %v1608
        %v1629 = vpack.c.bf16 %v1611, %v1610
        %v1630 = vpack.c.bf16 %v1613, %v1612
        %v1631 = vpack.c.bf16 %v1615, %v1614
        %v1648 = vunpack.c.l.b16 %v1616
        %v1649 = vunpack.c.h.b16 %v1616
        %v1650 = vunpack.c.l.b16 %v1617
        %v1651 = vunpack.c.h.b16 %v1617
        %v1652 = vunpack.c.l.b16 %v1618
        %v1653 = vunpack.c.h.b16 %v1618
        %v1654 = vunpack.c.l.b16 %v1619
        %v1655 = vunpack.c.h.b16 %v1619
        %v1656 = vunpack.c.l.b16 %v1620
        %v1657 = vunpack.c.h.b16 %v1620
        %v1658 = vunpack.c.l.b16 %v1621
        %v1659 = vunpack.c.h.b16 %v1621
        %v1660 = vunpack.c.l.b16 %v1622
        %v1661 = vunpack.c.h.b16 %v1622
        %v1662 = vunpack.c.l.b16 %v1623
        %v1663 = vunpack.c.h.b16 %v1623
        %v1664 = vunpack.c.l.b16 %v1624
        %v1665 = vunpack.c.h.b16 %v1624
        %v1666 = vunpack.c.l.b16 %v1625
        %v1667 = vunpack.c.h.b16 %v1625
        %v1668 = vunpack.c.l.b16 %v1626
        %v1669 = vunpack.c.h.b16 %v1626
        %v1670 = vunpack.c.l.b16 %v1627
        %v1671 = vunpack.c.h.b16 %v1627
        %v1672 = vunpack.c.l.b16 %v1628
        %v1673 = vunpack.c.h.b16 %v1628
        %v1674 = vunpack.c.l.b16 %v1629
        %v1675 = vunpack.c.h.b16 %v1629
        %v1676 = vunpack.c.l.b16 %v1630
        %v1677 = vunpack.c.h.b16 %v1630
        %v1678 = vunpack.c.l.b16 %v1631
        %v1679 = vunpack.c.h.b16 %v1631
        %v1680 = vpack.c.b16 %v1648, %v1648
        %v1681 = vpack.c.b16 %v1649, %v1649
        %v1682 = vpack.c.b16 %v1650, %v1650
        %v1683 = vpack.c.b16 %v1651, %v1651
        %v1684 = vpack.c.b16 %v1652, %v1652
        %v1685 = vpack.c.b16 %v1653, %v1653
        %v1686 = vpack.c.b16 %v1654, %v1654
        %v1687 = vpack.c.b16 %v1655, %v1655
        %v1688 = vpack.c.b16 %v1656, %v1656
        %v1689 = vpack.c.b16 %v1657, %v1657
        %v1690 = vpack.c.b16 %v1658, %v1658
        %v1691 = vpack.c.b16 %v1659, %v1659
        %v1692 = vpack.c.b16 %v1660, %v1660
        %v1693 = vpack.c.b16 %v1661, %v1661
        %v1694 = vpack.c.b16 %v1662, %v1662
        %v1695 = vpack.c.b16 %v1663, %v1663
        %v1696 = vpack.c.b16 %v1664, %v1664
        %v1697 = vpack.c.b16 %v1665, %v1665
        %v1698 = vpack.c.b16 %v1666, %v1666
        %v1699 = vpack.c.b16 %v1667, %v1667
        %v1700 = vpack.c.b16 %v1668, %v1668
        %v1701 = vpack.c.b16 %v1669, %v1669
        %v1702 = vpack.c.b16 %v1670, %v1670
        %v1703 = vpack.c.b16 %v1671, %v1671
        %v1704 = vpack.c.b16 %v1672, %v1672
        %v1705 = vpack.c.b16 %v1673, %v1673
        %v1706 = vpack.c.b16 %v1674, %v1674
        %v1707 = vpack.c.b16 %v1675, %v1675
        %v1708 = vpack.c.b16 %v1676, %v1676
        %v1709 = vpack.c.b16 %v1677, %v1677
        %v1710 = vpack.c.b16 %v1678, %v1678
        %v1711 = vpack.c.b16 %v1679, %v1679
        %1712 = vrot.lane.b32.xlu0 %v1680, 32
        %v1713 = vpop.permute.xlu0 %1712
        %1714 = vrot.lane.b32.xlu0 %v1681, 32
        %v1715 = vpop.permute.xlu0 %1714
        %1716 = vrot.lane.b32.xlu0 %v1682, 32
        %v1717 = vpop.permute.xlu0 %1716
        %1718 = vrot.lane.b32.xlu0 %v1683, 32
        %v1719 = vpop.permute.xlu0 %1718
        %1720 = vrot.lane.b32.xlu0 %v1684, 32
        %v1721 = vpop.permute.xlu0 %1720
        %1722 = vrot.lane.b32.xlu0 %v1685, 32
        %v1723 = vpop.permute.xlu0 %1722
        %1724 = vrot.lane.b32.xlu0 %v1686, 32
        %v1725 = vpop.permute.xlu0 %1724
        %1726 = vrot.lane.b32.xlu0 %v1687, 32
        %v1727 = vpop.permute.xlu0 %1726
        %1728 = vrot.lane.b32.xlu0 %v1688, 32
        %v1729 = vpop.permute.xlu0 %1728
        %1730 = vrot.lane.b32.xlu0 %v1689, 32
        %v1731 = vpop.permute.xlu0 %1730
        %1732 = vrot.lane.b32.xlu0 %v1690, 32
        %v1733 = vpop.permute.xlu0 %1732
        %1734 = vrot.lane.b32.xlu0 %v1691, 32
        %v1735 = vpop.permute.xlu0 %1734
        %1736 = vrot.lane.b32.xlu0 %v1692, 32
        %v1737 = vpop.permute.xlu0 %1736
        %1738 = vrot.lane.b32.xlu0 %v1693, 32
        %v1739 = vpop.permute.xlu0 %1738
        %1740 = vrot.lane.b32.xlu0 %v1694, 32
        %v1741 = vpop.permute.xlu0 %1740
        %1742 = vrot.lane.b32.xlu0 %v1695, 32
        %v1743 = vpop.permute.xlu0 %1742
        %1744 = vrot.lane.b32.xlu0 %v1696, 32
        %v1745 = vpop.permute.xlu0 %1744
        %1746 = vrot.lane.b32.xlu0 %v1697, 32
        %v1747 = vpop.permute.xlu0 %1746
        %1748 = vrot.lane.b32.xlu0 %v1698, 32
        %v1749 = vpop.permute.xlu0 %1748
        %1750 = vrot.lane.b32.xlu0 %v1699, 32
        %v1751 = vpop.permute.xlu0 %1750
        %1752 = vrot.lane.b32.xlu0 %v1700, 32
        %v1753 = vpop.permute.xlu0 %1752
        %1754 = vrot.lane.b32.xlu0 %v1701, 32
        %v1755 = vpop.permute.xlu0 %1754
        %1756 = vrot.lane.b32.xlu0 %v1702, 32
        %v1757 = vpop.permute.xlu0 %1756
        %1758 = vrot.lane.b32.xlu0 %v1703, 32
        %v1759 = vpop.permute.xlu0 %1758
        %1760 = vrot.lane.b32.xlu0 %v1704, 32
        %v1761 = vpop.permute.xlu0 %1760
        %1762 = vrot.lane.b32.xlu0 %v1705, 32
        %v1763 = vpop.permute.xlu0 %1762
        %1764 = vrot.lane.b32.xlu0 %v1706, 32
        %v1765 = vpop.permute.xlu0 %1764
        %1766 = vrot.lane.b32.xlu0 %v1707, 32
        %v1767 = vpop.permute.xlu0 %1766
        %1768 = vrot.lane.b32.xlu0 %v1708, 32
        %v1769 = vpop.permute.xlu0 %1768
        %1770 = vrot.lane.b32.xlu0 %v1709, 32
        %v1771 = vpop.permute.xlu0 %1770
        %1772 = vrot.lane.b32.xlu0 %v1710, 32
        %v1773 = vpop.permute.xlu0 %1772
        %1774 = vrot.lane.b32.xlu0 %v1711, 32
        %v1775 = vpop.permute.xlu0 %1774
        %vm1808 = vcmask 257024
        %1809 = vst.msk [vmem:[%s262] sm:$0xf] %vm1808, %v1713
        %1810 = vst.msk [vmem:[%s262 + $0x4] sm:$0xf] %vm1808, %v1715
        %1811 = vst.msk [vmem:[%s262 + $0x8] sm:$0xf] %vm1808, %v1717
        %1812 = vst.msk [vmem:[%s262 + $0xc] sm:$0xf] %vm1808, %v1719
        %1813 = vst.msk [vmem:[%s262 + $0x10] sm:$0xf] %vm1808, %v1721
        %1814 = vst.msk [vmem:[%s262 + $0x14] sm:$0xf] %vm1808, %v1723
        %1815 = vst.msk [vmem:[%s262 + $0x18] sm:$0xf] %vm1808, %v1725
        %1816 = vst.msk [vmem:[%s262 + $0x1c] sm:$0xf] %vm1808, %v1727
        %1817 = vst.msk [vmem:[%s262 + $0x20] sm:$0xf] %vm1808, %v1729
        %1818 = vst.msk [vmem:[%s262 + $0x24] sm:$0xf] %vm1808, %v1731
        %1819 = vst.msk [vmem:[%s262 + $0x28] sm:$0xf] %vm1808, %v1733
        %1820 = vst.msk [vmem:[%s262 + $0x2c] sm:$0xf] %vm1808, %v1735
        %1821 = vst.msk [vmem:[%s262 + $0x30] sm:$0xf] %vm1808, %v1737
        %1822 = vst.msk [vmem:[%s262 + $0x34] sm:$0xf] %vm1808, %v1739
        %1823 = vst.msk [vmem:[%s262 + $0x38] sm:$0xf] %vm1808, %v1741
        %1824 = vst.msk [vmem:[%s262 + $0x3c] sm:$0xf] %vm1808, %v1743
        %1825 = vst.msk [vmem:[%s262 + $0x40] sm:$0xf] %vm1808, %v1745
        %1826 = vst.msk [vmem:[%s262 + $0x44] sm:$0xf] %vm1808, %v1747
        %1827 = vst.msk [vmem:[%s262 + $0x48] sm:$0xf] %vm1808, %v1749
        %1828 = vst.msk [vmem:[%s262 + $0x4c] sm:$0xf] %vm1808, %v1751
        %1829 = vst.msk [vmem:[%s262 + $0x50] sm:$0xf] %vm1808, %v1753
        %1830 = vst.msk [vmem:[%s262 + $0x54] sm:$0xf] %vm1808, %v1755
        %1831 = vst.msk [vmem:[%s262 + $0x58] sm:$0xf] %vm1808, %v1757
        %1832 = vst.msk [vmem:[%s262 + $0x5c] sm:$0xf] %vm1808, %v1759
        %1833 = vst.msk [vmem:[%s262 + $0x60] sm:$0xf] %vm1808, %v1761
        %1834 = vst.msk [vmem:[%s262 + $0x64] sm:$0xf] %vm1808, %v1763
        %1835 = vst.msk [vmem:[%s262 + $0x68] sm:$0xf] %vm1808, %v1765
        %1836 = vst.msk [vmem:[%s262 + $0x6c] sm:$0xf] %vm1808, %v1767
        %1837 = vst.msk [vmem:[%s262 + $0x70] sm:$0xf] %vm1808, %v1769
        %1838 = vst.msk [vmem:[%s262 + $0x74] sm:$0xf] %vm1808, %v1771
        %1839 = vst.msk [vmem:[%s262 + $0x78] sm:$0xf] %vm1808, %v1773
        %1840 = vst.msk [vmem:[%s262 + $0x7c] sm:$0xf] %vm1808, %v1775
        %vm1841 = vcmask 261120
        %1842 = vst.msk [vmem:[%s268] sm:$0xff] %vm1841, %v976
        %1843 = vst.msk [vmem:[%s268 + $0x8] sm:$0xff] %vm1841, %v977
        %1844 = vst.msk [vmem:[%s268 + $0x10] sm:$0xff] %vm1841, %v978
        %1845 = vst.msk [vmem:[%s268 + $0x18] sm:$0xff] %vm1841, %v979
        %1846 = vst.msk [vmem:[%s268 + $0x20] sm:$0xff] %vm1841, %v980
        %1847 = vst.msk [vmem:[%s268 + $0x28] sm:$0xff] %vm1841, %v981
        %1848 = vst.msk [vmem:[%s268 + $0x30] sm:$0xff] %vm1841, %v982
        %1849 = vst.msk [vmem:[%s268 + $0x38] sm:$0xff] %vm1841, %v983
        %1850 = vst.msk [vmem:[%s268 + $0x40] sm:$0xff] %vm1841, %v984
        %1851 = vst.msk [vmem:[%s268 + $0x48] sm:$0xff] %vm1841, %v985
        %1852 = vst.msk [vmem:[%s268 + $0x50] sm:$0xff] %vm1841, %v986
        %1853 = vst.msk [vmem:[%s268 + $0x58] sm:$0xff] %vm1841, %v987
        %1854 = vst.msk [vmem:[%s268 + $0x60] sm:$0xff] %vm1841, %v988
        %1855 = vst.msk [vmem:[%s268 + $0x68] sm:$0xff] %vm1841, %v989
        %1856 = vst.msk [vmem:[%s268 + $0x70] sm:$0xff] %vm1841, %v990
        %1857 = vst.msk [vmem:[%s268 + $0x78] sm:$0xff] %vm1841, %v991
        %1858 = vst.msk [vmem:[%s268 + $0x80] sm:$0xff] %vm1841, %v992
        %1859 = vst.msk [vmem:[%s268 + $0x88] sm:$0xff] %vm1841, %v993
        %1860 = vst.msk [vmem:[%s268 + $0x90] sm:$0xff] %vm1841, %v994
        %1861 = vst.msk [vmem:[%s268 + $0x98] sm:$0xff] %vm1841, %v995
        %1862 = vst.msk [vmem:[%s268 + $0xa0] sm:$0xff] %vm1841, %v996
        %1863 = vst.msk [vmem:[%s268 + $0xa8] sm:$0xff] %vm1841, %v997
        %1864 = vst.msk [vmem:[%s268 + $0xb0] sm:$0xff] %vm1841, %v998
        %1865 = vst.msk [vmem:[%s268 + $0xb8] sm:$0xff] %vm1841, %v999
        %1866 = vst.msk [vmem:[%s268 + $0xc0] sm:$0xff] %vm1841, %v1000
        %1867 = vst.msk [vmem:[%s268 + $0xc8] sm:$0xff] %vm1841, %v1001
        %1868 = vst.msk [vmem:[%s268 + $0xd0] sm:$0xff] %vm1841, %v1002
        %1869 = vst.msk [vmem:[%s268 + $0xd8] sm:$0xff] %vm1841, %v1003
        %1870 = vst.msk [vmem:[%s268 + $0xe0] sm:$0xff] %vm1841, %v1004
        %1871 = vst.msk [vmem:[%s268 + $0xe8] sm:$0xff] %vm1841, %v1005
        %1872 = vst.msk [vmem:[%s268 + $0xf0] sm:$0xff] %vm1841, %v1006
        %1873 = vst.msk [vmem:[%s268 + $0xf8] sm:$0xff] %vm1841, %v1007
        %s1874 = smul.u32 32, %s19
        %p1875 = scmp.lt.s32.totalorder %s1874, 63
        %s1876 = scalar_select %p1875, %s1874, 63
        %s1877 = smul.addr %s1876, 4
        %s1878 = scalar_lea.vmem %s4, %s1877
        %s1879 = smul.u32 32, %s19
        %p1880 = scmp.lt.s32.totalorder %s1879, 63
        %s1881 = scalar_select %p1880, %s1879, 63
        %s1882 = smul.addr %s1881, 8
        %s1883 = scalar_lea.vmem %s5, %s1882
        // Predicated region
        $region45: #{convlstm_forward.3} parent=35 // pred_check
          %p1884 = pneg %p126
        $region46: #{convlstm_forward.3} parent=35 // pred_check_branch
          %1886 = sbr.rel (%p1884) target = $region48
        $region47: #{convlstm_forward.3} parent=35 // pred_region
          %s1887 = smul.u32 32, %s19
        $region48: #{convlstm_forward.3} parent=35 // pred_fallthru
          _
        // Predicated region
        $region49: #{convlstm_forward.3} parent=35 // pred_check
          %p1888 = pneg %p152
        $region50: #{convlstm_forward.3} parent=35 // pred_check_branch
          %1890 = sbr.rel (%p1888) target = $region52
        $region51: #{convlstm_forward.3} parent=35 // pred_region
          %s1891 = smul.u32 32, %s19
        $region52: #{convlstm_forward.3} parent=35 // pred_fallthru
          _
      $region36: #{convlstm_forward.3} parent=5 // pred_fallthru
        _
      %p1892 = scmp.le.s32.totalorder 2, %s14
      // Predicated region
      $region53: #{convlstm_forward.3} parent=5 // pred_check
        %p1893 = pneg %p1892
      $region54: #{convlstm_forward.3} parent=5 // pred_check_branch
        %1895 = sbr.rel (%p1893) target = $region56
      $region55: #{convlstm_forward.3} parent=5 // pred_region
        %s1896 = ssub.s32 %s14, 2
        // Predicated region
        $region57: #{convlstm_forward.3} parent=55 // pred_check
          %p1897 = pneg %p132
        $region58: #{convlstm_forward.3} parent=55 // pred_check_branch
          %1899 = sbr.rel (%p1897) target = $region60
        $region59: #{convlstm_forward.3} parent=55 // pred_region
          %s1900 = smul.u32 32, %s20
          %p1901 = scmp.lt.s32.totalorder %s1900, 63
          %s1902 = scalar_select %p1901, %s1900, 63
          %s1903 = smul.addr %s1902, 4
          %s1904 = scalar_lea.vmem %s4, %s1903
        $region60: #{convlstm_forward.3} parent=55 // pred_fallthru
          _
        // Predicated region
        $region61: #{convlstm_forward.3} parent=55 // pred_check
          %p1905 = pneg %p158
        $region62: #{convlstm_forward.3} parent=55 // pred_check_branch
          %1907 = sbr.rel (%p1905) target = $region64
        $region63: #{convlstm_forward.3} parent=55 // pred_region
          %s1908 = smul.u32 32, %s20
          %p1909 = scmp.lt.s32.totalorder %s1908, 63
          %s1910 = scalar_select %p1909, %s1908, 63
          %s1911 = smul.addr %s1910, 8
          %s1912 = scalar_lea.vmem %s5, %s1911
        $region64: #{convlstm_forward.3} parent=55 // pred_fallthru
          _
      $region56: #{convlstm_forward.3} parent=5 // pred_fallthru
        _
    $region6: #{convlstm_forward.3} parent=1 // loop_footer
      %s18 = sadd.s32 1, %s14
    $region7: #{convlstm_forward.3} parent=1 // loop_footer_branch
      %13 = sbr.rel target = $region3
    $region8: #{convlstm_forward.3} parent=1 // loop_exit
      _
    %1913 = vsyncpa [#allocation3], 1
    %s1914 = scalar_lea.sflag [#allocation3], 1
    %1915 = vsyncpa %s1914, 1
    %1916 = vsyncpa [#allocation5], 1

// kernel: convlstm_forward.4
$region0: #{convlstm_forward.4}
  #allocation0 [shape = 'u32[]', space=smem, size = 0x4, offset = 0x4, fixed_abs, tag = 'smem constant byte address 0x4 - core index']
  #allocation1 [shape = 'u32[144,128]{1,0:T(1,128)}', space=vmem, size = 0x12000, scoped, tag = 'internal scratch']
  %s0 = inlined_call_operand.vmem [shape: bf16[512,288], index: 0, kind: input, shape index: {}]
  %s1 = inlined_call_operand.vmem [shape: f32[512,32], index: 1, kind: input, shape index: {}]
  %s2 = inlined_call_operand.hbm [shape: bf16[288,128], index: 2, kind: input, shape index: {}]
  %s3 = inlined_call_operand.hbm [shape: f32[1,128], index: 3, kind: input, shape index: {}]
  %s4 = inlined_call_operand.vmem [shape: f32[256,96], index: 4, kind: input, shape index: {}]
  %s5 = inlined_call_operand.vmem [shape: bf16[512,32], index: 5, kind: output, shape index: {}]
  %s6 = sld [smem:[#allocation0]]
  $region61: #{convlstm_forward.4} parent=0
    _
  %s8 = ssub.s32 1, %s6
  %s9 = scalar_select 0, %s8, %s6
  $region1: #{convlstm_forward.4} parent=0
    #allocation2 [shape = 'u8[73728]{0}', space=vmem, size = 0x12000, scoped, tag = 'input window, operand 2, single buffered']
    #allocation3 [shape = 's32[2]{0}', space=sflag, size = 0x8, scoped, tag = 'scoped memory for convlstm_forward.4']
    #allocation4 [shape = 'u8[512]{0}', space=vmem, size = 0x400, scoped, tag = 'input window, operand 3, single buffered']
    #allocation5 [shape = 's32[1]{0}', space=sflag, size = 0x4, scoped, tag = 'scoped memory for convlstm_forward.4']
    %10 = vsyncpa [#allocation3], 0
    %11 = vsyncpa [#allocation5], 0
    loop: start=0, step=1, limit=4
    $region2: #{convlstm_forward.4} parent=1 // loop_pre_header
      _
    $region3: #{convlstm_forward.4} parent=1 // loop_header
      %s13 = sphi 0, %s17
      %p14 = scmp.ge.s32.totalorder %s13, 4
      %s23 = sphi 0, %s25
      %s26 = sphi 0, %s23
      %s27 = sphi 0, %s26
      %s43 = sphi 0, %s27
      %s49 = sphi 0, %s51
      %s52 = sphi 0, %s49
      %s53 = sphi 0, %s52
      %s69 = sphi 0, %s53
      %s73 = sphi 0, %s73
      %s75 = sphi 0, %s73
      %s76 = sphi 0, %s75
      %s90 = sphi 0, %s76
      %s94 = sphi 0, %s94
      %s96 = sphi 0, %s94
      %s97 = sphi 0, %s96
      %s111 = sphi 0, %s97
      %s115 = sphi 0, %s115
      %s117 = sphi 0, %s115
      %s118 = sphi 0, %s117
      %s132 = sphi 0, %s118
      %s138 = sphi 0, %s140
      %s141 = sphi 0, %s138
      %s142 = sphi 0, %s141
      %s158 = sphi 0, %s142
    $region4: #{convlstm_forward.4} parent=1 // loop_header_branch
      %16 = sbr.rel (%p14) target = $region8
    $region5: #{convlstm_forward.4} parent=1 // loop_body
      %s18 = ssub.s32 %s13, 1
      %s19 = ssub.s32 %s13, 2
      %s20 = sadd.s32 %s13, 1
      %s21 = ssub.s32 %s13, %s20
      %p22 = scmp.eq.s32.totalorder %s21, 0
      %s24 = sadd.s32 %s23, 1
      %s25 = scalar_select %p22, %s23, %s24
      %p28 = pneg %p22
      %p29 = scmp.eq.s32.totalorder %s13, 1
      %p30 = por %p28, %p29
      %p31 = scmp.ne.s32.totalorder %s23, %s26
      %p32 = scmp.eq.s32.totalorder %s13, 0
      %p33 = por %p31, %p32
      %p34 = scmp.ne.s32.totalorder %s23, %s26
      %p35 = scmp.eq.s32.totalorder %s18, 1
      %p36 = por %p34, %p35
      %p37 = scmp.ne.s32.totalorder %s26, %s27
      %p38 = scmp.eq.s32.totalorder %s18, 0
      %p39 = por %p37, %p38
      %p40 = scmp.ne.s32.totalorder %s26, %s27
      %p41 = scmp.eq.s32.totalorder %s19, 1
      %p42 = por %p40, %p41
      %p44 = scmp.ne.s32.totalorder %s27, %s43
      %p45 = scmp.eq.s32.totalorder %s19, 0
      %p46 = por %p44, %p45
      %s47 = ssub.s32 %s13, %s20
      %p48 = scmp.eq.s32.totalorder %s47, 0
      %s50 = sadd.s32 %s49, 1
      %s51 = scalar_select %p48, %s49, %s50
      %p54 = pneg %p48
      %p55 = scmp.eq.s32.totalorder %s13, 1
      %p56 = por %p54, %p55
      %p57 = scmp.ne.s32.totalorder %s49, %s52
      %p58 = scmp.eq.s32.totalorder %s13, 0
      %p59 = por %p57, %p58
      %p60 = scmp.ne.s32.totalorder %s49, %s52
      %p61 = scmp.eq.s32.totalorder %s18, 1
      %p62 = por %p60, %p61
      %p63 = scmp.ne.s32.totalorder %s52, %s53
      %p64 = scmp.eq.s32.totalorder %s18, 0
      %p65 = por %p63, %p64
      %p66 = scmp.ne.s32.totalorder %s52, %s53
      %p67 = scmp.eq.s32.totalorder %s19, 1
      %p68 = por %p66, %p67
      %p70 = scmp.ne.s32.totalorder %s53, %s69
      %p71 = scmp.eq.s32.totalorder %s19, 0
      %p72 = por %p70, %p71
      %s74 = sadd.s32 %s73, 1
      %p77 = scmp.eq.s32.totalorder %s13, 1
      %p78 = scmp.ne.s32.totalorder %s73, %s75
      %p79 = scmp.eq.s32.totalorder %s13, 0
      %p80 = por %p78, %p79
      %p81 = scmp.ne.s32.totalorder %s73, %s75
      %p82 = scmp.eq.s32.totalorder %s18, 1
      %p83 = por %p81, %p82
      %p84 = scmp.ne.s32.totalorder %s75, %s76
      %p85 = scmp.eq.s32.totalorder %s18, 0
      %p86 = por %p84, %p85
      %p87 = scmp.ne.s32.totalorder %s75, %s76
      %p88 = scmp.eq.s32.totalorder %s19, 1
      %p89 = por %p87, %p88
      %p91 = scmp.ne.s32.totalorder %s76, %s90
      %p92 = scmp.eq.s32.totalorder %s19, 0
      %p93 = por %p91, %p92
      %s95 = sadd.s32 %s94, 1
      %p98 = scmp.eq.s32.totalorder %s13, 1
      %p99 = scmp.ne.s32.totalorder %s94, %s96
      %p100 = scmp.eq.s32.totalorder %s13, 0
      %p101 = por %p99, %p100
      %p102 = scmp.ne.s32.totalorder %s94, %s96
      %p103 = scmp.eq.s32.totalorder %s18, 1
      %p104 = por %p102, %p103
      %p105 = scmp.ne.s32.totalorder %s96, %s97
      %p106 = scmp.eq.s32.totalorder %s18, 0
      %p107 = por %p105, %p106
      %p108 = scmp.ne.s32.totalorder %s96, %s97
      %p109 = scmp.eq.s32.totalorder %s19, 1
      %p110 = por %p108, %p109
      %p112 = scmp.ne.s32.totalorder %s97, %s111
      %p113 = scmp.eq.s32.totalorder %s19, 0
      %p114 = por %p112, %p113
      %s116 = sadd.s32 %s115, 1
      %p119 = scmp.eq.s32.totalorder %s13, 1
      %p120 = scmp.ne.s32.totalorder %s115, %s117
      %p121 = scmp.eq.s32.totalorder %s13, 0
      %p122 = por %p120, %p121
      %p123 = scmp.ne.s32.totalorder %s115, %s117
      %p124 = scmp.eq.s32.totalorder %s18, 1
      %p125 = por %p123, %p124
      %p126 = scmp.ne.s32.totalorder %s117, %s118
      %p127 = scmp.eq.s32.totalorder %s18, 0
      %p128 = por %p126, %p127
      %p129 = scmp.ne.s32.totalorder %s117, %s118
      %p130 = scmp.eq.s32.totalorder %s19, 1
      %p131 = por %p129, %p130
      %p133 = scmp.ne.s32.totalorder %s118, %s132
      %p134 = scmp.eq.s32.totalorder %s19, 0
      %p135 = por %p133, %p134
      %s136 = ssub.s32 %s13, %s20
      %p137 = scmp.eq.s32.totalorder %s136, 0
      %s139 = sadd.s32 %s138, 1
      %s140 = scalar_select %p137, %s138, %s139
      %p143 = pneg %p137
      %p144 = scmp.eq.s32.totalorder %s13, 1
      %p145 = por %p143, %p144
      %p146 = scmp.ne.s32.totalorder %s138, %s141
      %p147 = scmp.eq.s32.totalorder %s13, 0
      %p148 = por %p146, %p147
      %p149 = scmp.ne.s32.totalorder %s138, %s141
      %p150 = scmp.eq.s32.totalorder %s18, 1
      %p151 = por %p149, %p150
      %p152 = scmp.ne.s32.totalorder %s141, %s142
      %p153 = scmp.eq.s32.totalorder %s18, 0
      %p154 = por %p152, %p153
      %p155 = scmp.ne.s32.totalorder %s141, %s142
      %p156 = scmp.eq.s32.totalorder %s19, 1
      %p157 = por %p155, %p156
      %p159 = scmp.ne.s32.totalorder %s142, %s158
      %p160 = scmp.eq.s32.totalorder %s19, 0
      %p161 = por %p159, %p160
      %p162 = scmp.le.s32.totalorder 1, %s13
      %p163 = scmp.lt.s32.totalorder %s13, 3
      %p164 = pnand %p162, %p163
      %p165 = pneg %p164
      // Predicated region
      $region9: #{convlstm_forward.4} parent=5 // pred_check
        _
      $region10: #{convlstm_forward.4} parent=5 // pred_check_branch
        %167 = sbr.rel (%p164) target = $region12
      $region11: #{convlstm_forward.4} parent=5 // pred_region
        %s168 = ssub.s32 %s13, 1
        // Predicated region
        $region13: #{convlstm_forward.4} parent=11 // pred_check
          %p169 = pneg %p86
        $region14: #{convlstm_forward.4} parent=11 // pred_check_branch
          %171 = sbr.rel (%p169) target = $region16
        $region15: #{convlstm_forward.4} parent=11 // pred_region
          %s173 = ssub.s32 2304, 2304
          %174 = vsyncadd [#allocation3], %s173
          %s175 = sshll.u32 [#allocation2], 4
          %s176 = int_to_ptr.vmem [resolvable:$true] %s175
          %181 = dma.hbm_to_vmem [thread:$0]  %s2, 2304, %s176, [#allocation3], 64, 64, 4
        $region16: #{convlstm_forward.4} parent=11 // pred_fallthru
          _
        // Predicated region
        $region17: #{convlstm_forward.4} parent=11 // pred_check
          %p182 = pneg %p107
        $region18: #{convlstm_forward.4} parent=11 // pred_check_branch
          %184 = sbr.rel (%p182) target = $region20
        $region19: #{convlstm_forward.4} parent=11 // pred_region
          %s186 = ssub.s32 16, 16
          %187 = vsyncadd [#allocation5], %s186
          %s189 = sshll.u32 [#allocation4], 4
          %s190 = int_to_ptr.vmem [resolvable:$true] %s189
          %192 = dma.hbm_to_vmem [thread:$0]  %s3, 16, %s190, [#allocation5]
        $region20: #{convlstm_forward.4} parent=11 // pred_fallthru
          _
        // Predicated region
        $region21: #{convlstm_forward.4} parent=11 // pred_check
          %p193 = pneg %p128
        $region22: #{convlstm_forward.4} parent=11 // pred_check_branch
          %195 = sbr.rel (%p193) target = $region24
        $region23: #{convlstm_forward.4} parent=11 // pred_region
          _
        $region24: #{convlstm_forward.4} parent=11 // pred_fallthru
          _
      $region12: #{convlstm_forward.4} parent=5 // pred_fallthru
        _
      %p196 = scmp.lt.s32.totalorder %s13, 2
      // Predicated region
      $region25: #{convlstm_forward.4} parent=5 // pred_check
        %p197 = pneg %p196
      $region26: #{convlstm_forward.4} parent=5 // pred_check_branch
        %199 = sbr.rel (%p197) target = $region28
      $region27: #{convlstm_forward.4} parent=5 // pred_region
        // Predicated region
        $region29: #{convlstm_forward.4} parent=27 // pred_check
          %p200 = pneg %p33
        $region30: #{convlstm_forward.4} parent=27 // pred_check_branch
          %202 = sbr.rel (%p200) target = $region32
        $region31: #{convlstm_forward.4} parent=27 // pred_region
          %s203 = smul.u32 32, %s13
          %p204 = scmp.lt.s32.totalorder %s203, 63
          %s205 = scalar_select %p204, %s203, 63
          %s206 = smul.addr %s205, 3
          %s207 = smul.addr %s206, 4
          %s208 = scalar_lea.vmem %s0, %s207
          %s209 = smul.u32 32, %s13
        $region32: #{convlstm_forward.4} parent=27 // pred_fallthru
          _
        // Predicated region
        $region33: #{convlstm_forward.4} parent=27 // pred_check
          %p210 = pneg %p59
        $region34: #{convlstm_forward.4} parent=27 // pred_check_branch
          %212 = sbr.rel (%p210) target = $region36
        $region35: #{convlstm_forward.4} parent=27 // pred_region
          %s213 = smul.u32 32, %s13
          %p214 = scmp.lt.s32.totalorder %s213, 63
          %s215 = scalar_select %p214, %s213, 63
          %s216 = smul.addr %s215, 8
          %s217 = scalar_lea.vmem %s1, %s216
          %s218 = smul.u32 32, %s13
        $region36: #{convlstm_forward.4} parent=27 // pred_fallthru
          _
      $region28: #{convlstm_forward.4} parent=5 // pred_fallthru
        _
      %p219 = scmp.le.s32.totalorder 1, %s13
      %p220 = scmp.lt.s32.totalorder %s13, 3
      %p221 = pnand %p219, %p220
      %p222 = pneg %p221
      // Predicated region
      $region37: #{convlstm_forward.4} parent=5 // pred_check
        _
      $region38: #{convlstm_forward.4} parent=5 // pred_check_branch
        %224 = sbr.rel (%p221) target = $region40
      $region39: #{convlstm_forward.4} parent=5 // pred_region
        %s225 = ssub.s32 %s13, 1
        // Predicated region
        $region41: #{convlstm_forward.4} parent=39 // pred_check
          %p226 = pneg %p86
        $region42: #{convlstm_forward.4} parent=39 // pred_check_branch
          %228 = sbr.rel (%p226) target = $region44
        $region43: #{convlstm_forward.4} parent=39 // pred_region
          %229 = dma.done [#allocation3], 2304
        $region44: #{convlstm_forward.4} parent=39 // pred_fallthru
          _
        // Predicated region
        $region45: #{convlstm_forward.4} parent=39 // pred_check
          %p230 = pneg %p107
        $region46: #{convlstm_forward.4} parent=39 // pred_check_branch
          %232 = sbr.rel (%p230) target = $region48
        $region47: #{convlstm_forward.4} parent=39 // pred_region
          %233 = dma.done [#allocation5], 16
        $region48: #{convlstm_forward.4} parent=39 // pred_fallthru
          _
        %s234 = smul.u32 32, %s18
        %p235 = scmp.lt.s32.totalorder %s234, 63
        %s236 = scalar_select %p235, %s234, 63
        %s237 = smul.addr %s236, 3
        %s238 = smul.addr %s237, 4
        %s239 = scalar_lea.vmem %s0, %s238
        %p240 = pneg %p39
        %p241 = pneg %p36
        %s242 = smul.u32 32, %s18
        %p243 = scmp.lt.s32.totalorder %s242, 63
        %s244 = scalar_select %p243, %s242, 63
        %s245 = smul.addr %s244, 8
        %s246 = scalar_lea.vmem %s1, %s245
        %p247 = pneg %p65
        %p248 = pneg %p62
        %p249 = pneg %p86
        %p250 = pneg %p83
        %p251 = pneg %p107
        %p252 = pneg %p104
        %p253 = pneg %p128
        %p254 = pneg %p125
        %p255 = pneg %p154
        %p256 = pneg %p151
        %s257 = smul.u32 32, %s18
        %p258 = scmp.lt.s32.totalorder %s257, 63
        %s259 = scalar_select %p258, %s257, 63
        %s260 = smul.addr %s259, 4
        %s261 = scalar_lea.vmem %s5, %s260
        %s262 = smul.u32 32, %s18
        %p263 = scmp.lt.s32.totalorder %s262, 63
        %s264 = scalar_select %p263, %s262, 63
        %s265 = smul.addr %s264, 3
        %s266 = smul.addr %s265, 4
        %s267 = scalar_lea.vmem %s0, %s266
        %s268 = smul.u32 32, %s18
        %s269 = smul.u32 32, %s18
        %p270 = scmp.lt.s32.totalorder %s269, 63
        %s271 = scalar_select %p270, %s269, 63
        %s272 = smul.addr %s271, 8
        %s273 = scalar_lea.vmem %s1, %s272
        %s274 = smul.u32 32, %s18
        %s275 = smul.u32 32, %s18
        %p276 = scmp.lt.s32.totalorder %s275, 63
        %s277 = scalar_select %p276, %s275, 63
        %s278 = smul.addr %s277, 4
        %s279 = scalar_lea.vmem %s5, %s278
        %s280 = smul.u32 32, %s18
        %v282 = vld [vmem:[%s267] sm:$0xff]
        %v283 = vld [vmem:[%s267 + $0x8] sm:$0xf]
        %v284 = vld [vmem:[%s267 + $0xc] sm:$0xff]
        %v285 = vld [vmem:[%s267 + $0x14] sm:$0xf]
        %v286 = vld [vmem:[%s267 + $0x18] sm:$0xff]
        %v287 = vld [vmem:[%s267 + $0x20] sm:$0xf]
        %v288 = vld [vmem:[%s267 + $0x24] sm:$0xff]
        %v289 = vld [vmem:[%s267 + $0x2c] sm:$0xf]
        %v290 = vld [vmem:[%s267 + $0x30] sm:$0xff]
        %v291 = vld [vmem:[%s267 + $0x38] sm:$0xf]
        %v292 = vld [vmem:[%s267 + $0x3c] sm:$0xff]
        %v293 = vld [vmem:[%s267 + $0x44] sm:$0xf]
        %v294 = vld [vmem:[%s267 + $0x48] sm:$0xff]
        %v295 = vld [vmem:[%s267 + $0x50] sm:$0xf]
        %v296 = vld [vmem:[%s267 + $0x54] sm:$0xff]
        %v297 = vld [vmem:[%s267 + $0x5c] sm:$0xf]
        %v298 = vld [vmem:[%s267 + $0x60] sm:$0xff]
        %v299 = vld [vmem:[%s267 + $0x68] sm:$0xf]
        %v300 = vld [vmem:[%s267 + $0x6c] sm:$0xff]
        %v301 = vld [vmem:[%s267 + $0x74] sm:$0xf]
        %v302 = vld [vmem:[%s267 + $0x78] sm:$0xff]
        %v303 = vld [vmem:[%s267 + $0x80] sm:$0xf]
        %v304 = vld [vmem:[%s267 + $0x84] sm:$0xff]
        %v305 = vld [vmem:[%s267 + $0x8c] sm:$0xf]
        %v306 = vld [vmem:[%s267 + $0x90] sm:$0xff]
        %v307 = vld [vmem:[%s267 + $0x98] sm:$0xf]
        %v308 = vld [vmem:[%s267 + $0x9c] sm:$0xff]
        %v309 = vld [vmem:[%s267 + $0xa4] sm:$0xf]
        %v310 = vld [vmem:[%s267 + $0xa8] sm:$0xff]
        %v311 = vld [vmem:[%s267 + $0xb0] sm:$0xf]
        %v312 = vld [vmem:[%s267 + $0xb4] sm:$0xff]
        %v313 = vld [vmem:[%s267 + $0xbc] sm:$0xf]
        %v314 = vld [vmem:[%s267 + $0xc0] sm:$0xff]
        %v315 = vld [vmem:[%s267 + $0xc8] sm:$0xf]
        %v316 = vld [vmem:[%s267 + $0xcc] sm:$0xff]
        %v317 = vld [vmem:[%s267 + $0xd4] sm:$0xf]
        %v318 = vld [vmem:[%s267 + $0xd8] sm:$0xff]
        %v319 = vld [vmem:[%s267 + $0xe0] sm:$0xf]
        %v320 = vld [vmem:[%s267 + $0xe4] sm:$0xff]
        %v321 = vld [vmem:[%s267 + $0xec] sm:$0xf]
        %v322 = vld [vmem:[%s267 + $0xf0] sm:$0xff]
        %v323 = vld [vmem:[%s267 + $0xf8] sm:$0xf]
        %v324 = vld [vmem:[%s267 + $0xfc] sm:$0xff]
        %v325 = vld [vmem:[%s267 + $0x104] sm:$0xf]
        %v326 = vld [vmem:[%s267 + $0x108] sm:$0xff]
        %v327 = vld [vmem:[%s267 + $0x110] sm:$0xf]
        %v328 = vld [vmem:[%s267 + $0x114] sm:$0xff]
        %v329 = vld [vmem:[%s267 + $0x11c] sm:$0xf]
        %v330 = vld [vmem:[%s267 + $0x120] sm:$0xff]
        %v331 = vld [vmem:[%s267 + $0x128] sm:$0xf]
        %v332 = vld [vmem:[%s267 + $0x12c] sm:$0xff]
        %v333 = vld [vmem:[%s267 + $0x134] sm:$0xf]
        %v334 = vld [vmem:[%s267 + $0x138] sm:$0xff]
        %v335 = vld [vmem:[%s267 + $0x140] sm:$0xf]
        %v336 = vld [vmem:[%s267 + $0x144] sm:$0xff]
        %v337 = vld [vmem:[%s267 + $0x14c] sm:$0xf]
        %v338 = vld [vmem:[%s267 + $0x150] sm:$0xff]
        %v339 = vld [vmem:[%s267 + $0x158] sm:$0xf]
        %v340 = vld [vmem:[%s267 + $0x15c] sm:$0xff]
        %v341 = vld [vmem:[%s267 + $0x164] sm:$0xf]
        %v342 = vld [vmem:[%s267 + $0x168] sm:$0xff]
        %v343 = vld [vmem:[%s267 + $0x170] sm:$0xf]
        %v344 = vld [vmem:[%s267 + $0x174] sm:$0xff]
        %v345 = vld [vmem:[%s267 + $0x17c] sm:$0xf]
        %v346 = vld [vmem:[#allocation2] sm:$0xf]
        %v347 = vld [vmem:[#allocation2 + $0x4] sm:$0xf]
        %v348 = vld [vmem:[#allocation2 + $0x8] sm:$0xf]
        %v349 = vld [vmem:[#allocation2 + $0xc] sm:$0xf]
        %v350 = vld [vmem:[#allocation2 + $0x10] sm:$0xf]
        %v351 = vld [vmem:[#allocation2 + $0x14] sm:$0xf]
        %v352 = vld [vmem:[#allocation2 + $0x18] sm:$0xf]
        %v353 = vld [vmem:[#allocation2 + $0x1c] sm:$0xf]
        %v354 = vld [vmem:[#allocation2 + $0x20] sm:$0xf]
        %v355 = vld [vmem:[#allocation2 + $0x24] sm:$0xf]
        %v356 = vld [vmem:[#allocation2 + $0x28] sm:$0xf]
        %v357 = vld [vmem:[#allocation2 + $0x2c] sm:$0xf]
        %v358 = vld [vmem:[#allocation2 + $0x30] sm:$0xf]
        %v359 = vld [vmem:[#allocation2 + $0x34] sm:$0xf]
        %v360 = vld [vmem:[#allocation2 + $0x38] sm:$0xf]
        %v361 = vld [vmem:[#allocation2 + $0x3c] sm:$0xf]
        %v362 = vld [vmem:[#allocation2 + $0x40] sm:$0xf]
        %v363 = vld [vmem:[#allocation2 + $0x44] sm:$0xf]
        %v364 = vld [vmem:[#allocation2 + $0x48] sm:$0xf]
        %v365 = vld [vmem:[#allocation2 + $0x4c] sm:$0xf]
        %v366 = vld [vmem:[#allocation2 + $0x50] sm:$0xf]
        %v367 = vld [vmem:[#allocation2 + $0x54] sm:$0xf]
        %v368 = vld [vmem:[#allocation2 + $0x58] sm:$0xf]
        %v369 = vld [vmem:[#allocation2 + $0x5c] sm:$0xf]
        %v370 = vld [vmem:[#allocation2 + $0x60] sm:$0xf]
        %v371 = vld [vmem:[#allocation2 + $0x64] sm:$0xf]
        %v372 = vld [vmem:[#allocation2 + $0x68] sm:$0xf]
        %v373 = vld [vmem:[#allocation2 + $0x6c] sm:$0xf]
        %v374 = vld [vmem:[#allocation2 + $0x70] sm:$0xf]
        %v375 = vld [vmem:[#allocation2 + $0x74] sm:$0xf]
        %v376 = vld [vmem:[#allocation2 + $0x78] sm:$0xf]
        %v377 = vld [vmem:[#allocation2 + $0x7c] sm:$0xf]
        %v378 = vld [vmem:[#allocation2 + $0x80] sm:$0xf]
        %v379 = vld [vmem:[#allocation2 + $0x84] sm:$0xf]
        %v380 = vld [vmem:[#allocation2 + $0x88] sm:$0xf]
        %v381 = vld [vmem:[#allocation2 + $0x8c] sm:$0xf]
        %v382 = vld [vmem:[#allocation4] sm:$0x1]
        %v384 = vlaneseq
        %v385 = vshrl.u32 %v384, 7
        %v386 = vsub.s32 0, %v385
        %v387 = vrot.slane %v382, %v386
        %v453 = vunpack.c.l.b16 %v282
        %v454 = vunpack.c.h.b16 %v282
        %v455 = vunpack.c.l.b16 %v283
        %v456 = vunpack.c.l.b16 %v284
        %v457 = vunpack.c.h.b16 %v284
        %v458 = vunpack.c.l.b16 %v285
        %v459 = vunpack.c.l.b16 %v286
        %v460 = vunpack.c.h.b16 %v286
        %v461 = vunpack.c.l.b16 %v287
        %v462 = vunpack.c.l.b16 %v288
        %v463 = vunpack.c.h.b16 %v288
        %v464 = vunpack.c.l.b16 %v289
        %v465 = vunpack.c.l.b16 %v290
        %v466 = vunpack.c.h.b16 %v290
        %v467 = vunpack.c.l.b16 %v291
        %v468 = vunpack.c.l.b16 %v292
        %v469 = vunpack.c.h.b16 %v292
        %v470 = vunpack.c.l.b16 %v293
        %v471 = vunpack.c.l.b16 %v294
        %v472 = vunpack.c.h.b16 %v294
        %v473 = vunpack.c.l.b16 %v295
        %v474 = vunpack.c.l.b16 %v296
        %v475 = vunpack.c.h.b16 %v296
        %v476 = vunpack.c.l.b16 %v297
        %v477 = vunpack.c.l.b16 %v298
        %v478 = vunpack.c.h.b16 %v298
        %v479 = vunpack.c.l.b16 %v299
        %v480 = vunpack.c.l.b16 %v300
        %v481 = vunpack.c.h.b16 %v300
        %v482 = vunpack.c.l.b16 %v301
        %v483 = vunpack.c.l.b16 %v302
        %v484 = vunpack.c.h.b16 %v302
        %v485 = vunpack.c.l.b16 %v303
        %v486 = vunpack.c.l.b16 %v304
        %v487 = vunpack.c.h.b16 %v304
        %v488 = vunpack.c.l.b16 %v305
        %v489 = vunpack.c.l.b16 %v306
        %v490 = vunpack.c.h.b16 %v306
        %v491 = vunpack.c.l.b16 %v307
        %v492 = vunpack.c.l.b16 %v308
        %v493 = vunpack.c.h.b16 %v308
        %v494 = vunpack.c.l.b16 %v309
        %v495 = vunpack.c.l.b16 %v310
        %v496 = vunpack.c.h.b16 %v310
        %v497 = vunpack.c.l.b16 %v311
        %v498 = vunpack.c.l.b16 %v312
        %v499 = vunpack.c.h.b16 %v312
        %v500 = vunpack.c.l.b16 %v313
        %v501 = vunpack.c.l.b16 %v314
        %v502 = vunpack.c.h.b16 %v314
        %v503 = vunpack.c.l.b16 %v315
        %v504 = vunpack.c.l.b16 %v316
        %v505 = vunpack.c.h.b16 %v316
        %v506 = vunpack.c.l.b16 %v317
        %v507 = vunpack.c.l.b16 %v318
        %v508 = vunpack.c.h.b16 %v318
        %v509 = vunpack.c.l.b16 %v319
        %v510 = vunpack.c.l.b16 %v320
        %v511 = vunpack.c.h.b16 %v320
        %v512 = vunpack.c.l.b16 %v321
        %v513 = vunpack.c.l.b16 %v322
        %v514 = vunpack.c.h.b16 %v322
        %v515 = vunpack.c.l.b16 %v323
        %v516 = vunpack.c.l.b16 %v324
        %v517 = vunpack.c.h.b16 %v324
        %v518 = vunpack.c.l.b16 %v325
        %v519 = vunpack.c.l.b16 %v326
        %v520 = vunpack.c.h.b16 %v326
        %v521 = vunpack.c.l.b16 %v327
        %v522 = vunpack.c.l.b16 %v328
        %v523 = vunpack.c.h.b16 %v328
        %v524 = vunpack.c.l.b16 %v329
        %v525 = vunpack.c.l.b16 %v330
        %v526 = vunpack.c.h.b16 %v330
        %v527 = vunpack.c.l.b16 %v331
        %v528 = vunpack.c.l.b16 %v332
        %v529 = vunpack.c.h.b16 %v332
        %v530 = vunpack.c.l.b16 %v333
        %v531 = vunpack.c.l.b16 %v334
        %v532 = vunpack.c.h.b16 %v334
        %v533 = vunpack.c.l.b16 %v335
        %v534 = vunpack.c.l.b16 %v336
        %v535 = vunpack.c.h.b16 %v336
        %v536 = vunpack.c.l.b16 %v337
        %v537 = vunpack.c.l.b16 %v338
        %v538 = vunpack.c.h.b16 %v338
        %v539 = vunpack.c.l.b16 %v339
        %v540 = vunpack.c.l.b16 %v340
        %v541 = vunpack.c.h.b16 %v340
        %v542 = vunpack.c.l.b16 %v341
        %v543 = vunpack.c.l.b16 %v342
        %v544 = vunpack.c.h.b16 %v342
        %v545 = vunpack.c.l.b16 %v343
        %v546 = vunpack.c.l.b16 %v344
        %v547 = vunpack.c.h.b16 %v344
        %v548 = vunpack.c.l.b16 %v345
        %v549 = vpack.c.b16 %v456, %v453
        %v550 = vpack.c.b16 %v457, %v454
        %v551 = vpack.c.b16 %v458, %v455
        %v552 = vpack.c.b16 %v462, %v459
        %v553 = vpack.c.b16 %v463, %v460
        %v554 = vpack.c.b16 %v464, %v461
        %v555 = vpack.c.b16 %v468, %v465
        %v556 = vpack.c.b16 %v469, %v466
        %v557 = vpack.c.b16 %v470, %v467
        %v558 = vpack.c.b16 %v474, %v471
        %v559 = vpack.c.b16 %v475, %v472
        %v560 = vpack.c.b16 %v476, %v473
        %v561 = vpack.c.b16 %v480, %v477
        %v562 = vpack.c.b16 %v481, %v478
        %v563 = vpack.c.b16 %v482, %v479
        %v564 = vpack.c.b16 %v486, %v483
        %v565 = vpack.c.b16 %v487, %v484
        %v566 = vpack.c.b16 %v488, %v485
        %v567 = vpack.c.b16 %v492, %v489
        %v568 = vpack.c.b16 %v493, %v490
        %v569 = vpack.c.b16 %v494, %v491
        %v570 = vpack.c.b16 %v498, %v495
        %v571 = vpack.c.b16 %v499, %v496
        %v572 = vpack.c.b16 %v500, %v497
        %v573 = vpack.c.b16 %v504, %v501
        %v574 = vpack.c.b16 %v505, %v502
        %v575 = vpack.c.b16 %v506, %v503
        %v576 = vpack.c.b16 %v510, %v507
        %v577 = vpack.c.b16 %v511, %v508
        %v578 = vpack.c.b16 %v512, %v509
        %v579 = vpack.c.b16 %v516, %v513
        %v580 = vpack.c.b16 %v517, %v514
        %v581 = vpack.c.b16 %v518, %v515
        %v582 = vpack.c.b16 %v522, %v519
        %v583 = vpack.c.b16 %v523, %v520
        %v584 = vpack.c.b16 %v524, %v521
        %v585 = vpack.c.b16 %v528, %v525
        %v586 = vpack.c.b16 %v529, %v526
        %v587 = vpack.c.b16 %v530, %v527
        %v588 = vpack.c.b16 %v534, %v531
        %v589 = vpack.c.b16 %v535, %v532
        %v590 = vpack.c.b16 %v536, %v533
        %v591 = vpack.c.b16 %v540, %v537
        %v592 = vpack.c.b16 %v541, %v538
        %v593 = vpack.c.b16 %v542, %v539
        %v594 = vpack.c.b16 %v546, %v543
        %v595 = vpack.c.b16 %v547, %v544
        %v596 = vpack.c.b16 %v548, %v545
        %v665 = vunpack.c.l.b16 %v346
        %v666 = vunpack.c.l.b16 %v347
        %v667 = vunpack.c.l.b16 %v348
        %v668 = vunpack.c.l.b16 %v349
        %v669 = vunpack.c.l.b16 %v350
        %v670 = vunpack.c.l.b16 %v351
        %v671 = vunpack.c.l.b16 %v352
        %v672 = vunpack.c.l.b16 %v353
        %v673 = vunpack.c.l.b16 %v354
        %v674 = vunpack.c.l.b16 %v355
        %v675 = vunpack.c.l.b16 %v356
        %v676 = vunpack.c.l.b16 %v357
        %v677 = vunpack.c.l.b16 %v358
        %v678 = vunpack.c.l.b16 %v359
        %v679 = vunpack.c.l.b16 %v360
        %v680 = vunpack.c.l.b16 %v361
        %v681 = vunpack.c.l.b16 %v362
        %v682 = vunpack.c.l.b16 %v363
        %v683 = vunpack.c.l.b16 %v364
        %v684 = vunpack.c.l.b16 %v365
        %v685 = vunpack.c.l.b16 %v366
        %v686 = vunpack.c.l.b16 %v367
        %v687 = vunpack.c.l.b16 %v368
        %v688 = vunpack.c.l.b16 %v369
        %v689 = vunpack.c.l.b16 %v370
        %v690 = vunpack.c.l.b16 %v371
        %v691 = vunpack.c.l.b16 %v372
        %v692 = vunpack.c.l.b16 %v373
        %v693 = vunpack.c.l.b16 %v374
        %v694 = vunpack.c.l.b16 %v375
        %v695 = vunpack.c.l.b16 %v376
        %v696 = vunpack.c.l.b16 %v377
        %v697 = vunpack.c.l.b16 %v378
        %v698 = vunpack.c.l.b16 %v379
        %v699 = vunpack.c.l.b16 %v380
        %v700 = vunpack.c.l.b16 %v381
        %v701 = vpack.c.b16 %v666, %v665
        %v702 = vpack.c.b16 %v668, %v667
        %v703 = vpack.c.b16 %v670, %v669
        %v704 = vpack.c.b16 %v672, %v671
        %v705 = vpack.c.b16 %v674, %v673
        %v706 = vpack.c.b16 %v676, %v675
        %v707 = vpack.c.b16 %v678, %v677
        %v708 = vpack.c.b16 %v680, %v679
        %v709 = vpack.c.b16 %v682, %v681
        %v710 = vpack.c.b16 %v684, %v683
        %v711 = vpack.c.b16 %v686, %v685
        %v712 = vpack.c.b16 %v688, %v687
        %v713 = vpack.c.b16 %v690, %v689
        %v714 = vpack.c.b16 %v692, %v691
        %v715 = vpack.c.b16 %v694, %v693
        %v716 = vpack.c.b16 %v696, %v695
        %v717 = vpack.c.b16 %v698, %v697
        %v718 = vpack.c.b16 %v700, %v699
        %vm737 = vcmask 261120
        %v739 = vsel %vm737, %v551, 0
        %v742 = vsel %vm737, %v554, 0
        %v745 = vsel %vm737, %v557, 0
        %v748 = vsel %vm737, %v560, 0
        %v751 = vsel %vm737, %v563, 0
        %v754 = vsel %vm737, %v566, 0
        %v757 = vsel %vm737, %v569, 0
        %v760 = vsel %vm737, %v572, 0
        %v763 = vsel %vm737, %v575, 0
        %v766 = vsel %vm737, %v578, 0
        %v769 = vsel %vm737, %v581, 0
        %v772 = vsel %vm737, %v584, 0
        %v775 = vsel %vm737, %v587, 0
        %v778 = vsel %vm737, %v590, 0
        %v781 = vsel %vm737, %v593, 0
        %v784 = vsel %vm737, %v596, 0
        %786 = vmatprep.subr.bf16.mxu0 0
        %787 = vmatpush1.bf16.msra.mxu0 %v701
        %788 = vmatprep.subr.bf16.mxu0 0
        %789 = vmatpush1.bf16.msra.mxu0 %v702
        %790 = vmatprep.subr.bf16.mxu0 0
        %791 = vmatpush1.bf16.msra.mxu0 %v703
        %792 = vmatprep.subr.bf16.mxu0 0
        %793 = vmatpush1.bf16.msra.mxu0 %v704
        %794 = vmatprep.subr.bf16.mxu0 0
        %795 = vmatpush1.bf16.msra.mxu0 %v705
        %796 = vmatprep.subr.bf16.mxu0 0
        %797 = vmatpush1.bf16.msra.mxu0 %v706
        %798 = vmatprep.subr.bf16.mxu0 0
        %799 = vmatpush1.bf16.msra.mxu0 %v707
        %800 = vmatprep.subr.bf16.mxu0 0
        %801 = vmatpush1.bf16.msra.mxu0 %v708
        %802 = vmatprep.subr.bf16.mxu0 0
        %803 = vmatpush1.bf16.msra.mxu0 %v709
        %804 = vmatprep.subr.bf16.mxu0 0
        %805 = vmatpush1.bf16.msra.mxu0 %v710
        %806 = vmatprep.subr.bf16.mxu0 0
        %807 = vmatpush1.bf16.msra.mxu0 %v711
        %808 = vmatprep.subr.bf16.mxu0 0
        %809 = vmatpush1.bf16.msra.mxu0 %v712
        %810 = vmatprep.subr.bf16.mxu0 0
        %811 = vmatpush1.bf16.msra.mxu0 %v713
        %812 = vmatprep.subr.bf16.mxu0 0
        %813 = vmatpush1.bf16.msra.mxu0 %v714
        %814 = vmatprep.subr.bf16.mxu0 0
        %815 = vmatpush1.bf16.msra.mxu0 %v715
        %816 = vmatprep.subr.bf16.mxu0 0
        %817 = vmatpush1.bf16.msra.mxu0 %v716
        %818 = vmatprep.mubr.bf16.mxu0 %v550
        %819 = vmatmul.mubr.bf16.gmra.mrb[0].mxu0 %v549
        %v820 = vpop.f32.mrb[0].mxu0
        %v821 = vadd.f32 %v387, %v820
        %v822 = vpop.f32.mrb[0].mxu0
        %v823 = vpop.f32.mrb[0].mxu0
        %v824 = vadd.f32 %v387, %v823
        %v825 = vpop.f32.mrb[0].mxu0
        %826 = vmatprep.mubr.bf16.mxu0 %v553
        %827 = vmatmul.mubr.bf16.gmra.mrb[0].mxu0 %v552
        %v828 = vpop.f32.mrb[0].mxu0
        %v829 = vadd.f32 %v387, %v828
        %v830 = vpop.f32.mrb[0].mxu0
        %v831 = vpop.f32.mrb[0].mxu0
        %v832 = vadd.f32 %v387, %v831
        %v833 = vpop.f32.mrb[0].mxu0
        %834 = vmatprep.mubr.bf16.mxu0 %v556
        %835 = vmatmul.mubr.bf16.gmra.mrb[0].mxu0 %v555
        %v836 = vpop.f32.mrb[0].mxu0
        %v837 = vadd.f32 %v387, %v836
        %v838 = vpop.f32.mrb[0].mxu0
        %v839 = vpop.f32.mrb[0].mxu0
        %v840 = vadd.f32 %v387, %v839
        %v841 = vpop.f32.mrb[0].mxu0
        %842 = vmatprep.mubr.bf16.mxu0 %v559
        %843 = vmatmul.mubr.bf16.gmra.mrb[0].mxu0 %v558
        %v844 = vpop.f32.mrb[0].mxu0
        %v845 = vadd.f32 %v387, %v844
        %v846 = vpop.f32.mrb[0].mxu0
        %v847 = vpop.f32.mrb[0].mxu0
        %v848 = vadd.f32 %v387, %v847
        %v849 = vpop.f32.mrb[0].mxu0
        %850 = vmatprep.mubr.bf16.mxu0 %v562
        %851 = vmatmul.mubr.bf16.gmra.mrb[0].mxu0 %v561
        %v852 = vpop.f32.mrb[0].mxu0
        %v853 = vadd.f32 %v387, %v852
        %v854 = vpop.f32.mrb[0].mxu0
        %v855 = vpop.f32.mrb[0].mxu0
        %v856 = vadd.f32 %v387, %v855
        %v857 = vpop.f32.mrb[0].mxu0
        %858 = vmatprep.mubr.bf16.mxu0 %v565
        %859 = vmatmul.mubr.bf16.gmra.mrb[0].mxu0 %v564
        %v860 = vpop.f32.mrb[0].mxu0
        %v861 = vadd.f32 %v387, %v860
        %v862 = vpop.f32.mrb[0].mxu0
        %v863 = vpop.f32.mrb[0].mxu0
        %v864 = vadd.f32 %v387, %v863
        %v865 = vpop.f32.mrb[0].mxu0
        %866 = vmatprep.mubr.bf16.mxu0 %v568
        %867 = vmatmul.mubr.bf16.gmra.mrb[0].mxu0 %v567
        %v868 = vpop.f32.mrb[0].mxu0
        %v869 = vadd.f32 %v387, %v868
        %v870 = vpop.f32.mrb[0].mxu0
        %v871 = vpop.f32.mrb[0].mxu0
        %v872 = vadd.f32 %v387, %v871
        %v873 = vpop.f32.mrb[0].mxu0
        %874 = vmatprep.mubr.bf16.mxu0 %v571
        %875 = vmatmul.mubr.bf16.gmra.mrb[0].mxu0 %v570
        %v876 = vpop.f32.mrb[0].mxu0
        %v877 = vadd.f32 %v387, %v876
        %v878 = vpop.f32.mrb[0].mxu0
        %v879 = vpop.f32.mrb[0].mxu0
        %v880 = vadd.f32 %v387, %v879
        %v881 = vpop.f32.mrb[0].mxu0
        %882 = vmatprep.mubr.bf16.mxu0 %v574
        %883 = vmatmul.mubr.bf16.gmra.mrb[0].mxu0 %v573
        %v884 = vpop.f32.mrb[0].mxu0
        %v885 = vadd.f32 %v387, %v884
        %v886 = vpop.f32.mrb[0].mxu0
        %v887 = vpop.f32.mrb[0].mxu0
        %v888 = vadd.f32 %v387, %v887
        %v889 = vpop.f32.mrb[0].mxu0
        %890 = vmatprep.mubr.bf16.mxu0 %v577
        %891 = vmatmul.mubr.bf16.gmra.mrb[0].mxu0 %v576
        %v892 = vpop.f32.mrb[0].mxu0
        %v893 = vadd.f32 %v387, %v892
        %v894 = vpop.f32.mrb[0].mxu0
        %v895 = vpop.f32.mrb[0].mxu0
        %v896 = vadd.f32 %v387, %v895
        %v897 = vpop.f32.mrb[0].mxu0
        %898 = vmatprep.mubr.bf16.mxu0 %v580
        %899 = vmatmul.mubr.bf16.gmra.mrb[0].mxu0 %v579
        %v900 = vpop.f32.mrb[0].mxu0
        %v901 = vadd.f32 %v387, %v900
        %v902 = vpop.f32.mrb[0].mxu0
        %v903 = vpop.f32.mrb[0].mxu0
        %v904 = vadd.f32 %v387, %v903
        %v905 = vpop.f32.mrb[0].mxu0
        %906 = vmatprep.mubr.bf16.mxu0 %v583
        %907 = vmatmul.mubr.bf16.gmra.mrb[0].mxu0 %v582
        %v908 = vpop.f32.mrb[0].mxu0
        %v909 = vadd.f32 %v387, %v908
        %v910 = vpop.f32.mrb[0].mxu0
        %v911 = vpop.f32.mrb[0].mxu0
        %v912 = vadd.f32 %v387, %v911
        %v913 = vpop.f32.mrb[0].mxu0
        %914 = vmatprep.mubr.bf16.mxu0 %v586
        %915 = vmatmul.mubr.bf16.gmra.mrb[0].mxu0 %v585
        %v916 = vpop.f32.mrb[0].mxu0
        %v917 = vadd.f32 %v387, %v916
        %v918 = vpop.f32.mrb[0].mxu0
        %v919 = vpop.f32.mrb[0].mxu0
        %v920 = vadd.f32 %v387, %v919
        %v921 = vpop.f32.mrb[0].mxu0
        %922 = vmatprep.mubr.bf16.mxu0 %v589
        %923 = vmatmul.mubr.bf16.gmra.mrb[0].mxu0 %v588
        %v924 = vpop.f32.mrb[0].mxu0
        %v925 = vadd.f32 %v387, %v924
        %v926 = vpop.f32.mrb[0].mxu0
        %v927 = vpop.f32.mrb[0].mxu0
        %v928 = vadd.f32 %v387, %v927
        %v929 = vpop.f32.mrb[0].mxu0
        %930 = vmatprep.mubr.bf16.mxu0 %v592
        %931 = vmatmul.mubr.bf16.gmra.mrb[0].mxu0 %v591
        %v932 = vpop.f32.mrb[0].mxu0
        %v933 = vadd.f32 %v387, %v932
        %v934 = vpop.f32.mrb[0].mxu0
        %v935 = vpop.f32.mrb[0].mxu0
        %v936 = vadd.f32 %v387, %v935
        %v937 = vpop.f32.mrb[0].mxu0
        %938 = vmatprep.mubr.bf16.mxu0 %v595
        %939 = vmatmul.mubr.bf16.gmra.mrb[0].mxu0 %v594
        %v940 = vpop.f32.mrb[0].mxu0
        %v941 = vadd.f32 %v387, %v940
        %v942 = vpop.f32.mrb[0].mxu0
        %v943 = vpop.f32.mrb[0].mxu0
        %v944 = vadd.f32 %v387, %v943
        %v945 = vpop.f32.mrb[0].mxu0
        %946 = vdwg.mxu0
        %947 = vmatprep.subr.bf16.mxu0 0
        %948 = vmatpush1.bf16.msra.mxu0 %v717
        %949 = vmatprep.subr.bf16.mxu0 0
        %950 = vmatpush1.bf16.msra.mxu0 %v718
        %951 = vmatprep.subr.bf16.mxu0 0
        %952 = vmatpush1.bf16.msra.mxu0 0
        %953 = vmatprep.subr.bf16.mxu0 0
        %954 = vmatpush1.bf16.msra.mxu0 0
        %955 = vmatprep.subr.bf16.mxu0 0
        %956 = vmatpush1.bf16.msra.mxu0 0
        %957 = vmatprep.subr.bf16.mxu0 0
        %958 = vmatpush1.bf16.msra.mxu0 0
        %959 = vmatprep.subr.bf16.mxu0 0
        %960 = vmatpush1.bf16.msra.mxu0 0
        %961 = vmatprep.subr.bf16.mxu0 0
        %962 = vmatpush1.bf16.msra.mxu0 0
        %963 = vmatprep.subr.bf16.mxu0 0
        %964 = vmatpush1.bf16.msra.mxu0 0
        %965 = vmatprep.subr.bf16.mxu0 0
        %966 = vmatpush1.bf16.msra.mxu0 0
        %967 = vmatprep.subr.bf16.mxu0 0
        %968 = vmatpush1.bf16.msra.mxu0 0
        %969 = vmatprep.subr.bf16.mxu0 0
        %970 = vmatpush1.bf16.msra.mxu0 0
        %971 = vmatprep.subr.bf16.mxu0 0
        %972 = vmatpush1.bf16.msra.mxu0 0
        %973 = vmatprep.subr.bf16.mxu0 0
        %974 = vmatpush1.bf16.msra.mxu0 0
        %975 = vmatprep.subr.bf16.mxu0 0
        %976 = vmatpush1.bf16.msra.mxu0 0
        %977 = vmatprep.subr.bf16.mxu0 0
        %978 = vmatpush1.bf16.msra.mxu0 0
        %979 = vmatprep.mubr.bf16.mxu0 0
        %980 = vmatmul.mubr.bf16.gmra.mrb[0].mxu0 %v739
        %v981 = vpop.f32.mrb[0].mxu0
        %v982 = vadd.f32 %v821, %v981
        %v983 = vpop.f32.mrb[0].mxu0
        %v984 = vpop.f32.mrb[0].mxu0
        %v985 = vadd.f32 %v824, %v984
        %v986 = vpop.f32.mrb[0].mxu0
        %987 = vmatprep.mubr.bf16.mxu0 0
        %988 = vmatmul.mubr.bf16.gmra.mrb[0].mxu0 %v742
        %v989 = vpop.f32.mrb[0].mxu0
        %v990 = vadd.f32 %v829, %v989
        %v991 = vpop.f32.mrb[0].mxu0
        %v992 = vpop.f32.mrb[0].mxu0
        %v993 = vadd.f32 %v832, %v992
        %v994 = vpop.f32.mrb[0].mxu0
        %995 = vmatprep.mubr.bf16.mxu0 0
        %996 = vmatmul.mubr.bf16.gmra.mrb[0].mxu0 %v745
        %v997 = vpop.f32.mrb[0].mxu0
        %v998 = vadd.f32 %v837, %v997
        %v999 = vpop.f32.mrb[0].mxu0
        %v1000 = vpop.f32.mrb[0].mxu0
        %v1001 = vadd.f32 %v840, %v1000
        %v1002 = vpop.f32.mrb[0].mxu0
        %1003 = vmatprep.mubr.bf16.mxu0 0
        %1004 = vmatmul.mubr.bf16.gmra.mrb[0].mxu0 %v748
        %v1005 = vpop.f32.mrb[0].mxu0
        %v1006 = vadd.f32 %v845, %v1005
        %v1007 = vpop.f32.mrb[0].mxu0
        %v1008 = vpop.f32.mrb[0].mxu0
        %v1009 = vadd.f32 %v848, %v1008
        %v1010 = vpop.f32.mrb[0].mxu0
        %1011 = vmatprep.mubr.bf16.mxu0 0
        %1012 = vmatmul.mubr.bf16.gmra.mrb[0].mxu0 %v751
        %v1013 = vpop.f32.mrb[0].mxu0
        %v1014 = vadd.f32 %v853, %v1013
        %v1015 = vpop.f32.mrb[0].mxu0
        %v1016 = vpop.f32.mrb[0].mxu0
        %v1017 = vadd.f32 %v856, %v1016
        %v1018 = vpop.f32.mrb[0].mxu0
        %1019 = vmatprep.mubr.bf16.mxu0 0
        %1020 = vmatmul.mubr.bf16.gmra.mrb[0].mxu0 %v754
        %v1021 = vpop.f32.mrb[0].mxu0
        %v1022 = vadd.f32 %v861, %v1021
        %v1023 = vpop.f32.mrb[0].mxu0
        %v1024 = vpop.f32.mrb[0].mxu0
        %v1025 = vadd.f32 %v864, %v1024
        %v1026 = vpop.f32.mrb[0].mxu0
        %1027 = vmatprep.mubr.bf16.mxu0 0
        %1028 = vmatmul.mubr.bf16.gmra.mrb[0].mxu0 %v757
        %v1029 = vpop.f32.mrb[0].mxu0
        %v1030 = vadd.f32 %v869, %v1029
        %v1031 = vpop.f32.mrb[0].mxu0
        %v1032 = vpop.f32.mrb[0].mxu0
        %v1033 = vadd.f32 %v872, %v1032
        %v1034 = vpop.f32.mrb[0].mxu0
        %1035 = vmatprep.mubr.bf16.mxu0 0
        %1036 = vmatmul.mubr.bf16.gmra.mrb[0].mxu0 %v760
        %v1037 = vpop.f32.mrb[0].mxu0
        %v1038 = vadd.f32 %v877, %v1037
        %v1039 = vpop.f32.mrb[0].mxu0
        %v1040 = vpop.f32.mrb[0].mxu0
        %v1041 = vadd.f32 %v880, %v1040
        %v1042 = vpop.f32.mrb[0].mxu0
        %1043 = vmatprep.mubr.bf16.mxu0 0
        %1044 = vmatmul.mubr.bf16.gmra.mrb[0].mxu0 %v763
        %v1045 = vpop.f32.mrb[0].mxu0
        %v1046 = vadd.f32 %v885, %v1045
        %v1047 = vpop.f32.mrb[0].mxu0
        %v1048 = vpop.f32.mrb[0].mxu0
        %v1049 = vadd.f32 %v888, %v1048
        %v1050 = vpop.f32.mrb[0].mxu0
        %1051 = vmatprep.mubr.bf16.mxu0 0
        %1052 = vmatmul.mubr.bf16.gmra.mrb[0].mxu0 %v766
        %v1053 = vpop.f32.mrb[0].mxu0
        %v1054 = vadd.f32 %v893, %v1053
        %v1055 = vpop.f32.mrb[0].mxu0
        %v1056 = vpop.f32.mrb[0].mxu0
        %v1057 = vadd.f32 %v896, %v1056
        %v1058 = vpop.f32.mrb[0].mxu0
        %1059 = vmatprep.mubr.bf16.mxu0 0
        %1060 = vmatmul.mubr.bf16.gmra.mrb[0].mxu0 %v769
        %v1061 = vpop.f32.mrb[0].mxu0
        %v1062 = vadd.f32 %v901, %v1061
        %v1063 = vpop.f32.mrb[0].mxu0
        %v1064 = vpop.f32.mrb[0].mxu0
        %v1065 = vadd.f32 %v904, %v1064
        %v1066 = vpop.f32.mrb[0].mxu0
        %1067 = vmatprep.mubr.bf16.mxu0 0
        %1068 = vmatmul.mubr.bf16.gmra.mrb[0].mxu0 %v772
        %v1069 = vpop.f32.mrb[0].mxu0
        %v1070 = vadd.f32 %v909, %v1069
        %v1071 = vpop.f32.mrb[0].mxu0
        %v1072 = vpop.f32.mrb[0].mxu0
        %v1073 = vadd.f32 %v912, %v1072
        %v1074 = vpop.f32.mrb[0].mxu0
        %1075 = vmatprep.mubr.bf16.mxu0 0
        %1076 = vmatmul.mubr.bf16.gmra.mrb[0].mxu0 %v775
        %v1077 = vpop.f32.mrb[0].mxu0
        %v1078 = vadd.f32 %v917, %v1077
        %v1079 = vpop.f32.mrb[0].mxu0
        %v1080 = vpop.f32.mrb[0].mxu0
        %v1081 = vadd.f32 %v920, %v1080
        %v1082 = vpop.f32.mrb[0].mxu0
        %1083 = vmatprep.mubr.bf16.mxu0 0
        %1084 = vmatmul.mubr.bf16.gmra.mrb[0].mxu0 %v778
        %v1085 = vpop.f32.mrb[0].mxu0
        %v1086 = vadd.f32 %v925, %v1085
        %v1087 = vpop.f32.mrb[0].mxu0
        %v1088 = vpop.f32.mrb[0].mxu0
        %v1089 = vadd.f32 %v928, %v1088
        %v1090 = vpop.f32.mrb[0].mxu0
        %1091 = vmatprep.mubr.bf16.mxu0 0
        %1092 = vmatmul.mubr.bf16.gmra.mrb[0].mxu0 %v781
        %v1093 = vpop.f32.mrb[0].mxu0
        %v1094 = vadd.f32 %v933, %v1093
        %v1095 = vpop.f32.mrb[0].mxu0
        %v1096 = vpop.f32.mrb[0].mxu0
        %v1097 = vadd.f32 %v936, %v1096
        %v1098 = vpop.f32.mrb[0].mxu0
        %1099 = vmatprep.mubr.bf16.mxu0 0
        %1100 = vmatmul.mubr.bf16.gmra.mrb[0].mxu0 %v784
        %v1101 = vpop.f32.mrb[0].mxu0
        %v1102 = vadd.f32 %v941, %v1101
        %v1103 = vpop.f32.mrb[0].mxu0
        %v1104 = vpop.f32.mrb[0].mxu0
        %v1105 = vadd.f32 %v944, %v1104
        %v1106 = vpop.f32.mrb[0].mxu0
        %1107 = vdwg.mxu0
        %v1108 = vld [vmem:[%s273] sm:$0xff]
        %v1109 = vld [vmem:[%s273 + $0x8] sm:$0xff]
        %v1110 = vld [vmem:[%s273 + $0x10] sm:$0xff]
        %v1111 = vld [vmem:[%s273 + $0x18] sm:$0xff]
        %v1112 = vld [vmem:[%s273 + $0x20] sm:$0xff]
        %v1113 = vld [vmem:[%s273 + $0x28] sm:$0xff]
        %v1114 = vld [vmem:[%s273 + $0x30] sm:$0xff]
        %v1115 = vld [vmem:[%s273 + $0x38] sm:$0xff]
        %v1116 = vld [vmem:[%s273 + $0x40] sm:$0xff]
        %v1117 = vld [vmem:[%s273 + $0x48] sm:$0xff]
        %v1118 = vld [vmem:[%s273 + $0x50] sm:$0xff]
        %v1119 = vld [vmem:[%s273 + $0x58] sm:$0xff]
        %v1120 = vld [vmem:[%s273 + $0x60] sm:$0xff]
        %v1121 = vld [vmem:[%s273 + $0x68] sm:$0xff]
        %v1122 = vld [vmem:[%s273 + $0x70] sm:$0xff]
        %v1123 = vld [vmem:[%s273 + $0x78] sm:$0xff]
        %v1124 = vld [vmem:[%s273 + $0x80] sm:$0xff]
        %v1125 = vld [vmem:[%s273 + $0x88] sm:$0xff]
        %v1126 = vld [vmem:[%s273 + $0x90] sm:$0xff]
        %v1127 = vld [vmem:[%s273 + $0x98] sm:$0xff]
        %v1128 = vld [vmem:[%s273 + $0xa0] sm:$0xff]
        %v1129 = vld [vmem:[%s273 + $0xa8] sm:$0xff]
        %v1130 = vld [vmem:[%s273 + $0xb0] sm:$0xff]
        %v1131 = vld [vmem:[%s273 + $0xb8] sm:$0xff]
        %v1132 = vld [vmem:[%s273 + $0xc0] sm:$0xff]
        %v1133 = vld [vmem:[%s273 + $0xc8] sm:$0xff]
        %v1134 = vld [vmem:[%s273 + $0xd0] sm:$0xff]
        %v1135 = vld [vmem:[%s273 + $0xd8] sm:$0xff]
        %v1136 = vld [vmem:[%s273 + $0xe0] sm:$0xff]
        %v1137 = vld [vmem:[%s273 + $0xe8] sm:$0xff]
        %v1138 = vld [vmem:[%s273 + $0xf0] sm:$0xff]
        %v1139 = vld [vmem:[%s273 + $0xf8] sm:$0xff]
        %v1140 = vld [vmem:[%s4] sm:$0xff]
        %v1141 = vld [vmem:[%s4 + $0x8] sm:$0xff]
        %v1142 = vld [vmem:[%s4 + $0x10] sm:$0xff]
        %v1143 = vld [vmem:[%s4 + $0x18] sm:$0xff]
        %v1144 = vld [vmem:[%s4 + $0x20] sm:$0xff]
        %v1145 = vld [vmem:[%s4 + $0x28] sm:$0xff]
        %v1146 = vld [vmem:[%s4 + $0x30] sm:$0xff]
        %v1147 = vld [vmem:[%s4 + $0x38] sm:$0xff]
        %v1148 = vld [vmem:[%s4 + $0x40] sm:$0xff]
        %v1149 = vld [vmem:[%s4 + $0x48] sm:$0xff]
        %v1150 = vld [vmem:[%s4 + $0x50] sm:$0xff]
        %v1151 = vld [vmem:[%s4 + $0x58] sm:$0xff]
        %v1152 = vld [vmem:[%s4 + $0x60] sm:$0xff]
        %v1153 = vld [vmem:[%s4 + $0x68] sm:$0xff]
        %v1154 = vld [vmem:[%s4 + $0x70] sm:$0xff]
        %v1155 = vld [vmem:[%s4 + $0x78] sm:$0xff]
        %v1156 = vld [vmem:[%s4 + $0x80] sm:$0xff]
        %v1157 = vld [vmem:[%s4 + $0x88] sm:$0xff]
        %v1158 = vld [vmem:[%s4 + $0x90] sm:$0xff]
        %v1159 = vld [vmem:[%s4 + $0x98] sm:$0xff]
        %v1160 = vld [vmem:[%s4 + $0xa0] sm:$0xff]
        %v1161 = vld [vmem:[%s4 + $0xa8] sm:$0xff]
        %v1162 = vld [vmem:[%s4 + $0xb0] sm:$0xff]
        %v1163 = vld [vmem:[%s4 + $0xb8] sm:$0xff]
        %v1164 = vld [vmem:[%s4 + $0xc0] sm:$0xff]
        %v1165 = vld [vmem:[%s4 + $0xc8] sm:$0xff]
        %v1166 = vld [vmem:[%s4 + $0xd0] sm:$0xff]
        %v1167 = vld [vmem:[%s4 + $0xd8] sm:$0xff]
        %v1168 = vld [vmem:[%s4 + $0xe0] sm:$0xff]
        %v1169 = vld [vmem:[%s4 + $0xe8] sm:$0xff]
        %v1170 = vld [vmem:[%s4 + $0xf0] sm:$0xff]
        %v1171 = vld [vmem:[%s4 + $0xf8] sm:$0xff]
        %v1172 = vmul.f32 %v1108, %v1140
        %v1173 = vmul.f32 %v1109, %v1141
        %v1174 = vmul.f32 %v1110, %v1142
        %v1175 = vmul.f32 %v1111, %v1143
        %v1176 = vmul.f32 %v1112, %v1144
        %v1177 = vmul.f32 %v1113, %v1145
        %v1178 = vmul.f32 %v1114, %v1146
        %v1179 = vmul.f32 %v1115, %v1147
        %v1180 = vmul.f32 %v1116, %v1148
        %v1181 = vmul.f32 %v1117, %v1149
        %v1182 = vmul.f32 %v1118, %v1150
        %v1183 = vmul.f32 %v1119, %v1151
        %v1184 = vmul.f32 %v1120, %v1152
        %v1185 = vmul.f32 %v1121, %v1153
        %v1186 = vmul.f32 %v1122, %v1154
        %v1187 = vmul.f32 %v1123, %v1155
        %v1188 = vmul.f32 %v1124, %v1156
        %v1189 = vmul.f32 %v1125, %v1157
        %v1190 = vmul.f32 %v1126, %v1158
        %v1191 = vmul.f32 %v1127, %v1159
        %v1192 = vmul.f32 %v1128, %v1160
        %v1193 = vmul.f32 %v1129, %v1161
        %v1194 = vmul.f32 %v1130, %v1162
        %v1195 = vmul.f32 %v1131, %v1163
        %v1196 = vmul.f32 %v1132, %v1164
        %v1197 = vmul.f32 %v1133, %v1165
        %v1198 = vmul.f32 %v1134, %v1166
        %v1199 = vmul.f32 %v1135, %v1167
        %v1200 = vmul.f32 %v1136, %v1168
        %v1201 = vmul.f32 %v1137, %v1169
        %v1202 = vmul.f32 %v1138, %v1170
        %v1203 = vmul.f32 %v1139, %v1171
        %v1204 = vadd.f32 %v982, %v1172
        %v1205 = vadd.f32 %v985, %v1173
        %v1206 = vadd.f32 %v990, %v1174
        %v1207 = vadd.f32 %v993, %v1175
        %v1208 = vadd.f32 %v998, %v1176
        %v1209 = vadd.f32 %v1001, %v1177
        %v1210 = vadd.f32 %v1006, %v1178
        %v1211 = vadd.f32 %v1009, %v1179
        %v1212 = vadd.f32 %v1014, %v1180
        %v1213 = vadd.f32 %v1017, %v1181
        %v1214 = vadd.f32 %v1022, %v1182
        %v1215 = vadd.f32 %v1025, %v1183
        %v1216 = vadd.f32 %v1030, %v1184
        %v1217 = vadd.f32 %v1033, %v1185
        %v1218 = vadd.f32 %v1038, %v1186
        %v1219 = vadd.f32 %v1041, %v1187
        %v1220 = vadd.f32 %v1046, %v1188
        %v1221 = vadd.f32 %v1049, %v1189
        %v1222 = vadd.f32 %v1054, %v1190
        %v1223 = vadd.f32 %v1057, %v1191
        %v1224 = vadd.f32 %v1062, %v1192
        %v1225 = vadd.f32 %v1065, %v1193
        %v1226 = vadd.f32 %v1070, %v1194
        %v1227 = vadd.f32 %v1073, %v1195
        %v1228 = vadd.f32 %v1078, %v1196
        %v1229 = vadd.f32 %v1081, %v1197
        %v1230 = vadd.f32 %v1086, %v1198
        %v1231 = vadd.f32 %v1089, %v1199
        %v1232 = vadd.f32 %v1094, %v1200
        %v1233 = vadd.f32 %v1097, %v1201
        %v1234 = vadd.f32 %v1102, %v1202
        %v1235 = vadd.f32 %v1105, %v1203
        %v1236 = vxor.u32 %v1204, 2147483648
        %v1237 = vxor.u32 %v1205, 2147483648
        %v1238 = vxor.u32 %v1206, 2147483648
        %v1239 = vxor.u32 %v1207, 2147483648
        %v1240 = vxor.u32 %v1208, 2147483648
        %v1241 = vxor.u32 %v1209, 2147483648
        %v1242 = vxor.u32 %v1210, 2147483648
        %v1243 = vxor.u32 %v1211, 2147483648
        %v1244 = vxor.u32 %v1212, 2147483648
        %v1245 = vxor.u32 %v1213, 2147483648
        %v1246 = vxor.u32 %v1214, 2147483648
        %v1247 = vxor.u32 %v1215, 2147483648
        %v1248 = vxor.u32 %v1216, 2147483648
        %v1249 = vxor.u32 %v1217, 2147483648
        %v1250 = vxor.u32 %v1218, 2147483648
        %v1251 = vxor.u32 %v1219, 2147483648
        %v1252 = vxor.u32 %v1220, 2147483648
        %v1253 = vxor.u32 %v1221, 2147483648
        %v1254 = vxor.u32 %v1222, 2147483648
        %v1255 = vxor.u32 %v1223, 2147483648
        %v1256 = vxor.u32 %v1224, 2147483648
        %v1257 = vxor.u32 %v1225, 2147483648
        %v1258 = vxor.u32 %v1226, 2147483648
        %v1259 = vxor.u32 %v1227, 2147483648
        %v1260 = vxor.u32 %v1228, 2147483648
        %v1261 = vxor.u32 %v1229, 2147483648
        %v1262 = vxor.u32 %v1230, 2147483648
        %v1263 = vxor.u32 %v1231, 2147483648
        %v1264 = vxor.u32 %v1232, 2147483648
        %v1265 = vxor.u32 %v1233, 2147483648
        %v1266 = vxor.u32 %v1234, 2147483648
        %v1267 = vxor.u32 %v1235, 2147483648
        %v1268 = vmul.f32 %v1236, 1.442695
        %v1269 = vpow.pop %v1268
        %v1270 = vmul.f32 %v1237, 1.442695
        %v1271 = vpow.pop %v1270
        %v1272 = vmul.f32 %v1238, 1.442695
        %v1273 = vpow.pop %v1272
        %v1274 = vmul.f32 %v1239, 1.442695
        %v1275 = vpow.pop %v1274
        %v1276 = vmul.f32 %v1240, 1.442695
        %v1277 = vpow.pop %v1276
        %v1278 = vmul.f32 %v1241, 1.442695
        %v1279 = vpow.pop %v1278
        %v1280 = vmul.f32 %v1242, 1.442695
        %v1281 = vpow.pop %v1280
        %v1282 = vmul.f32 %v1243, 1.442695
        %v1283 = vpow.pop %v1282
        %v1284 = vmul.f32 %v1244, 1.442695
        %v1285 = vpow.pop %v1284
        %v1286 = vmul.f32 %v1245, 1.442695
        %v1287 = vpow.pop %v1286
        %v1288 = vmul.f32 %v1246, 1.442695
        %v1289 = vpow.pop %v1288
        %v1290 = vmul.f32 %v1247, 1.442695
        %v1291 = vpow.pop %v1290
        %v1292 = vmul.f32 %v1248, 1.442695
        %v1293 = vpow.pop %v1292
        %v1294 = vmul.f32 %v1249, 1.442695
        %v1295 = vpow.pop %v1294
        %v1296 = vmul.f32 %v1250, 1.442695
        %v1297 = vpow.pop %v1296
        %v1298 = vmul.f32 %v1251, 1.442695
        %v1299 = vpow.pop %v1298
        %v1300 = vmul.f32 %v1252, 1.442695
        %v1301 = vpow.pop %v1300
        %v1302 = vmul.f32 %v1253, 1.442695
        %v1303 = vpow.pop %v1302
        %v1304 = vmul.f32 %v1254, 1.442695
        %v1305 = vpow.pop %v1304
        %v1306 = vmul.f32 %v1255, 1.442695
        %v1307 = vpow.pop %v1306
        %v1308 = vmul.f32 %v1256, 1.442695
        %v1309 = vpow.pop %v1308
        %v1310 = vmul.f32 %v1257, 1.442695
        %v1311 = vpow.pop %v1310
        %v1312 = vmul.f32 %v1258, 1.442695
        %v1313 = vpow.pop %v1312
        %v1314 = vmul.f32 %v1259, 1.442695
        %v1315 = vpow.pop %v1314
        %v1316 = vmul.f32 %v1260, 1.442695
        %v1317 = vpow.pop %v1316
        %v1318 = vmul.f32 %v1261, 1.442695
        %v1319 = vpow.pop %v1318
        %v1320 = vmul.f32 %v1262, 1.442695
        %v1321 = vpow.pop %v1320
        %v1322 = vmul.f32 %v1263, 1.442695
        %v1323 = vpow.pop %v1322
        %v1324 = vmul.f32 %v1264, 1.442695
        %v1325 = vpow.pop %v1324
        %v1326 = vmul.f32 %v1265, 1.442695
        %v1327 = vpow.pop %v1326
        %v1328 = vmul.f32 %v1266, 1.442695
        %v1329 = vpow.pop %v1328
        %v1330 = vmul.f32 %v1267, 1.442695
        %v1331 = vpow.pop %v1330
        %v1332 = vadd.f32 %v1269, 1.0
        %v1333 = vadd.f32 %v1271, 1.0
        %v1334 = vadd.f32 %v1273, 1.0
        %v1335 = vadd.f32 %v1275, 1.0
        %v1336 = vadd.f32 %v1277, 1.0
        %v1337 = vadd.f32 %v1279, 1.0
        %v1338 = vadd.f32 %v1281, 1.0
        %v1339 = vadd.f32 %v1283, 1.0
        %v1340 = vadd.f32 %v1285, 1.0
        %v1341 = vadd.f32 %v1287, 1.0
        %v1342 = vadd.f32 %v1289, 1.0
        %v1343 = vadd.f32 %v1291, 1.0
        %v1344 = vadd.f32 %v1293, 1.0
        %v1345 = vadd.f32 %v1295, 1.0
        %v1346 = vadd.f32 %v1297, 1.0
        %v1347 = vadd.f32 %v1299, 1.0
        %v1348 = vadd.f32 %v1301, 1.0
        %v1349 = vadd.f32 %v1303, 1.0
        %v1350 = vadd.f32 %v1305, 1.0
        %v1351 = vadd.f32 %v1307, 1.0
        %v1352 = vadd.f32 %v1309, 1.0
        %v1353 = vadd.f32 %v1311, 1.0
        %v1354 = vadd.f32 %v1313, 1.0
        %v1355 = vadd.f32 %v1315, 1.0
        %v1356 = vadd.f32 %v1317, 1.0
        %v1357 = vadd.f32 %v1319, 1.0
        %v1358 = vadd.f32 %v1321, 1.0
        %v1359 = vadd.f32 %v1323, 1.0
        %v1360 = vadd.f32 %v1325, 1.0
        %v1361 = vadd.f32 %v1327, 1.0
        %v1362 = vadd.f32 %v1329, 1.0
        %v1363 = vadd.f32 %v1331, 1.0
        %v1364 = vrcp.pop %v1332
        %v1365 = vmul.f32 1.0, %v1364
        %v1366 = vrcp.pop %v1333
        %v1367 = vmul.f32 1.0, %v1366
        %v1368 = vrcp.pop %v1334
        %v1369 = vmul.f32 1.0, %v1368
        %v1370 = vrcp.pop %v1335
        %v1371 = vmul.f32 1.0, %v1370
        %v1372 = vrcp.pop %v1336
        %v1373 = vmul.f32 1.0, %v1372
        %v1374 = vrcp.pop %v1337
        %v1375 = vmul.f32 1.0, %v1374
        %v1376 = vrcp.pop %v1338
        %v1377 = vmul.f32 1.0, %v1376
        %v1378 = vrcp.pop %v1339
        %v1379 = vmul.f32 1.0, %v1378
        %v1380 = vrcp.pop %v1340
        %v1381 = vmul.f32 1.0, %v1380
        %v1382 = vrcp.pop %v1341
        %v1383 = vmul.f32 1.0, %v1382
        %v1384 = vrcp.pop %v1342
        %v1385 = vmul.f32 1.0, %v1384
        %v1386 = vrcp.pop %v1343
        %v1387 = vmul.f32 1.0, %v1386
        %v1388 = vrcp.pop %v1344
        %v1389 = vmul.f32 1.0, %v1388
        %v1390 = vrcp.pop %v1345
        %v1391 = vmul.f32 1.0, %v1390
        %v1392 = vrcp.pop %v1346
        %v1393 = vmul.f32 1.0, %v1392
        %v1394 = vrcp.pop %v1347
        %v1395 = vmul.f32 1.0, %v1394
        %v1396 = vrcp.pop %v1348
        %v1397 = vmul.f32 1.0, %v1396
        %v1398 = vrcp.pop %v1349
        %v1399 = vmul.f32 1.0, %v1398
        %v1400 = vrcp.pop %v1350
        %v1401 = vmul.f32 1.0, %v1400
        %v1402 = vrcp.pop %v1351
        %v1403 = vmul.f32 1.0, %v1402
        %v1404 = vrcp.pop %v1352
        %v1405 = vmul.f32 1.0, %v1404
        %v1406 = vrcp.pop %v1353
        %v1407 = vmul.f32 1.0, %v1406
        %v1408 = vrcp.pop %v1354
        %v1409 = vmul.f32 1.0, %v1408
        %v1410 = vrcp.pop %v1355
        %v1411 = vmul.f32 1.0, %v1410
        %v1412 = vrcp.pop %v1356
        %v1413 = vmul.f32 1.0, %v1412
        %v1414 = vrcp.pop %v1357
        %v1415 = vmul.f32 1.0, %v1414
        %v1416 = vrcp.pop %v1358
        %v1417 = vmul.f32 1.0, %v1416
        %v1418 = vrcp.pop %v1359
        %v1419 = vmul.f32 1.0, %v1418
        %v1420 = vrcp.pop %v1360
        %v1421 = vmul.f32 1.0, %v1420
        %v1422 = vrcp.pop %v1361
        %v1423 = vmul.f32 1.0, %v1422
        %v1424 = vrcp.pop %v1362
        %v1425 = vmul.f32 1.0, %v1424
        %v1426 = vrcp.pop %v1363
        %v1427 = vmul.f32 1.0, %v1426
        %1460 = vrot.lane.b32.xlu0 %v1140, 96
        %v1461 = vpop.permute.xlu0 %1460
        %1462 = vrot.lane.b32.xlu0 %v1141, 96
        %v1463 = vpop.permute.xlu0 %1462
        %1464 = vrot.lane.b32.xlu0 %v1142, 96
        %v1465 = vpop.permute.xlu0 %1464
        %1466 = vrot.lane.b32.xlu0 %v1143, 96
        %v1467 = vpop.permute.xlu0 %1466
        %1468 = vrot.lane.b32.xlu0 %v1144, 96
        %v1469 = vpop.permute.xlu0 %1468
        %1470 = vrot.lane.b32.xlu0 %v1145, 96
        %v1471 = vpop.permute.xlu0 %1470
        %1472 = vrot.lane.b32.xlu0 %v1146, 96
        %v1473 = vpop.permute.xlu0 %1472
        %1474 = vrot.lane.b32.xlu0 %v1147, 96
        %v1475 = vpop.permute.xlu0 %1474
        %1476 = vrot.lane.b32.xlu0 %v1148, 96
        %v1477 = vpop.permute.xlu0 %1476
        %1478 = vrot.lane.b32.xlu0 %v1149, 96
        %v1479 = vpop.permute.xlu0 %1478
        %1480 = vrot.lane.b32.xlu0 %v1150, 96
        %v1481 = vpop.permute.xlu0 %1480
        %1482 = vrot.lane.b32.xlu0 %v1151, 96
        %v1483 = vpop.permute.xlu0 %1482
        %1484 = vrot.lane.b32.xlu0 %v1152, 96
        %v1485 = vpop.permute.xlu0 %1484
        %1486 = vrot.lane.b32.xlu0 %v1153, 96
        %v1487 = vpop.permute.xlu0 %1486
        %1488 = vrot.lane.b32.xlu0 %v1154, 96
        %v1489 = vpop.permute.xlu0 %1488
        %1490 = vrot.lane.b32.xlu0 %v1155, 96
        %v1491 = vpop.permute.xlu0 %1490
        %1492 = vrot.lane.b32.xlu0 %v1156, 96
        %v1493 = vpop.permute.xlu0 %1492
        %1494 = vrot.lane.b32.xlu0 %v1157, 96
        %v1495 = vpop.permute.xlu0 %1494
        %1496 = vrot.lane.b32.xlu0 %v1158, 96
        %v1497 = vpop.permute.xlu0 %1496
        %1498 = vrot.lane.b32.xlu0 %v1159, 96
        %v1499 = vpop.permute.xlu0 %1498
        %1500 = vrot.lane.b32.xlu0 %v1160, 96
        %v1501 = vpop.permute.xlu0 %1500
        %1502 = vrot.lane.b32.xlu0 %v1161, 96
        %v1503 = vpop.permute.xlu0 %1502
        %1504 = vrot.lane.b32.xlu0 %v1162, 96
        %v1505 = vpop.permute.xlu0 %1504
        %1506 = vrot.lane.b32.xlu0 %v1163, 96
        %v1507 = vpop.permute.xlu0 %1506
        %1508 = vrot.lane.b32.xlu0 %v1164, 96
        %v1509 = vpop.permute.xlu0 %1508
        %1510 = vrot.lane.b32.xlu0 %v1165, 96
        %v1511 = vpop.permute.xlu0 %1510
        %1512 = vrot.lane.b32.xlu0 %v1166, 96
        %v1513 = vpop.permute.xlu0 %1512
        %1514 = vrot.lane.b32.xlu0 %v1167, 96
        %v1515 = vpop.permute.xlu0 %1514
        %1516 = vrot.lane.b32.xlu0 %v1168, 96
        %v1517 = vpop.permute.xlu0 %1516
        %1518 = vrot.lane.b32.xlu0 %v1169, 96
        %v1519 = vpop.permute.xlu0 %1518
        %1520 = vrot.lane.b32.xlu0 %v1170, 96
        %v1521 = vpop.permute.xlu0 %1520
        %1522 = vrot.lane.b32.xlu0 %v1171, 96
        %v1523 = vpop.permute.xlu0 %1522
        %v1556 = vmul.f32 %v1108, %v1461
        %v1557 = vmul.f32 %v1109, %v1463
        %v1558 = vmul.f32 %v1110, %v1465
        %v1559 = vmul.f32 %v1111, %v1467
        %v1560 = vmul.f32 %v1112, %v1469
        %v1561 = vmul.f32 %v1113, %v1471
        %v1562 = vmul.f32 %v1114, %v1473
        %v1563 = vmul.f32 %v1115, %v1475
        %v1564 = vmul.f32 %v1116, %v1477
        %v1565 = vmul.f32 %v1117, %v1479
        %v1566 = vmul.f32 %v1118, %v1481
        %v1567 = vmul.f32 %v1119, %v1483
        %v1568 = vmul.f32 %v1120, %v1485
        %v1569 = vmul.f32 %v1121, %v1487
        %v1570 = vmul.f32 %v1122, %v1489
        %v1571 = vmul.f32 %v1123, %v1491
        %v1572 = vmul.f32 %v1124, %v1493
        %v1573 = vmul.f32 %v1125, %v1495
        %v1574 = vmul.f32 %v1126, %v1497
        %v1575 = vmul.f32 %v1127, %v1499
        %v1576 = vmul.f32 %v1128, %v1501
        %v1577 = vmul.f32 %v1129, %v1503
        %v1578 = vmul.f32 %v1130, %v1505
        %v1579 = vmul.f32 %v1131, %v1507
        %v1580 = vmul.f32 %v1132, %v1509
        %v1581 = vmul.f32 %v1133, %v1511
        %v1582 = vmul.f32 %v1134, %v1513
        %v1583 = vmul.f32 %v1135, %v1515
        %v1584 = vmul.f32 %v1136, %v1517
        %v1585 = vmul.f32 %v1137, %v1519
        %v1586 = vmul.f32 %v1138, %v1521
        %v1587 = vmul.f32 %v1139, %v1523
        %1620 = vrot.lane.b32.xlu0 %v1556, 32
        %v1621 = vpop.permute.xlu0 %1620
        %1622 = vrot.lane.b32.xlu0 %v1557, 32
        %v1623 = vpop.permute.xlu0 %1622
        %1624 = vrot.lane.b32.xlu0 %v1558, 32
        %v1625 = vpop.permute.xlu0 %1624
        %1626 = vrot.lane.b32.xlu0 %v1559, 32
        %v1627 = vpop.permute.xlu0 %1626
        %1628 = vrot.lane.b32.xlu0 %v1560, 32
        %v1629 = vpop.permute.xlu0 %1628
        %1630 = vrot.lane.b32.xlu0 %v1561, 32
        %v1631 = vpop.permute.xlu0 %1630
        %1632 = vrot.lane.b32.xlu0 %v1562, 32
        %v1633 = vpop.permute.xlu0 %1632
        %1634 = vrot.lane.b32.xlu0 %v1563, 32
        %v1635 = vpop.permute.xlu0 %1634
        %1636 = vrot.lane.b32.xlu0 %v1564, 32
        %v1637 = vpop.permute.xlu0 %1636
        %1638 = vrot.lane.b32.xlu0 %v1565, 32
        %v1639 = vpop.permute.xlu0 %1638
        %1640 = vrot.lane.b32.xlu0 %v1566, 32
        %v1641 = vpop.permute.xlu0 %1640
        %1642 = vrot.lane.b32.xlu0 %v1567, 32
        %v1643 = vpop.permute.xlu0 %1642
        %1644 = vrot.lane.b32.xlu0 %v1568, 32
        %v1645 = vpop.permute.xlu0 %1644
        %1646 = vrot.lane.b32.xlu0 %v1569, 32
        %v1647 = vpop.permute.xlu0 %1646
        %1648 = vrot.lane.b32.xlu0 %v1570, 32
        %v1649 = vpop.permute.xlu0 %1648
        %1650 = vrot.lane.b32.xlu0 %v1571, 32
        %v1651 = vpop.permute.xlu0 %1650
        %1652 = vrot.lane.b32.xlu0 %v1572, 32
        %v1653 = vpop.permute.xlu0 %1652
        %1654 = vrot.lane.b32.xlu0 %v1573, 32
        %v1655 = vpop.permute.xlu0 %1654
        %1656 = vrot.lane.b32.xlu0 %v1574, 32
        %v1657 = vpop.permute.xlu0 %1656
        %1658 = vrot.lane.b32.xlu0 %v1575, 32
        %v1659 = vpop.permute.xlu0 %1658
        %1660 = vrot.lane.b32.xlu0 %v1576, 32
        %v1661 = vpop.permute.xlu0 %1660
        %1662 = vrot.lane.b32.xlu0 %v1577, 32
        %v1663 = vpop.permute.xlu0 %1662
        %1664 = vrot.lane.b32.xlu0 %v1578, 32
        %v1665 = vpop.permute.xlu0 %1664
        %1666 = vrot.lane.b32.xlu0 %v1579, 32
        %v1667 = vpop.permute.xlu0 %1666
        %1668 = vrot.lane.b32.xlu0 %v1580, 32
        %v1669 = vpop.permute.xlu0 %1668
        %1670 = vrot.lane.b32.xlu0 %v1581, 32
        %v1671 = vpop.permute.xlu0 %1670
        %1672 = vrot.lane.b32.xlu0 %v1582, 32
        %v1673 = vpop.permute.xlu0 %1672
        %1674 = vrot.lane.b32.xlu0 %v1583, 32
        %v1675 = vpop.permute.xlu0 %1674
        %1676 = vrot.lane.b32.xlu0 %v1584, 32
        %v1677 = vpop.permute.xlu0 %1676
        %1678 = vrot.lane.b32.xlu0 %v1585, 32
        %v1679 = vpop.permute.xlu0 %1678
        %1680 = vrot.lane.b32.xlu0 %v1586, 32
        %v1681 = vpop.permute.xlu0 %1680
        %1682 = vrot.lane.b32.xlu0 %v1587, 32
        %v1683 = vpop.permute.xlu0 %1682
        %v1716 = vadd.f32 %v982, %v1621
        %v1717 = vadd.f32 %v985, %v1623
        %v1718 = vadd.f32 %v990, %v1625
        %v1719 = vadd.f32 %v993, %v1627
        %v1720 = vadd.f32 %v998, %v1629
        %v1721 = vadd.f32 %v1001, %v1631
        %v1722 = vadd.f32 %v1006, %v1633
        %v1723 = vadd.f32 %v1009, %v1635
        %v1724 = vadd.f32 %v1014, %v1637
        %v1725 = vadd.f32 %v1017, %v1639
        %v1726 = vadd.f32 %v1022, %v1641
        %v1727 = vadd.f32 %v1025, %v1643
        %v1728 = vadd.f32 %v1030, %v1645
        %v1729 = vadd.f32 %v1033, %v1647
        %v1730 = vadd.f32 %v1038, %v1649
        %v1731 = vadd.f32 %v1041, %v1651
        %v1732 = vadd.f32 %v1046, %v1653
        %v1733 = vadd.f32 %v1049, %v1655
        %v1734 = vadd.f32 %v1054, %v1657
        %v1735 = vadd.f32 %v1057, %v1659
        %v1736 = vadd.f32 %v1062, %v1661
        %v1737 = vadd.f32 %v1065, %v1663
        %v1738 = vadd.f32 %v1070, %v1665
        %v1739 = vadd.f32 %v1073, %v1667
        %v1740 = vadd.f32 %v1078, %v1669
        %v1741 = vadd.f32 %v1081, %v1671
        %v1742 = vadd.f32 %v1086, %v1673
        %v1743 = vadd.f32 %v1089, %v1675
        %v1744 = vadd.f32 %v1094, %v1677
        %v1745 = vadd.f32 %v1097, %v1679
        %v1746 = vadd.f32 %v1102, %v1681
        %v1747 = vadd.f32 %v1105, %v1683
        %v1748 = vxor.u32 %v1716, 2147483648
        %v1749 = vxor.u32 %v1717, 2147483648
        %v1750 = vxor.u32 %v1718, 2147483648
        %v1751 = vxor.u32 %v1719, 2147483648
        %v1752 = vxor.u32 %v1720, 2147483648
        %v1753 = vxor.u32 %v1721, 2147483648
        %v1754 = vxor.u32 %v1722, 2147483648
        %v1755 = vxor.u32 %v1723, 2147483648
        %v1756 = vxor.u32 %v1724, 2147483648
        %v1757 = vxor.u32 %v1725, 2147483648
        %v1758 = vxor.u32 %v1726, 2147483648
        %v1759 = vxor.u32 %v1727, 2147483648
        %v1760 = vxor.u32 %v1728, 2147483648
        %v1761 = vxor.u32 %v1729, 2147483648
        %v1762 = vxor.u32 %v1730, 2147483648
        %v1763 = vxor.u32 %v1731, 2147483648
        %v1764 = vxor.u32 %v1732, 2147483648
        %v1765 = vxor.u32 %v1733, 2147483648
        %v1766 = vxor.u32 %v1734, 2147483648
        %v1767 = vxor.u32 %v1735, 2147483648
        %v1768 = vxor.u32 %v1736, 2147483648
        %v1769 = vxor.u32 %v1737, 2147483648
        %v1770 = vxor.u32 %v1738, 2147483648
        %v1771 = vxor.u32 %v1739, 2147483648
        %v1772 = vxor.u32 %v1740, 2147483648
        %v1773 = vxor.u32 %v1741, 2147483648
        %v1774 = vxor.u32 %v1742, 2147483648
        %v1775 = vxor.u32 %v1743, 2147483648
        %v1776 = vxor.u32 %v1744, 2147483648
        %v1777 = vxor.u32 %v1745, 2147483648
        %v1778 = vxor.u32 %v1746, 2147483648
        %v1779 = vxor.u32 %v1747, 2147483648
        %v1780 = vmul.f32 %v1748, 1.442695
        %v1781 = vpow.pop %v1780
        %v1782 = vmul.f32 %v1749, 1.442695
        %v1783 = vpow.pop %v1782
        %v1784 = vmul.f32 %v1750, 1.442695
        %v1785 = vpow.pop %v1784
        %v1786 = vmul.f32 %v1751, 1.442695
        %v1787 = vpow.pop %v1786
        %v1788 = vmul.f32 %v1752, 1.442695
        %v1789 = vpow.pop %v1788
        %v1790 = vmul.f32 %v1753, 1.442695
        %v1791 = vpow.pop %v1790
        %v1792 = vmul.f32 %v1754, 1.442695
        %v1793 = vpow.pop %v1792
        %v1794 = vmul.f32 %v1755, 1.442695
        %v1795 = vpow.pop %v1794
        %v1796 = vmul.f32 %v1756, 1.442695
        %v1797 = vpow.pop %v1796
        %v1798 = vmul.f32 %v1757, 1.442695
        %v1799 = vpow.pop %v1798
        %v1800 = vmul.f32 %v1758, 1.442695
        %v1801 = vpow.pop %v1800
        %v1802 = vmul.f32 %v1759, 1.442695
        %v1803 = vpow.pop %v1802
        %v1804 = vmul.f32 %v1760, 1.442695
        %v1805 = vpow.pop %v1804
        %v1806 = vmul.f32 %v1761, 1.442695
        %v1807 = vpow.pop %v1806
        %v1808 = vmul.f32 %v1762, 1.442695
        %v1809 = vpow.pop %v1808
        %v1810 = vmul.f32 %v1763, 1.442695
        %v1811 = vpow.pop %v1810
        %v1812 = vmul.f32 %v1764, 1.442695
        %v1813 = vpow.pop %v1812
        %v1814 = vmul.f32 %v1765, 1.442695
        %v1815 = vpow.pop %v1814
        %v1816 = vmul.f32 %v1766, 1.442695
        %v1817 = vpow.pop %v1816
        %v1818 = vmul.f32 %v1767, 1.442695
        %v1819 = vpow.pop %v1818
        %v1820 = vmul.f32 %v1768, 1.442695
        %v1821 = vpow.pop %v1820
        %v1822 = vmul.f32 %v1769, 1.442695
        %v1823 = vpow.pop %v1822
        %v1824 = vmul.f32 %v1770, 1.442695
        %v1825 = vpow.pop %v1824
        %v1826 = vmul.f32 %v1771, 1.442695
        %v1827 = vpow.pop %v1826
        %v1828 = vmul.f32 %v1772, 1.442695
        %v1829 = vpow.pop %v1828
        %v1830 = vmul.f32 %v1773, 1.442695
        %v1831 = vpow.pop %v1830
        %v1832 = vmul.f32 %v1774, 1.442695
        %v1833 = vpow.pop %v1832
        %v1834 = vmul.f32 %v1775, 1.442695
        %v1835 = vpow.pop %v1834
        %v1836 = vmul.f32 %v1776, 1.442695
        %v1837 = vpow.pop %v1836
        %v1838 = vmul.f32 %v1777, 1.442695
        %v1839 = vpow.pop %v1838
        %v1840 = vmul.f32 %v1778, 1.442695
        %v1841 = vpow.pop %v1840
        %v1842 = vmul.f32 %v1779, 1.442695
        %v1843 = vpow.pop %v1842
        %v1844 = vadd.f32 %v1781, 1.0
        %v1845 = vadd.f32 %v1783, 1.0
        %v1846 = vadd.f32 %v1785, 1.0
        %v1847 = vadd.f32 %v1787, 1.0
        %v1848 = vadd.f32 %v1789, 1.0
        %v1849 = vadd.f32 %v1791, 1.0
        %v1850 = vadd.f32 %v1793, 1.0
        %v1851 = vadd.f32 %v1795, 1.0
        %v1852 = vadd.f32 %v1797, 1.0
        %v1853 = vadd.f32 %v1799, 1.0
        %v1854 = vadd.f32 %v1801, 1.0
        %v1855 = vadd.f32 %v1803, 1.0
        %v1856 = vadd.f32 %v1805, 1.0
        %v1857 = vadd.f32 %v1807, 1.0
        %v1858 = vadd.f32 %v1809, 1.0
        %v1859 = vadd.f32 %v1811, 1.0
        %v1860 = vadd.f32 %v1813, 1.0
        %v1861 = vadd.f32 %v1815, 1.0
        %v1862 = vadd.f32 %v1817, 1.0
        %v1863 = vadd.f32 %v1819, 1.0
        %v1864 = vadd.f32 %v1821, 1.0
        %v1865 = vadd.f32 %v1823, 1.0
        %v1866 = vadd.f32 %v1825, 1.0
        %v1867 = vadd.f32 %v1827, 1.0
        %v1868 = vadd.f32 %v1829, 1.0
        %v1869 = vadd.f32 %v1831, 1.0
        %v1870 = vadd.f32 %v1833, 1.0
        %v1871 = vadd.f32 %v1835, 1.0
        %v1872 = vadd.f32 %v1837, 1.0
        %v1873 = vadd.f32 %v1839, 1.0
        %v1874 = vadd.f32 %v1841, 1.0
        %v1875 = vadd.f32 %v1843, 1.0
        %v1876 = vrcp.pop %v1844
        %v1877 = vmul.f32 1.0, %v1876
        %v1878 = vrcp.pop %v1845
        %v1879 = vmul.f32 1.0, %v1878
        %v1880 = vrcp.pop %v1846
        %v1881 = vmul.f32 1.0, %v1880
        %v1882 = vrcp.pop %v1847
        %v1883 = vmul.f32 1.0, %v1882
        %v1884 = vrcp.pop %v1848
        %v1885 = vmul.f32 1.0, %v1884
        %v1886 = vrcp.pop %v1849
        %v1887 = vmul.f32 1.0, %v1886
        %v1888 = vrcp.pop %v1850
        %v1889 = vmul.f32 1.0, %v1888
        %v1890 = vrcp.pop %v1851
        %v1891 = vmul.f32 1.0, %v1890
        %v1892 = vrcp.pop %v1852
        %v1893 = vmul.f32 1.0, %v1892
        %v1894 = vrcp.pop %v1853
        %v1895 = vmul.f32 1.0, %v1894
        %v1896 = vrcp.pop %v1854
        %v1897 = vmul.f32 1.0, %v1896
        %v1898 = vrcp.pop %v1855
        %v1899 = vmul.f32 1.0, %v1898
        %v1900 = vrcp.pop %v1856
        %v1901 = vmul.f32 1.0, %v1900
        %v1902 = vrcp.pop %v1857
        %v1903 = vmul.f32 1.0, %v1902
        %v1904 = vrcp.pop %v1858
        %v1905 = vmul.f32 1.0, %v1904
        %v1906 = vrcp.pop %v1859
        %v1907 = vmul.f32 1.0, %v1906
        %v1908 = vrcp.pop %v1860
        %v1909 = vmul.f32 1.0, %v1908
        %v1910 = vrcp.pop %v1861
        %v1911 = vmul.f32 1.0, %v1910
        %v1912 = vrcp.pop %v1862
        %v1913 = vmul.f32 1.0, %v1912
        %v1914 = vrcp.pop %v1863
        %v1915 = vmul.f32 1.0, %v1914
        %v1916 = vrcp.pop %v1864
        %v1917 = vmul.f32 1.0, %v1916
        %v1918 = vrcp.pop %v1865
        %v1919 = vmul.f32 1.0, %v1918
        %v1920 = vrcp.pop %v1866
        %v1921 = vmul.f32 1.0, %v1920
        %v1922 = vrcp.pop %v1867
        %v1923 = vmul.f32 1.0, %v1922
        %v1924 = vrcp.pop %v1868
        %v1925 = vmul.f32 1.0, %v1924
        %v1926 = vrcp.pop %v1869
        %v1927 = vmul.f32 1.0, %v1926
        %v1928 = vrcp.pop %v1870
        %v1929 = vmul.f32 1.0, %v1928
        %v1930 = vrcp.pop %v1871
        %v1931 = vmul.f32 1.0, %v1930
        %v1932 = vrcp.pop %v1872
        %v1933 = vmul.f32 1.0, %v1932
        %v1934 = vrcp.pop %v1873
        %v1935 = vmul.f32 1.0, %v1934
        %v1936 = vrcp.pop %v1874
        %v1937 = vmul.f32 1.0, %v1936
        %v1938 = vrcp.pop %v1875
        %v1939 = vmul.f32 1.0, %v1938
        %1972 = vrot.lane.b32.xlu0 %v1108, 32
        %v1973 = vpop.permute.xlu0 %1972
        %1974 = vrot.lane.b32.xlu0 %v1109, 32
        %v1975 = vpop.permute.xlu0 %1974
        %1976 = vrot.lane.b32.xlu0 %v1110, 32
        %v1977 = vpop.permute.xlu0 %1976
        %1978 = vrot.lane.b32.xlu0 %v1111, 32
        %v1979 = vpop.permute.xlu0 %1978
        %1980 = vrot.lane.b32.xlu0 %v1112, 32
        %v1981 = vpop.permute.xlu0 %1980
        %1982 = vrot.lane.b32.xlu0 %v1113, 32
        %v1983 = vpop.permute.xlu0 %1982
        %1984 = vrot.lane.b32.xlu0 %v1114, 32
        %v1985 = vpop.permute.xlu0 %1984
        %1986 = vrot.lane.b32.xlu0 %v1115, 32
        %v1987 = vpop.permute.xlu0 %1986
        %1988 = vrot.lane.b32.xlu0 %v1116, 32
        %v1989 = vpop.permute.xlu0 %1988
        %1990 = vrot.lane.b32.xlu0 %v1117, 32
        %v1991 = vpop.permute.xlu0 %1990
        %1992 = vrot.lane.b32.xlu0 %v1118, 32
        %v1993 = vpop.permute.xlu0 %1992
        %1994 = vrot.lane.b32.xlu0 %v1119, 32
        %v1995 = vpop.permute.xlu0 %1994
        %1996 = vrot.lane.b32.xlu0 %v1120, 32
        %v1997 = vpop.permute.xlu0 %1996
        %1998 = vrot.lane.b32.xlu0 %v1121, 32
        %v1999 = vpop.permute.xlu0 %1998
        %2000 = vrot.lane.b32.xlu0 %v1122, 32
        %v2001 = vpop.permute.xlu0 %2000
        %2002 = vrot.lane.b32.xlu0 %v1123, 32
        %v2003 = vpop.permute.xlu0 %2002
        %2004 = vrot.lane.b32.xlu0 %v1124, 32
        %v2005 = vpop.permute.xlu0 %2004
        %2006 = vrot.lane.b32.xlu0 %v1125, 32
        %v2007 = vpop.permute.xlu0 %2006
        %2008 = vrot.lane.b32.xlu0 %v1126, 32
        %v2009 = vpop.permute.xlu0 %2008
        %2010 = vrot.lane.b32.xlu0 %v1127, 32
        %v2011 = vpop.permute.xlu0 %2010
        %2012 = vrot.lane.b32.xlu0 %v1128, 32
        %v2013 = vpop.permute.xlu0 %2012
        %2014 = vrot.lane.b32.xlu0 %v1129, 32
        %v2015 = vpop.permute.xlu0 %2014
        %2016 = vrot.lane.b32.xlu0 %v1130, 32
        %v2017 = vpop.permute.xlu0 %2016
        %2018 = vrot.lane.b32.xlu0 %v1131, 32
        %v2019 = vpop.permute.xlu0 %2018
        %2020 = vrot.lane.b32.xlu0 %v1132, 32
        %v2021 = vpop.permute.xlu0 %2020
        %2022 = vrot.lane.b32.xlu0 %v1133, 32
        %v2023 = vpop.permute.xlu0 %2022
        %2024 = vrot.lane.b32.xlu0 %v1134, 32
        %v2025 = vpop.permute.xlu0 %2024
        %2026 = vrot.lane.b32.xlu0 %v1135, 32
        %v2027 = vpop.permute.xlu0 %2026
        %2028 = vrot.lane.b32.xlu0 %v1136, 32
        %v2029 = vpop.permute.xlu0 %2028
        %2030 = vrot.lane.b32.xlu0 %v1137, 32
        %v2031 = vpop.permute.xlu0 %2030
        %2032 = vrot.lane.b32.xlu0 %v1138, 32
        %v2033 = vpop.permute.xlu0 %2032
        %2034 = vrot.lane.b32.xlu0 %v1139, 32
        %v2035 = vpop.permute.xlu0 %2034
        %v2068 = vmul.f32 %v1877, %v1973
        %v2069 = vmul.f32 %v1879, %v1975
        %v2070 = vmul.f32 %v1881, %v1977
        %v2071 = vmul.f32 %v1883, %v1979
        %v2072 = vmul.f32 %v1885, %v1981
        %v2073 = vmul.f32 %v1887, %v1983
        %v2074 = vmul.f32 %v1889, %v1985
        %v2075 = vmul.f32 %v1891, %v1987
        %v2076 = vmul.f32 %v1893, %v1989
        %v2077 = vmul.f32 %v1895, %v1991
        %v2078 = vmul.f32 %v1897, %v1993
        %v2079 = vmul.f32 %v1899, %v1995
        %v2080 = vmul.f32 %v1901, %v1997
        %v2081 = vmul.f32 %v1903, %v1999
        %v2082 = vmul.f32 %v1905, %v2001
        %v2083 = vmul.f32 %v1907, %v2003
        %v2084 = vmul.f32 %v1909, %v2005
        %v2085 = vmul.f32 %v1911, %v2007
        %v2086 = vmul.f32 %v1913, %v2009
        %v2087 = vmul.f32 %v1915, %v2011
        %v2088 = vmul.f32 %v1917, %v2013
        %v2089 = vmul.f32 %v1919, %v2015
        %v2090 = vmul.f32 %v1921, %v2017
        %v2091 = vmul.f32 %v1923, %v2019
        %v2092 = vmul.f32 %v1925, %v2021
        %v2093 = vmul.f32 %v1927, %v2023
        %v2094 = vmul.f32 %v1929, %v2025
        %v2095 = vmul.f32 %v1931, %v2027
        %v2096 = vmul.f32 %v1933, %v2029
        %v2097 = vmul.f32 %v1935, %v2031
        %v2098 = vmul.f32 %v1937, %v2033
        %v2099 = vmul.f32 %v1939, %v2035
        %v2100 = vtanh.pop %v982
        %v2101 = vtanh.pop %v985
        %v2102 = vtanh.pop %v990
        %v2103 = vtanh.pop %v993
        %v2104 = vtanh.pop %v998
        %v2105 = vtanh.pop %v1001
        %v2106 = vtanh.pop %v1006
        %v2107 = vtanh.pop %v1009
        %v2108 = vtanh.pop %v1014
        %v2109 = vtanh.pop %v1017
        %v2110 = vtanh.pop %v1022
        %v2111 = vtanh.pop %v1025
        %v2112 = vtanh.pop %v1030
        %v2113 = vtanh.pop %v1033
        %v2114 = vtanh.pop %v1038
        %v2115 = vtanh.pop %v1041
        %v2116 = vtanh.pop %v1046
        %v2117 = vtanh.pop %v1049
        %v2118 = vtanh.pop %v1054
        %v2119 = vtanh.pop %v1057
        %v2120 = vtanh.pop %v1062
        %v2121 = vtanh.pop %v1065
        %v2122 = vtanh.pop %v1070
        %v2123 = vtanh.pop %v1073
        %v2124 = vtanh.pop %v1078
        %v2125 = vtanh.pop %v1081
        %v2126 = vtanh.pop %v1086
        %v2127 = vtanh.pop %v1089
        %v2128 = vtanh.pop %v1094
        %v2129 = vtanh.pop %v1097
        %v2130 = vtanh.pop %v1102
        %v2131 = vtanh.pop %v1105
        %2164 = vrot.lane.b32.xlu0 %v2100, 64
        %v2165 = vpop.permute.xlu0 %2164
        %2166 = vrot.lane.b32.xlu0 %v2101, 64
        %v2167 = vpop.permute.xlu0 %2166
        %2168 = vrot.lane.b32.xlu0 %v2102, 64
        %v2169 = vpop.permute.xlu0 %2168
        %2170 = vrot.lane.b32.xlu0 %v2103, 64
        %v2171 = vpop.permute.xlu0 %2170
        %2172 = vrot.lane.b32.xlu0 %v2104, 64
        %v2173 = vpop.permute.xlu0 %2172
        %2174 = vrot.lane.b32.xlu0 %v2105, 64
        %v2175 = vpop.permute.xlu0 %2174
        %2176 = vrot.lane.b32.xlu0 %v2106, 64
        %v2177 = vpop.permute.xlu0 %2176
        %2178 = vrot.lane.b32.xlu0 %v2107, 64
        %v2179 = vpop.permute.xlu0 %2178
        %2180 = vrot.lane.b32.xlu0 %v2108, 64
        %v2181 = vpop.permute.xlu0 %2180
        %2182 = vrot.lane.b32.xlu0 %v2109, 64
        %v2183 = vpop.permute.xlu0 %2182
        %2184 = vrot.lane.b32.xlu0 %v2110, 64
        %v2185 = vpop.permute.xlu0 %2184
        %2186 = vrot.lane.b32.xlu0 %v2111, 64
        %v2187 = vpop.permute.xlu0 %2186
        %2188 = vrot.lane.b32.xlu0 %v2112, 64
        %v2189 = vpop.permute.xlu0 %2188
        %2190 = vrot.lane.b32.xlu0 %v2113, 64
        %v2191 = vpop.permute.xlu0 %2190
        %2192 = vrot.lane.b32.xlu0 %v2114, 64
        %v2193 = vpop.permute.xlu0 %2192
        %2194 = vrot.lane.b32.xlu0 %v2115, 64
        %v2195 = vpop.permute.xlu0 %2194
        %2196 = vrot.lane.b32.xlu0 %v2116, 64
        %v2197 = vpop.permute.xlu0 %2196
        %2198 = vrot.lane.b32.xlu0 %v2117, 64
        %v2199 = vpop.permute.xlu0 %2198
        %2200 = vrot.lane.b32.xlu0 %v2118, 64
        %v2201 = vpop.permute.xlu0 %2200
        %2202 = vrot.lane.b32.xlu0 %v2119, 64
        %v2203 = vpop.permute.xlu0 %2202
        %2204 = vrot.lane.b32.xlu0 %v2120, 64
        %v2205 = vpop.permute.xlu0 %2204
        %2206 = vrot.lane.b32.xlu0 %v2121, 64
        %v2207 = vpop.permute.xlu0 %2206
        %2208 = vrot.lane.b32.xlu0 %v2122, 64
        %v2209 = vpop.permute.xlu0 %2208
        %2210 = vrot.lane.b32.xlu0 %v2123, 64
        %v2211 = vpop.permute.xlu0 %2210
        %2212 = vrot.lane.b32.xlu0 %v2124, 64
        %v2213 = vpop.permute.xlu0 %2212
        %2214 = vrot.lane.b32.xlu0 %v2125, 64
        %v2215 = vpop.permute.xlu0 %2214
        %2216 = vrot.lane.b32.xlu0 %v2126, 64
        %v2217 = vpop.permute.xlu0 %2216
        %2218 = vrot.lane.b32.xlu0 %v2127, 64
        %v2219 = vpop.permute.xlu0 %2218
        %2220 = vrot.lane.b32.xlu0 %v2128, 64
        %v2221 = vpop.permute.xlu0 %2220
        %2222 = vrot.lane.b32.xlu0 %v2129, 64
        %v2223 = vpop.permute.xlu0 %2222
        %2224 = vrot.lane.b32.xlu0 %v2130, 64
        %v2225 = vpop.permute.xlu0 %2224
        %2226 = vrot.lane.b32.xlu0 %v2131, 64
        %v2227 = vpop.permute.xlu0 %2226
        %v2260 = vmul.f32 %v1365, %v2165
        %v2261 = vmul.f32 %v1367, %v2167
        %v2262 = vmul.f32 %v1369, %v2169
        %v2263 = vmul.f32 %v1371, %v2171
        %v2264 = vmul.f32 %v1373, %v2173
        %v2265 = vmul.f32 %v1375, %v2175
        %v2266 = vmul.f32 %v1377, %v2177
        %v2267 = vmul.f32 %v1379, %v2179
        %v2268 = vmul.f32 %v1381, %v2181
        %v2269 = vmul.f32 %v1383, %v2183
        %v2270 = vmul.f32 %v1385, %v2185
        %v2271 = vmul.f32 %v1387, %v2187
        %v2272 = vmul.f32 %v1389, %v2189
        %v2273 = vmul.f32 %v1391, %v2191
        %v2274 = vmul.f32 %v1393, %v2193
        %v2275 = vmul.f32 %v1395, %v2195
        %v2276 = vmul.f32 %v1397, %v2197
        %v2277 = vmul.f32 %v1399, %v2199
        %v2278 = vmul.f32 %v1401, %v2201
        %v2279 = vmul.f32 %v1403, %v2203
        %v2280 = vmul.f32 %v1405, %v2205
        %v2281 = vmul.f32 %v1407, %v2207
        %v2282 = vmul.f32 %v1409, %v2209
        %v2283 = vmul.f32 %v1411, %v2211
        %v2284 = vmul.f32 %v1413, %v2213
        %v2285 = vmul.f32 %v1415, %v2215
        %v2286 = vmul.f32 %v1417, %v2217
        %v2287 = vmul.f32 %v1419, %v2219
        %v2288 = vmul.f32 %v1421, %v2221
        %v2289 = vmul.f32 %v1423, %v2223
        %v2290 = vmul.f32 %v1425, %v2225
        %v2291 = vmul.f32 %v1427, %v2227
        %2324 = vrot.lane.b32.xlu0 %v2260, 32
        %v2325 = vpop.permute.xlu0 %2324
        %2326 = vrot.lane.b32.xlu0 %v2261, 32
        %v2327 = vpop.permute.xlu0 %2326
        %2328 = vrot.lane.b32.xlu0 %v2262, 32
        %v2329 = vpop.permute.xlu0 %2328
        %2330 = vrot.lane.b32.xlu0 %v2263, 32
        %v2331 = vpop.permute.xlu0 %2330
        %2332 = vrot.lane.b32.xlu0 %v2264, 32
        %v2333 = vpop.permute.xlu0 %2332
        %2334 = vrot.lane.b32.xlu0 %v2265, 32
        %v2335 = vpop.permute.xlu0 %2334
        %2336 = vrot.lane.b32.xlu0 %v2266, 32
        %v2337 = vpop.permute.xlu0 %2336
        %2338 = vrot.lane.b32.xlu0 %v2267, 32
        %v2339 = vpop.permute.xlu0 %2338
        %2340 = vrot.lane.b32.xlu0 %v2268, 32
        %v2341 = vpop.permute.xlu0 %2340
        %2342 = vrot.lane.b32.xlu0 %v2269, 32
        %v2343 = vpop.permute.xlu0 %2342
        %2344 = vrot.lane.b32.xlu0 %v2270, 32
        %v2345 = vpop.permute.xlu0 %2344
        %2346 = vrot.lane.b32.xlu0 %v2271, 32
        %v2347 = vpop.permute.xlu0 %2346
        %2348 = vrot.lane.b32.xlu0 %v2272, 32
        %v2349 = vpop.permute.xlu0 %2348
        %2350 = vrot.lane.b32.xlu0 %v2273, 32
        %v2351 = vpop.permute.xlu0 %2350
        %2352 = vrot.lane.b32.xlu0 %v2274, 32
        %v2353 = vpop.permute.xlu0 %2352
        %2354 = vrot.lane.b32.xlu0 %v2275, 32
        %v2355 = vpop.permute.xlu0 %2354
        %2356 = vrot.lane.b32.xlu0 %v2276, 32
        %v2357 = vpop.permute.xlu0 %2356
        %2358 = vrot.lane.b32.xlu0 %v2277, 32
        %v2359 = vpop.permute.xlu0 %2358
        %2360 = vrot.lane.b32.xlu0 %v2278, 32
        %v2361 = vpop.permute.xlu0 %2360
        %2362 = vrot.lane.b32.xlu0 %v2279, 32
        %v2363 = vpop.permute.xlu0 %2362
        %2364 = vrot.lane.b32.xlu0 %v2280, 32
        %v2365 = vpop.permute.xlu0 %2364
        %2366 = vrot.lane.b32.xlu0 %v2281, 32
        %v2367 = vpop.permute.xlu0 %2366
        %2368 = vrot.lane.b32.xlu0 %v2282, 32
        %v2369 = vpop.permute.xlu0 %2368
        %2370 = vrot.lane.b32.xlu0 %v2283, 32
        %v2371 = vpop.permute.xlu0 %2370
        %2372 = vrot.lane.b32.xlu0 %v2284, 32
        %v2373 = vpop.permute.xlu0 %2372
        %2374 = vrot.lane.b32.xlu0 %v2285, 32
        %v2375 = vpop.permute.xlu0 %2374
        %2376 = vrot.lane.b32.xlu0 %v2286, 32
        %v2377 = vpop.permute.xlu0 %2376
        %2378 = vrot.lane.b32.xlu0 %v2287, 32
        %v2379 = vpop.permute.xlu0 %2378
        %2380 = vrot.lane.b32.xlu0 %v2288, 32
        %v2381 = vpop.permute.xlu0 %2380
        %2382 = vrot.lane.b32.xlu0 %v2289, 32
        %v2383 = vpop.permute.xlu0 %2382
        %2384 = vrot.lane.b32.xlu0 %v2290, 32
        %v2385 = vpop.permute.xlu0 %2384
        %2386 = vrot.lane.b32.xlu0 %v2291, 32
        %v2387 = vpop.permute.xlu0 %2386
        %v2420 = vadd.f32 %v2068, %v2325
        %v2421 = vadd.f32 %v2069, %v2327
        %v2422 = vadd.f32 %v2070, %v2329
        %v2423 = vadd.f32 %v2071, %v2331
        %v2424 = vadd.f32 %v2072, %v2333
        %v2425 = vadd.f32 %v2073, %v2335
        %v2426 = vadd.f32 %v2074, %v2337
        %v2427 = vadd.f32 %v2075, %v2339
        %v2428 = vadd.f32 %v2076, %v2341
        %v2429 = vadd.f32 %v2077, %v2343
        %v2430 = vadd.f32 %v2078, %v2345
        %v2431 = vadd.f32 %v2079, %v2347
        %v2432 = vadd.f32 %v2080, %v2349
        %v2433 = vadd.f32 %v2081, %v2351
        %v2434 = vadd.f32 %v2082, %v2353
        %v2435 = vadd.f32 %v2083, %v2355
        %v2436 = vadd.f32 %v2084, %v2357
        %v2437 = vadd.f32 %v2085, %v2359
        %v2438 = vadd.f32 %v2086, %v2361
        %v2439 = vadd.f32 %v2087, %v2363
        %v2440 = vadd.f32 %v2088, %v2365
        %v2441 = vadd.f32 %v2089, %v2367
        %v2442 = vadd.f32 %v2090, %v2369
        %v2443 = vadd.f32 %v2091, %v2371
        %v2444 = vadd.f32 %v2092, %v2373
        %v2445 = vadd.f32 %v2093, %v2375
        %v2446 = vadd.f32 %v2094, %v2377
        %v2447 = vadd.f32 %v2095, %v2379
        %v2448 = vadd.f32 %v2096, %v2381
        %v2449 = vadd.f32 %v2097, %v2383
        %v2450 = vadd.f32 %v2098, %v2385
        %v2451 = vadd.f32 %v2099, %v2387
        %v2452 = vmul.f32 %v2420, %v1461
        %v2453 = vmul.f32 %v2421, %v1463
        %v2454 = vmul.f32 %v2422, %v1465
        %v2455 = vmul.f32 %v2423, %v1467
        %v2456 = vmul.f32 %v2424, %v1469
        %v2457 = vmul.f32 %v2425, %v1471
        %v2458 = vmul.f32 %v2426, %v1473
        %v2459 = vmul.f32 %v2427, %v1475
        %v2460 = vmul.f32 %v2428, %v1477
        %v2461 = vmul.f32 %v2429, %v1479
        %v2462 = vmul.f32 %v2430, %v1481
        %v2463 = vmul.f32 %v2431, %v1483
        %v2464 = vmul.f32 %v2432, %v1485
        %v2465 = vmul.f32 %v2433, %v1487
        %v2466 = vmul.f32 %v2434, %v1489
        %v2467 = vmul.f32 %v2435, %v1491
        %v2468 = vmul.f32 %v2436, %v1493
        %v2469 = vmul.f32 %v2437, %v1495
        %v2470 = vmul.f32 %v2438, %v1497
        %v2471 = vmul.f32 %v2439, %v1499
        %v2472 = vmul.f32 %v2440, %v1501
        %v2473 = vmul.f32 %v2441, %v1503
        %v2474 = vmul.f32 %v2442, %v1505
        %v2475 = vmul.f32 %v2443, %v1507
        %v2476 = vmul.f32 %v2444, %v1509
        %v2477 = vmul.f32 %v2445, %v1511
        %v2478 = vmul.f32 %v2446, %v1513
        %v2479 = vmul.f32 %v2447, %v1515
        %v2480 = vmul.f32 %v2448, %v1517
        %v2481 = vmul.f32 %v2449, %v1519
        %v2482 = vmul.f32 %v2450, %v1521
        %v2483 = vmul.f32 %v2451, %v1523
        %2516 = vrot.lane.b32.xlu0 %v2452, 64
        %v2517 = vpop.permute.xlu0 %2516
        %2518 = vrot.lane.b32.xlu0 %v2453, 64
        %v2519 = vpop.permute.xlu0 %2518
        %2520 = vrot.lane.b32.xlu0 %v2454, 64
        %v2521 = vpop.permute.xlu0 %2520
        %2522 = vrot.lane.b32.xlu0 %v2455, 64
        %v2523 = vpop.permute.xlu0 %2522
        %2524 = vrot.lane.b32.xlu0 %v2456, 64
        %v2525 = vpop.permute.xlu0 %2524
        %2526 = vrot.lane.b32.xlu0 %v2457, 64
        %v2527 = vpop.permute.xlu0 %2526
        %2528 = vrot.lane.b32.xlu0 %v2458, 64
        %v2529 = vpop.permute.xlu0 %2528
        %2530 = vrot.lane.b32.xlu0 %v2459, 64
        %v2531 = vpop.permute.xlu0 %2530
        %2532 = vrot.lane.b32.xlu0 %v2460, 64
        %v2533 = vpop.permute.xlu0 %2532
        %2534 = vrot.lane.b32.xlu0 %v2461, 64
        %v2535 = vpop.permute.xlu0 %2534
        %2536 = vrot.lane.b32.xlu0 %v2462, 64
        %v2537 = vpop.permute.xlu0 %2536
        %2538 = vrot.lane.b32.xlu0 %v2463, 64
        %v2539 = vpop.permute.xlu0 %2538
        %2540 = vrot.lane.b32.xlu0 %v2464, 64
        %v2541 = vpop.permute.xlu0 %2540
        %2542 = vrot.lane.b32.xlu0 %v2465, 64
        %v2543 = vpop.permute.xlu0 %2542
        %2544 = vrot.lane.b32.xlu0 %v2466, 64
        %v2545 = vpop.permute.xlu0 %2544
        %2546 = vrot.lane.b32.xlu0 %v2467, 64
        %v2547 = vpop.permute.xlu0 %2546
        %2548 = vrot.lane.b32.xlu0 %v2468, 64
        %v2549 = vpop.permute.xlu0 %2548
        %2550 = vrot.lane.b32.xlu0 %v2469, 64
        %v2551 = vpop.permute.xlu0 %2550
        %2552 = vrot.lane.b32.xlu0 %v2470, 64
        %v2553 = vpop.permute.xlu0 %2552
        %2554 = vrot.lane.b32.xlu0 %v2471, 64
        %v2555 = vpop.permute.xlu0 %2554
        %2556 = vrot.lane.b32.xlu0 %v2472, 64
        %v2557 = vpop.permute.xlu0 %2556
        %2558 = vrot.lane.b32.xlu0 %v2473, 64
        %v2559 = vpop.permute.xlu0 %2558
        %2560 = vrot.lane.b32.xlu0 %v2474, 64
        %v2561 = vpop.permute.xlu0 %2560
        %2562 = vrot.lane.b32.xlu0 %v2475, 64
        %v2563 = vpop.permute.xlu0 %2562
        %2564 = vrot.lane.b32.xlu0 %v2476, 64
        %v2565 = vpop.permute.xlu0 %2564
        %2566 = vrot.lane.b32.xlu0 %v2477, 64
        %v2567 = vpop.permute.xlu0 %2566
        %2568 = vrot.lane.b32.xlu0 %v2478, 64
        %v2569 = vpop.permute.xlu0 %2568
        %2570 = vrot.lane.b32.xlu0 %v2479, 64
        %v2571 = vpop.permute.xlu0 %2570
        %2572 = vrot.lane.b32.xlu0 %v2480, 64
        %v2573 = vpop.permute.xlu0 %2572
        %2574 = vrot.lane.b32.xlu0 %v2481, 64
        %v2575 = vpop.permute.xlu0 %2574
        %2576 = vrot.lane.b32.xlu0 %v2482, 64
        %v2577 = vpop.permute.xlu0 %2576
        %2578 = vrot.lane.b32.xlu0 %v2483, 64
        %v2579 = vpop.permute.xlu0 %2578
        %v2612 = vadd.f32 %v982, %v2517
        %v2613 = vadd.f32 %v985, %v2519
        %v2614 = vadd.f32 %v990, %v2521
        %v2615 = vadd.f32 %v993, %v2523
        %v2616 = vadd.f32 %v998, %v2525
        %v2617 = vadd.f32 %v1001, %v2527
        %v2618 = vadd.f32 %v1006, %v2529
        %v2619 = vadd.f32 %v1009, %v2531
        %v2620 = vadd.f32 %v1014, %v2533
        %v2621 = vadd.f32 %v1017, %v2535
        %v2622 = vadd.f32 %v1022, %v2537
        %v2623 = vadd.f32 %v1025, %v2539
        %v2624 = vadd.f32 %v1030, %v2541
        %v2625 = vadd.f32 %v1033, %v2543
        %v2626 = vadd.f32 %v1038, %v2545
        %v2627 = vadd.f32 %v1041, %v2547
        %v2628 = vadd.f32 %v1046, %v2549
        %v2629 = vadd.f32 %v1049, %v2551
        %v2630 = vadd.f32 %v1054, %v2553
        %v2631 = vadd.f32 %v1057, %v2555
        %v2632 = vadd.f32 %v1062, %v2557
        %v2633 = vadd.f32 %v1065, %v2559
        %v2634 = vadd.f32 %v1070, %v2561
        %v2635 = vadd.f32 %v1073, %v2563
        %v2636 = vadd.f32 %v1078, %v2565
        %v2637 = vadd.f32 %v1081, %v2567
        %v2638 = vadd.f32 %v1086, %v2569
        %v2639 = vadd.f32 %v1089, %v2571
        %v2640 = vadd.f32 %v1094, %v2573
        %v2641 = vadd.f32 %v1097, %v2575
        %v2642 = vadd.f32 %v1102, %v2577
        %v2643 = vadd.f32 %v1105, %v2579
        %v2644 = vxor.u32 %v2612, 2147483648
        %v2645 = vxor.u32 %v2613, 2147483648
        %v2646 = vxor.u32 %v2614, 2147483648
        %v2647 = vxor.u32 %v2615, 2147483648
        %v2648 = vxor.u32 %v2616, 2147483648
        %v2649 = vxor.u32 %v2617, 2147483648
        %v2650 = vxor.u32 %v2618, 2147483648
        %v2651 = vxor.u32 %v2619, 2147483648
        %v2652 = vxor.u32 %v2620, 2147483648
        %v2653 = vxor.u32 %v2621, 2147483648
        %v2654 = vxor.u32 %v2622, 2147483648
        %v2655 = vxor.u32 %v2623, 2147483648
        %v2656 = vxor.u32 %v2624, 2147483648
        %v2657 = vxor.u32 %v2625, 2147483648
        %v2658 = vxor.u32 %v2626, 2147483648
        %v2659 = vxor.u32 %v2627, 2147483648
        %v2660 = vxor.u32 %v2628, 2147483648
        %v2661 = vxor.u32 %v2629, 2147483648
        %v2662 = vxor.u32 %v2630, 2147483648
        %v2663 = vxor.u32 %v2631, 2147483648
        %v2664 = vxor.u32 %v2632, 2147483648
        %v2665 = vxor.u32 %v2633, 2147483648
        %v2666 = vxor.u32 %v2634, 2147483648
        %v2667 = vxor.u32 %v2635, 2147483648
        %v2668 = vxor.u32 %v2636, 2147483648
        %v2669 = vxor.u32 %v2637, 2147483648
        %v2670 = vxor.u32 %v2638, 2147483648
        %v2671 = vxor.u32 %v2639, 2147483648
        %v2672 = vxor.u32 %v2640, 2147483648
        %v2673 = vxor.u32 %v2641, 2147483648
        %v2674 = vxor.u32 %v2642, 2147483648
        %v2675 = vxor.u32 %v2643, 2147483648
        %v2676 = vmul.f32 %v2644, 1.442695
        %v2677 = vpow.pop %v2676
        %v2678 = vmul.f32 %v2645, 1.442695
        %v2679 = vpow.pop %v2678
        %v2680 = vmul.f32 %v2646, 1.442695
        %v2681 = vpow.pop %v2680
        %v2682 = vmul.f32 %v2647, 1.442695
        %v2683 = vpow.pop %v2682
        %v2684 = vmul.f32 %v2648, 1.442695
        %v2685 = vpow.pop %v2684
        %v2686 = vmul.f32 %v2649, 1.442695
        %v2687 = vpow.pop %v2686
        %v2688 = vmul.f32 %v2650, 1.442695
        %v2689 = vpow.pop %v2688
        %v2690 = vmul.f32 %v2651, 1.442695
        %v2691 = vpow.pop %v2690
        %v2692 = vmul.f32 %v2652, 1.442695
        %v2693 = vpow.pop %v2692
        %v2694 = vmul.f32 %v2653, 1.442695
        %v2695 = vpow.pop %v2694
        %v2696 = vmul.f32 %v2654, 1.442695
        %v2697 = vpow.pop %v2696
        %v2698 = vmul.f32 %v2655, 1.442695
        %v2699 = vpow.pop %v2698
        %v2700 = vmul.f32 %v2656, 1.442695
        %v2701 = vpow.pop %v2700
        %v2702 = vmul.f32 %v2657, 1.442695
        %v2703 = vpow.pop %v2702
        %v2704 = vmul.f32 %v2658, 1.442695
        %v2705 = vpow.pop %v2704
        %v2706 = vmul.f32 %v2659, 1.442695
        %v2707 = vpow.pop %v2706
        %v2708 = vmul.f32 %v2660, 1.442695
        %v2709 = vpow.pop %v2708
        %v2710 = vmul.f32 %v2661, 1.442695
        %v2711 = vpow.pop %v2710
        %v2712 = vmul.f32 %v2662, 1.442695
        %v2713 = vpow.pop %v2712
        %v2714 = vmul.f32 %v2663, 1.442695
        %v2715 = vpow.pop %v2714
        %v2716 = vmul.f32 %v2664, 1.442695
        %v2717 = vpow.pop %v2716
        %v2718 = vmul.f32 %v2665, 1.442695
        %v2719 = vpow.pop %v2718
        %v2720 = vmul.f32 %v2666, 1.442695
        %v2721 = vpow.pop %v2720
        %v2722 = vmul.f32 %v2667, 1.442695
        %v2723 = vpow.pop %v2722
        %v2724 = vmul.f32 %v2668, 1.442695
        %v2725 = vpow.pop %v2724
        %v2726 = vmul.f32 %v2669, 1.442695
        %v2727 = vpow.pop %v2726
        %v2728 = vmul.f32 %v2670, 1.442695
        %v2729 = vpow.pop %v2728
        %v2730 = vmul.f32 %v2671, 1.442695
        %v2731 = vpow.pop %v2730
        %v2732 = vmul.f32 %v2672, 1.442695
        %v2733 = vpow.pop %v2732
        %v2734 = vmul.f32 %v2673, 1.442695
        %v2735 = vpow.pop %v2734
        %v2736 = vmul.f32 %v2674, 1.442695
        %v2737 = vpow.pop %v2736
        %v2738 = vmul.f32 %v2675, 1.442695
        %v2739 = vpow.pop %v2738
        %v2740 = vadd.f32 %v2677, 1.0
        %v2741 = vadd.f32 %v2679, 1.0
        %v2742 = vadd.f32 %v2681, 1.0
        %v2743 = vadd.f32 %v2683, 1.0
        %v2744 = vadd.f32 %v2685, 1.0
        %v2745 = vadd.f32 %v2687, 1.0
        %v2746 = vadd.f32 %v2689, 1.0
        %v2747 = vadd.f32 %v2691, 1.0
        %v2748 = vadd.f32 %v2693, 1.0
        %v2749 = vadd.f32 %v2695, 1.0
        %v2750 = vadd.f32 %v2697, 1.0
        %v2751 = vadd.f32 %v2699, 1.0
        %v2752 = vadd.f32 %v2701, 1.0
        %v2753 = vadd.f32 %v2703, 1.0
        %v2754 = vadd.f32 %v2705, 1.0
        %v2755 = vadd.f32 %v2707, 1.0
        %v2756 = vadd.f32 %v2709, 1.0
        %v2757 = vadd.f32 %v2711, 1.0
        %v2758 = vadd.f32 %v2713, 1.0
        %v2759 = vadd.f32 %v2715, 1.0
        %v2760 = vadd.f32 %v2717, 1.0
        %v2761 = vadd.f32 %v2719, 1.0
        %v2762 = vadd.f32 %v2721, 1.0
        %v2763 = vadd.f32 %v2723, 1.0
        %v2764 = vadd.f32 %v2725, 1.0
        %v2765 = vadd.f32 %v2727, 1.0
        %v2766 = vadd.f32 %v2729, 1.0
        %v2767 = vadd.f32 %v2731, 1.0
        %v2768 = vadd.f32 %v2733, 1.0
        %v2769 = vadd.f32 %v2735, 1.0
        %v2770 = vadd.f32 %v2737, 1.0
        %v2771 = vadd.f32 %v2739, 1.0
        %v2772 = vrcp.pop %v2740
        %v2773 = vmul.f32 1.0, %v2772
        %v2774 = vrcp.pop %v2741
        %v2775 = vmul.f32 1.0, %v2774
        %v2776 = vrcp.pop %v2742
        %v2777 = vmul.f32 1.0, %v2776
        %v2778 = vrcp.pop %v2743
        %v2779 = vmul.f32 1.0, %v2778
        %v2780 = vrcp.pop %v2744
        %v2781 = vmul.f32 1.0, %v2780
        %v2782 = vrcp.pop %v2745
        %v2783 = vmul.f32 1.0, %v2782
        %v2784 = vrcp.pop %v2746
        %v2785 = vmul.f32 1.0, %v2784
        %v2786 = vrcp.pop %v2747
        %v2787 = vmul.f32 1.0, %v2786
        %v2788 = vrcp.pop %v2748
        %v2789 = vmul.f32 1.0, %v2788
        %v2790 = vrcp.pop %v2749
        %v2791 = vmul.f32 1.0, %v2790
        %v2792 = vrcp.pop %v2750
        %v2793 = vmul.f32 1.0, %v2792
        %v2794 = vrcp.pop %v2751
        %v2795 = vmul.f32 1.0, %v2794
        %v2796 = vrcp.pop %v2752
        %v2797 = vmul.f32 1.0, %v2796
        %v2798 = vrcp.pop %v2753
        %v2799 = vmul.f32 1.0, %v2798
        %v2800 = vrcp.pop %v2754
        %v2801 = vmul.f32 1.0, %v2800
        %v2802 = vrcp.pop %v2755
        %v2803 = vmul.f32 1.0, %v2802
        %v2804 = vrcp.pop %v2756
        %v2805 = vmul.f32 1.0, %v2804
        %v2806 = vrcp.pop %v2757
        %v2807 = vmul.f32 1.0, %v2806
        %v2808 = vrcp.pop %v2758
        %v2809 = vmul.f32 1.0, %v2808
        %v2810 = vrcp.pop %v2759
        %v2811 = vmul.f32 1.0, %v2810
        %v2812 = vrcp.pop %v2760
        %v2813 = vmul.f32 1.0, %v2812
        %v2814 = vrcp.pop %v2761
        %v2815 = vmul.f32 1.0, %v2814
        %v2816 = vrcp.pop %v2762
        %v2817 = vmul.f32 1.0, %v2816
        %v2818 = vrcp.pop %v2763
        %v2819 = vmul.f32 1.0, %v2818
        %v2820 = vrcp.pop %v2764
        %v2821 = vmul.f32 1.0, %v2820
        %v2822 = vrcp.pop %v2765
        %v2823 = vmul.f32 1.0, %v2822
        %v2824 = vrcp.pop %v2766
        %v2825 = vmul.f32 1.0, %v2824
        %v2826 = vrcp.pop %v2767
        %v2827 = vmul.f32 1.0, %v2826
        %v2828 = vrcp.pop %v2768
        %v2829 = vmul.f32 1.0, %v2828
        %v2830 = vrcp.pop %v2769
        %v2831 = vmul.f32 1.0, %v2830
        %v2832 = vrcp.pop %v2770
        %v2833 = vmul.f32 1.0, %v2832
        %v2834 = vrcp.pop %v2771
        %v2835 = vmul.f32 1.0, %v2834
        %v2836 = vtanh.pop %v2420
        %v2837 = vtanh.pop %v2421
        %v2838 = vtanh.pop %v2422
        %v2839 = vtanh.pop %v2423
        %v2840 = vtanh.pop %v2424
        %v2841 = vtanh.pop %v2425
        %v2842 = vtanh.pop %v2426
        %v2843 = vtanh.pop %v2427
        %v2844 = vtanh.pop %v2428
        %v2845 = vtanh.pop %v2429
        %v2846 = vtanh.pop %v2430
        %v2847 = vtanh.pop %v2431
        %v2848 = vtanh.pop %v2432
        %v2849 = vtanh.pop %v2433
        %v2850 = vtanh.pop %v2434
        %v2851 = vtanh.pop %v2435
        %v2852 = vtanh.pop %v2436
        %v2853 = vtanh.pop %v2437
        %v2854 = vtanh.pop %v2438
        %v2855 = vtanh.pop %v2439
        %v2856 = vtanh.pop %v2440
        %v2857 = vtanh.pop %v2441
        %v2858 = vtanh.pop %v2442
        %v2859 = vtanh.pop %v2443
        %v2860 = vtanh.pop %v2444
        %v2861 = vtanh.pop %v2445
        %v2862 = vtanh.pop %v2446
        %v2863 = vtanh.pop %v2447
        %v2864 = vtanh.pop %v2448
        %v2865 = vtanh.pop %v2449
        %v2866 = vtanh.pop %v2450
        %v2867 = vtanh.pop %v2451
        %2900 = vrot.lane.b32.xlu0 %v2836, 64
        %v2901 = vpop.permute.xlu0 %2900
        %2902 = vrot.lane.b32.xlu0 %v2837, 64
        %v2903 = vpop.permute.xlu0 %2902
        %2904 = vrot.lane.b32.xlu0 %v2838, 64
        %v2905 = vpop.permute.xlu0 %2904
        %2906 = vrot.lane.b32.xlu0 %v2839, 64
        %v2907 = vpop.permute.xlu0 %2906
        %2908 = vrot.lane.b32.xlu0 %v2840, 64
        %v2909 = vpop.permute.xlu0 %2908
        %2910 = vrot.lane.b32.xlu0 %v2841, 64
        %v2911 = vpop.permute.xlu0 %2910
        %2912 = vrot.lane.b32.xlu0 %v2842, 64
        %v2913 = vpop.permute.xlu0 %2912
        %2914 = vrot.lane.b32.xlu0 %v2843, 64
        %v2915 = vpop.permute.xlu0 %2914
        %2916 = vrot.lane.b32.xlu0 %v2844, 64
        %v2917 = vpop.permute.xlu0 %2916
        %2918 = vrot.lane.b32.xlu0 %v2845, 64
        %v2919 = vpop.permute.xlu0 %2918
        %2920 = vrot.lane.b32.xlu0 %v2846, 64
        %v2921 = vpop.permute.xlu0 %2920
        %2922 = vrot.lane.b32.xlu0 %v2847, 64
        %v2923 = vpop.permute.xlu0 %2922
        %2924 = vrot.lane.b32.xlu0 %v2848, 64
        %v2925 = vpop.permute.xlu0 %2924
        %2926 = vrot.lane.b32.xlu0 %v2849, 64
        %v2927 = vpop.permute.xlu0 %2926
        %2928 = vrot.lane.b32.xlu0 %v2850, 64
        %v2929 = vpop.permute.xlu0 %2928
        %2930 = vrot.lane.b32.xlu0 %v2851, 64
        %v2931 = vpop.permute.xlu0 %2930
        %2932 = vrot.lane.b32.xlu0 %v2852, 64
        %v2933 = vpop.permute.xlu0 %2932
        %2934 = vrot.lane.b32.xlu0 %v2853, 64
        %v2935 = vpop.permute.xlu0 %2934
        %2936 = vrot.lane.b32.xlu0 %v2854, 64
        %v2937 = vpop.permute.xlu0 %2936
        %2938 = vrot.lane.b32.xlu0 %v2855, 64
        %v2939 = vpop.permute.xlu0 %2938
        %2940 = vrot.lane.b32.xlu0 %v2856, 64
        %v2941 = vpop.permute.xlu0 %2940
        %2942 = vrot.lane.b32.xlu0 %v2857, 64
        %v2943 = vpop.permute.xlu0 %2942
        %2944 = vrot.lane.b32.xlu0 %v2858, 64
        %v2945 = vpop.permute.xlu0 %2944
        %2946 = vrot.lane.b32.xlu0 %v2859, 64
        %v2947 = vpop.permute.xlu0 %2946
        %2948 = vrot.lane.b32.xlu0 %v2860, 64
        %v2949 = vpop.permute.xlu0 %2948
        %2950 = vrot.lane.b32.xlu0 %v2861, 64
        %v2951 = vpop.permute.xlu0 %2950
        %2952 = vrot.lane.b32.xlu0 %v2862, 64
        %v2953 = vpop.permute.xlu0 %2952
        %2954 = vrot.lane.b32.xlu0 %v2863, 64
        %v2955 = vpop.permute.xlu0 %2954
        %2956 = vrot.lane.b32.xlu0 %v2864, 64
        %v2957 = vpop.permute.xlu0 %2956
        %2958 = vrot.lane.b32.xlu0 %v2865, 64
        %v2959 = vpop.permute.xlu0 %2958
        %2960 = vrot.lane.b32.xlu0 %v2866, 64
        %v2961 = vpop.permute.xlu0 %2960
        %2962 = vrot.lane.b32.xlu0 %v2867, 64
        %v2963 = vpop.permute.xlu0 %2962
        %v2996 = vmul.f32 %v2773, %v2901
        %v2997 = vmul.f32 %v2775, %v2903
        %v2998 = vmul.f32 %v2777, %v2905
        %v2999 = vmul.f32 %v2779, %v2907
        %v3000 = vmul.f32 %v2781, %v2909
        %v3001 = vmul.f32 %v2783, %v2911
        %v3002 = vmul.f32 %v2785, %v2913
        %v3003 = vmul.f32 %v2787, %v2915
        %v3004 = vmul.f32 %v2789, %v2917
        %v3005 = vmul.f32 %v2791, %v2919
        %v3006 = vmul.f32 %v2793, %v2921
        %v3007 = vmul.f32 %v2795, %v2923
        %v3008 = vmul.f32 %v2797, %v2925
        %v3009 = vmul.f32 %v2799, %v2927
        %v3010 = vmul.f32 %v2801, %v2929
        %v3011 = vmul.f32 %v2803, %v2931
        %v3012 = vmul.f32 %v2805, %v2933
        %v3013 = vmul.f32 %v2807, %v2935
        %v3014 = vmul.f32 %v2809, %v2937
        %v3015 = vmul.f32 %v2811, %v2939
        %v3016 = vmul.f32 %v2813, %v2941
        %v3017 = vmul.f32 %v2815, %v2943
        %v3018 = vmul.f32 %v2817, %v2945
        %v3019 = vmul.f32 %v2819, %v2947
        %v3020 = vmul.f32 %v2821, %v2949
        %v3021 = vmul.f32 %v2823, %v2951
        %v3022 = vmul.f32 %v2825, %v2953
        %v3023 = vmul.f32 %v2827, %v2955
        %v3024 = vmul.f32 %v2829, %v2957
        %v3025 = vmul.f32 %v2831, %v2959
        %v3026 = vmul.f32 %v2833, %v2961
        %v3027 = vmul.f32 %v2835, %v2963
        %v3028 = vpack.c.bf16 %v2997, %v2996
        %v3029 = vpack.c.bf16 %v2999, %v2998
        %v3030 = vpack.c.bf16 %v3001, %v3000
        %v3031 = vpack.c.bf16 %v3003, %v3002
        %v3032 = vpack.c.bf16 %v3005, %v3004
        %v3033 = vpack.c.bf16 %v3007, %v3006
        %v3034 = vpack.c.bf16 %v3009, %v3008
        %v3035 = vpack.c.bf16 %v3011, %v3010
        %v3036 = vpack.c.bf16 %v3013, %v3012
        %v3037 = vpack.c.bf16 %v3015, %v3014
        %v3038 = vpack.c.bf16 %v3017, %v3016
        %v3039 = vpack.c.bf16 %v3019, %v3018
        %v3040 = vpack.c.bf16 %v3021, %v3020
        %v3041 = vpack.c.bf16 %v3023, %v3022
        %v3042 = vpack.c.bf16 %v3025, %v3024
        %v3043 = vpack.c.bf16 %v3027, %v3026
        %v3060 = vunpack.c.l.b16 %v3028
        %v3061 = vunpack.c.h.b16 %v3028
        %v3062 = vunpack.c.l.b16 %v3029
        %v3063 = vunpack.c.h.b16 %v3029
        %v3064 = vunpack.c.l.b16 %v3030
        %v3065 = vunpack.c.h.b16 %v3030
        %v3066 = vunpack.c.l.b16 %v3031
        %v3067 = vunpack.c.h.b16 %v3031
        %v3068 = vunpack.c.l.b16 %v3032
        %v3069 = vunpack.c.h.b16 %v3032
        %v3070 = vunpack.c.l.b16 %v3033
        %v3071 = vunpack.c.h.b16 %v3033
        %v3072 = vunpack.c.l.b16 %v3034
        %v3073 = vunpack.c.h.b16 %v3034
        %v3074 = vunpack.c.l.b16 %v3035
        %v3075 = vunpack.c.h.b16 %v3035
        %v3076 = vunpack.c.l.b16 %v3036
        %v3077 = vunpack.c.h.b16 %v3036
        %v3078 = vunpack.c.l.b16 %v3037
        %v3079 = vunpack.c.h.b16 %v3037
        %v3080 = vunpack.c.l.b16 %v3038
        %v3081 = vunpack.c.h.b16 %v3038
        %v3082 = vunpack.c.l.b16 %v3039
        %v3083 = vunpack.c.h.b16 %v3039
        %v3084 = vunpack.c.l.b16 %v3040
        %v3085 = vunpack.c.h.b16 %v3040
        %v3086 = vunpack.c.l.b16 %v3041
        %v3087 = vunpack.c.h.b16 %v3041
        %v3088 = vunpack.c.l.b16 %v3042
        %v3089 = vunpack.c.h.b16 %v3042
        %v3090 = vunpack.c.l.b16 %v3043
        %v3091 = vunpack.c.h.b16 %v3043
        %v3092 = vpack.c.b16 %v3060, %v3060
        %v3093 = vpack.c.b16 %v3061, %v3061
        %v3094 = vpack.c.b16 %v3062, %v3062
        %v3095 = vpack.c.b16 %v3063, %v3063
        %v3096 = vpack.c.b16 %v3064, %v3064
        %v3097 = vpack.c.b16 %v3065, %v3065
        %v3098 = vpack.c.b16 %v3066, %v3066
        %v3099 = vpack.c.b16 %v3067, %v3067
        %v3100 = vpack.c.b16 %v3068, %v3068
        %v3101 = vpack.c.b16 %v3069, %v3069
        %v3102 = vpack.c.b16 %v3070, %v3070
        %v3103 = vpack.c.b16 %v3071, %v3071
        %v3104 = vpack.c.b16 %v3072, %v3072
        %v3105 = vpack.c.b16 %v3073, %v3073
        %v3106 = vpack.c.b16 %v3074, %v3074
        %v3107 = vpack.c.b16 %v3075, %v3075
        %v3108 = vpack.c.b16 %v3076, %v3076
        %v3109 = vpack.c.b16 %v3077, %v3077
        %v3110 = vpack.c.b16 %v3078, %v3078
        %v3111 = vpack.c.b16 %v3079, %v3079
        %v3112 = vpack.c.b16 %v3080, %v3080
        %v3113 = vpack.c.b16 %v3081, %v3081
        %v3114 = vpack.c.b16 %v3082, %v3082
        %v3115 = vpack.c.b16 %v3083, %v3083
        %v3116 = vpack.c.b16 %v3084, %v3084
        %v3117 = vpack.c.b16 %v3085, %v3085
        %v3118 = vpack.c.b16 %v3086, %v3086
        %v3119 = vpack.c.b16 %v3087, %v3087
        %v3120 = vpack.c.b16 %v3088, %v3088
        %v3121 = vpack.c.b16 %v3089, %v3089
        %v3122 = vpack.c.b16 %v3090, %v3090
        %v3123 = vpack.c.b16 %v3091, %v3091
        %3124 = vrot.lane.b32.xlu0 %v3092, 32
        %v3125 = vpop.permute.xlu0 %3124
        %3126 = vrot.lane.b32.xlu0 %v3093, 32
        %v3127 = vpop.permute.xlu0 %3126
        %3128 = vrot.lane.b32.xlu0 %v3094, 32
        %v3129 = vpop.permute.xlu0 %3128
        %3130 = vrot.lane.b32.xlu0 %v3095, 32
        %v3131 = vpop.permute.xlu0 %3130
        %3132 = vrot.lane.b32.xlu0 %v3096, 32
        %v3133 = vpop.permute.xlu0 %3132
        %3134 = vrot.lane.b32.xlu0 %v3097, 32
        %v3135 = vpop.permute.xlu0 %3134
        %3136 = vrot.lane.b32.xlu0 %v3098, 32
        %v3137 = vpop.permute.xlu0 %3136
        %3138 = vrot.lane.b32.xlu0 %v3099, 32
        %v3139 = vpop.permute.xlu0 %3138
        %3140 = vrot.lane.b32.xlu0 %v3100, 32
        %v3141 = vpop.permute.xlu0 %3140
        %3142 = vrot.lane.b32.xlu0 %v3101, 32
        %v3143 = vpop.permute.xlu0 %3142
        %3144 = vrot.lane.b32.xlu0 %v3102, 32
        %v3145 = vpop.permute.xlu0 %3144
        %3146 = vrot.lane.b32.xlu0 %v3103, 32
        %v3147 = vpop.permute.xlu0 %3146
        %3148 = vrot.lane.b32.xlu0 %v3104, 32
        %v3149 = vpop.permute.xlu0 %3148
        %3150 = vrot.lane.b32.xlu0 %v3105, 32
        %v3151 = vpop.permute.xlu0 %3150
        %3152 = vrot.lane.b32.xlu0 %v3106, 32
        %v3153 = vpop.permute.xlu0 %3152
        %3154 = vrot.lane.b32.xlu0 %v3107, 32
        %v3155 = vpop.permute.xlu0 %3154
        %3156 = vrot.lane.b32.xlu0 %v3108, 32
        %v3157 = vpop.permute.xlu0 %3156
        %3158 = vrot.lane.b32.xlu0 %v3109, 32
        %v3159 = vpop.permute.xlu0 %3158
        %3160 = vrot.lane.b32.xlu0 %v3110, 32
        %v3161 = vpop.permute.xlu0 %3160
        %3162 = vrot.lane.b32.xlu0 %v3111, 32
        %v3163 = vpop.permute.xlu0 %3162
        %3164 = vrot.lane.b32.xlu0 %v3112, 32
        %v3165 = vpop.permute.xlu0 %3164
        %3166 = vrot.lane.b32.xlu0 %v3113, 32
        %v3167 = vpop.permute.xlu0 %3166
        %3168 = vrot.lane.b32.xlu0 %v3114, 32
        %v3169 = vpop.permute.xlu0 %3168
        %3170 = vrot.lane.b32.xlu0 %v3115, 32
        %v3171 = vpop.permute.xlu0 %3170
        %3172 = vrot.lane.b32.xlu0 %v3116, 32
        %v3173 = vpop.permute.xlu0 %3172
        %3174 = vrot.lane.b32.xlu0 %v3117, 32
        %v3175 = vpop.permute.xlu0 %3174
        %3176 = vrot.lane.b32.xlu0 %v3118, 32
        %v3177 = vpop.permute.xlu0 %3176
        %3178 = vrot.lane.b32.xlu0 %v3119, 32
        %v3179 = vpop.permute.xlu0 %3178
        %3180 = vrot.lane.b32.xlu0 %v3120, 32
        %v3181 = vpop.permute.xlu0 %3180
        %3182 = vrot.lane.b32.xlu0 %v3121, 32
        %v3183 = vpop.permute.xlu0 %3182
        %3184 = vrot.lane.b32.xlu0 %v3122, 32
        %v3185 = vpop.permute.xlu0 %3184
        %3186 = vrot.lane.b32.xlu0 %v3123, 32
        %v3187 = vpop.permute.xlu0 %3186
        %vm3220 = vcmask 257024
        %3221 = vst.msk [vmem:[%s279] sm:$0xf] %vm3220, %v3125
        %3222 = vst.msk [vmem:[%s279 + $0x4] sm:$0xf] %vm3220, %v3127
        %3223 = vst.msk [vmem:[%s279 + $0x8] sm:$0xf] %vm3220, %v3129
        %3224 = vst.msk [vmem:[%s279 + $0xc] sm:$0xf] %vm3220, %v3131
        %3225 = vst.msk [vmem:[%s279 + $0x10] sm:$0xf] %vm3220, %v3133
        %3226 = vst.msk [vmem:[%s279 + $0x14] sm:$0xf] %vm3220, %v3135
        %3227 = vst.msk [vmem:[%s279 + $0x18] sm:$0xf] %vm3220, %v3137
        %3228 = vst.msk [vmem:[%s279 + $0x1c] sm:$0xf] %vm3220, %v3139
        %3229 = vst.msk [vmem:[%s279 + $0x20] sm:$0xf] %vm3220, %v3141
        %3230 = vst.msk [vmem:[%s279 + $0x24] sm:$0xf] %vm3220, %v3143
        %3231 = vst.msk [vmem:[%s279 + $0x28] sm:$0xf] %vm3220, %v3145
        %3232 = vst.msk [vmem:[%s279 + $0x2c] sm:$0xf] %vm3220, %v3147
        %3233 = vst.msk [vmem:[%s279 + $0x30] sm:$0xf] %vm3220, %v3149
        %3234 = vst.msk [vmem:[%s279 + $0x34] sm:$0xf] %vm3220, %v3151
        %3235 = vst.msk [vmem:[%s279 + $0x38] sm:$0xf] %vm3220, %v3153
        %3236 = vst.msk [vmem:[%s279 + $0x3c] sm:$0xf] %vm3220, %v3155
        %3237 = vst.msk [vmem:[%s279 + $0x40] sm:$0xf] %vm3220, %v3157
        %3238 = vst.msk [vmem:[%s279 + $0x44] sm:$0xf] %vm3220, %v3159
        %3239 = vst.msk [vmem:[%s279 + $0x48] sm:$0xf] %vm3220, %v3161
        %3240 = vst.msk [vmem:[%s279 + $0x4c] sm:$0xf] %vm3220, %v3163
        %3241 = vst.msk [vmem:[%s279 + $0x50] sm:$0xf] %vm3220, %v3165
        %3242 = vst.msk [vmem:[%s279 + $0x54] sm:$0xf] %vm3220, %v3167
        %3243 = vst.msk [vmem:[%s279 + $0x58] sm:$0xf] %vm3220, %v3169
        %3244 = vst.msk [vmem:[%s279 + $0x5c] sm:$0xf] %vm3220, %v3171
        %3245 = vst.msk [vmem:[%s279 + $0x60] sm:$0xf] %vm3220, %v3173
        %3246 = vst.msk [vmem:[%s279 + $0x64] sm:$0xf] %vm3220, %v3175
        %3247 = vst.msk [vmem:[%s279 + $0x68] sm:$0xf] %vm3220, %v3177
        %3248 = vst.msk [vmem:[%s279 + $0x6c] sm:$0xf] %vm3220, %v3179
        %3249 = vst.msk [vmem:[%s279 + $0x70] sm:$0xf] %vm3220, %v3181
        %3250 = vst.msk [vmem:[%s279 + $0x74] sm:$0xf] %vm3220, %v3183
        %3251 = vst.msk [vmem:[%s279 + $0x78] sm:$0xf] %vm3220, %v3185
        %3252 = vst.msk [vmem:[%s279 + $0x7c] sm:$0xf] %vm3220, %v3187
        %s3253 = smul.u32 32, %s18
        %p3254 = scmp.lt.s32.totalorder %s3253, 63
        %s3255 = scalar_select %p3254, %s3253, 63
        %s3256 = smul.addr %s3255, 4
        %s3257 = scalar_lea.vmem %s5, %s3256
        // Predicated region
        $region49: #{convlstm_forward.4} parent=39 // pred_check
          %p3258 = pneg %p151
        $region50: #{convlstm_forward.4} parent=39 // pred_check_branch
          %3260 = sbr.rel (%p3258) target = $region52
        $region51: #{convlstm_forward.4} parent=39 // pred_region
          %s3261 = smul.u32 32, %s18
        $region52: #{convlstm_forward.4} parent=39 // pred_fallthru
          _
      $region40: #{convlstm_forward.4} parent=5 // pred_fallthru
        _
      %p3262 = scmp.le.s32.totalorder 2, %s13
      // Predicated region
      $region53: #{convlstm_forward.4} parent=5 // pred_check
        %p3263 = pneg %p3262
      $region54: #{convlstm_forward.4} parent=5 // pred_check_branch
        %3265 = sbr.rel (%p3263) target = $region56
      $region55: #{convlstm_forward.4} parent=5 // pred_region
        %s3266 = ssub.s32 %s13, 2
        // Predicated region
        $region57: #{convlstm_forward.4} parent=55 // pred_check
          %p3267 = pneg %p157
        $region58: #{convlstm_forward.4} parent=55 // pred_check_branch
          %3269 = sbr.rel (%p3267) target = $region60
        $region59: #{convlstm_forward.4} parent=55 // pred_region
          %s3270 = smul.u32 32, %s19
          %p3271 = scmp.lt.s32.totalorder %s3270, 63
          %s3272 = scalar_select %p3271, %s3270, 63
          %s3273 = smul.addr %s3272, 4
          %s3274 = scalar_lea.vmem %s5, %s3273
        $region60: #{convlstm_forward.4} parent=55 // pred_fallthru
          _
      $region56: #{convlstm_forward.4} parent=5 // pred_fallthru
        _
    $region6: #{convlstm_forward.4} parent=1 // loop_footer
      %s17 = sadd.s32 1, %s13
    $region7: #{convlstm_forward.4} parent=1 // loop_footer_branch
      %12 = sbr.rel target = $region3
    $region8: #{convlstm_forward.4} parent=1 // loop_exit
      _
    %3275 = vsyncpa [#allocation3], 1
    %s3276 = scalar_lea.sflag [#allocation3], 1
    %3277 = vsyncpa %s3276, 1
    %3278 = vsyncpa [#allocation5], 1

// kernel: convlstm_forward.5
$region0: #{convlstm_forward.5}
  #allocation0 [shape = 'u32[]', space=smem, size = 0x4, offset = 0x4, fixed_abs, tag = 'smem constant byte address 0x4 - core index']
  #allocation1 [shape = 'u32[144,128]{1,0:T(1,128)}', space=vmem, size = 0x12000, scoped, tag = 'internal scratch']
  #allocation2 [shape = 'f32[2,1024]{1,0:T(2,128)}', space=vmem, size = 0x2000, scoped, tag = 'scratch operand']
  #allocation3 [shape = 'f32[1,1]{1,0:T(1,128)S(1)}', space=vmem, size = 0x200, scoped, tag = 'scoped memory for convlstm_forward.5']
  %s0 = inlined_call_operand.vmem [shape: bf16[2,8192], index: 0, kind: input, shape index: {}]
  %s1 = inlined_call_operand.hbm [shape: s8[8192,1024], index: 1, kind: input, shape index: {}]
  %s2 = inlined_call_operand.hbm [shape: f32[1,1024], index: 2, kind: input, shape index: {}]
  %s3 = inlined_call_operand.hbm [shape: f32[1,1024], index: 3, kind: input, shape index: {}]
  %s4 = inlined_call_operand.hbm [shape: f32[1,1024], index: 4, kind: input, shape index: {}]
  %s5 = inlined_call_operand.<no memory space> [shape: f32[1,1], index: 5, kind: input, shape index: {}]
  %s6 = inlined_call_operand.vmem [shape: f32[2,1], index: 6, kind: output, shape index: {}]
  %s7 = sld [smem:[#allocation0]]
  $region81: #{convlstm_forward.5} parent=0
    _
  %s9 = ssub.s32 1, %s7
  %s10 = scalar_select 0, %s9, %s7
  %v11 = vstv %s5
  %12 = vst [vmem:[#allocation3] sm:$0x1] %v11
  $region1: #{convlstm_forward.5} parent=0
    #allocation4 [shape = 'u8[4194304]{0}', space=vmem, size = 0x400000, scoped, tag = 'input window, operand 1']
    #allocation5 [shape = 's32[2]{0}', space=sflag, size = 0x8, scoped, tag = 'scoped memory for convlstm_forward.5']
    #allocation6 [shape = 'u8[4096]{0}', space=vmem, size = 0x1000, scoped, tag = 'input window, operand 2, single buffered']
    #allocation7 [shape = 's32[1]{0}', space=sflag, size = 0x4, scoped, tag = 'scoped memory for convlstm_forward.5']
    #allocation8 [shape = 'u8[4096]{0}', space=vmem, size = 0x1000, scoped, tag = 'input window, operand 3, single buffered']
    #allocation9 [shape = 'u8[4096]{0}', space=vmem, size = 0x1000, scoped, tag = 'input window, operand 4, single buffered']
    #allocation10 [shape = 's32[1]{0}', space=sflag, size = 0x4, scoped, tag = 'scoped memory for convlstm_forward.5']
    %13 = vsyncpa [#allocation5], 0
    %s14 = scalar_lea.sflag [#allocation5], 1
    %15 = vsyncpa %s14, 0
    %16 = vsyncpa [#allocation7], 0
    %17 = vsyncpa [#allocation10], 0
    loop: start=0, step=1, limit=6
    $region2: #{convlstm_forward.5} parent=1 // loop_pre_header
      _
    $region3: #{convlstm_forward.5} parent=1 // loop_header
      %s19 = sphi 0, %s23
      %p20 = scmp.ge.s32.totalorder %s19, 6
      %s29 = sphi 0, %s31
      %s32 = sphi 0, %s29
      %s33 = sphi 0, %s32
      %s49 = sphi 0, %s33
      %s55 = sphi 0, %s57
      %s58 = sphi 0, %s55
      %s59 = sphi 0, %s58
      %s75 = sphi 0, %s59
      %s79 = sphi 0, %s79
      %s81 = sphi 0, %s79
      %s82 = sphi 0, %s81
      %s96 = sphi 0, %s82
      %s100 = sphi 0, %s100
      %s102 = sphi 0, %s100
      %s103 = sphi 0, %s102
      %s117 = sphi 0, %s103
      %s121 = sphi 0, %s121
      %s123 = sphi 0, %s121
      %s124 = sphi 0, %s123
      %s138 = sphi 0, %s124
      %s142 = sphi 0, %s142
      %s144 = sphi 0, %s142
      %s145 = sphi 0, %s144
      %s159 = sphi 0, %s145
      %s163 = sphi 0, %s163
      %s165 = sphi 0, %s163
      %s166 = sphi 0, %s165
      %s180 = sphi 0, %s166
    $region4: #{convlstm_forward.5} parent=1 // loop_header_branch
      %22 = sbr.rel (%p20) target = $region8
    $region5: #{convlstm_forward.5} parent=1 // loop_body
      %s24 = ssub.s32 %s19, 1
      %s25 = ssub.s32 %s19, 2
      %s26 = sadd.s32 %s19, 1
      %s27 = ssub.s32 %s19, %s26
      %p28 = scmp.eq.s32.totalorder %s27, 0
      %s30 = sadd.s32 %s29, 1
      %s31 = scalar_select %p28, %s29, %s30
      %p34 = pneg %p28
      %p35 = scmp.eq.s32.totalorder %s19, 3
      %p36 = por %p34, %p35
      %p37 = scmp.ne.s32.totalorder %s29, %s32
      %p38 = scmp.eq.s32.totalorder %s19, 0
      %p39 = por %p37, %p38
      %p40 = scmp.ne.s32.totalorder %s29, %s32
      %p41 = scmp.eq.s32.totalorder %s24, 3
      %p42 = por %p40, %p41
      %p43 = scmp.ne.s32.totalorder %s32, %s33
      %p44 = scmp.eq.s32.totalorder %s24, 0
      %p45 = por %p43, %p44
      %p46 = scmp.ne.s32.totalorder %s32, %s33
      %p47 = scmp.eq.s32.totalorder %s25, 3
      %p48 = por %p46, %p47
      %p50 = scmp.ne.s32.totalorder %s33, %s49
      %p51 = scmp.eq.s32.totalorder %s25, 0
      %p52 = por %p50, %p51
      %s53 = ssub.s32 %s19, %s26
      %p54 = scmp.eq.s32.totalorder %s53, 0
      %s56 = sadd.s32 %s55, 1
      %s57 = scalar_select %p54, %s55, %s56
      %p60 = pneg %p54
      %p61 = scmp.eq.s32.totalorder %s19, 3
      %p62 = por %p60, %p61
      %p63 = scmp.ne.s32.totalorder %s55, %s58
      %p64 = scmp.eq.s32.totalorder %s19, 0
      %p65 = por %p63, %p64
      %p66 = scmp.ne.s32.totalorder %s55, %s58
      %p67 = scmp.eq.s32.totalorder %s24, 3
      %p68 = por %p66, %p67
      %p69 = scmp.ne.s32.totalorder %s58, %s59
      %p70 = scmp.eq.s32.totalorder %s24, 0
      %p71 = por %p69, %p70
      %p72 = scmp.ne.s32.totalorder %s58, %s59
      %p73 = scmp.eq.s32.totalorder %s25, 3
      %p74 = por %p72, %p73
      %p76 = scmp.ne.s32.totalorder %s59, %s75
      %p77 = scmp.eq.s32.totalorder %s25, 0
      %p78 = por %p76, %p77
      %s80 = sadd.s32 %s79, 1
      %p83 = scmp.eq.s32.totalorder %s19, 3
      %p84 = scmp.ne.s32.totalorder %s79, %s81
      %p85 = scmp.eq.s32.totalorder %s19, 0
      %p86 = por %p84, %p85
      %p87 = scmp.ne.s32.totalorder %s79, %s81
      %p88 = scmp.eq.s32.totalorder %s24, 3
      %p89 = por %p87, %p88
      %p90 = scmp.ne.s32.totalorder %s81, %s82
      %p91 = scmp.eq.s32.totalorder %s24, 0
      %p92 = por %p90, %p91
      %p93 = scmp.ne.s32.totalorder %s81, %s82
      %p94 = scmp.eq.s32.totalorder %s25, 3
      %p95 = por %p93, %p94
      %p97 = scmp.ne.s32.totalorder %s82, %s96
      %p98 = scmp.eq.s32.totalorder %s25, 0
      %p99 = por %p97, %p98
      %s101 = sadd.s32 %s100, 1
      %p104 = scmp.eq.s32.totalorder %s19, 3
      %p105 = scmp.ne.s32.totalorder %s100, %s102
      %p106 = scmp.eq.s32.totalorder %s19, 0
      %p107 = por %p105, %p106
      %p108 = scmp.ne.s32.totalorder %s100, %s102
      %p109 = scmp.eq.s32.totalorder %s24, 3
      %p110 = por %p108, %p109
      %p111 = scmp.ne.s32.totalorder %s102, %s103
      %p112 = scmp.eq.s32.totalorder %s24, 0
      %p113 = por %p111, %p112
      %p114 = scmp.ne.s32.totalorder %s102, %s103
      %p115 = scmp.eq.s32.totalorder %s25, 3
      %p116 = por %p114, %p115
      %p118 = scmp.ne.s32.totalorder %s103, %s117
      %p119 = scmp.eq.s32.totalorder %s25, 0
      %p120 = por %p118, %p119
      %s122 = sadd.s32 %s121, 1
      %p125 = scmp.eq.s32.totalorder %s19, 3
      %p126 = scmp.ne.s32.totalorder %s121, %s123
      %p127 = scmp.eq.s32.totalorder %s19, 0
      %p128 = por %p126, %p127
      %p129 = scmp.ne.s32.totalorder %s121, %s123
      %p130 = scmp.eq.s32.totalorder %s24, 3
      %p131 = por %p129, %p130
      %p132 = scmp.ne.s32.totalorder %s123, %s124
      %p133 = scmp.eq.s32.totalorder %s24, 0
      %p134 = por %p132, %p133
      %p135 = scmp.ne.s32.totalorder %s123, %s124
      %p136 = scmp.eq.s32.totalorder %s25, 3
      %p137 = por %p135, %p136
      %p139 = scmp.ne.s32.totalorder %s124, %s138
      %p140 = scmp.eq.s32.totalorder %s25, 0
      %p141 = por %p139, %p140
      %s143 = sadd.s32 %s142, 1
      %p146 = scmp.eq.s32.totalorder %s19, 3
      %p147 = scmp.ne.s32.totalorder %s142, %s144
      %p148 = scmp.eq.s32.totalorder %s19, 0
      %p149 = por %p147, %p148
      %p150 = scmp.ne.s32.totalorder %s142, %s144
      %p151 = scmp.eq.s32.totalorder %s24, 3
      %p152 = por %p150, %p151
      %p153 = scmp.ne.s32.totalorder %s144, %s145
      %p154 = scmp.eq.s32.totalorder %s24, 0
      %p155 = por %p153, %p154
      %p156 = scmp.ne.s32.totalorder %s144, %s145
      %p157 = scmp.eq.s32.totalorder %s25, 3
      %p158 = por %p156, %p157
      %p160 = scmp.ne.s32.totalorder %s145, %s159
      %p161 = scmp.eq.s32.totalorder %s25, 0
      %p162 = por %p160, %p161
      %s164 = sadd.s32 %s163, 1
      %p167 = scmp.eq.s32.totalorder %s19, 3
      %p168 = scmp.ne.s32.totalorder %s163, %s165
      %p169 = scmp.eq.s32.totalorder %s19, 0
      %p170 = por %p168, %p169
      %p171 = scmp.ne.s32.totalorder %s163, %s165
      %p172 = scmp.eq.s32.totalorder %s24, 3
      %p173 = por %p171, %p172
      %p174 = scmp.ne.s32.totalorder %s165, %s166
      %p175 = scmp.eq.s32.totalorder %s24, 0
      %p176 = por %p174, %p175
      %p177 = scmp.ne.s32.totalorder %s165, %s166
      %p178 = scmp.eq.s32.totalorder %s25, 3
      %p179 = por %p177, %p178
      %p181 = scmp.ne.s32.totalorder %s166, %s180
      %p182 = scmp.eq.s32.totalorder %s25, 0
      %p183 = por %p181, %p182
      %p184 = scmp.le.s32.totalorder 1, %s19
      %p185 = scmp.lt.s32.totalorder %s19, 5
      %p186 = pnand %p184, %p185
      %p187 = pneg %p186
      // Predicated region
      $region9: #{convlstm_forward.5} parent=5 // pred_check
        _
      $region10: #{convlstm_forward.5} parent=5 // pred_check_branch
        %189 = sbr.rel (%p186) target = $region12
      $region11: #{convlstm_forward.5} parent=5 // pred_region
        %s190 = ssub.s32 %s19, 1
        // Predicated region
        $region13: #{convlstm_forward.5} parent=11 // pred_check
          %p191 = pneg %p92
        $region14: #{convlstm_forward.5} parent=11 // pred_check_branch
          %193 = sbr.rel (%p191) target = $region16
        $region15: #{convlstm_forward.5} parent=11 // pred_region
          %s195 = ssub.s32 128, 128
          %196 = vsyncadd [#allocation7], %s195
          %s198 = sshll.u32 [#allocation6], 4
          %s199 = int_to_ptr.vmem [resolvable:$true] %s198
          %201 = dma.hbm_to_vmem [thread:$0]  %s2, 128, %s199, [#allocation7]
        $region16: #{convlstm_forward.5} parent=11 // pred_fallthru
          _
        // Predicated region
        $region17: #{convlstm_forward.5} parent=11 // pred_check
          %p202 = pneg %p113
        $region18: #{convlstm_forward.5} parent=11 // pred_check_branch
          %204 = sbr.rel (%p202) target = $region20
        $region19: #{convlstm_forward.5} parent=11 // pred_region
          %s206 = ssub.s32 128, 128
          %207 = vsyncadd [#allocation7], %s206
          %s209 = sshll.u32 [#allocation8], 4
          %s210 = int_to_ptr.vmem [resolvable:$true] %s209
          %212 = dma.hbm_to_vmem [thread:$0]  %s3, 128, %s210, [#allocation7]
        $region20: #{convlstm_forward.5} parent=11 // pred_fallthru
          _
        // Predicated region
        $region21: #{convlstm_forward.5} parent=11 // pred_check
          %p213 = pneg %p134
        $region22: #{convlstm_forward.5} parent=11 // pred_check_branch
          %215 = sbr.rel (%p213) target = $region24
        $region23: #{convlstm_forward.5} parent=11 // pred_region
          %s217 = ssub.s32 128, 128
          %218 = vsyncadd [#allocation10], %s217
          %s220 = sshll.u32 [#allocation9], 4
          %s221 = int_to_ptr.vmem [resolvable:$true] %s220
          %223 = dma.hbm_to_vmem [thread:$0]  %s4, 128, %s221, [#allocation10]
        $region24: #{convlstm_forward.5} parent=11 // pred_fallthru
          _
        // Predicated region
        $region25: #{convlstm_forward.5} parent=11 // pred_check
          %p224 = pneg %p155
        $region26: #{convlstm_forward.5} parent=11 // pred_check_branch
          %226 = sbr.rel (%p224) target = $region28
        $region27: #{convlstm_forward.5} parent=11 // pred_region
          _
        $region28: #{convlstm_forward.5} parent=11 // pred_fallthru
          _
      $region12: #{convlstm_forward.5} parent=5 // pred_fallthru
        _
      %p227 = scmp.lt.s32.totalorder %s19, 4
      // Predicated region
      $region29: #{convlstm_forward.5} parent=5 // pred_check
        %p228 = pneg %p227
      $region30: #{convlstm_forward.5} parent=5 // pred_check_branch
        %230 = sbr.rel (%p228) target = $region32
      $region31: #{convlstm_forward.5} parent=5 // pred_region
        // Predicated region
        $region33: #{convlstm_forward.5} parent=31 // pred_check
          %p231 = pneg %p39
        $region34: #{convlstm_forward.5} parent=31 // pred_check_branch
          %233 = sbr.rel (%p231) target = $region36
        $region35: #{convlstm_forward.5} parent=31 // pred_region
          %s234 = smul.u32 16, %s19
          %p235 = scmp.lt.s32.totalorder %s234, 63
          %s236 = scalar_select %p235, %s234, 63
          %s237 = scalar_lea.vmem %s0, %s236
          %s238 = smul.u32 16, %s19
        $region36: #{convlstm_forward.5} parent=31 // pred_fallthru
          _
        // Predicated region
        $region37: #{convlstm_forward.5} parent=31 // pred_check
          %p239 = pneg %p65
        $region38: #{convlstm_forward.5} parent=31 // pred_check_branch
          %241 = sbr.rel (%p239) target = $region40
        $region39: #{convlstm_forward.5} parent=31 // pred_region
          %s242 = sand.u32 %s55, 1
          %s243 = scalar_lea.sflag [#allocation5], %s242
          %s244 = sand.u32 %s55, 1
          %s245 = smul.addr %s244, 4096
          %s246 = scalar_lea.vmem [#allocation4], %s245
          %s247 = smul.u32 64, %s19
          %s249 = ssub.s32 65536, 65536
          %250 = vsyncadd %s243, %s249
          %s251 = smul.addr %s247, 8
          %s252 = smul.addr %s251, 128
          %s253 = scalar_lea.hbm %s1, %s252
          %s254 = sshll.u32 %s246, 4
          %s255 = int_to_ptr.vmem [resolvable:$true] %s254
          %260 = dma.hbm_to_vmem [thread:$0]  %s253, 65536, %s255, %s243, 1024, 1024, 64
        $region40: #{convlstm_forward.5} parent=31 // pred_fallthru
          _
      $region32: #{convlstm_forward.5} parent=5 // pred_fallthru
        _
      %p261 = scmp.le.s32.totalorder 1, %s19
      %p262 = scmp.lt.s32.totalorder %s19, 5
      %p263 = pnand %p261, %p262
      %p264 = pneg %p263
      // Predicated region
      $region41: #{convlstm_forward.5} parent=5 // pred_check
        _
      $region42: #{convlstm_forward.5} parent=5 // pred_check_branch
        %266 = sbr.rel (%p263) target = $region44
      $region43: #{convlstm_forward.5} parent=5 // pred_region
        %s267 = ssub.s32 %s19, 1
        %s268 = sand.u32 %s58, 1
        %s269 = scalar_lea.sflag [#allocation5], %s268
        %s270 = sand.u32 %s58, 1
        %s271 = smul.addr %s270, 4096
        %s272 = scalar_lea.vmem [#allocation4], %s271
        // Predicated region
        $region45: #{convlstm_forward.5} parent=43 // pred_check
          %p273 = pneg %p71
        $region46: #{convlstm_forward.5} parent=43 // pred_check_branch
          %275 = sbr.rel (%p273) target = $region48
        $region47: #{convlstm_forward.5} parent=43 // pred_region
          %276 = dma.done %s269, 65536
        $region48: #{convlstm_forward.5} parent=43 // pred_fallthru
          _
        // Predicated region
        $region49: #{convlstm_forward.5} parent=43 // pred_check
          %p277 = pneg %p92
        $region50: #{convlstm_forward.5} parent=43 // pred_check_branch
          %279 = sbr.rel (%p277) target = $region52
        $region51: #{convlstm_forward.5} parent=43 // pred_region
          %280 = dma.done [#allocation7], 128
        $region52: #{convlstm_forward.5} parent=43 // pred_fallthru
          _
        // Predicated region
        $region53: #{convlstm_forward.5} parent=43 // pred_check
          %p281 = pneg %p113
        $region54: #{convlstm_forward.5} parent=43 // pred_check_branch
          %283 = sbr.rel (%p281) target = $region56
        $region55: #{convlstm_forward.5} parent=43 // pred_region
          %284 = dma.done [#allocation7], 128
        $region56: #{convlstm_forward.5} parent=43 // pred_fallthru
          _
        // Predicated region
        $region57: #{convlstm_forward.5} parent=43 // pred_check
          %p285 = pneg %p134
        $region58: #{convlstm_forward.5} parent=43 // pred_check_branch
          %287 = sbr.rel (%p285) target = $region60
        $region59: #{convlstm_forward.5} parent=43 // pred_region
          %288 = dma.done [#allocation10], 128
        $region60: #{convlstm_forward.5} parent=43 // pred_fallthru
          _
        %s289 = smul.u32 16, %s24
        %p290 = scmp.lt.s32.totalorder %s289, 63
        %s291 = scalar_select %p290, %s289, 63
        %s292 = scalar_lea.vmem %s0, %s291
        %p293 = pneg %p45
        %p294 = pneg %p42
        %s295 = sand.u32 %s58, 1
        %s296 = scalar_lea.sflag [#allocation5], %s295
        %s297 = sand.u32 %s58, 1
        %s298 = smul.addr %s297, 4096
        %s299 = scalar_lea.vmem [#allocation4], %s298
        %p300 = pneg %p71
        %p301 = pneg %p68
        %p302 = pneg %p92
        %p303 = pneg %p89
        %p304 = pneg %p113
        %p305 = pneg %p110
        %p306 = pneg %p134
        %p307 = pneg %p131
        %p308 = pneg %p155
        %p309 = pneg %p152
        %p310 = pneg %p176
        %p311 = pneg %p173
        %s312 = smul.u32 16, %s24
        %p313 = scmp.lt.s32.totalorder %s312, 63
        %s314 = scalar_select %p313, %s312, 63
        %s315 = scalar_lea.vmem %s0, %s314
        %s316 = smul.u32 16, %s24
        %s317 = smul.u32 64, %s24
        %p318 = scmp.eq.s32.totalorder %s24, 0
        // Predicated region
        $region61: #{convlstm_forward.5} parent=43 // pred_check
          %p319 = pneg %p318
        $region62: #{convlstm_forward.5} parent=43 // pred_check_branch
          %321 = sbr.rel (%p319) target = $region64
        $region63: #{convlstm_forward.5} parent=43 // pred_region
          %322 = vst [vmem:[#allocation2] sm:$0xff] 0.0
          %323 = vst [vmem:[#allocation2 + $0x8] sm:$0xff] 0.0
        $region64: #{convlstm_forward.5} parent=43 // pred_fallthru
          _
        %v324 = vld [vmem:[#allocation2] sm:$0xff]
        %v325 = vld [vmem:[#allocation2 + $0x8] sm:$0xff]
        %v326 = vld [vmem:[%s315] sm:$0xff]
        %v327 = vld [vmem:[%s315 + $0x8] sm:$0xff]
        %v328 = vld [vmem:[%s272] sm:$0xff]
        %v329 = vld [vmem:[%s272 + $0x8] sm:$0xff]
        %v330 = vld [vmem:[%s272 + $0x10] sm:$0xff]
        %v331 = vld [vmem:[%s272 + $0x18] sm:$0xff]
        %v332 = vld [vmem:[%s272 + $0x20] sm:$0xff]
        %v333 = vld [vmem:[%s272 + $0x28] sm:$0xff]
        %v334 = vld [vmem:[%s272 + $0x30] sm:$0xff]
        %v335 = vld [vmem:[%s272 + $0x38] sm:$0xff]
        %v336 = vld [vmem:[%s272 + $0x40] sm:$0xff]
        %v337 = vld [vmem:[%s272 + $0x48] sm:$0xff]
        %v338 = vld [vmem:[%s272 + $0x50] sm:$0xff]
        %v339 = vld [vmem:[%s272 + $0x58] sm:$0xff]
        %v340 = vld [vmem:[%s272 + $0x60] sm:$0xff]
        %v341 = vld [vmem:[%s272 + $0x68] sm:$0xff]
        %v342 = vld [vmem:[%s272 + $0x70] sm:$0xff]
        %v343 = vld [vmem:[%s272 + $0x78] sm:$0xff]
        %v344 = vld [vmem:[%s272 + $0x80] sm:$0xff]
        %v345 = vld [vmem:[%s272 + $0x88] sm:$0xff]
        %v346 = vld [vmem:[%s272 + $0x90] sm:$0xff]
        %v347 = vld [vmem:[%s272 + $0x98] sm:$0xff]
        %v348 = vld [vmem:[%s272 + $0xa0] sm:$0xff]
        %v349 = vld [vmem:[%s272 + $0xa8] sm:$0xff]
        %v350 = vld [vmem:[%s272 + $0xb0] sm:$0xff]
        %v351 = vld [vmem:[%s272 + $0xb8] sm:$0xff]
        %v352 = vld [vmem:[%s272 + $0xc0] sm:$0xff]
        %v353 = vld [vmem:[%s272 + $0xc8] sm:$0xff]
        %v354 = vld [vmem:[%s272 + $0xd0] sm:$0xff]
        %v355 = vld [vmem:[%s272 + $0xd8] sm:$0xff]
        %v356 = vld [vmem:[%s272 + $0xe0] sm:$0xff]
        %v357 = vld [vmem:[%s272 + $0xe8] sm:$0xff]
        %v358 = vld [vmem:[%s272 + $0xf0] sm:$0xff]
        %v359 = vld [vmem:[%s272 + $0xf8] sm:$0xff]
        %v360 = vld [vmem:[%s272 + $0x100] sm:$0xff]
        %v361 = vld [vmem:[%s272 + $0x108] sm:$0xff]
        %v362 = vld [vmem:[%s272 + $0x110] sm:$0xff]
        %v363 = vld [vmem:[%s272 + $0x118] sm:$0xff]
        %v364 = vld [vmem:[%s272 + $0x120] sm:$0xff]
        %v365 = vld [vmem:[%s272 + $0x128] sm:$0xff]
        %v366 = vld [vmem:[%s272 + $0x130] sm:$0xff]
        %v367 = vld [vmem:[%s272 + $0x138] sm:$0xff]
        %v368 = vld [vmem:[%s272 + $0x140] sm:$0xff]
        %v369 = vld [vmem:[%s272 + $0x148] sm:$0xff]
        %v370 = vld [vmem:[%s272 + $0x150] sm:$0xff]
        %v371 = vld [vmem:[%s272 + $0x158] sm:$0xff]
        %v372 = vld [vmem:[%s272 + $0x160] sm:$0xff]
        %v373 = vld [vmem:[%s272 + $0x168] sm:$0xff]
        %v374 = vld [vmem:[%s272 + $0x170] sm:$0xff]
        %v375 = vld [vmem:[%s272 + $0x178] sm:$0xff]
        %v376 = vld [vmem:[%s272 + $0x180] sm:$0xff]
        %v377 = vld [vmem:[%s272 + $0x188] sm:$0xff]
        %v378 = vld [vmem:[%s272 + $0x190] sm:$0xff]
        %v379 = vld [vmem:[%s272 + $0x198] sm:$0xff]
        %v380 = vld [vmem:[%s272 + $0x1a0] sm:$0xff]
        %v381 = vld [vmem:[%s272 + $0x1a8] sm:$0xff]
        %v382 = vld [vmem:[%s272 + $0x1b0] sm:$0xff]
        %v383 = vld [vmem:[%s272 + $0x1b8] sm:$0xff]
        %v384 = vld [vmem:[%s272 + $0x1c0] sm:$0xff]
        %v385 = vld [vmem:[%s272 + $0x1c8] sm:$0xff]
        %v386 = vld [vmem:[%s272 + $0x1d0] sm:$0xff]
        %v387 = vld [vmem:[%s272 + $0x1d8] sm:$0xff]
        %v388 = vld [vmem:[%s272 + $0x1e0] sm:$0xff]
        %v389 = vld [vmem:[%s272 + $0x1e8] sm:$0xff]
        %v390 = vld [vmem:[%s272 + $0x1f0] sm:$0xff]
        %v391 = vld [vmem:[%s272 + $0x1f8] sm:$0xff]
        %v392 = vld [vmem:[%s272 + $0x200] sm:$0xff]
        %v393 = vld [vmem:[%s272 + $0x208] sm:$0xff]
        %v394 = vld [vmem:[%s272 + $0x210] sm:$0xff]
        %v395 = vld [vmem:[%s272 + $0x218] sm:$0xff]
        %v396 = vld [vmem:[%s272 + $0x220] sm:$0xff]
        %v397 = vld [vmem:[%s272 + $0x228] sm:$0xff]
        %v398 = vld [vmem:[%s272 + $0x230] sm:$0xff]
        %v399 = vld [vmem:[%s272 + $0x238] sm:$0xff]
        %v400 = vld [vmem:[%s272 + $0x240] sm:$0xff]
        %v401 = vld [vmem:[%s272 + $0x248] sm:$0xff]
        %v402 = vld [vmem:[%s272 + $0x250] sm:$0xff]
        %v403 = vld [vmem:[%s272 + $0x258] sm:$0xff]
        %v404 = vld [vmem:[%s272 + $0x260] sm:$0xff]
        %v405 = vld [vmem:[%s272 + $0x268] sm:$0xff]
        %v406 = vld [vmem:[%s272 + $0x270] sm:$0xff]
        %v407 = vld [vmem:[%s272 + $0x278] sm:$0xff]
        %v408 = vld [vmem:[%s272 + $0x280] sm:$0xff]
        %v409 = vld [vmem:[%s272 + $0x288] sm:$0xff]
        %v410 = vld [vmem:[%s272 + $0x290] sm:$0xff]
        %v411 = vld [vmem:[%s272 + $0x298] sm:$0xff]
        %v412 = vld [vmem:[%s272 + $0x2a0] sm:$0xff]
        %v413 = vld [vmem:[%s272 + $0x2a8] sm:$0xff]
        %v414 = vld [vmem:[%s272 + $0x2b0] sm:$0xff]
        %v415 = vld [vmem:[%s272 + $0x2b8] sm:$0xff]
        %v416 = vld [vmem:[%s272 + $0x2c0] sm:$0xff]
        %v417 = vld [vmem:[%s272 + $0x2c8] sm:$0xff]
        %v418 = vld [vmem:[%s272 + $0x2d0] sm:$0xff]
        %v419 = vld [vmem:[%s272 + $0x2d8] sm:$0xff]
        %v420 = vld [vmem:[%s272 + $0x2e0] sm:$0xff]
        %v421 = vld [vmem:[%s272 + $0x2e8] sm:$0xff]
        %v422 = vld [vmem:[%s272 + $0x2f0] sm:$0xff]
        %v423 = vld [vmem:[%s272 + $0x2f8] sm:$0xff]
        %v424 = vld [vmem:[%s272 + $0x300] sm:$0xff]
        %v425 = vld [vmem:[%s272 + $0x308] sm:$0xff]
        %v426 = vld [vmem:[%s272 + $0x310] sm:$0xff]
        %v427 = vld [vmem:[%s272 + $0x318] sm:$0xff]
        %v428 = vld [vmem:[%s272 + $0x320] sm:$0xff]
        %v429 = vld [vmem:[%s272 + $0x328] sm:$0xff]
        %v430 = vld [vmem:[%s272 + $0x330] sm:$0xff]
        %v431 = vld [vmem:[%s272 + $0x338] sm:$0xff]
        %v432 = vld [vmem:[%s272 + $0x340] sm:$0xff]
        %v433 = vld [vmem:[%s272 + $0x348] sm:$0xff]
        %v434 = vld [vmem:[%s272 + $0x350] sm:$0xff]
        %v435 = vld [vmem:[%s272 + $0x358] sm:$0xff]
        %v436 = vld [vmem:[%s272 + $0x360] sm:$0xff]
        %v437 = vld [vmem:[%s272 + $0x368] sm:$0xff]
        %v438 = vld [vmem:[%s272 + $0x370] sm:$0xff]
        %v439 = vld [vmem:[%s272 + $0x378] sm:$0xff]
        %v440 = vld [vmem:[%s272 + $0x380] sm:$0xff]
        %v441 = vld [vmem:[%s272 + $0x388] sm:$0xff]
        %v442 = vld [vmem:[%s272 + $0x390] sm:$0xff]
        %v443 = vld [vmem:[%s272 + $0x398] sm:$0xff]
        %v444 = vld [vmem:[%s272 + $0x3a0] sm:$0xff]
        %v445 = vld [vmem:[%s272 + $0x3a8] sm:$0xff]
        %v446 = vld [vmem:[%s272 + $0x3b0] sm:$0xff]
        %v447 = vld [vmem:[%s272 + $0x3b8] sm:$0xff]
        %v448 = vld [vmem:[%s272 + $0x3c0] sm:$0xff]
        %v449 = vld [vmem:[%s272 + $0x3c8] sm:$0xff]
        %v450 = vld [vmem:[%s272 + $0x3d0] sm:$0xff]
        %v451 = vld [vmem:[%s272 + $0x3d8] sm:$0xff]
        %v452 = vld [vmem:[%s272 + $0x3e0] sm:$0xff]
        %v453 = vld [vmem:[%s272 + $0x3e8] sm:$0xff]
        %v454 = vld [vmem:[%s272 + $0x3f0] sm:$0xff]
        %v455 = vld [vmem:[%s272 + $0x3f8] sm:$0xff]
        %v456 = vld [vmem:[%s272 + $0x400] sm:$0xff]
        %v457 = vld [vmem:[%s272 + $0x408] sm:$0xff]
        %v458 = vld [vmem:[%s272 + $0x410] sm:$0xff]
        %v459 = vld [vmem:[%s272 + $0x418] sm:$0xff]
        %v460 = vld [vmem:[%s272 + $0x420] sm:$0xff]
        %v461 = vld [vmem:[%s272 + $0x428] sm:$0xff]
        %v462 = vld [vmem:[%s272 + $0x430] sm:$0xff]
        %v463 = vld [vmem:[%s272 + $0x438] sm:$0xff]
        %v464 = vld [vmem:[%s272 + $0x440] sm:$0xff]
        %v465 = vld [vmem:[%s272 + $0x448] sm:$0xff]
        %v466 = vld [vmem:[%s272 + $0x450] sm:$0xff]
        %v467 = vld [vmem:[%s272 + $0x458] sm:$0xff]
        %v468 = vld [vmem:[%s272 + $0x460] sm:$0xff]
        %v469 = vld [vmem:[%s272 + $0x468] sm:$0xff]
        %v470 = vld [vmem:[%s272 + $0x470] sm:$0xff]
        %v471 = vld [vmem:[%s272 + $0x478] sm:$0xff]
        %v472 = vld [vmem:[%s272 + $0x480] sm:$0xff]
        %v473 = vld [vmem:[%s272 + $0x488] sm:$0xff]
        %v474 = vld [vmem:[%s272 + $0x490] sm:$0xff]
        %v475 = vld [vmem:[%s272 + $0x498] sm:$0xff]
        %v476 = vld [vmem:[%s272 + $0x4a0] sm:$0xff]
        %v477 = vld [vmem:[%s272 + $0x4a8] sm:$0xff]
        %v478 = vld [vmem:[%s272 + $0x4b0] sm:$0xff]
        %v479 = vld [vmem:[%s272 + $0x4b8] sm:$0xff]
        %v480 = vld [vmem:[%s272 + $0x4c0] sm:$0xff]
        %v481 = vld [vmem:[%s272 + $0x4c8] sm:$0xff]
        %v482 = vld [vmem:[%s272 + $0x4d0] sm:$0xff]
        %v483 = vld [vmem:[%s272 + $0x4d8] sm:$0xff]
        %v484 = vld [vmem:[%s272 + $0x4e0] sm:$0xff]
        %v485 = vld [vmem:[%s272 + $0x4e8] sm:$0xff]
        %v486 = vld [vmem:[%s272 + $0x4f0] sm:$0xff]
        %v487 = vld [vmem:[%s272 + $0x4f8] sm:$0xff]
        %v488 = vld [vmem:[%s272 + $0x500] sm:$0xff]
        %v489 = vld [vmem:[%s272 + $0x508] sm:$0xff]
        %v490 = vld [vmem:[%s272 + $0x510] sm:$0xff]
        %v491 = vld [vmem:[%s272 + $0x518] sm:$0xff]
        %v492 = vld [vmem:[%s272 + $0x520] sm:$0xff]
        %v493 = vld [vmem:[%s272 + $0x528] sm:$0xff]
        %v494 = vld [vmem:[%s272 + $0x530] sm:$0xff]
        %v495 = vld [vmem:[%s272 + $0x538] sm:$0xff]
        %v496 = vld [vmem:[%s272 + $0x540] sm:$0xff]
        %v497 = vld [vmem:[%s272 + $0x548] sm:$0xff]
        %v498 = vld [vmem:[%s272 + $0x550] sm:$0xff]
        %v499 = vld [vmem:[%s272 + $0x558] sm:$0xff]
        %v500 = vld [vmem:[%s272 + $0x560] sm:$0xff]
        %v501 = vld [vmem:[%s272 + $0x568] sm:$0xff]
        %v502 = vld [vmem:[%s272 + $0x570] sm:$0xff]
        %v503 = vld [vmem:[%s272 + $0x578] sm:$0xff]
        %v504 = vld [vmem:[%s272 + $0x580] sm:$0xff]
        %v505 = vld [vmem:[%s272 + $0x588] sm:$0xff]
        %v506 = vld [vmem:[%s272 + $0x590] sm:$0xff]
        %v507 = vld [vmem:[%s272 + $0x598] sm:$0xff]
        %v508 = vld [vmem:[%s272 + $0x5a0] sm:$0xff]
        %v509 = vld [vmem:[%s272 + $0x5a8] sm:$0xff]
        %v510 = vld [vmem:[%s272 + $0x5b0] sm:$0xff]
        %v511 = vld [vmem:[%s272 + $0x5b8] sm:$0xff]
        %v512 = vld [vmem:[%s272 + $0x5c0] sm:$0xff]
        %v513 = vld [vmem:[%s272 + $0x5c8] sm:$0xff]
        %v514 = vld [vmem:[%s272 + $0x5d0] sm:$0xff]
        %v515 = vld [vmem:[%s272 + $0x5d8] sm:$0xff]
        %v516 = vld [vmem:[%s272 + $0x5e0] sm:$0xff]
        %v517 = vld [vmem:[%s272 + $0x5e8] sm:$0xff]
        %v518 = vld [vmem:[%s272 + $0x5f0] sm:$0xff]
        %v519 = vld [vmem:[%s272 + $0x5f8] sm:$0xff]
        %v520 = vld [vmem:[%s272 + $0x600] sm:$0xff]
        %v521 = vld [vmem:[%s272 + $0x608] sm:$0xff]
        %v522 = vld [vmem:[%s272 + $0x610] sm:$0xff]
        %v523 = vld [vmem:[%s272 + $0x618] sm:$0xff]
        %v524 = vld [vmem:[%s272 + $0x620] sm:$0xff]
        %v525 = vld [vmem:[%s272 + $0x628] sm:$0xff]
        %v526 = vld [vmem:[%s272 + $0x630] sm:$0xff]
        %v527 = vld [vmem:[%s272 + $0x638] sm:$0xff]
        %v528 = vld [vmem:[%s272 + $0x640] sm:$0xff]
        %v529 = vld [vmem:[%s272 + $0x648] sm:$0xff]
        %v530 = vld [vmem:[%s272 + $0x650] sm:$0xff]
        %v531 = vld [vmem:[%s272 + $0x658] sm:$0xff]
        %v532 = vld [vmem:[%s272 + $0x660] sm:$0xff]
        %v533 = vld [vmem:[%s272 + $0x668] sm:$0xff]
        %v534 = vld [vmem:[%s272 + $0x670] sm:$0xff]
        %v535 = vld [vmem:[%s272 + $0x678] sm:$0xff]
        %v536 = vld [vmem:[%s272 + $0x680] sm:$0xff]
        %v537 = vld [vmem:[%s272 + $0x688] sm:$0xff]
        %v538 = vld [vmem:[%s272 + $0x690] sm:$0xff]
        %v539 = vld [vmem:[%s272 + $0x698] sm:$0xff]
        %v540 = vld [vmem:[%s272 + $0x6a0] sm:$0xff]
        %v541 = vld [vmem:[%s272 + $0x6a8] sm:$0xff]
        %v542 = vld [vmem:[%s272 + $0x6b0] sm:$0xff]
        %v543 = vld [vmem:[%s272 + $0x6b8] sm:$0xff]
        %v544 = vld [vmem:[%s272 + $0x6c0] sm:$0xff]
        %v545 = vld [vmem:[%s272 + $0x6c8] sm:$0xff]
        %v546 = vld [vmem:[%s272 + $0x6d0] sm:$0xff]
        %v547 = vld [vmem:[%s272 + $0x6d8] sm:$0xff]
        %v548 = vld [vmem:[%s272 + $0x6e0] sm:$0xff]
        %v549 = vld [vmem:[%s272 + $0x6e8] sm:$0xff]
        %v550 = vld [vmem:[%s272 + $0x6f0] sm:$0xff]
        %v551 = vld [vmem:[%s272 + $0x6f8] sm:$0xff]
        %v552 = vld [vmem:[%s272 + $0x700] sm:$0xff]
        %v553 = vld [vmem:[%s272 + $0x708] sm:$0xff]
        %v554 = vld [vmem:[%s272 + $0x710] sm:$0xff]
        %v555 = vld [vmem:[%s272 + $0x718] sm:$0xff]
        %v556 = vld [vmem:[%s272 + $0x720] sm:$0xff]
        %v557 = vld [vmem:[%s272 + $0x728] sm:$0xff]
        %v558 = vld [vmem:[%s272 + $0x730] sm:$0xff]
        %v559 = vld [vmem:[%s272 + $0x738] sm:$0xff]
        %v560 = vld [vmem:[%s272 + $0x740] sm:$0xff]
        %v561 = vld [vmem:[%s272 + $0x748] sm:$0xff]
        %v562 = vld [vmem:[%s272 + $0x750] sm:$0xff]
        %v563 = vld [vmem:[%s272 + $0x758] sm:$0xff]
        %v564 = vld [vmem:[%s272 + $0x760] sm:$0xff]
        %v565 = vld [vmem:[%s272 + $0x768] sm:$0xff]
        %v566 = vld [vmem:[%s272 + $0x770] sm:$0xff]
        %v567 = vld [vmem:[%s272 + $0x778] sm:$0xff]
        %v568 = vld [vmem:[%s272 + $0x780] sm:$0xff]
        %v569 = vld [vmem:[%s272 + $0x788] sm:$0xff]
        %v570 = vld [vmem:[%s272 + $0x790] sm:$0xff]
        %v571 = vld [vmem:[%s272 + $0x798] sm:$0xff]
        %v572 = vld [vmem:[%s272 + $0x7a0] sm:$0xff]
        %v573 = vld [vmem:[%s272 + $0x7a8] sm:$0xff]
        %v574 = vld [vmem:[%s272 + $0x7b0] sm:$0xff]
        %v575 = vld [vmem:[%s272 + $0x7b8] sm:$0xff]
        %v576 = vld [vmem:[%s272 + $0x7c0] sm:$0xff]
        %v577 = vld [vmem:[%s272 + $0x7c8] sm:$0xff]
        %v578 = vld [vmem:[%s272 + $0x7d0] sm:$0xff]
        %v579 = vld [vmem:[%s272 + $0x7d8] sm:$0xff]
        %v580 = vld [vmem:[%s272 + $0x7e0] sm:$0xff]
        %v581 = vld [vmem:[%s272 + $0x7e8] sm:$0xff]
        %v582 = vld [vmem:[%s272 + $0x7f0] sm:$0xff]
        %v583 = vld [vmem:[%s272 + $0x7f8] sm:$0xff]
        %v584 = vld [vmem:[%s272 + $0x800] sm:$0xff]
        %v585 = vld [vmem:[%s272 + $0x808] sm:$0xff]
        %v586 = vld [vmem:[%s272 + $0x810] sm:$0xff]
        %v587 = vld [vmem:[%s272 + $0x818] sm:$0xff]
        %v588 = vld [vmem:[%s272 + $0x820] sm:$0xff]
        %v589 = vld [vmem:[%s272 + $0x828] sm:$0xff]
        %v590 = vld [vmem:[%s272 + $0x830] sm:$0xff]
        %v591 = vld [vmem:[%s272 + $0x838] sm:$0xff]
        %v592 = vld [vmem:[%s272 + $0x840] sm:$0xff]
        %v593 = vld [vmem:[%s272 + $0x848] sm:$0xff]
        %v594 = vld [vmem:[%s272 + $0x850] sm:$0xff]
        %v595 = vld [vmem:[%s272 + $0x858] sm:$0xff]
        %v596 = vld [vmem:[%s272 + $0x860] sm:$0xff]
        %v597 = vld [vmem:[%s272 + $0x868] sm:$0xff]
        %v598 = vld [vmem:[%s272 + $0x870] sm:$0xff]
        %v599 = vld [vmem:[%s272 + $0x878] sm:$0xff]
        %v600 = vld [vmem:[%s272 + $0x880] sm:$0xff]
        %v601 = vld [vmem:[%s272 + $0x888] sm:$0xff]
        %v602 = vld [vmem:[%s272 + $0x890] sm:$0xff]
        %v603 = vld [vmem:[%s272 + $0x898] sm:$0xff]
        %v604 = vld [vmem:[%s272 + $0x8a0] sm:$0xff]
        %v605 = vld [vmem:[%s272 + $0x8a8] sm:$0xff]
        %v606 = vld [vmem:[%s272 + $0x8b0] sm:$0xff]
        %v607 = vld [vmem:[%s272 + $0x8b8] sm:$0xff]
        %v608 = vld [vmem:[%s272 + $0x8c0] sm:$0xff]
        %v609 = vld [vmem:[%s272 + $0x8c8] sm:$0xff]
        %v610 = vld [vmem:[%s272 + $0x8d0] sm:$0xff]
        %v611 = vld [vmem:[%s272 + $0x8d8] sm:$0xff]
        %v612 = vld [vmem:[%s272 + $0x8e0] sm:$0xff]
        %v613 = vld [vmem:[%s272 + $0x8e8] sm:$0xff]
        %v614 = vld [vmem:[%s272 + $0x8f0] sm:$0xff]
        %v615 = vld [vmem:[%s272 + $0x8f8] sm:$0xff]
        %v616 = vld [vmem:[%s272 + $0x900] sm:$0xff]
        %v617 = vld [vmem:[%s272 + $0x908] sm:$0xff]
        %v618 = vld [vmem:[%s272 + $0x910] sm:$0xff]
        %v619 = vld [vmem:[%s272 + $0x918] sm:$0xff]
        %v620 = vld [vmem:[%s272 + $0x920] sm:$0xff]
        %v621 = vld [vmem:[%s272 + $0x928] sm:$0xff]
        %v622 = vld [vmem:[%s272 + $0x930] sm:$0xff]
        %v623 = vld [vmem:[%s272 + $0x938] sm:$0xff]
        %v624 = vld [vmem:[%s272 + $0x940] sm:$0xff]
        %v625 = vld [vmem:[%s272 + $0x948] sm:$0xff]
        %v626 = vld [vmem:[%s272 + $0x950] sm:$0xff]
        %v627 = vld [vmem:[%s272 + $0x958] sm:$0xff]
        %v628 = vld [vmem:[%s272 + $0x960] sm:$0xff]
        %v629 = vld [vmem:[%s272 + $0x968] sm:$0xff]
        %v630 = vld [vmem:[%s272 + $0x970] sm:$0xff]
        %v631 = vld [vmem:[%s272 + $0x978] sm:$0xff]
        %v632 = vld [vmem:[%s272 + $0x980] sm:$0xff]
        %v633 = vld [vmem:[%s272 + $0x988] sm:$0xff]
        %v634 = vld [vmem:[%s272 + $0x990] sm:$0xff]
        %v635 = vld [vmem:[%s272 + $0x998] sm:$0xff]
        %v636 = vld [vmem:[%s272 + $0x9a0] sm:$0xff]
        %v637 = vld [vmem:[%s272 + $0x9a8] sm:$0xff]
        %v638 = vld [vmem:[%s272 + $0x9b0] sm:$0xff]
        %v639 = vld [vmem:[%s272 + $0x9b8] sm:$0xff]
        %v640 = vld [vmem:[%s272 + $0x9c0] sm:$0xff]
        %v641 = vld [vmem:[%s272 + $0x9c8] sm:$0xff]
        %v642 = vld [vmem:[%s272 + $0x9d0] sm:$0xff]
        %v643 = vld [vmem:[%s272 + $0x9d8] sm:$0xff]
        %v644 = vld [vmem:[%s272 + $0x9e0] sm:$0xff]
        %v645 = vld [vmem:[%s272 + $0x9e8] sm:$0xff]
        %v646 = vld [vmem:[%s272 + $0x9f0] sm:$0xff]
        %v647 = vld [vmem:[%s272 + $0x9f8] sm:$0xff]
        %v648 = vld [vmem:[%s272 + $0xa00] sm:$0xff]
        %v649 = vld [vmem:[%s272 + $0xa08] sm:$0xff]
        %v650 = vld [vmem:[%s272 + $0xa10] sm:$0xff]
        %v651 = vld [vmem:[%s272 + $0xa18] sm:$0xff]
        %v652 = vld [vmem:[%s272 + $0xa20] sm:$0xff]
        %v653 = vld [vmem:[%s272 + $0xa28] sm:$0xff]
        %v654 = vld [vmem:[%s272 + $0xa30] sm:$0xff]
        %v655 = vld [vmem:[%s272 + $0xa38] sm:$0xff]
        %v656 = vld [vmem:[%s272 + $0xa40] sm:$0xff]
        %v657 = vld [vmem:[%s272 + $0xa48] sm:$0xff]
        %v658 = vld [vmem:[%s272 + $0xa50] sm:$0xff]
        %v659 = vld [vmem:[%s272 + $0xa58] sm:$0xff]
        %v660 = vld [vmem:[%s272 + $0xa60] sm:$0xff]
        %v661 = vld [vmem:[%s272 + $0xa68] sm:$0xff]
        %v662 = vld [vmem:[%s272 + $0xa70] sm:$0xff]
        %v663 = vld [vmem:[%s272 + $0xa78] sm:$0xff]
        %v664 = vld [vmem:[%s272 + $0xa80] sm:$0xff]
        %v665 = vld [vmem:[%s272 + $0xa88] sm:$0xff]
        %v666 = vld [vmem:[%s272 + $0xa90] sm:$0xff]
        %v667 = vld [vmem:[%s272 + $0xa98] sm:$0xff]
        %v668 = vld [vmem:[%s272 + $0xaa0] sm:$0xff]
        %v669 = vld [vmem:[%s272 + $0xaa8] sm:$0xff]
        %v670 = vld [vmem:[%s272 + $0xab0] sm:$0xff]
        %v671 = vld [vmem:[%s272 + $0xab8] sm:$0xff]
        %v672 = vld [vmem:[%s272 + $0xac0] sm:$0xff]
        %v673 = vld [vmem:[%s272 + $0xac8] sm:$0xff]
        %v674 = vld [vmem:[%s272 + $0xad0] sm:$0xff]
        %v675 = vld [vmem:[%s272 + $0xad8] sm:$0xff]
        %v676 = vld [vmem:[%s272 + $0xae0] sm:$0xff]
        %v677 = vld [vmem:[%s272 + $0xae8] sm:$0xff]
        %v678 = vld [vmem:[%s272 + $0xaf0] sm:$0xff]
        %v679 = vld [vmem:[%s272 + $0xaf8] sm:$0xff]
        %v680 = vld [vmem:[%s272 + $0xb00] sm:$0xff]
        %v681 = vld [vmem:[%s272 + $0xb08] sm:$0xff]
        %v682 = vld [vmem:[%s272 + $0xb10] sm:$0xff]
        %v683 = vld [vmem:[%s272 + $0xb18] sm:$0xff]
        %v684 = vld [vmem:[%s272 + $0xb20] sm:$0xff]
        %v685 = vld [vmem:[%s272 + $0xb28] sm:$0xff]
        %v686 = vld [vmem:[%s272 + $0xb30] sm:$0xff]
        %v687 = vld [vmem:[%s272 + $0xb38] sm:$0xff]
        %v688 = vld [vmem:[%s272 + $0xb40] sm:$0xff]
        %v689 = vld [vmem:[%s272 + $0xb48] sm:$0xff]
        %v690 = vld [vmem:[%s272 + $0xb50] sm:$0xff]
        %v691 = vld [vmem:[%s272 + $0xb58] sm:$0xff]
        %v692 = vld [vmem:[%s272 + $0xb60] sm:$0xff]
        %v693 = vld [vmem:[%s272 + $0xb68] sm:$0xff]
        %v694 = vld [vmem:[%s272 + $0xb70] sm:$0xff]
        %v695 = vld [vmem:[%s272 + $0xb78] sm:$0xff]
        %v696 = vld [vmem:[%s272 + $0xb80] sm:$0xff]
        %v697 = vld [vmem:[%s272 + $0xb88] sm:$0xff]
        %v698 = vld [vmem:[%s272 + $0xb90] sm:$0xff]
        %v699 = vld [vmem:[%s272 + $0xb98] sm:$0xff]
        %v700 = vld [vmem:[%s272 + $0xba0] sm:$0xff]
        %v701 = vld [vmem:[%s272 + $0xba8] sm:$0xff]
        %v702 = vld [vmem:[%s272 + $0xbb0] sm:$0xff]
        %v703 = vld [vmem:[%s272 + $0xbb8] sm:$0xff]
        %v704 = vld [vmem:[%s272 + $0xbc0] sm:$0xff]
        %v705 = vld [vmem:[%s272 + $0xbc8] sm:$0xff]
        %v706 = vld [vmem:[%s272 + $0xbd0] sm:$0xff]
        %v707 = vld [vmem:[%s272 + $0xbd8] sm:$0xff]
        %v708 = vld [vmem:[%s272 + $0xbe0] sm:$0xff]
        %v709 = vld [vmem:[%s272 + $0xbe8] sm:$0xff]
        %v710 = vld [vmem:[%s272 + $0xbf0] sm:$0xff]
        %v711 = vld [vmem:[%s272 + $0xbf8] sm:$0xff]
        %v712 = vld [vmem:[%s272 + $0xc00] sm:$0xff]
        %v713 = vld [vmem:[%s272 + $0xc08] sm:$0xff]
        %v714 = vld [vmem:[%s272 + $0xc10] sm:$0xff]
        %v715 = vld [vmem:[%s272 + $0xc18] sm:$0xff]
        %v716 = vld [vmem:[%s272 + $0xc20] sm:$0xff]
        %v717 = vld [vmem:[%s272 + $0xc28] sm:$0xff]
        %v718 = vld [vmem:[%s272 + $0xc30] sm:$0xff]
        %v719 = vld [vmem:[%s272 + $0xc38] sm:$0xff]
        %v720 = vld [vmem:[%s272 + $0xc40] sm:$0xff]
        %v721 = vld [vmem:[%s272 + $0xc48] sm:$0xff]
        %v722 = vld [vmem:[%s272 + $0xc50] sm:$0xff]
        %v723 = vld [vmem:[%s272 + $0xc58] sm:$0xff]
        %v724 = vld [vmem:[%s272 + $0xc60] sm:$0xff]
        %v725 = vld [vmem:[%s272 + $0xc68] sm:$0xff]
        %v726 = vld [vmem:[%s272 + $0xc70] sm:$0xff]
        %v727 = vld [vmem:[%s272 + $0xc78] sm:$0xff]
        %v728 = vld [vmem:[%s272 + $0xc80] sm:$0xff]
        %v729 = vld [vmem:[%s272 + $0xc88] sm:$0xff]
        %v730 = vld [vmem:[%s272 + $0xc90] sm:$0xff]
        %v731 = vld [vmem:[%s272 + $0xc98] sm:$0xff]
        %v732 = vld [vmem:[%s272 + $0xca0] sm:$0xff]
        %v733 = vld [vmem:[%s272 + $0xca8] sm:$0xff]
        %v734 = vld [vmem:[%s272 + $0xcb0] sm:$0xff]
        %v735 = vld [vmem:[%s272 + $0xcb8] sm:$0xff]
        %v736 = vld [vmem:[%s272 + $0xcc0] sm:$0xff]
        %v737 = vld [vmem:[%s272 + $0xcc8] sm:$0xff]
        %v738 = vld [vmem:[%s272 + $0xcd0] sm:$0xff]
        %v739 = vld [vmem:[%s272 + $0xcd8] sm:$0xff]
        %v740 = vld [vmem:[%s272 + $0xce0] sm:$0xff]
        %v741 = vld [vmem:[%s272 + $0xce8] sm:$0xff]
        %v742 = vld [vmem:[%s272 + $0xcf0] sm:$0xff]
        %v743 = vld [vmem:[%s272 + $0xcf8] sm:$0xff]
        %v744 = vld [vmem:[%s272 + $0xd00] sm:$0xff]
        %v745 = vld [vmem:[%s272 + $0xd08] sm:$0xff]
        %v746 = vld [vmem:[%s272 + $0xd10] sm:$0xff]
        %v747 = vld [vmem:[%s272 + $0xd18] sm:$0xff]
        %v748 = vld [vmem:[%s272 + $0xd20] sm:$0xff]
        %v749 = vld [vmem:[%s272 + $0xd28] sm:$0xff]
        %v750 = vld [vmem:[%s272 + $0xd30] sm:$0xff]
        %v751 = vld [vmem:[%s272 + $0xd38] sm:$0xff]
        %v752 = vld [vmem:[%s272 + $0xd40] sm:$0xff]
        %v753 = vld [vmem:[%s272 + $0xd48] sm:$0xff]
        %v754 = vld [vmem:[%s272 + $0xd50] sm:$0xff]
        %v755 = vld [vmem:[%s272 + $0xd58] sm:$0xff]
        %v756 = vld [vmem:[%s272 + $0xd60] sm:$0xff]
        %v757 = vld [vmem:[%s272 + $0xd68] sm:$0xff]
        %v758 = vld [vmem:[%s272 + $0xd70] sm:$0xff]
        %v759 = vld [vmem:[%s272 + $0xd78] sm:$0xff]
        %v760 = vld [vmem:[%s272 + $0xd80] sm:$0xff]
        %v761 = vld [vmem:[%s272 + $0xd88] sm:$0xff]
        %v762 = vld [vmem:[%s272 + $0xd90] sm:$0xff]
        %v763 = vld [vmem:[%s272 + $0xd98] sm:$0xff]
        %v764 = vld [vmem:[%s272 + $0xda0] sm:$0xff]
        %v765 = vld [vmem:[%s272 + $0xda8] sm:$0xff]
        %v766 = vld [vmem:[%s272 + $0xdb0] sm:$0xff]
        %v767 = vld [vmem:[%s272 + $0xdb8] sm:$0xff]
        %v768 = vld [vmem:[%s272 + $0xdc0] sm:$0xff]
        %v769 = vld [vmem:[%s272 + $0xdc8] sm:$0xff]
        %v770 = vld [vmem:[%s272 + $0xdd0] sm:$0xff]
        %v771 = vld [vmem:[%s272 + $0xdd8] sm:$0xff]
        %v772 = vld [vmem:[%s272 + $0xde0] sm:$0xff]
        %v773 = vld [vmem:[%s272 + $0xde8] sm:$0xff]
        %v774 = vld [vmem:[%s272 + $0xdf0] sm:$0xff]
        %v775 = vld [vmem:[%s272 + $0xdf8] sm:$0xff]
        %v776 = vld [vmem:[%s272 + $0xe00] sm:$0xff]
        %v777 = vld [vmem:[%s272 + $0xe08] sm:$0xff]
        %v778 = vld [vmem:[%s272 + $0xe10] sm:$0xff]
        %v779 = vld [vmem:[%s272 + $0xe18] sm:$0xff]
        %v780 = vld [vmem:[%s272 + $0xe20] sm:$0xff]
        %v781 = vld [vmem:[%s272 + $0xe28] sm:$0xff]
        %v782 = vld [vmem:[%s272 + $0xe30] sm:$0xff]
        %v783 = vld [vmem:[%s272 + $0xe38] sm:$0xff]
        %v784 = vld [vmem:[%s272 + $0xe40] sm:$0xff]
        %v785 = vld [vmem:[%s272 + $0xe48] sm:$0xff]
        %v786 = vld [vmem:[%s272 + $0xe50] sm:$0xff]
        %v787 = vld [vmem:[%s272 + $0xe58] sm:$0xff]
        %v788 = vld [vmem:[%s272 + $0xe60] sm:$0xff]
        %v789 = vld [vmem:[%s272 + $0xe68] sm:$0xff]
        %v790 = vld [vmem:[%s272 + $0xe70] sm:$0xff]
        %v791 = vld [vmem:[%s272 + $0xe78] sm:$0xff]
        %v792 = vld [vmem:[%s272 + $0xe80] sm:$0xff]
        %v793 = vld [vmem:[%s272 + $0xe88] sm:$0xff]
        %v794 = vld [vmem:[%s272 + $0xe90] sm:$0xff]
        %v795 = vld [vmem:[%s272 + $0xe98] sm:$0xff]
        %v796 = vld [vmem:[%s272 + $0xea0] sm:$0xff]
        %v797 = vld [vmem:[%s272 + $0xea8] sm:$0xff]
        %v798 = vld [vmem:[%s272 + $0xeb0] sm:$0xff]
        %v799 = vld [vmem:[%s272 + $0xeb8] sm:$0xff]
        %v800 = vld [vmem:[%s272 + $0xec0] sm:$0xff]
        %v801 = vld [vmem:[%s272 + $0xec8] sm:$0xff]
        %v802 = vld [vmem:[%s272 + $0xed0] sm:$0xff]
        %v803 = vld [vmem:[%s272 + $0xed8] sm:$0xff]
        %v804 = vld [vmem:[%s272 + $0xee0] sm:$0xff]
        %v805 = vld [vmem:[%s272 + $0xee8] sm:$0xff]
        %v806 = vld [vmem:[%s272 + $0xef0] sm:$0xff]
        %v807 = vld [vmem:[%s272 + $0xef8] sm:$0xff]
        %v808 = vld [vmem:[%s272 + $0xf00] sm:$0xff]
        %v809 = vld [vmem:[%s272 + $0xf08] sm:$0xff]
        %v810 = vld [vmem:[%s272 + $0xf10] sm:$0xff]
        %v811 = vld [vmem:[%s272 + $0xf18] sm:$0xff]
        %v812 = vld [vmem:[%s272 + $0xf20] sm:$0xff]
        %v813 = vld [vmem:[%s272 + $0xf28] sm:$0xff]
        %v814 = vld [vmem:[%s272 + $0xf30] sm:$0xff]
        %v815 = vld [vmem:[%s272 + $0xf38] sm:$0xff]
        %v816 = vld [vmem:[%s272 + $0xf40] sm:$0xff]
        %v817 = vld [vmem:[%s272 + $0xf48] sm:$0xff]
        %v818 = vld [vmem:[%s272 + $0xf50] sm:$0xff]
        %v819 = vld [vmem:[%s272 + $0xf58] sm:$0xff]
        %v820 = vld [vmem:[%s272 + $0xf60] sm:$0xff]
        %v821 = vld [vmem:[%s272 + $0xf68] sm:$0xff]
        %v822 = vld [vmem:[%s272 + $0xf70] sm:$0xff]
        %v823 = vld [vmem:[%s272 + $0xf78] sm:$0xff]
        %v824 = vld [vmem:[%s272 + $0xf80] sm:$0xff]
        %v825 = vld [vmem:[%s272 + $0xf88] sm:$0xff]
        %v826 = vld [vmem:[%s272 + $0xf90] sm:$0xff]
        %v827 = vld [vmem:[%s272 + $0xf98] sm:$0xff]
        %v828 = vld [vmem:[%s272 + $0xfa0] sm:$0xff]
        %v829 = vld [vmem:[%s272 + $0xfa8] sm:$0xff]
        %v830 = vld [vmem:[%s272 + $0xfb0] sm:$0xff]
        %v831 = vld [vmem:[%s272 + $0xfb8] sm:$0xff]
        %v832 = vld [vmem:[%s272 + $0xfc0] sm:$0xff]
        %v833 = vld [vmem:[%s272 + $0xfc8] sm:$0xff]
        %v834 = vld [vmem:[%s272 + $0xfd0] sm:$0xff]
        %v835 = vld [vmem:[%s272 + $0xfd8] sm:$0xff]
        %v836 = vld [vmem:[%s272 + $0xfe0] sm:$0xff]
        %v837 = vld [vmem:[%s272 + $0xfe8] sm:$0xff]
        %v838 = vld [vmem:[%s272 + $0xff0] sm:$0xff]
        %v839 = vld [vmem:[%s272 + $0xff8] sm:$0xff]
        %v840 = vunpack.c.l.s8.bf16 %v328
        %v841 = vunpack.c.l.s8.bf16 %v329
        %v842 = vunpack.c.l.s8.bf16 %v330
        %v843 = vunpack.c.l.s8.bf16 %v331
        %v844 = vunpack.c.l.s8.bf16 %v332
        %v845 = vunpack.c.l.s8.bf16 %v333
        %v846 = vunpack.c.l.s8.bf16 %v334
        %v847 = vunpack.c.l.s8.bf16 %v335
        %v848 = vunpack.c.h.s8.bf16 %v328
        %v849 = vunpack.c.h.s8.bf16 %v329
        %v850 = vunpack.c.h.s8.bf16 %v330
        %v851 = vunpack.c.h.s8.bf16 %v331
        %v852 = vunpack.c.h.s8.bf16 %v332
        %v853 = vunpack.c.h.s8.bf16 %v333
        %v854 = vunpack.c.h.s8.bf16 %v334
        %v855 = vunpack.c.h.s8.bf16 %v335
        %v856 = vunpack.c.l.s8.bf16 %v336
        %v857 = vunpack.c.l.s8.bf16 %v337
        %v858 = vunpack.c.l.s8.bf16 %v338
        %v859 = vunpack.c.l.s8.bf16 %v339
        %v860 = vunpack.c.l.s8.bf16 %v340
        %v861 = vunpack.c.l.s8.bf16 %v341
        %v862 = vunpack.c.l.s8.bf16 %v342
        %v863 = vunpack.c.l.s8.bf16 %v343
        %v864 = vunpack.c.h.s8.bf16 %v336
        %v865 = vunpack.c.h.s8.bf16 %v337
        %v866 = vunpack.c.h.s8.bf16 %v338
        %v867 = vunpack.c.h.s8.bf16 %v339
        %v868 = vunpack.c.h.s8.bf16 %v340
        %v869 = vunpack.c.h.s8.bf16 %v341
        %v870 = vunpack.c.h.s8.bf16 %v342
        %v871 = vunpack.c.h.s8.bf16 %v343
        %v872 = vunpack.c.l.s8.bf16 %v344
        %v873 = vunpack.c.l.s8.bf16 %v345
        %v874 = vunpack.c.l.s8.bf16 %v346
        %v875 = vunpack.c.l.s8.bf16 %v347
        %v876 = vunpack.c.l.s8.bf16 %v348
        %v877 = vunpack.c.l.s8.bf16 %v349
        %v878 = vunpack.c.l.s8.bf16 %v350
        %v879 = vunpack.c.l.s8.bf16 %v351
        %v880 = vunpack.c.h.s8.bf16 %v344
        %v881 = vunpack.c.h.s8.bf16 %v345
        %v882 = vunpack.c.h.s8.bf16 %v346
        %v883 = vunpack.c.h.s8.bf16 %v347
        %v884 = vunpack.c.h.s8.bf16 %v348
        %v885 = vunpack.c.h.s8.bf16 %v349
        %v886 = vunpack.c.h.s8.bf16 %v350
        %v887 = vunpack.c.h.s8.bf16 %v351
        %v888 = vunpack.c.l.s8.bf16 %v352
        %v889 = vunpack.c.l.s8.bf16 %v353
        %v890 = vunpack.c.l.s8.bf16 %v354
        %v891 = vunpack.c.l.s8.bf16 %v355
        %v892 = vunpack.c.l.s8.bf16 %v356
        %v893 = vunpack.c.l.s8.bf16 %v357
        %v894 = vunpack.c.l.s8.bf16 %v358
        %v895 = vunpack.c.l.s8.bf16 %v359
        %v896 = vunpack.c.h.s8.bf16 %v352
        %v897 = vunpack.c.h.s8.bf16 %v353
        %v898 = vunpack.c.h.s8.bf16 %v354
        %v899 = vunpack.c.h.s8.bf16 %v355
        %v900 = vunpack.c.h.s8.bf16 %v356
        %v901 = vunpack.c.h.s8.bf16 %v357
        %v902 = vunpack.c.h.s8.bf16 %v358
        %v903 = vunpack.c.h.s8.bf16 %v359
        %v904 = vunpack.c.l.s8.bf16 %v360
        %v905 = vunpack.c.l.s8.bf16 %v361
        %v906 = vunpack.c.l.s8.bf16 %v362
        %v907 = vunpack.c.l.s8.bf16 %v363
        %v908 = vunpack.c.l.s8.bf16 %v364
        %v909 = vunpack.c.l.s8.bf16 %v365
        %v910 = vunpack.c.l.s8.bf16 %v366
        %v911 = vunpack.c.l.s8.bf16 %v367
        %v912 = vunpack.c.h.s8.bf16 %v360
        %v913 = vunpack.c.h.s8.bf16 %v361
        %v914 = vunpack.c.h.s8.bf16 %v362
        %v915 = vunpack.c.h.s8.bf16 %v363
        %v916 = vunpack.c.h.s8.bf16 %v364
        %v917 = vunpack.c.h.s8.bf16 %v365
        %v918 = vunpack.c.h.s8.bf16 %v366
        %v919 = vunpack.c.h.s8.bf16 %v367
        %v920 = vunpack.c.l.s8.bf16 %v368
        %v921 = vunpack.c.l.s8.bf16 %v369
        %v922 = vunpack.c.l.s8.bf16 %v370
        %v923 = vunpack.c.l.s8.bf16 %v371
        %v924 = vunpack.c.l.s8.bf16 %v372
        %v925 = vunpack.c.l.s8.bf16 %v373
        %v926 = vunpack.c.l.s8.bf16 %v374
        %v927 = vunpack.c.l.s8.bf16 %v375
        %v928 = vunpack.c.h.s8.bf16 %v368
        %v929 = vunpack.c.h.s8.bf16 %v369
        %v930 = vunpack.c.h.s8.bf16 %v370
        %v931 = vunpack.c.h.s8.bf16 %v371
        %v932 = vunpack.c.h.s8.bf16 %v372
        %v933 = vunpack.c.h.s8.bf16 %v373
        %v934 = vunpack.c.h.s8.bf16 %v374
        %v935 = vunpack.c.h.s8.bf16 %v375
        %v936 = vunpack.c.l.s8.bf16 %v376
        %v937 = vunpack.c.l.s8.bf16 %v377
        %v938 = vunpack.c.l.s8.bf16 %v378
        %v939 = vunpack.c.l.s8.bf16 %v379
        %v940 = vunpack.c.l.s8.bf16 %v380
        %v941 = vunpack.c.l.s8.bf16 %v381
        %v942 = vunpack.c.l.s8.bf16 %v382
        %v943 = vunpack.c.l.s8.bf16 %v383
        %v944 = vunpack.c.h.s8.bf16 %v376
        %v945 = vunpack.c.h.s8.bf16 %v377
        %v946 = vunpack.c.h.s8.bf16 %v378
        %v947 = vunpack.c.h.s8.bf16 %v379
        %v948 = vunpack.c.h.s8.bf16 %v380
        %v949 = vunpack.c.h.s8.bf16 %v381
        %v950 = vunpack.c.h.s8.bf16 %v382
        %v951 = vunpack.c.h.s8.bf16 %v383
        %v952 = vunpack.c.l.s8.bf16 %v384
        %v953 = vunpack.c.l.s8.bf16 %v385
        %v954 = vunpack.c.l.s8.bf16 %v386
        %v955 = vunpack.c.l.s8.bf16 %v387
        %v956 = vunpack.c.l.s8.bf16 %v388
        %v957 = vunpack.c.l.s8.bf16 %v389
        %v958 = vunpack.c.l.s8.bf16 %v390
        %v959 = vunpack.c.l.s8.bf16 %v391
        %v960 = vunpack.c.h.s8.bf16 %v384
        %v961 = vunpack.c.h.s8.bf16 %v385
        %v962 = vunpack.c.h.s8.bf16 %v386
        %v963 = vunpack.c.h.s8.bf16 %v387
        %v964 = vunpack.c.h.s8.bf16 %v388
        %v965 = vunpack.c.h.s8.bf16 %v389
        %v966 = vunpack.c.h.s8.bf16 %v390
        %v967 = vunpack.c.h.s8.bf16 %v391
        %v968 = vunpack.c.l.s8.bf16 %v392
        %v969 = vunpack.c.l.s8.bf16 %v393
        %v970 = vunpack.c.l.s8.bf16 %v394
        %v971 = vunpack.c.l.s8.bf16 %v395
        %v972 = vunpack.c.l.s8.bf16 %v396
        %v973 = vunpack.c.l.s8.bf16 %v397
        %v974 = vunpack.c.l.s8.bf16 %v398
        %v975 = vunpack.c.l.s8.bf16 %v399
        %v976 = vunpack.c.h.s8.bf16 %v392
        %v977 = vunpack.c.h.s8.bf16 %v393
        %v978 = vunpack.c.h.s8.bf16 %v394
        %v979 = vunpack.c.h.s8.bf16 %v395
        %v980 = vunpack.c.h.s8.bf16 %v396
        %v981 = vunpack.c.h.s8.bf16 %v397
        %v982 = vunpack.c.h.s8.bf16 %v398
        %v983 = vunpack.c.h.s8.bf16 %v399
        %v984 = vunpack.c.l.s8.bf16 %v400
        %v985 = vunpack.c.l.s8.bf16 %v401
        %v986 = vunpack.c.l.s8.bf16 %v402
        %v987 = vunpack.c.l.s8.bf16 %v403
        %v988 = vunpack.c.l.s8.bf16 %v404
        %v989 = vunpack.c.l.s8.bf16 %v405
        %v990 = vunpack.c.l.s8.bf16 %v406
        %v991 = vunpack.c.l.s8.bf16 %v407
        %v992 = vunpack.c.h.s8.bf16 %v400
        %v993 = vunpack.c.h.s8.bf16 %v401
        %v994 = vunpack.c.h.s8.bf16 %v402
        %v995 = vunpack.c.h.s8.bf16 %v403
        %v996 = vunpack.c.h.s8.bf16 %v404
        %v997 = vunpack.c.h.s8.bf16 %v405
        %v998 = vunpack.c.h.s8.bf16 %v406
        %v999 = vunpack.c.h.s8.bf16 %v407
        %v1000 = vunpack.c.l.s8.bf16 %v408
        %v1001 = vunpack.c.l.s8.bf16 %v409
        %v1002 = vunpack.c.l.s8.bf16 %v410
        %v1003 = vunpack.c.l.s8.bf16 %v411
        %v1004 = vunpack.c.l.s8.bf16 %v412
        %v1005 = vunpack.c.l.s8.bf16 %v413
        %v1006 = vunpack.c.l.s8.bf16 %v414
        %v1007 = vunpack.c.l.s8.bf16 %v415
        %v1008 = vunpack.c.h.s8.bf16 %v408
        %v1009 = vunpack.c.h.s8.bf16 %v409
        %v1010 = vunpack.c.h.s8.bf16 %v410
        %v1011 = vunpack.c.h.s8.bf16 %v411
        %v1012 = vunpack.c.h.s8.bf16 %v412
        %v1013 = vunpack.c.h.s8.bf16 %v413
        %v1014 = vunpack.c.h.s8.bf16 %v414
        %v1015 = vunpack.c.h.s8.bf16 %v415
        %v1016 = vunpack.c.l.s8.bf16 %v416
        %v1017 = vunpack.c.l.s8.bf16 %v417
        %v1018 = vunpack.c.l.s8.bf16 %v418
        %v1019 = vunpack.c.l.s8.bf16 %v419
        %v1020 = vunpack.c.l.s8.bf16 %v420
        %v1021 = vunpack.c.l.s8.bf16 %v421
        %v1022 = vunpack.c.l.s8.bf16 %v422
        %v1023 = vunpack.c.l.s8.bf16 %v423
        %v1024 = vunpack.c.h.s8.bf16 %v416
        %v1025 = vunpack.c.h.s8.bf16 %v417
        %v1026 = vunpack.c.h.s8.bf16 %v418
        %v1027 = vunpack.c.h.s8.bf16 %v419
        %v1028 = vunpack.c.h.s8.bf16 %v420
        %v1029 = vunpack.c.h.s8.bf16 %v421
        %v1030 = vunpack.c.h.s8.bf16 %v422
        %v1031 = vunpack.c.h.s8.bf16 %v423
        %v1032 = vunpack.c.l.s8.bf16 %v424
        %v1033 = vunpack.c.l.s8.bf16 %v425
        %v1034 = vunpack.c.l.s8.bf16 %v426
        %v1035 = vunpack.c.l.s8.bf16 %v427
        %v1036 = vunpack.c.l.s8.bf16 %v428
        %v1037 = vunpack.c.l.s8.bf16 %v429
        %v1038 = vunpack.c.l.s8.bf16 %v430
        %v1039 = vunpack.c.l.s8.bf16 %v431
        %v1040 = vunpack.c.h.s8.bf16 %v424
        %v1041 = vunpack.c.h.s8.bf16 %v425
        %v1042 = vunpack.c.h.s8.bf16 %v426
        %v1043 = vunpack.c.h.s8.bf16 %v427
        %v1044 = vunpack.c.h.s8.bf16 %v428
        %v1045 = vunpack.c.h.s8.bf16 %v429
        %v1046 = vunpack.c.h.s8.bf16 %v430
        %v1047 = vunpack.c.h.s8.bf16 %v431
        %v1048 = vunpack.c.l.s8.bf16 %v432
        %v1049 = vunpack.c.l.s8.bf16 %v433
        %v1050 = vunpack.c.l.s8.bf16 %v434
        %v1051 = vunpack.c.l.s8.bf16 %v435
        %v1052 = vunpack.c.l.s8.bf16 %v436
        %v1053 = vunpack.c.l.s8.bf16 %v437
        %v1054 = vunpack.c.l.s8.bf16 %v438
        %v1055 = vunpack.c.l.s8.bf16 %v439
        %v1056 = vunpack.c.h.s8.bf16 %v432
        %v1057 = vunpack.c.h.s8.bf16 %v433
        %v1058 = vunpack.c.h.s8.bf16 %v434
        %v1059 = vunpack.c.h.s8.bf16 %v435
        %v1060 = vunpack.c.h.s8.bf16 %v436
        %v1061 = vunpack.c.h.s8.bf16 %v437
        %v1062 = vunpack.c.h.s8.bf16 %v438
        %v1063 = vunpack.c.h.s8.bf16 %v439
        %v1064 = vunpack.c.l.s8.bf16 %v440
        %v1065 = vunpack.c.l.s8.bf16 %v441
        %v1066 = vunpack.c.l.s8.bf16 %v442
        %v1067 = vunpack.c.l.s8.bf16 %v443
        %v1068 = vunpack.c.l.s8.bf16 %v444
        %v1069 = vunpack.c.l.s8.bf16 %v445
        %v1070 = vunpack.c.l.s8.bf16 %v446
        %v1071 = vunpack.c.l.s8.bf16 %v447
        %v1072 = vunpack.c.h.s8.bf16 %v440
        %v1073 = vunpack.c.h.s8.bf16 %v441
        %v1074 = vunpack.c.h.s8.bf16 %v442
        %v1075 = vunpack.c.h.s8.bf16 %v443
        %v1076 = vunpack.c.h.s8.bf16 %v444
        %v1077 = vunpack.c.h.s8.bf16 %v445
        %v1078 = vunpack.c.h.s8.bf16 %v446
        %v1079 = vunpack.c.h.s8.bf16 %v447
        %v1080 = vunpack.c.l.s8.bf16 %v448
        %v1081 = vunpack.c.l.s8.bf16 %v449
        %v1082 = vunpack.c.l.s8.bf16 %v450
        %v1083 = vunpack.c.l.s8.bf16 %v451
        %v1084 = vunpack.c.l.s8.bf16 %v452
        %v1085 = vunpack.c.l.s8.bf16 %v453
        %v1086 = vunpack.c.l.s8.bf16 %v454
        %v1087 = vunpack.c.l.s8.bf16 %v455
        %v1088 = vunpack.c.h.s8.bf16 %v448
        %v1089 = vunpack.c.h.s8.bf16 %v449
        %v1090 = vunpack.c.h.s8.bf16 %v450
        %v1091 = vunpack.c.h.s8.bf16 %v451
        %v1092 = vunpack.c.h.s8.bf16 %v452
        %v1093 = vunpack.c.h.s8.bf16 %v453
        %v1094 = vunpack.c.h.s8.bf16 %v454
        %v1095 = vunpack.c.h.s8.bf16 %v455
        %v1096 = vunpack.c.l.s8.bf16 %v456
        %v1097 = vunpack.c.l.s8.bf16 %v457
        %v1098 = vunpack.c.l.s8.bf16 %v458
        %v1099 = vunpack.c.l.s8.bf16 %v459
        %v1100 = vunpack.c.l.s8.bf16 %v460
        %v1101 = vunpack.c.l.s8.bf16 %v461
        %v1102 = vunpack.c.l.s8.bf16 %v462
        %v1103 = vunpack.c.l.s8.bf16 %v463
        %v1104 = vunpack.c.h.s8.bf16 %v456
        %v1105 = vunpack.c.h.s8.bf16 %v457
        %v1106 = vunpack.c.h.s8.bf16 %v458
        %v1107 = vunpack.c.h.s8.bf16 %v459
        %v1108 = vunpack.c.h.s8.bf16 %v460
        %v1109 = vunpack.c.h.s8.bf16 %v461
        %v1110 = vunpack.c.h.s8.bf16 %v462
        %v1111 = vunpack.c.h.s8.bf16 %v463
        %v1112 = vunpack.c.l.s8.bf16 %v464
        %v1113 = vunpack.c.l.s8.bf16 %v465
        %v1114 = vunpack.c.l.s8.bf16 %v466
        %v1115 = vunpack.c.l.s8.bf16 %v467
        %v1116 = vunpack.c.l.s8.bf16 %v468
        %v1117 = vunpack.c.l.s8.bf16 %v469
        %v1118 = vunpack.c.l.s8.bf16 %v470
        %v1119 = vunpack.c.l.s8.bf16 %v471
        %v1120 = vunpack.c.h.s8.bf16 %v464
        %v1121 = vunpack.c.h.s8.bf16 %v465
        %v1122 = vunpack.c.h.s8.bf16 %v466
        %v1123 = vunpack.c.h.s8.bf16 %v467
        %v1124 = vunpack.c.h.s8.bf16 %v468
        %v1125 = vunpack.c.h.s8.bf16 %v469
        %v1126 = vunpack.c.h.s8.bf16 %v470
        %v1127 = vunpack.c.h.s8.bf16 %v471
        %v1128 = vunpack.c.l.s8.bf16 %v472
        %v1129 = vunpack.c.l.s8.bf16 %v473
        %v1130 = vunpack.c.l.s8.bf16 %v474
        %v1131 = vunpack.c.l.s8.bf16 %v475
        %v1132 = vunpack.c.l.s8.bf16 %v476
        %v1133 = vunpack.c.l.s8.bf16 %v477
        %v1134 = vunpack.c.l.s8.bf16 %v478
        %v1135 = vunpack.c.l.s8.bf16 %v479
        %v1136 = vunpack.c.h.s8.bf16 %v472
        %v1137 = vunpack.c.h.s8.bf16 %v473
        %v1138 = vunpack.c.h.s8.bf16 %v474
        %v1139 = vunpack.c.h.s8.bf16 %v475
        %v1140 = vunpack.c.h.s8.bf16 %v476
        %v1141 = vunpack.c.h.s8.bf16 %v477
        %v1142 = vunpack.c.h.s8.bf16 %v478
        %v1143 = vunpack.c.h.s8.bf16 %v479
        %v1144 = vunpack.c.l.s8.bf16 %v480
        %v1145 = vunpack.c.l.s8.bf16 %v481
        %v1146 = vunpack.c.l.s8.bf16 %v482
        %v1147 = vunpack.c.l.s8.bf16 %v483
        %v1148 = vunpack.c.l.s8.bf16 %v484
        %v1149 = vunpack.c.l.s8.bf16 %v485
        %v1150 = vunpack.c.l.s8.bf16 %v486
        %v1151 = vunpack.c.l.s8.bf16 %v487
        %v1152 = vunpack.c.h.s8.bf16 %v480
        %v1153 = vunpack.c.h.s8.bf16 %v481
        %v1154 = vunpack.c.h.s8.bf16 %v482
        %v1155 = vunpack.c.h.s8.bf16 %v483
        %v1156 = vunpack.c.h.s8.bf16 %v484
        %v1157 = vunpack.c.h.s8.bf16 %v485
        %v1158 = vunpack.c.h.s8.bf16 %v486
        %v1159 = vunpack.c.h.s8.bf16 %v487
        %v1160 = vunpack.c.l.s8.bf16 %v488
        %v1161 = vunpack.c.l.s8.bf16 %v489
        %v1162 = vunpack.c.l.s8.bf16 %v490
        %v1163 = vunpack.c.l.s8.bf16 %v491
        %v1164 = vunpack.c.l.s8.bf16 %v492
        %v1165 = vunpack.c.l.s8.bf16 %v493
        %v1166 = vunpack.c.l.s8.bf16 %v494
        %v1167 = vunpack.c.l.s8.bf16 %v495
        %v1168 = vunpack.c.h.s8.bf16 %v488
        %v1169 = vunpack.c.h.s8.bf16 %v489
        %v1170 = vunpack.c.h.s8.bf16 %v490
        %v1171 = vunpack.c.h.s8.bf16 %v491
        %v1172 = vunpack.c.h.s8.bf16 %v492
        %v1173 = vunpack.c.h.s8.bf16 %v493
        %v1174 = vunpack.c.h.s8.bf16 %v494
        %v1175 = vunpack.c.h.s8.bf16 %v495
        %v1176 = vunpack.c.l.s8.bf16 %v496
        %v1177 = vunpack.c.l.s8.bf16 %v497
        %v1178 = vunpack.c.l.s8.bf16 %v498
        %v1179 = vunpack.c.l.s8.bf16 %v499
        %v1180 = vunpack.c.l.s8.bf16 %v500
        %v1181 = vunpack.c.l.s8.bf16 %v501
        %v1182 = vunpack.c.l.s8.bf16 %v502
        %v1183 = vunpack.c.l.s8.bf16 %v503
        %v1184 = vunpack.c.h.s8.bf16 %v496
        %v1185 = vunpack.c.h.s8.bf16 %v497
        %v1186 = vunpack.c.h.s8.bf16 %v498
        %v1187 = vunpack.c.h.s8.bf16 %v499
        %v1188 = vunpack.c.h.s8.bf16 %v500
        %v1189 = vunpack.c.h.s8.bf16 %v501
        %v1190 = vunpack.c.h.s8.bf16 %v502
        %v1191 = vunpack.c.h.s8.bf16 %v503
        %v1192 = vunpack.c.l.s8.bf16 %v504
        %v1193 = vunpack.c.l.s8.bf16 %v505
        %v1194 = vunpack.c.l.s8.bf16 %v506
        %v1195 = vunpack.c.l.s8.bf16 %v507
        %v1196 = vunpack.c.l.s8.bf16 %v508
        %v1197 = vunpack.c.l.s8.bf16 %v509
        %v1198 = vunpack.c.l.s8.bf16 %v510
        %v1199 = vunpack.c.l.s8.bf16 %v511
        %v1200 = vunpack.c.h.s8.bf16 %v504
        %v1201 = vunpack.c.h.s8.bf16 %v505
        %v1202 = vunpack.c.h.s8.bf16 %v506
        %v1203 = vunpack.c.h.s8.bf16 %v507
        %v1204 = vunpack.c.h.s8.bf16 %v508
        %v1205 = vunpack.c.h.s8.bf16 %v509
        %v1206 = vunpack.c.h.s8.bf16 %v510
        %v1207 = vunpack.c.h.s8.bf16 %v511
        %v1208 = vunpack.c.l.s8.bf16 %v512
        %v1209 = vunpack.c.l.s8.bf16 %v513
        %v1210 = vunpack.c.l.s8.bf16 %v514
        %v1211 = vunpack.c.l.s8.bf16 %v515
        %v1212 = vunpack.c.l.s8.bf16 %v516
        %v1213 = vunpack.c.l.s8.bf16 %v517
        %v1214 = vunpack.c.l.s8.bf16 %v518
        %v1215 = vunpack.c.l.s8.bf16 %v519
        %v1216 = vunpack.c.h.s8.bf16 %v512
        %v1217 = vunpack.c.h.s8.bf16 %v513
        %v1218 = vunpack.c.h.s8.bf16 %v514
        %v1219 = vunpack.c.h.s8.bf16 %v515
        %v1220 = vunpack.c.h.s8.bf16 %v516
        %v1221 = vunpack.c.h.s8.bf16 %v517
        %v1222 = vunpack.c.h.s8.bf16 %v518
        %v1223 = vunpack.c.h.s8.bf16 %v519
        %v1224 = vunpack.c.l.s8.bf16 %v520
        %v1225 = vunpack.c.l.s8.bf16 %v521
        %v1226 = vunpack.c.l.s8.bf16 %v522
        %v1227 = vunpack.c.l.s8.bf16 %v523
        %v1228 = vunpack.c.l.s8.bf16 %v524
        %v1229 = vunpack.c.l.s8.bf16 %v525
        %v1230 = vunpack.c.l.s8.bf16 %v526
        %v1231 = vunpack.c.l.s8.bf16 %v527
        %v1232 = vunpack.c.h.s8.bf16 %v520
        %v1233 = vunpack.c.h.s8.bf16 %v521
        %v1234 = vunpack.c.h.s8.bf16 %v522
        %v1235 = vunpack.c.h.s8.bf16 %v523
        %v1236 = vunpack.c.h.s8.bf16 %v524
        %v1237 = vunpack.c.h.s8.bf16 %v525
        %v1238 = vunpack.c.h.s8.bf16 %v526
        %v1239 = vunpack.c.h.s8.bf16 %v527
        %v1240 = vunpack.c.l.s8.bf16 %v528
        %v1241 = vunpack.c.l.s8.bf16 %v529
        %v1242 = vunpack.c.l.s8.bf16 %v530
        %v1243 = vunpack.c.l.s8.bf16 %v531
        %v1244 = vunpack.c.l.s8.bf16 %v532
        %v1245 = vunpack.c.l.s8.bf16 %v533
        %v1246 = vunpack.c.l.s8.bf16 %v534
        %v1247 = vunpack.c.l.s8.bf16 %v535
        %v1248 = vunpack.c.h.s8.bf16 %v528
        %v1249 = vunpack.c.h.s8.bf16 %v529
        %v1250 = vunpack.c.h.s8.bf16 %v530
        %v1251 = vunpack.c.h.s8.bf16 %v531
        %v1252 = vunpack.c.h.s8.bf16 %v532
        %v1253 = vunpack.c.h.s8.bf16 %v533
        %v1254 = vunpack.c.h.s8.bf16 %v534
        %v1255 = vunpack.c.h.s8.bf16 %v535
        %v1256 = vunpack.c.l.s8.bf16 %v536
        %v1257 = vunpack.c.l.s8.bf16 %v537
        %v1258 = vunpack.c.l.s8.bf16 %v538
        %v1259 = vunpack.c.l.s8.bf16 %v539
        %v1260 = vunpack.c.l.s8.bf16 %v540
        %v1261 = vunpack.c.l.s8.bf16 %v541
        %v1262 = vunpack.c.l.s8.bf16 %v542
        %v1263 = vunpack.c.l.s8.bf16 %v543
        %v1264 = vunpack.c.h.s8.bf16 %v536
        %v1265 = vunpack.c.h.s8.bf16 %v537
        %v1266 = vunpack.c.h.s8.bf16 %v538
        %v1267 = vunpack.c.h.s8.bf16 %v539
        %v1268 = vunpack.c.h.s8.bf16 %v540
        %v1269 = vunpack.c.h.s8.bf16 %v541
        %v1270 = vunpack.c.h.s8.bf16 %v542
        %v1271 = vunpack.c.h.s8.bf16 %v543
        %v1272 = vunpack.c.l.s8.bf16 %v544
        %v1273 = vunpack.c.l.s8.bf16 %v545
        %v1274 = vunpack.c.l.s8.bf16 %v546
        %v1275 = vunpack.c.l.s8.bf16 %v547
        %v1276 = vunpack.c.l.s8.bf16 %v548
        %v1277 = vunpack.c.l.s8.bf16 %v549
        %v1278 = vunpack.c.l.s8.bf16 %v550
        %v1279 = vunpack.c.l.s8.bf16 %v551
        %v1280 = vunpack.c.h.s8.bf16 %v544
        %v1281 = vunpack.c.h.s8.bf16 %v545
        %v1282 = vunpack.c.h.s8.bf16 %v546
        %v1283 = vunpack.c.h.s8.bf16 %v547
        %v1284 = vunpack.c.h.s8.bf16 %v548
        %v1285 = vunpack.c.h.s8.bf16 %v549
        %v1286 = vunpack.c.h.s8.bf16 %v550
        %v1287 = vunpack.c.h.s8.bf16 %v551
        %v1288 = vunpack.c.l.s8.bf16 %v552
        %v1289 = vunpack.c.l.s8.bf16 %v553
        %v1290 = vunpack.c.l.s8.bf16 %v554
        %v1291 = vunpack.c.l.s8.bf16 %v555
        %v1292 = vunpack.c.l.s8.bf16 %v556
        %v1293 = vunpack.c.l.s8.bf16 %v557
        %v1294 = vunpack.c.l.s8.bf16 %v558
        %v1295 = vunpack.c.l.s8.bf16 %v559
        %v1296 = vunpack.c.h.s8.bf16 %v552
        %v1297 = vunpack.c.h.s8.bf16 %v553
        %v1298 = vunpack.c.h.s8.bf16 %v554
        %v1299 = vunpack.c.h.s8.bf16 %v555
        %v1300 = vunpack.c.h.s8.bf16 %v556
        %v1301 = vunpack.c.h.s8.bf16 %v557
        %v1302 = vunpack.c.h.s8.bf16 %v558
        %v1303 = vunpack.c.h.s8.bf16 %v559
        %v1304 = vunpack.c.l.s8.bf16 %v560
        %v1305 = vunpack.c.l.s8.bf16 %v561
        %v1306 = vunpack.c.l.s8.bf16 %v562
        %v1307 = vunpack.c.l.s8.bf16 %v563
        %v1308 = vunpack.c.l.s8.bf16 %v564
        %v1309 = vunpack.c.l.s8.bf16 %v565
        %v1310 = vunpack.c.l.s8.bf16 %v566
        %v1311 = vunpack.c.l.s8.bf16 %v567
        %v1312 = vunpack.c.h.s8.bf16 %v560
        %v1313 = vunpack.c.h.s8.bf16 %v561
        %v1314 = vunpack.c.h.s8.bf16 %v562
        %v1315 = vunpack.c.h.s8.bf16 %v563
        %v1316 = vunpack.c.h.s8.bf16 %v564
        %v1317 = vunpack.c.h.s8.bf16 %v565
        %v1318 = vunpack.c.h.s8.bf16 %v566
        %v1319 = vunpack.c.h.s8.bf16 %v567
        %v1320 = vunpack.c.l.s8.bf16 %v568
        %v1321 = vunpack.c.l.s8.bf16 %v569
        %v1322 = vunpack.c.l.s8.bf16 %v570
        %v1323 = vunpack.c.l.s8.bf16 %v571
        %v1324 = vunpack.c.l.s8.bf16 %v572
        %v1325 = vunpack.c.l.s8.bf16 %v573
        %v1326 = vunpack.c.l.s8.bf16 %v574
        %v1327 = vunpack.c.l.s8.bf16 %v575
        %v1328 = vunpack.c.h.s8.bf16 %v568
        %v1329 = vunpack.c.h.s8.bf16 %v569
        %v1330 = vunpack.c.h.s8.bf16 %v570
        %v1331 = vunpack.c.h.s8.bf16 %v571
        %v1332 = vunpack.c.h.s8.bf16 %v572
        %v1333 = vunpack.c.h.s8.bf16 %v573
        %v1334 = vunpack.c.h.s8.bf16 %v574
        %v1335 = vunpack.c.h.s8.bf16 %v575
        %v1336 = vunpack.c.l.s8.bf16 %v576
        %v1337 = vunpack.c.l.s8.bf16 %v577
        %v1338 = vunpack.c.l.s8.bf16 %v578
        %v1339 = vunpack.c.l.s8.bf16 %v579
        %v1340 = vunpack.c.l.s8.bf16 %v580
        %v1341 = vunpack.c.l.s8.bf16 %v581
        %v1342 = vunpack.c.l.s8.bf16 %v582
        %v1343 = vunpack.c.l.s8.bf16 %v583
        %v1344 = vunpack.c.h.s8.bf16 %v576
        %v1345 = vunpack.c.h.s8.bf16 %v577
        %v1346 = vunpack.c.h.s8.bf16 %v578
        %v1347 = vunpack.c.h.s8.bf16 %v579
        %v1348 = vunpack.c.h.s8.bf16 %v580
        %v1349 = vunpack.c.h.s8.bf16 %v581
        %v1350 = vunpack.c.h.s8.bf16 %v582
        %v1351 = vunpack.c.h.s8.bf16 %v583
        %v1352 = vunpack.c.l.s8.bf16 %v584
        %v1353 = vunpack.c.l.s8.bf16 %v585
        %v1354 = vunpack.c.l.s8.bf16 %v586
        %v1355 = vunpack.c.l.s8.bf16 %v587
        %v1356 = vunpack.c.l.s8.bf16 %v588
        %v1357 = vunpack.c.l.s8.bf16 %v589
        %v1358 = vunpack.c.l.s8.bf16 %v590
        %v1359 = vunpack.c.l.s8.bf16 %v591
        %v1360 = vunpack.c.h.s8.bf16 %v584
        %v1361 = vunpack.c.h.s8.bf16 %v585
        %v1362 = vunpack.c.h.s8.bf16 %v586
        %v1363 = vunpack.c.h.s8.bf16 %v587
        %v1364 = vunpack.c.h.s8.bf16 %v588
        %v1365 = vunpack.c.h.s8.bf16 %v589
        %v1366 = vunpack.c.h.s8.bf16 %v590
        %v1367 = vunpack.c.h.s8.bf16 %v591
        %v1368 = vunpack.c.l.s8.bf16 %v592
        %v1369 = vunpack.c.l.s8.bf16 %v593
        %v1370 = vunpack.c.l.s8.bf16 %v594
        %v1371 = vunpack.c.l.s8.bf16 %v595
        %v1372 = vunpack.c.l.s8.bf16 %v596
        %v1373 = vunpack.c.l.s8.bf16 %v597
        %v1374 = vunpack.c.l.s8.bf16 %v598
        %v1375 = vunpack.c.l.s8.bf16 %v599
        %v1376 = vunpack.c.h.s8.bf16 %v592
        %v1377 = vunpack.c.h.s8.bf16 %v593
        %v1378 = vunpack.c.h.s8.bf16 %v594
        %v1379 = vunpack.c.h.s8.bf16 %v595
        %v1380 = vunpack.c.h.s8.bf16 %v596
        %v1381 = vunpack.c.h.s8.bf16 %v597
        %v1382 = vunpack.c.h.s8.bf16 %v598
        %v1383 = vunpack.c.h.s8.bf16 %v599
        %v1384 = vunpack.c.l.s8.bf16 %v600
        %v1385 = vunpack.c.l.s8.bf16 %v601
        %v1386 = vunpack.c.l.s8.bf16 %v602
        %v1387 = vunpack.c.l.s8.bf16 %v603
        %v1388 = vunpack.c.l.s8.bf16 %v604
        %v1389 = vunpack.c.l.s8.bf16 %v605
        %v1390 = vunpack.c.l.s8.bf16 %v606
        %v1391 = vunpack.c.l.s8.bf16 %v607
        %v1392 = vunpack.c.h.s8.bf16 %v600
        %v1393 = vunpack.c.h.s8.bf16 %v601
        %v1394 = vunpack.c.h.s8.bf16 %v602
        %v1395 = vunpack.c.h.s8.bf16 %v603
        %v1396 = vunpack.c.h.s8.bf16 %v604
        %v1397 = vunpack.c.h.s8.bf16 %v605
        %v1398 = vunpack.c.h.s8.bf16 %v606
        %v1399 = vunpack.c.h.s8.bf16 %v607
        %v1400 = vunpack.c.l.s8.bf16 %v608
        %v1401 = vunpack.c.l.s8.bf16 %v609
        %v1402 = vunpack.c.l.s8.bf16 %v610
        %v1403 = vunpack.c.l.s8.bf16 %v611
        %v1404 = vunpack.c.l.s8.bf16 %v612
        %v1405 = vunpack.c.l.s8.bf16 %v613
        %v1406 = vunpack.c.l.s8.bf16 %v614
        %v1407 = vunpack.c.l.s8.bf16 %v615
        %v1408 = vunpack.c.h.s8.bf16 %v608
        %v1409 = vunpack.c.h.s8.bf16 %v609
        %v1410 = vunpack.c.h.s8.bf16 %v610
        %v1411 = vunpack.c.h.s8.bf16 %v611
        %v1412 = vunpack.c.h.s8.bf16 %v612
        %v1413 = vunpack.c.h.s8.bf16 %v613
        %v1414 = vunpack.c.h.s8.bf16 %v614
        %v1415 = vunpack.c.h.s8.bf16 %v615
        %v1416 = vunpack.c.l.s8.bf16 %v616
        %v1417 = vunpack.c.l.s8.bf16 %v617
        %v1418 = vunpack.c.l.s8.bf16 %v618
        %v1419 = vunpack.c.l.s8.bf16 %v619
        %v1420 = vunpack.c.l.s8.bf16 %v620
        %v1421 = vunpack.c.l.s8.bf16 %v621
        %v1422 = vunpack.c.l.s8.bf16 %v622
        %v1423 = vunpack.c.l.s8.bf16 %v623
        %v1424 = vunpack.c.h.s8.bf16 %v616
        %v1425 = vunpack.c.h.s8.bf16 %v617
        %v1426 = vunpack.c.h.s8.bf16 %v618
        %v1427 = vunpack.c.h.s8.bf16 %v619
        %v1428 = vunpack.c.h.s8.bf16 %v620
        %v1429 = vunpack.c.h.s8.bf16 %v621
        %v1430 = vunpack.c.h.s8.bf16 %v622
        %v1431 = vunpack.c.h.s8.bf16 %v623
        %v1432 = vunpack.c.l.s8.bf16 %v624
        %v1433 = vunpack.c.l.s8.bf16 %v625
        %v1434 = vunpack.c.l.s8.bf16 %v626
        %v1435 = vunpack.c.l.s8.bf16 %v627
        %v1436 = vunpack.c.l.s8.bf16 %v628
        %v1437 = vunpack.c.l.s8.bf16 %v629
        %v1438 = vunpack.c.l.s8.bf16 %v630
        %v1439 = vunpack.c.l.s8.bf16 %v631
        %v1440 = vunpack.c.h.s8.bf16 %v624
        %v1441 = vunpack.c.h.s8.bf16 %v625
        %v1442 = vunpack.c.h.s8.bf16 %v626
        %v1443 = vunpack.c.h.s8.bf16 %v627
        %v1444 = vunpack.c.h.s8.bf16 %v628
        %v1445 = vunpack.c.h.s8.bf16 %v629
        %v1446 = vunpack.c.h.s8.bf16 %v630
        %v1447 = vunpack.c.h.s8.bf16 %v631
        %v1448 = vunpack.c.l.s8.bf16 %v632
        %v1449 = vunpack.c.l.s8.bf16 %v633
        %v1450 = vunpack.c.l.s8.bf16 %v634
        %v1451 = vunpack.c.l.s8.bf16 %v635
        %v1452 = vunpack.c.l.s8.bf16 %v636
        %v1453 = vunpack.c.l.s8.bf16 %v637
        %v1454 = vunpack.c.l.s8.bf16 %v638
        %v1455 = vunpack.c.l.s8.bf16 %v639
        %v1456 = vunpack.c.h.s8.bf16 %v632
        %v1457 = vunpack.c.h.s8.bf16 %v633
        %v1458 = vunpack.c.h.s8.bf16 %v634
        %v1459 = vunpack.c.h.s8.bf16 %v635
        %v1460 = vunpack.c.h.s8.bf16 %v636
        %v1461 = vunpack.c.h.s8.bf16 %v637
        %v1462 = vunpack.c.h.s8.bf16 %v638
        %v1463 = vunpack.c.h.s8.bf16 %v639
        %v1464 = vunpack.c.l.s8.bf16 %v640
        %v1465 = vunpack.c.l.s8.bf16 %v641
        %v1466 = vunpack.c.l.s8.bf16 %v642
        %v1467 = vunpack.c.l.s8.bf16 %v643
        %v1468 = vunpack.c.l.s8.bf16 %v644
        %v1469 = vunpack.c.l.s8.bf16 %v645
        %v1470 = vunpack.c.l.s8.bf16 %v646
        %v1471 = vunpack.c.l.s8.bf16 %v647
        %v1472 = vunpack.c.h.s8.bf16 %v640
        %v1473 = vunpack.c.h.s8.bf16 %v641
        %v1474 = vunpack.c.h.s8.bf16 %v642
        %v1475 = vunpack.c.h.s8.bf16 %v643
        %v1476 = vunpack.c.h.s8.bf16 %v644
        %v1477 = vunpack.c.h.s8.bf16 %v645
        %v1478 = vunpack.c.h.s8.bf16 %v646
        %v1479 = vunpack.c.h.s8.bf16 %v647
        %v1480 = vunpack.c.l.s8.bf16 %v648
        %v1481 = vunpack.c.l.s8.bf16 %v649
        %v1482 = vunpack.c.l.s8.bf16 %v650
        %v1483 = vunpack.c.l.s8.bf16 %v651
        %v1484 = vunpack.c.l.s8.bf16 %v652
        %v1485 = vunpack.c.l.s8.bf16 %v653
        %v1486 = vunpack.c.l.s8.bf16 %v654
        %v1487 = vunpack.c.l.s8.bf16 %v655
        %v1488 = vunpack.c.h.s8.bf16 %v648
        %v1489 = vunpack.c.h.s8.bf16 %v649
        %v1490 = vunpack.c.h.s8.bf16 %v650
        %v1491 = vunpack.c.h.s8.bf16 %v651
        %v1492 = vunpack.c.h.s8.bf16 %v652
        %v1493 = vunpack.c.h.s8.bf16 %v653
        %v1494 = vunpack.c.h.s8.bf16 %v654
        %v1495 = vunpack.c.h.s8.bf16 %v655
        %v1496 = vunpack.c.l.s8.bf16 %v656
        %v1497 = vunpack.c.l.s8.bf16 %v657
        %v1498 = vunpack.c.l.s8.bf16 %v658
        %v1499 = vunpack.c.l.s8.bf16 %v659
        %v1500 = vunpack.c.l.s8.bf16 %v660
        %v1501 = vunpack.c.l.s8.bf16 %v661
        %v1502 = vunpack.c.l.s8.bf16 %v662
        %v1503 = vunpack.c.l.s8.bf16 %v663
        %v1504 = vunpack.c.h.s8.bf16 %v656
        %v1505 = vunpack.c.h.s8.bf16 %v657
        %v1506 = vunpack.c.h.s8.bf16 %v658
        %v1507 = vunpack.c.h.s8.bf16 %v659
        %v1508 = vunpack.c.h.s8.bf16 %v660
        %v1509 = vunpack.c.h.s8.bf16 %v661
        %v1510 = vunpack.c.h.s8.bf16 %v662
        %v1511 = vunpack.c.h.s8.bf16 %v663
        %v1512 = vunpack.c.l.s8.bf16 %v664
        %v1513 = vunpack.c.l.s8.bf16 %v665
        %v1514 = vunpack.c.l.s8.bf16 %v666
        %v1515 = vunpack.c.l.s8.bf16 %v667
        %v1516 = vunpack.c.l.s8.bf16 %v668
        %v1517 = vunpack.c.l.s8.bf16 %v669
        %v1518 = vunpack.c.l.s8.bf16 %v670
        %v1519 = vunpack.c.l.s8.bf16 %v671
        %v1520 = vunpack.c.h.s8.bf16 %v664
        %v1521 = vunpack.c.h.s8.bf16 %v665
        %v1522 = vunpack.c.h.s8.bf16 %v666
        %v1523 = vunpack.c.h.s8.bf16 %v667
        %v1524 = vunpack.c.h.s8.bf16 %v668
        %v1525 = vunpack.c.h.s8.bf16 %v669
        %v1526 = vunpack.c.h.s8.bf16 %v670
        %v1527 = vunpack.c.h.s8.bf16 %v671
        %v1528 = vunpack.c.l.s8.bf16 %v672
        %v1529 = vunpack.c.l.s8.bf16 %v673
        %v1530 = vunpack.c.l.s8.bf16 %v674
        %v1531 = vunpack.c.l.s8.bf16 %v675
        %v1532 = vunpack.c.l.s8.bf16 %v676
        %v1533 = vunpack.c.l.s8.bf16 %v677
        %v1534 = vunpack.c.l.s8.bf16 %v678
        %v1535 = vunpack.c.l.s8.bf16 %v679
        %v1536 = vunpack.c.h.s8.bf16 %v672
        %v1537 = vunpack.c.h.s8.bf16 %v673
        %v1538 = vunpack.c.h.s8.bf16 %v674
        %v1539 = vunpack.c.h.s8.bf16 %v675
        %v1540 = vunpack.c.h.s8.bf16 %v676
        %v1541 = vunpack.c.h.s8.bf16 %v677
        %v1542 = vunpack.c.h.s8.bf16 %v678
        %v1543 = vunpack.c.h.s8.bf16 %v679
        %v1544 = vunpack.c.l.s8.bf16 %v680
        %v1545 = vunpack.c.l.s8.bf16 %v681
        %v1546 = vunpack.c.l.s8.bf16 %v682
        %v1547 = vunpack.c.l.s8.bf16 %v683
        %v1548 = vunpack.c.l.s8.bf16 %v684
        %v1549 = vunpack.c.l.s8.bf16 %v685
        %v1550 = vunpack.c.l.s8.bf16 %v686
        %v1551 = vunpack.c.l.s8.bf16 %v687
        %v1552 = vunpack.c.h.s8.bf16 %v680
        %v1553 = vunpack.c.h.s8.bf16 %v681
        %v1554 = vunpack.c.h.s8.bf16 %v682
        %v1555 = vunpack.c.h.s8.bf16 %v683
        %v1556 = vunpack.c.h.s8.bf16 %v684
        %v1557 = vunpack.c.h.s8.bf16 %v685
        %v1558 = vunpack.c.h.s8.bf16 %v686
        %v1559 = vunpack.c.h.s8.bf16 %v687
        %v1560 = vunpack.c.l.s8.bf16 %v688
        %v1561 = vunpack.c.l.s8.bf16 %v689
        %v1562 = vunpack.c.l.s8.bf16 %v690
        %v1563 = vunpack.c.l.s8.bf16 %v691
        %v1564 = vunpack.c.l.s8.bf16 %v692
        %v1565 = vunpack.c.l.s8.bf16 %v693
        %v1566 = vunpack.c.l.s8.bf16 %v694
        %v1567 = vunpack.c.l.s8.bf16 %v695
        %v1568 = vunpack.c.h.s8.bf16 %v688
        %v1569 = vunpack.c.h.s8.bf16 %v689
        %v1570 = vunpack.c.h.s8.bf16 %v690
        %v1571 = vunpack.c.h.s8.bf16 %v691
        %v1572 = vunpack.c.h.s8.bf16 %v692
        %v1573 = vunpack.c.h.s8.bf16 %v693
        %v1574 = vunpack.c.h.s8.bf16 %v694
        %v1575 = vunpack.c.h.s8.bf16 %v695
        %v1576 = vunpack.c.l.s8.bf16 %v696
        %v1577 = vunpack.c.l.s8.bf16 %v697
        %v1578 = vunpack.c.l.s8.bf16 %v698
        %v1579 = vunpack.c.l.s8.bf16 %v699
        %v1580 = vunpack.c.l.s8.bf16 %v700
        %v1581 = vunpack.c.l.s8.bf16 %v701
        %v1582 = vunpack.c.l.s8.bf16 %v702
        %v1583 = vunpack.c.l.s8.bf16 %v703
        %v1584 = vunpack.c.h.s8.bf16 %v696
        %v1585 = vunpack.c.h.s8.bf16 %v697
        %v1586 = vunpack.c.h.s8.bf16 %v698
        %v1587 = vunpack.c.h.s8.bf16 %v699
        %v1588 = vunpack.c.h.s8.bf16 %v700
        %v1589 = vunpack.c.h.s8.bf16 %v701
        %v1590 = vunpack.c.h.s8.bf16 %v702
        %v1591 = vunpack.c.h.s8.bf16 %v703
        %v1592 = vunpack.c.l.s8.bf16 %v704
        %v1593 = vunpack.c.l.s8.bf16 %v705
        %v1594 = vunpack.c.l.s8.bf16 %v706
        %v1595 = vunpack.c.l.s8.bf16 %v707
        %v1596 = vunpack.c.l.s8.bf16 %v708
        %v1597 = vunpack.c.l.s8.bf16 %v709
        %v1598 = vunpack.c.l.s8.bf16 %v710
        %v1599 = vunpack.c.l.s8.bf16 %v711
        %v1600 = vunpack.c.h.s8.bf16 %v704
        %v1601 = vunpack.c.h.s8.bf16 %v705
        %v1602 = vunpack.c.h.s8.bf16 %v706
        %v1603 = vunpack.c.h.s8.bf16 %v707
        %v1604 = vunpack.c.h.s8.bf16 %v708
        %v1605 = vunpack.c.h.s8.bf16 %v709
        %v1606 = vunpack.c.h.s8.bf16 %v710
        %v1607 = vunpack.c.h.s8.bf16 %v711
        %v1608 = vunpack.c.l.s8.bf16 %v712
        %v1609 = vunpack.c.l.s8.bf16 %v713
        %v1610 = vunpack.c.l.s8.bf16 %v714
        %v1611 = vunpack.c.l.s8.bf16 %v715
        %v1612 = vunpack.c.l.s8.bf16 %v716
        %v1613 = vunpack.c.l.s8.bf16 %v717
        %v1614 = vunpack.c.l.s8.bf16 %v718
        %v1615 = vunpack.c.l.s8.bf16 %v719
        %v1616 = vunpack.c.h.s8.bf16 %v712
        %v1617 = vunpack.c.h.s8.bf16 %v713
        %v1618 = vunpack.c.h.s8.bf16 %v714
        %v1619 = vunpack.c.h.s8.bf16 %v715
        %v1620 = vunpack.c.h.s8.bf16 %v716
        %v1621 = vunpack.c.h.s8.bf16 %v717
        %v1622 = vunpack.c.h.s8.bf16 %v718
        %v1623 = vunpack.c.h.s8.bf16 %v719
        %v1624 = vunpack.c.l.s8.bf16 %v720
        %v1625 = vunpack.c.l.s8.bf16 %v721
        %v1626 = vunpack.c.l.s8.bf16 %v722
        %v1627 = vunpack.c.l.s8.bf16 %v723
        %v1628 = vunpack.c.l.s8.bf16 %v724
        %v1629 = vunpack.c.l.s8.bf16 %v725
        %v1630 = vunpack.c.l.s8.bf16 %v726
        %v1631 = vunpack.c.l.s8.bf16 %v727
        %v1632 = vunpack.c.h.s8.bf16 %v720
        %v1633 = vunpack.c.h.s8.bf16 %v721
        %v1634 = vunpack.c.h.s8.bf16 %v722
        %v1635 = vunpack.c.h.s8.bf16 %v723
        %v1636 = vunpack.c.h.s8.bf16 %v724
        %v1637 = vunpack.c.h.s8.bf16 %v725
        %v1638 = vunpack.c.h.s8.bf16 %v726
        %v1639 = vunpack.c.h.s8.bf16 %v727
        %v1640 = vunpack.c.l.s8.bf16 %v728
        %v1641 = vunpack.c.l.s8.bf16 %v729
        %v1642 = vunpack.c.l.s8.bf16 %v730
        %v1643 = vunpack.c.l.s8.bf16 %v731
        %v1644 = vunpack.c.l.s8.bf16 %v732
        %v1645 = vunpack.c.l.s8.bf16 %v733
        %v1646 = vunpack.c.l.s8.bf16 %v734
        %v1647 = vunpack.c.l.s8.bf16 %v735
        %v1648 = vunpack.c.h.s8.bf16 %v728
        %v1649 = vunpack.c.h.s8.bf16 %v729
        %v1650 = vunpack.c.h.s8.bf16 %v730
        %v1651 = vunpack.c.h.s8.bf16 %v731
        %v1652 = vunpack.c.h.s8.bf16 %v732
        %v1653 = vunpack.c.h.s8.bf16 %v733
        %v1654 = vunpack.c.h.s8.bf16 %v734
        %v1655 = vunpack.c.h.s8.bf16 %v735
        %v1656 = vunpack.c.l.s8.bf16 %v736
        %v1657 = vunpack.c.l.s8.bf16 %v737
        %v1658 = vunpack.c.l.s8.bf16 %v738
        %v1659 = vunpack.c.l.s8.bf16 %v739
        %v1660 = vunpack.c.l.s8.bf16 %v740
        %v1661 = vunpack.c.l.s8.bf16 %v741
        %v1662 = vunpack.c.l.s8.bf16 %v742
        %v1663 = vunpack.c.l.s8.bf16 %v743
        %v1664 = vunpack.c.h.s8.bf16 %v736
        %v1665 = vunpack.c.h.s8.bf16 %v737
        %v1666 = vunpack.c.h.s8.bf16 %v738
        %v1667 = vunpack.c.h.s8.bf16 %v739
        %v1668 = vunpack.c.h.s8.bf16 %v740
        %v1669 = vunpack.c.h.s8.bf16 %v741
        %v1670 = vunpack.c.h.s8.bf16 %v742
        %v1671 = vunpack.c.h.s8.bf16 %v743
        %v1672 = vunpack.c.l.s8.bf16 %v744
        %v1673 = vunpack.c.l.s8.bf16 %v745
        %v1674 = vunpack.c.l.s8.bf16 %v746
        %v1675 = vunpack.c.l.s8.bf16 %v747
        %v1676 = vunpack.c.l.s8.bf16 %v748
        %v1677 = vunpack.c.l.s8.bf16 %v749
        %v1678 = vunpack.c.l.s8.bf16 %v750
        %v1679 = vunpack.c.l.s8.bf16 %v751
        %v1680 = vunpack.c.h.s8.bf16 %v744
        %v1681 = vunpack.c.h.s8.bf16 %v745
        %v1682 = vunpack.c.h.s8.bf16 %v746
        %v1683 = vunpack.c.h.s8.bf16 %v747
        %v1684 = vunpack.c.h.s8.bf16 %v748
        %v1685 = vunpack.c.h.s8.bf16 %v749
        %v1686 = vunpack.c.h.s8.bf16 %v750
        %v1687 = vunpack.c.h.s8.bf16 %v751
        %v1688 = vunpack.c.l.s8.bf16 %v752
        %v1689 = vunpack.c.l.s8.bf16 %v753
        %v1690 = vunpack.c.l.s8.bf16 %v754
        %v1691 = vunpack.c.l.s8.bf16 %v755
        %v1692 = vunpack.c.l.s8.bf16 %v756
        %v1693 = vunpack.c.l.s8.bf16 %v757
        %v1694 = vunpack.c.l.s8.bf16 %v758
        %v1695 = vunpack.c.l.s8.bf16 %v759
        %v1696 = vunpack.c.h.s8.bf16 %v752
        %v1697 = vunpack.c.h.s8.bf16 %v753
        %v1698 = vunpack.c.h.s8.bf16 %v754
        %v1699 = vunpack.c.h.s8.bf16 %v755
        %v1700 = vunpack.c.h.s8.bf16 %v756
        %v1701 = vunpack.c.h.s8.bf16 %v757
        %v1702 = vunpack.c.h.s8.bf16 %v758
        %v1703 = vunpack.c.h.s8.bf16 %v759
        %v1704 = vunpack.c.l.s8.bf16 %v760
        %v1705 = vunpack.c.l.s8.bf16 %v761
        %v1706 = vunpack.c.l.s8.bf16 %v762
        %v1707 = vunpack.c.l.s8.bf16 %v763
        %v1708 = vunpack.c.l.s8.bf16 %v764
        %v1709 = vunpack.c.l.s8.bf16 %v765
        %v1710 = vunpack.c.l.s8.bf16 %v766
        %v1711 = vunpack.c.l.s8.bf16 %v767
        %v1712 = vunpack.c.h.s8.bf16 %v760
        %v1713 = vunpack.c.h.s8.bf16 %v761
        %v1714 = vunpack.c.h.s8.bf16 %v762
        %v1715 = vunpack.c.h.s8.bf16 %v763
        %v1716 = vunpack.c.h.s8.bf16 %v764
        %v1717 = vunpack.c.h.s8.bf16 %v765
        %v1718 = vunpack.c.h.s8.bf16 %v766
        %v1719 = vunpack.c.h.s8.bf16 %v767
        %v1720 = vunpack.c.l.s8.bf16 %v768
        %v1721 = vunpack.c.l.s8.bf16 %v769
        %v1722 = vunpack.c.l.s8.bf16 %v770
        %v1723 = vunpack.c.l.s8.bf16 %v771
        %v1724 = vunpack.c.l.s8.bf16 %v772
        %v1725 = vunpack.c.l.s8.bf16 %v773
        %v1726 = vunpack.c.l.s8.bf16 %v774
        %v1727 = vunpack.c.l.s8.bf16 %v775
        %v1728 = vunpack.c.h.s8.bf16 %v768
        %v1729 = vunpack.c.h.s8.bf16 %v769
        %v1730 = vunpack.c.h.s8.bf16 %v770
        %v1731 = vunpack.c.h.s8.bf16 %v771
        %v1732 = vunpack.c.h.s8.bf16 %v772
        %v1733 = vunpack.c.h.s8.bf16 %v773
        %v1734 = vunpack.c.h.s8.bf16 %v774
        %v1735 = vunpack.c.h.s8.bf16 %v775
        %v1736 = vunpack.c.l.s8.bf16 %v776
        %v1737 = vunpack.c.l.s8.bf16 %v777
        %v1738 = vunpack.c.l.s8.bf16 %v778
        %v1739 = vunpack.c.l.s8.bf16 %v779
        %v1740 = vunpack.c.l.s8.bf16 %v780
        %v1741 = vunpack.c.l.s8.bf16 %v781
        %v1742 = vunpack.c.l.s8.bf16 %v782
        %v1743 = vunpack.c.l.s8.bf16 %v783
        %v1744 = vunpack.c.h.s8.bf16 %v776
        %v1745 = vunpack.c.h.s8.bf16 %v777
        %v1746 = vunpack.c.h.s8.bf16 %v778
        %v1747 = vunpack.c.h.s8.bf16 %v779
        %v1748 = vunpack.c.h.s8.bf16 %v780
        %v1749 = vunpack.c.h.s8.bf16 %v781
        %v1750 = vunpack.c.h.s8.bf16 %v782
        %v1751 = vunpack.c.h.s8.bf16 %v783
        %v1752 = vunpack.c.l.s8.bf16 %v784
        %v1753 = vunpack.c.l.s8.bf16 %v785
        %v1754 = vunpack.c.l.s8.bf16 %v786
        %v1755 = vunpack.c.l.s8.bf16 %v787
        %v1756 = vunpack.c.l.s8.bf16 %v788
        %v1757 = vunpack.c.l.s8.bf16 %v789
        %v1758 = vunpack.c.l.s8.bf16 %v790
        %v1759 = vunpack.c.l.s8.bf16 %v791
        %v1760 = vunpack.c.h.s8.bf16 %v784
        %v1761 = vunpack.c.h.s8.bf16 %v785
        %v1762 = vunpack.c.h.s8.bf16 %v786
        %v1763 = vunpack.c.h.s8.bf16 %v787
        %v1764 = vunpack.c.h.s8.bf16 %v788
        %v1765 = vunpack.c.h.s8.bf16 %v789
        %v1766 = vunpack.c.h.s8.bf16 %v790
        %v1767 = vunpack.c.h.s8.bf16 %v791
        %v1768 = vunpack.c.l.s8.bf16 %v792
        %v1769 = vunpack.c.l.s8.bf16 %v793
        %v1770 = vunpack.c.l.s8.bf16 %v794
        %v1771 = vunpack.c.l.s8.bf16 %v795
        %v1772 = vunpack.c.l.s8.bf16 %v796
        %v1773 = vunpack.c.l.s8.bf16 %v797
        %v1774 = vunpack.c.l.s8.bf16 %v798
        %v1775 = vunpack.c.l.s8.bf16 %v799
        %v1776 = vunpack.c.h.s8.bf16 %v792
        %v1777 = vunpack.c.h.s8.bf16 %v793
        %v1778 = vunpack.c.h.s8.bf16 %v794
        %v1779 = vunpack.c.h.s8.bf16 %v795
        %v1780 = vunpack.c.h.s8.bf16 %v796
        %v1781 = vunpack.c.h.s8.bf16 %v797
        %v1782 = vunpack.c.h.s8.bf16 %v798
        %v1783 = vunpack.c.h.s8.bf16 %v799
        %v1784 = vunpack.c.l.s8.bf16 %v800
        %v1785 = vunpack.c.l.s8.bf16 %v801
        %v1786 = vunpack.c.l.s8.bf16 %v802
        %v1787 = vunpack.c.l.s8.bf16 %v803
        %v1788 = vunpack.c.l.s8.bf16 %v804
        %v1789 = vunpack.c.l.s8.bf16 %v805
        %v1790 = vunpack.c.l.s8.bf16 %v806
        %v1791 = vunpack.c.l.s8.bf16 %v807
        %v1792 = vunpack.c.h.s8.bf16 %v800
        %v1793 = vunpack.c.h.s8.bf16 %v801
        %v1794 = vunpack.c.h.s8.bf16 %v802
        %v1795 = vunpack.c.h.s8.bf16 %v803
        %v1796 = vunpack.c.h.s8.bf16 %v804
        %v1797 = vunpack.c.h.s8.bf16 %v805
        %v1798 = vunpack.c.h.s8.bf16 %v806
        %v1799 = vunpack.c.h.s8.bf16 %v807
        %v1800 = vunpack.c.l.s8.bf16 %v808
        %v1801 = vunpack.c.l.s8.bf16 %v809
        %v1802 = vunpack.c.l.s8.bf16 %v810
        %v1803 = vunpack.c.l.s8.bf16 %v811
        %v1804 = vunpack.c.l.s8.bf16 %v812
        %v1805 = vunpack.c.l.s8.bf16 %v813
        %v1806 = vunpack.c.l.s8.bf16 %v814
        %v1807 = vunpack.c.l.s8.bf16 %v815
        %v1808 = vunpack.c.h.s8.bf16 %v808
        %v1809 = vunpack.c.h.s8.bf16 %v809
        %v1810 = vunpack.c.h.s8.bf16 %v810
        %v1811 = vunpack.c.h.s8.bf16 %v811
        %v1812 = vunpack.c.h.s8.bf16 %v812
        %v1813 = vunpack.c.h.s8.bf16 %v813
        %v1814 = vunpack.c.h.s8.bf16 %v814
        %v1815 = vunpack.c.h.s8.bf16 %v815
        %v1816 = vunpack.c.l.s8.bf16 %v816
        %v1817 = vunpack.c.l.s8.bf16 %v817
        %v1818 = vunpack.c.l.s8.bf16 %v818
        %v1819 = vunpack.c.l.s8.bf16 %v819
        %v1820 = vunpack.c.l.s8.bf16 %v820
        %v1821 = vunpack.c.l.s8.bf16 %v821
        %v1822 = vunpack.c.l.s8.bf16 %v822
        %v1823 = vunpack.c.l.s8.bf16 %v823
        %v1824 = vunpack.c.h.s8.bf16 %v816
        %v1825 = vunpack.c.h.s8.bf16 %v817
        %v1826 = vunpack.c.h.s8.bf16 %v818
        %v1827 = vunpack.c.h.s8.bf16 %v819
        %v1828 = vunpack.c.h.s8.bf16 %v820
        %v1829 = vunpack.c.h.s8.bf16 %v821
        %v1830 = vunpack.c.h.s8.bf16 %v822
        %v1831 = vunpack.c.h.s8.bf16 %v823
        %v1832 = vunpack.c.l.s8.bf16 %v824
        %v1833 = vunpack.c.l.s8.bf16 %v825
        %v1834 = vunpack.c.l.s8.bf16 %v826
        %v1835 = vunpack.c.l.s8.bf16 %v827
        %v1836 = vunpack.c.l.s8.bf16 %v828
        %v1837 = vunpack.c.l.s8.bf16 %v829
        %v1838 = vunpack.c.l.s8.bf16 %v830
        %v1839 = vunpack.c.l.s8.bf16 %v831
        %v1840 = vunpack.c.h.s8.bf16 %v824
        %v1841 = vunpack.c.h.s8.bf16 %v825
        %v1842 = vunpack.c.h.s8.bf16 %v826
        %v1843 = vunpack.c.h.s8.bf16 %v827
        %v1844 = vunpack.c.h.s8.bf16 %v828
        %v1845 = vunpack.c.h.s8.bf16 %v829
        %v1846 = vunpack.c.h.s8.bf16 %v830
        %v1847 = vunpack.c.h.s8.bf16 %v831
        %v1848 = vunpack.c.l.s8.bf16 %v832
        %v1849 = vunpack.c.l.s8.bf16 %v833
        %v1850 = vunpack.c.l.s8.bf16 %v834
        %v1851 = vunpack.c.l.s8.bf16 %v835
        %v1852 = vunpack.c.l.s8.bf16 %v836
        %v1853 = vunpack.c.l.s8.bf16 %v837
        %v1854 = vunpack.c.l.s8.bf16 %v838
        %v1855 = vunpack.c.l.s8.bf16 %v839
        %v1856 = vunpack.c.h.s8.bf16 %v832
        %v1857 = vunpack.c.h.s8.bf16 %v833
        %v1858 = vunpack.c.h.s8.bf16 %v834
        %v1859 = vunpack.c.h.s8.bf16 %v835
        %v1860 = vunpack.c.h.s8.bf16 %v836
        %v1861 = vunpack.c.h.s8.bf16 %v837
        %v1862 = vunpack.c.h.s8.bf16 %v838
        %v1863 = vunpack.c.h.s8.bf16 %v839
        %v1866 = vcombine.high %v326, %v326
        %v1868 = vunpack.c.l.s4 1966171168
        %v1869 = vunpack.c.0.s8 %v1868
        %v1870 = vlaneseq
        %v1871 = vshrl.u32 %v1870, 7
        %v1872 = vsub.s32 %v1869, %v1871
        %v1873 = vrot.slane %v326, %v1872
        %v1875 = vunpack.c.l.s4 1966171168
        %v1876 = vunpack.c.0.s8 %v1875
        %v1877 = vlaneseq
        %v1878 = vshrl.u32 %v1877, 7
        %v1879 = vsub.s32 %v1876, %v1878
        %v1880 = vrot.slane %v1866, %v1879
        %v1881 = vcombine.high %v1873, %v1873
        %v1882 = vcombine.high %v1880, %v1880
        %v1884 = vunpack.c.l.s4 1966171168
        %v1885 = vunpack.c.0.s8 %v1884
        %v1886 = vlaneseq
        %v1887 = vshrl.u32 %v1886, 7
        %v1888 = vsub.s32 %v1885, %v1887
        %v1889 = vrot.slane %v1873, %v1888
        %v1891 = vunpack.c.l.s4 1966171168
        %v1892 = vunpack.c.0.s8 %v1891
        %v1893 = vlaneseq
        %v1894 = vshrl.u32 %v1893, 7
        %v1895 = vsub.s32 %v1892, %v1894
        %v1896 = vrot.slane %v1880, %v1895
        %v1898 = vunpack.c.l.s4 1966171168
        %v1899 = vunpack.c.0.s8 %v1898
        %v1900 = vlaneseq
        %v1901 = vshrl.u32 %v1900, 7
        %v1902 = vsub.s32 %v1899, %v1901
        %v1903 = vrot.slane %v1881, %v1902
        %v1905 = vunpack.c.l.s4 1966171168
        %v1906 = vunpack.c.0.s8 %v1905
        %v1907 = vlaneseq
        %v1908 = vshrl.u32 %v1907, 7
        %v1909 = vsub.s32 %v1906, %v1908
        %v1910 = vrot.slane %v1882, %v1909
        %v1911 = vcombine.high %v1889, %v1889
        %v1912 = vcombine.high %v1896, %v1896
        %v1913 = vcombine.high %v1903, %v1903
        %v1914 = vcombine.high %v1910, %v1910
        %v1915 = vcombine.high %v327, %v327
        %v1917 = vunpack.c.l.s4 1966171168
        %v1918 = vunpack.c.0.s8 %v1917
        %v1919 = vlaneseq
        %v1920 = vshrl.u32 %v1919, 7
        %v1921 = vsub.s32 %v1918, %v1920
        %v1922 = vrot.slane %v327, %v1921
        %v1924 = vunpack.c.l.s4 1966171168
        %v1925 = vunpack.c.0.s8 %v1924
        %v1926 = vlaneseq
        %v1927 = vshrl.u32 %v1926, 7
        %v1928 = vsub.s32 %v1925, %v1927
        %v1929 = vrot.slane %v1915, %v1928
        %v1930 = vcombine.high %v1922, %v1922
        %v1931 = vcombine.high %v1929, %v1929
        %v1933 = vunpack.c.l.s4 1966171168
        %v1934 = vunpack.c.0.s8 %v1933
        %v1935 = vlaneseq
        %v1936 = vshrl.u32 %v1935, 7
        %v1937 = vsub.s32 %v1934, %v1936
        %v1938 = vrot.slane %v1922, %v1937
        %v1940 = vunpack.c.l.s4 1966171168
        %v1941 = vunpack.c.0.s8 %v1940
        %v1942 = vlaneseq
        %v1943 = vshrl.u32 %v1942, 7
        %v1944 = vsub.s32 %v1941, %v1943
        %v1945 = vrot.slane %v1929, %v1944
        %v1947 = vunpack.c.l.s4 1966171168
        %v1948 = vunpack.c.0.s8 %v1947
        %v1949 = vlaneseq
        %v1950 = vshrl.u32 %v1949, 7
        %v1951 = vsub.s32 %v1948, %v1950
        %v1952 = vrot.slane %v1930, %v1951
        %v1954 = vunpack.c.l.s4 1966171168
        %v1955 = vunpack.c.0.s8 %v1954
        %v1956 = vlaneseq
        %v1957 = vshrl.u32 %v1956, 7
        %v1958 = vsub.s32 %v1955, %v1957
        %v1959 = vrot.slane %v1931, %v1958
        %v1960 = vcombine.high %v1938, %v1938
        %v1961 = vcombine.high %v1945, %v1945
        %v1962 = vcombine.high %v1952, %v1952
        %v1963 = vcombine.high %v1959, %v1959
        %1980 = vmatprep.subr.bf16.mxu0 %v841
        %1981 = vmatpush1.bf16.msra.mxu0 %v840
        %1982 = vmatprep.subr.bf16.mxu0 %v849
        %1983 = vmatpush1.bf16.msra.mxu0 %v848
        %1984 = vmatprep.subr.bf16.mxu0 %v857
        %1985 = vmatpush1.bf16.msra.mxu0 %v856
        %1986 = vmatprep.subr.bf16.mxu0 %v865
        %1987 = vmatpush1.bf16.msra.mxu0 %v864
        %1988 = vmatprep.subr.bf16.mxu0 %v873
        %1989 = vmatpush1.bf16.msra.mxu0 %v872
        %1990 = vmatprep.subr.bf16.mxu0 %v881
        %1991 = vmatpush1.bf16.msra.mxu0 %v880
        %1992 = vmatprep.subr.bf16.mxu0 %v889
        %1993 = vmatpush1.bf16.msra.mxu0 %v888
        %1994 = vmatprep.subr.bf16.mxu0 %v897
        %1995 = vmatpush1.bf16.msra.mxu0 %v896
        %1996 = vmatprep.subr.bf16.mxu0 %v905
        %1997 = vmatpush1.bf16.msra.mxu0 %v904
        %1998 = vmatprep.subr.bf16.mxu0 %v913
        %1999 = vmatpush1.bf16.msra.mxu0 %v912
        %2000 = vmatprep.subr.bf16.mxu0 %v921
        %2001 = vmatpush1.bf16.msra.mxu0 %v920
        %2002 = vmatprep.subr.bf16.mxu0 %v929
        %2003 = vmatpush1.bf16.msra.mxu0 %v928
        %2004 = vmatprep.subr.bf16.mxu0 %v937
        %2005 = vmatpush1.bf16.msra.mxu0 %v936
        %2006 = vmatprep.subr.bf16.mxu0 %v945
        %2007 = vmatpush1.bf16.msra.mxu0 %v944
        %2008 = vmatprep.subr.bf16.mxu0 %v953
        %2009 = vmatpush1.bf16.msra.mxu0 %v952
        %2010 = vmatprep.subr.bf16.mxu0 %v961
        %2011 = vmatpush1.bf16.msra.mxu0 %v960
        %2012 = vmatprep.mubr.bf16.mxu0 %v1903
        %2013 = vmatmul.mubr.bf16.gmra.mrb[0].mxu0 %v1889
        %v2014 = vpop.f32.mrb[0].mxu0
        %v2015 = vadd.f32 0.0, %v2014
        %v2016 = vpop.f32.mrb[0].mxu0
        %v2017 = vadd.f32 0.0, %v2016
        %v2018 = vpop.f32.mrb[0].mxu0
        %v2019 = vpop.f32.mrb[0].mxu0
        %2020 = vdwg.mxu0
        %2021 = vmatprep.subr.bf16.mxu0 %v969
        %2022 = vmatpush1.bf16.msra.mxu0 %v968
        %2023 = vmatprep.subr.bf16.mxu0 %v977
        %2024 = vmatpush1.bf16.msra.mxu0 %v976
        %2025 = vmatprep.subr.bf16.mxu0 %v985
        %2026 = vmatpush1.bf16.msra.mxu0 %v984
        %2027 = vmatprep.subr.bf16.mxu0 %v993
        %2028 = vmatpush1.bf16.msra.mxu0 %v992
        %2029 = vmatprep.subr.bf16.mxu0 %v1001
        %2030 = vmatpush1.bf16.msra.mxu0 %v1000
        %2031 = vmatprep.subr.bf16.mxu0 %v1009
        %2032 = vmatpush1.bf16.msra.mxu0 %v1008
        %2033 = vmatprep.subr.bf16.mxu0 %v1017
        %2034 = vmatpush1.bf16.msra.mxu0 %v1016
        %2035 = vmatprep.subr.bf16.mxu0 %v1025
        %2036 = vmatpush1.bf16.msra.mxu0 %v1024
        %2037 = vmatprep.subr.bf16.mxu0 %v1033
        %2038 = vmatpush1.bf16.msra.mxu0 %v1032
        %2039 = vmatprep.subr.bf16.mxu0 %v1041
        %2040 = vmatpush1.bf16.msra.mxu0 %v1040
        %2041 = vmatprep.subr.bf16.mxu0 %v1049
        %2042 = vmatpush1.bf16.msra.mxu0 %v1048
        %2043 = vmatprep.subr.bf16.mxu0 %v1057
        %2044 = vmatpush1.bf16.msra.mxu0 %v1056
        %2045 = vmatprep.subr.bf16.mxu0 %v1065
        %2046 = vmatpush1.bf16.msra.mxu0 %v1064
        %2047 = vmatprep.subr.bf16.mxu0 %v1073
        %2048 = vmatpush1.bf16.msra.mxu0 %v1072
        %2049 = vmatprep.subr.bf16.mxu0 %v1081
        %2050 = vmatpush1.bf16.msra.mxu0 %v1080
        %2051 = vmatprep.subr.bf16.mxu0 %v1089
        %2052 = vmatpush1.bf16.msra.mxu0 %v1088
        %2053 = vmatprep.mubr.bf16.mxu0 %v1913
        %2054 = vmatmul.mubr.bf16.gmra.mrb[0].mxu0 %v1911
        %v2055 = vpop.f32.mrb[0].mxu0
        %v2056 = vadd.f32 %v2015, %v2055
        %v2057 = vpop.f32.mrb[0].mxu0
        %v2058 = vadd.f32 %v2017, %v2057
        %v2059 = vpop.f32.mrb[0].mxu0
        %v2060 = vpop.f32.mrb[0].mxu0
        %2061 = vdwg.mxu0
        %2062 = vmatprep.subr.bf16.mxu0 %v1097
        %2063 = vmatpush1.bf16.msra.mxu0 %v1096
        %2064 = vmatprep.subr.bf16.mxu0 %v1105
        %2065 = vmatpush1.bf16.msra.mxu0 %v1104
        %2066 = vmatprep.subr.bf16.mxu0 %v1113
        %2067 = vmatpush1.bf16.msra.mxu0 %v1112
        %2068 = vmatprep.subr.bf16.mxu0 %v1121
        %2069 = vmatpush1.bf16.msra.mxu0 %v1120
        %2070 = vmatprep.subr.bf16.mxu0 %v1129
        %2071 = vmatpush1.bf16.msra.mxu0 %v1128
        %2072 = vmatprep.subr.bf16.mxu0 %v1137
        %2073 = vmatpush1.bf16.msra.mxu0 %v1136
        %2074 = vmatprep.subr.bf16.mxu0 %v1145
        %2075 = vmatpush1.bf16.msra.mxu0 %v1144
        %2076 = vmatprep.subr.bf16.mxu0 %v1153
        %2077 = vmatpush1.bf16.msra.mxu0 %v1152
        %2078 = vmatprep.subr.bf16.mxu0 %v1161
        %2079 = vmatpush1.bf16.msra.mxu0 %v1160
        %2080 = vmatprep.subr.bf16.mxu0 %v1169
        %2081 = vmatpush1.bf16.msra.mxu0 %v1168
        %2082 = vmatprep.subr.bf16.mxu0 %v1177
        %2083 = vmatpush1.bf16.msra.mxu0 %v1176
        %2084 = vmatprep.subr.bf16.mxu0 %v1185
        %2085 = vmatpush1.bf16.msra.mxu0 %v1184
        %2086 = vmatprep.subr.bf16.mxu0 %v1193
        %2087 = vmatpush1.bf16.msra.mxu0 %v1192
        %2088 = vmatprep.subr.bf16.mxu0 %v1201
        %2089 = vmatpush1.bf16.msra.mxu0 %v1200
        %2090 = vmatprep.subr.bf16.mxu0 %v1209
        %2091 = vmatpush1.bf16.msra.mxu0 %v1208
        %2092 = vmatprep.subr.bf16.mxu0 %v1217
        %2093 = vmatpush1.bf16.msra.mxu0 %v1216
        %2094 = vmatprep.mubr.bf16.mxu0 %v1910
        %2095 = vmatmul.mubr.bf16.gmra.mrb[0].mxu0 %v1896
        %v2096 = vpop.f32.mrb[0].mxu0
        %v2097 = vadd.f32 %v2056, %v2096
        %v2098 = vpop.f32.mrb[0].mxu0
        %v2099 = vadd.f32 %v2058, %v2098
        %v2100 = vpop.f32.mrb[0].mxu0
        %v2101 = vpop.f32.mrb[0].mxu0
        %2102 = vdwg.mxu0
        %2103 = vmatprep.subr.bf16.mxu0 %v1225
        %2104 = vmatpush1.bf16.msra.mxu0 %v1224
        %2105 = vmatprep.subr.bf16.mxu0 %v1233
        %2106 = vmatpush1.bf16.msra.mxu0 %v1232
        %2107 = vmatprep.subr.bf16.mxu0 %v1241
        %2108 = vmatpush1.bf16.msra.mxu0 %v1240
        %2109 = vmatprep.subr.bf16.mxu0 %v1249
        %2110 = vmatpush1.bf16.msra.mxu0 %v1248
        %2111 = vmatprep.subr.bf16.mxu0 %v1257
        %2112 = vmatpush1.bf16.msra.mxu0 %v1256
        %2113 = vmatprep.subr.bf16.mxu0 %v1265
        %2114 = vmatpush1.bf16.msra.mxu0 %v1264
        %2115 = vmatprep.subr.bf16.mxu0 %v1273
        %2116 = vmatpush1.bf16.msra.mxu0 %v1272
        %2117 = vmatprep.subr.bf16.mxu0 %v1281
        %2118 = vmatpush1.bf16.msra.mxu0 %v1280
        %2119 = vmatprep.subr.bf16.mxu0 %v1289
        %2120 = vmatpush1.bf16.msra.mxu0 %v1288
        %2121 = vmatprep.subr.bf16.mxu0 %v1297
        %2122 = vmatpush1.bf16.msra.mxu0 %v1296
        %2123 = vmatprep.subr.bf16.mxu0 %v1305
        %2124 = vmatpush1.bf16.msra.mxu0 %v1304
        %2125 = vmatprep.subr.bf16.mxu0 %v1313
        %2126 = vmatpush1.bf16.msra.mxu0 %v1312
        %2127 = vmatprep.subr.bf16.mxu0 %v1321
        %2128 = vmatpush1.bf16.msra.mxu0 %v1320
        %2129 = vmatprep.subr.bf16.mxu0 %v1329
        %2130 = vmatpush1.bf16.msra.mxu0 %v1328
        %2131 = vmatprep.subr.bf16.mxu0 %v1337
        %2132 = vmatpush1.bf16.msra.mxu0 %v1336
        %2133 = vmatprep.subr.bf16.mxu0 %v1345
        %2134 = vmatpush1.bf16.msra.mxu0 %v1344
        %2135 = vmatprep.mubr.bf16.mxu0 %v1914
        %2136 = vmatmul.mubr.bf16.gmra.mrb[0].mxu0 %v1912
        %v2137 = vpop.f32.mrb[0].mxu0
        %v2138 = vadd.f32 %v2097, %v2137
        %v2139 = vpop.f32.mrb[0].mxu0
        %v2140 = vadd.f32 %v2099, %v2139
        %v2141 = vpop.f32.mrb[0].mxu0
        %v2142 = vpop.f32.mrb[0].mxu0
        %2143 = vdwg.mxu0
        %2144 = vmatprep.subr.bf16.mxu0 %v1353
        %2145 = vmatpush1.bf16.msra.mxu0 %v1352
        %2146 = vmatprep.subr.bf16.mxu0 %v1361
        %2147 = vmatpush1.bf16.msra.mxu0 %v1360
        %2148 = vmatprep.subr.bf16.mxu0 %v1369
        %2149 = vmatpush1.bf16.msra.mxu0 %v1368
        %2150 = vmatprep.subr.bf16.mxu0 %v1377
        %2151 = vmatpush1.bf16.msra.mxu0 %v1376
        %2152 = vmatprep.subr.bf16.mxu0 %v1385
        %2153 = vmatpush1.bf16.msra.mxu0 %v1384
        %2154 = vmatprep.subr.bf16.mxu0 %v1393
        %2155 = vmatpush1.bf16.msra.mxu0 %v1392
        %2156 = vmatprep.subr.bf16.mxu0 %v1401
        %2157 = vmatpush1.bf16.msra.mxu0 %v1400
        %2158 = vmatprep.subr.bf16.mxu0 %v1409
        %2159 = vmatpush1.bf16.msra.mxu0 %v1408
        %2160 = vmatprep.subr.bf16.mxu0 %v1417
        %2161 = vmatpush1.bf16.msra.mxu0 %v1416
        %2162 = vmatprep.subr.bf16.mxu0 %v1425
        %2163 = vmatpush1.bf16.msra.mxu0 %v1424
        %2164 = vmatprep.subr.bf16.mxu0 %v1433
        %2165 = vmatpush1.bf16.msra.mxu0 %v1432
        %2166 = vmatprep.subr.bf16.mxu0 %v1441
        %2167 = vmatpush1.bf16.msra.mxu0 %v1440
        %2168 = vmatprep.subr.bf16.mxu0 %v1449
        %2169 = vmatpush1.bf16.msra.mxu0 %v1448
        %2170 = vmatprep.subr.bf16.mxu0 %v1457
        %2171 = vmatpush1.bf16.msra.mxu0 %v1456
        %2172 = vmatprep.subr.bf16.mxu0 %v1465
        %2173 = vmatpush1.bf16.msra.mxu0 %v1464
        %2174 = vmatprep.subr.bf16.mxu0 %v1473
        %2175 = vmatpush1.bf16.msra.mxu0 %v1472
        %2176 = vmatprep.mubr.bf16.mxu0 %v1952
        %2177 = vmatmul.mubr.bf16.gmra.mrb[0].mxu0 %v1938
        %v2178 = vpop.f32.mrb[0].mxu0
        %v2179 = vadd.f32 %v2138, %v2178
        %v2180 = vpop.f32.mrb[0].mxu0
        %v2181 = vadd.f32 %v2140, %v2180
        %v2182 = vpop.f32.mrb[0].mxu0
        %v2183 = vpop.f32.mrb[0].mxu0
        %2184 = vdwg.mxu0
        %2185 = vmatprep.subr.bf16.mxu0 %v1481
        %2186 = vmatpush1.bf16.msra.mxu0 %v1480
        %2187 = vmatprep.subr.bf16.mxu0 %v1489
        %2188 = vmatpush1.bf16.msra.mxu0 %v1488
        %2189 = vmatprep.subr.bf16.mxu0 %v1497
        %2190 = vmatpush1.bf16.msra.mxu0 %v1496
        %2191 = vmatprep.subr.bf16.mxu0 %v1505
        %2192 = vmatpush1.bf16.msra.mxu0 %v1504
        %2193 = vmatprep.subr.bf16.mxu0 %v1513
        %2194 = vmatpush1.bf16.msra.mxu0 %v1512
        %2195 = vmatprep.subr.bf16.mxu0 %v1521
        %2196 = vmatpush1.bf16.msra.mxu0 %v1520
        %2197 = vmatprep.subr.bf16.mxu0 %v1529
        %2198 = vmatpush1.bf16.msra.mxu0 %v1528
        %2199 = vmatprep.subr.bf16.mxu0 %v1537
        %2200 = vmatpush1.bf16.msra.mxu0 %v1536
        %2201 = vmatprep.subr.bf16.mxu0 %v1545
        %2202 = vmatpush1.bf16.msra.mxu0 %v1544
        %2203 = vmatprep.subr.bf16.mxu0 %v1553
        %2204 = vmatpush1.bf16.msra.mxu0 %v1552
        %2205 = vmatprep.subr.bf16.mxu0 %v1561
        %2206 = vmatpush1.bf16.msra.mxu0 %v1560
        %2207 = vmatprep.subr.bf16.mxu0 %v1569
        %2208 = vmatpush1.bf16.msra.mxu0 %v1568
        %2209 = vmatprep.subr.bf16.mxu0 %v1577
        %2210 = vmatpush1.bf16.msra.mxu0 %v1576
        %2211 = vmatprep.subr.bf16.mxu0 %v1585
        %2212 = vmatpush1.bf16.msra.mxu0 %v1584
        %2213 = vmatprep.subr.bf16.mxu0 %v1593
        %2214 = vmatpush1.bf16.msra.mxu0 %v1592
        %2215 = vmatprep.subr.bf16.mxu0 %v1601
        %2216 = vmatpush1.bf16.msra.mxu0 %v1600
        %2217 = vmatprep.mubr.bf16.mxu0 %v1962
        %2218 = vmatmul.mubr.bf16.gmra.mrb[0].mxu0 %v1960
        %v2219 = vpop.f32.mrb[0].mxu0
        %v2220 = vadd.f32 %v2179, %v2219
        %v2221 = vpop.f32.mrb[0].mxu0
        %v2222 = vadd.f32 %v2181, %v2221
        %v2223 = vpop.f32.mrb[0].mxu0
        %v2224 = vpop.f32.mrb[0].mxu0
        %2225 = vdwg.mxu0
        %2226 = vmatprep.subr.bf16.mxu0 %v1609
        %2227 = vmatpush1.bf16.msra.mxu0 %v1608
        %2228 = vmatprep.subr.bf16.mxu0 %v1617
        %2229 = vmatpush1.bf16.msra.mxu0 %v1616
        %2230 = vmatprep.subr.bf16.mxu0 %v1625
        %2231 = vmatpush1.bf16.msra.mxu0 %v1624
        %2232 = vmatprep.subr.bf16.mxu0 %v1633
        %2233 = vmatpush1.bf16.msra.mxu0 %v1632
        %2234 = vmatprep.subr.bf16.mxu0 %v1641
        %2235 = vmatpush1.bf16.msra.mxu0 %v1640
        %2236 = vmatprep.subr.bf16.mxu0 %v1649
        %2237 = vmatpush1.bf16.msra.mxu0 %v1648
        %2238 = vmatprep.subr.bf16.mxu0 %v1657
        %2239 = vmatpush1.bf16.msra.mxu0 %v1656
        %2240 = vmatprep.subr.bf16.mxu0 %v1665
        %2241 = vmatpush1.bf16.msra.mxu0 %v1664
        %2242 = vmatprep.subr.bf16.mxu0 %v1673
        %2243 = vmatpush1.bf16.msra.mxu0 %v1672
        %2244 = vmatprep.subr.bf16.mxu0 %v1681
        %2245 = vmatpush1.bf16.msra.mxu0 %v1680
        %2246 = vmatprep.subr.bf16.mxu0 %v1689
        %2247 = vmatpush1.bf16.msra.mxu0 %v1688
        %2248 = vmatprep.subr.bf16.mxu0 %v1697
        %2249 = vmatpush1.bf16.msra.mxu0 %v1696
        %2250 = vmatprep.subr.bf16.mxu0 %v1705
        %2251 = vmatpush1.bf16.msra.mxu0 %v1704
        %2252 = vmatprep.subr.bf16.mxu0 %v1713
        %2253 = vmatpush1.bf16.msra.mxu0 %v1712
        %2254 = vmatprep.subr.bf16.mxu0 %v1721
        %2255 = vmatpush1.bf16.msra.mxu0 %v1720
        %2256 = vmatprep.subr.bf16.mxu0 %v1729
        %2257 = vmatpush1.bf16.msra.mxu0 %v1728
        %2258 = vmatprep.mubr.bf16.mxu0 %v1959
        %2259 = vmatmul.mubr.bf16.gmra.mrb[0].mxu0 %v1945
        %v2260 = vpop.f32.mrb[0].mxu0
        %v2261 = vadd.f32 %v2220, %v2260
        %v2262 = vpop.f32.mrb[0].mxu0
        %v2263 = vadd.f32 %v2222, %v2262
        %v2264 = vpop.f32.mrb[0].mxu0
        %v2265 = vpop.f32.mrb[0].mxu0
        %2266 = vdwg.mxu0
        %2267 = vmatprep.subr.bf16.mxu0 %v1737
        %2268 = vmatpush1.bf16.msra.mxu0 %v1736
        %2269 = vmatprep.subr.bf16.mxu0 %v1745
        %2270 = vmatpush1.bf16.msra.mxu0 %v1744
        %2271 = vmatprep.subr.bf16.mxu0 %v1753
        %2272 = vmatpush1.bf16.msra.mxu0 %v1752
        %2273 = vmatprep.subr.bf16.mxu0 %v1761
        %2274 = vmatpush1.bf16.msra.mxu0 %v1760
        %2275 = vmatprep.subr.bf16.mxu0 %v1769
        %2276 = vmatpush1.bf16.msra.mxu0 %v1768
        %2277 = vmatprep.subr.bf16.mxu0 %v1777
        %2278 = vmatpush1.bf16.msra.mxu0 %v1776
        %2279 = vmatprep.subr.bf16.mxu0 %v1785
        %2280 = vmatpush1.bf16.msra.mxu0 %v1784
        %2281 = vmatprep.subr.bf16.mxu0 %v1793
        %2282 = vmatpush1.bf16.msra.mxu0 %v1792
        %2283 = vmatprep.subr.bf16.mxu0 %v1801
        %2284 = vmatpush1.bf16.msra.mxu0 %v1800
        %2285 = vmatprep.subr.bf16.mxu0 %v1809
        %2286 = vmatpush1.bf16.msra.mxu0 %v1808
        %2287 = vmatprep.subr.bf16.mxu0 %v1817
        %2288 = vmatpush1.bf16.msra.mxu0 %v1816
        %2289 = vmatprep.subr.bf16.mxu0 %v1825
        %2290 = vmatpush1.bf16.msra.mxu0 %v1824
        %2291 = vmatprep.subr.bf16.mxu0 %v1833
        %2292 = vmatpush1.bf16.msra.mxu0 %v1832
        %2293 = vmatprep.subr.bf16.mxu0 %v1841
        %2294 = vmatpush1.bf16.msra.mxu0 %v1840
        %2295 = vmatprep.subr.bf16.mxu0 %v1849
        %2296 = vmatpush1.bf16.msra.mxu0 %v1848
        %2297 = vmatprep.subr.bf16.mxu0 %v1857
        %2298 = vmatpush1.bf16.msra.mxu0 %v1856
        %2299 = vmatprep.mubr.bf16.mxu0 %v1963
        %2300 = vmatmul.mubr.bf16.gmra.mrb[0].mxu0 %v1961
        %v2301 = vpop.f32.mrb[0].mxu0
        %v2302 = vadd.f32 %v2261, %v2301
        %v2303 = vpop.f32.mrb[0].mxu0
        %v2304 = vadd.f32 %v2263, %v2303
        %v2305 = vpop.f32.mrb[0].mxu0
        %v2306 = vpop.f32.mrb[0].mxu0
        %2307 = vdwg.mxu0
        %2308 = vmatprep.subr.bf16.mxu0 %v843
        %2309 = vmatpush1.bf16.msra.mxu0 %v842
        %2310 = vmatprep.subr.bf16.mxu0 %v851
        %2311 = vmatpush1.bf16.msra.mxu0 %v850
        %2312 = vmatprep.subr.bf16.mxu0 %v859
        %2313 = vmatpush1.bf16.msra.mxu0 %v858
        %2314 = vmatprep.subr.bf16.mxu0 %v867
        %2315 = vmatpush1.bf16.msra.mxu0 %v866
        %2316 = vmatprep.subr.bf16.mxu0 %v875
        %2317 = vmatpush1.bf16.msra.mxu0 %v874
        %2318 = vmatprep.subr.bf16.mxu0 %v883
        %2319 = vmatpush1.bf16.msra.mxu0 %v882
        %2320 = vmatprep.subr.bf16.mxu0 %v891
        %2321 = vmatpush1.bf16.msra.mxu0 %v890
        %2322 = vmatprep.subr.bf16.mxu0 %v899
        %2323 = vmatpush1.bf16.msra.mxu0 %v898
        %2324 = vmatprep.subr.bf16.mxu0 %v907
        %2325 = vmatpush1.bf16.msra.mxu0 %v906
        %2326 = vmatprep.subr.bf16.mxu0 %v915
        %2327 = vmatpush1.bf16.msra.mxu0 %v914
        %2328 = vmatprep.subr.bf16.mxu0 %v923
        %2329 = vmatpush1.bf16.msra.mxu0 %v922
        %2330 = vmatprep.subr.bf16.mxu0 %v931
        %2331 = vmatpush1.bf16.msra.mxu0 %v930
        %2332 = vmatprep.subr.bf16.mxu0 %v939
        %2333 = vmatpush1.bf16.msra.mxu0 %v938
        %2334 = vmatprep.subr.bf16.mxu0 %v947
        %2335 = vmatpush1.bf16.msra.mxu0 %v946
        %2336 = vmatprep.subr.bf16.mxu0 %v955
        %2337 = vmatpush1.bf16.msra.mxu0 %v954
        %2338 = vmatprep.subr.bf16.mxu0 %v963
        %2339 = vmatpush1.bf16.msra.mxu0 %v962
        %2340 = vmatprep.mubr.bf16.mxu0 %v1903
        %2341 = vmatmul.mubr.bf16.gmra.mrb[0].mxu0 %v1889
        %v2342 = vpop.f32.mrb[0].mxu0
        %v2343 = vadd.f32 0.0, %v2342
        %v2344 = vpop.f32.mrb[0].mxu0
        %v2345 = vadd.f32 0.0, %v2344
        %v2346 = vpop.f32.mrb[0].mxu0
        %v2347 = vpop.f32.mrb[0].mxu0
        %2348 = vdwg.mxu0
        %2349 = vmatprep.subr.bf16.mxu0 %v971
        %2350 = vmatpush1.bf16.msra.mxu0 %v970
        %2351 = vmatprep.subr.bf16.mxu0 %v979
        %2352 = vmatpush1.bf16.msra.mxu0 %v978
        %2353 = vmatprep.subr.bf16.mxu0 %v987
        %2354 = vmatpush1.bf16.msra.mxu0 %v986
        %2355 = vmatprep.subr.bf16.mxu0 %v995
        %2356 = vmatpush1.bf16.msra.mxu0 %v994
        %2357 = vmatprep.subr.bf16.mxu0 %v1003
        %2358 = vmatpush1.bf16.msra.mxu0 %v1002
        %2359 = vmatprep.subr.bf16.mxu0 %v1011
        %2360 = vmatpush1.bf16.msra.mxu0 %v1010
        %2361 = vmatprep.subr.bf16.mxu0 %v1019
        %2362 = vmatpush1.bf16.msra.mxu0 %v1018
        %2363 = vmatprep.subr.bf16.mxu0 %v1027
        %2364 = vmatpush1.bf16.msra.mxu0 %v1026
        %2365 = vmatprep.subr.bf16.mxu0 %v1035
        %2366 = vmatpush1.bf16.msra.mxu0 %v1034
        %2367 = vmatprep.subr.bf16.mxu0 %v1043
        %2368 = vmatpush1.bf16.msra.mxu0 %v1042
        %2369 = vmatprep.subr.bf16.mxu0 %v1051
        %2370 = vmatpush1.bf16.msra.mxu0 %v1050
        %2371 = vmatprep.subr.bf16.mxu0 %v1059
        %2372 = vmatpush1.bf16.msra.mxu0 %v1058
        %2373 = vmatprep.subr.bf16.mxu0 %v1067
        %2374 = vmatpush1.bf16.msra.mxu0 %v1066
        %2375 = vmatprep.subr.bf16.mxu0 %v1075
        %2376 = vmatpush1.bf16.msra.mxu0 %v1074
        %2377 = vmatprep.subr.bf16.mxu0 %v1083
        %2378 = vmatpush1.bf16.msra.mxu0 %v1082
        %2379 = vmatprep.subr.bf16.mxu0 %v1091
        %2380 = vmatpush1.bf16.msra.mxu0 %v1090
        %2381 = vmatprep.mubr.bf16.mxu0 %v1913
        %2382 = vmatmul.mubr.bf16.gmra.mrb[0].mxu0 %v1911
        %v2383 = vpop.f32.mrb[0].mxu0
        %v2384 = vadd.f32 %v2343, %v2383
        %v2385 = vpop.f32.mrb[0].mxu0
        %v2386 = vadd.f32 %v2345, %v2385
        %v2387 = vpop.f32.mrb[0].mxu0
        %v2388 = vpop.f32.mrb[0].mxu0
        %2389 = vdwg.mxu0
        %2390 = vmatprep.subr.bf16.mxu0 %v1099
        %2391 = vmatpush1.bf16.msra.mxu0 %v1098
        %2392 = vmatprep.subr.bf16.mxu0 %v1107
        %2393 = vmatpush1.bf16.msra.mxu0 %v1106
        %2394 = vmatprep.subr.bf16.mxu0 %v1115
        %2395 = vmatpush1.bf16.msra.mxu0 %v1114
        %2396 = vmatprep.subr.bf16.mxu0 %v1123
        %2397 = vmatpush1.bf16.msra.mxu0 %v1122
        %2398 = vmatprep.subr.bf16.mxu0 %v1131
        %2399 = vmatpush1.bf16.msra.mxu0 %v1130
        %2400 = vmatprep.subr.bf16.mxu0 %v1139
        %2401 = vmatpush1.bf16.msra.mxu0 %v1138
        %2402 = vmatprep.subr.bf16.mxu0 %v1147
        %2403 = vmatpush1.bf16.msra.mxu0 %v1146
        %2404 = vmatprep.subr.bf16.mxu0 %v1155
        %2405 = vmatpush1.bf16.msra.mxu0 %v1154
        %2406 = vmatprep.subr.bf16.mxu0 %v1163
        %2407 = vmatpush1.bf16.msra.mxu0 %v1162
        %2408 = vmatprep.subr.bf16.mxu0 %v1171
        %2409 = vmatpush1.bf16.msra.mxu0 %v1170
        %2410 = vmatprep.subr.bf16.mxu0 %v1179
        %2411 = vmatpush1.bf16.msra.mxu0 %v1178
        %2412 = vmatprep.subr.bf16.mxu0 %v1187
        %2413 = vmatpush1.bf16.msra.mxu0 %v1186
        %2414 = vmatprep.subr.bf16.mxu0 %v1195
        %2415 = vmatpush1.bf16.msra.mxu0 %v1194
        %2416 = vmatprep.subr.bf16.mxu0 %v1203
        %2417 = vmatpush1.bf16.msra.mxu0 %v1202
        %2418 = vmatprep.subr.bf16.mxu0 %v1211
        %2419 = vmatpush1.bf16.msra.mxu0 %v1210
        %2420 = vmatprep.subr.bf16.mxu0 %v1219
        %2421 = vmatpush1.bf16.msra.mxu0 %v1218
        %2422 = vmatprep.mubr.bf16.mxu0 %v1910
        %2423 = vmatmul.mubr.bf16.gmra.mrb[0].mxu0 %v1896
        %v2424 = vpop.f32.mrb[0].mxu0
        %v2425 = vadd.f32 %v2384, %v2424
        %v2426 = vpop.f32.mrb[0].mxu0
        %v2427 = vadd.f32 %v2386, %v2426
        %v2428 = vpop.f32.mrb[0].mxu0
        %v2429 = vpop.f32.mrb[0].mxu0
        %2430 = vdwg.mxu0
        %2431 = vmatprep.subr.bf16.mxu0 %v1227
        %2432 = vmatpush1.bf16.msra.mxu0 %v1226
        %2433 = vmatprep.subr.bf16.mxu0 %v1235
        %2434 = vmatpush1.bf16.msra.mxu0 %v1234
        %2435 = vmatprep.subr.bf16.mxu0 %v1243
        %2436 = vmatpush1.bf16.msra.mxu0 %v1242
        %2437 = vmatprep.subr.bf16.mxu0 %v1251
        %2438 = vmatpush1.bf16.msra.mxu0 %v1250
        %2439 = vmatprep.subr.bf16.mxu0 %v1259
        %2440 = vmatpush1.bf16.msra.mxu0 %v1258
        %2441 = vmatprep.subr.bf16.mxu0 %v1267
        %2442 = vmatpush1.bf16.msra.mxu0 %v1266
        %2443 = vmatprep.subr.bf16.mxu0 %v1275
        %2444 = vmatpush1.bf16.msra.mxu0 %v1274
        %2445 = vmatprep.subr.bf16.mxu0 %v1283
        %2446 = vmatpush1.bf16.msra.mxu0 %v1282
        %2447 = vmatprep.subr.bf16.mxu0 %v1291
        %2448 = vmatpush1.bf16.msra.mxu0 %v1290
        %2449 = vmatprep.subr.bf16.mxu0 %v1299
        %2450 = vmatpush1.bf16.msra.mxu0 %v1298
        %2451 = vmatprep.subr.bf16.mxu0 %v1307
        %2452 = vmatpush1.bf16.msra.mxu0 %v1306
        %2453 = vmatprep.subr.bf16.mxu0 %v1315
        %2454 = vmatpush1.bf16.msra.mxu0 %v1314
        %2455 = vmatprep.subr.bf16.mxu0 %v1323
        %2456 = vmatpush1.bf16.msra.mxu0 %v1322
        %2457 = vmatprep.subr.bf16.mxu0 %v1331
        %2458 = vmatpush1.bf16.msra.mxu0 %v1330
        %2459 = vmatprep.subr.bf16.mxu0 %v1339
        %2460 = vmatpush1.bf16.msra.mxu0 %v1338
        %2461 = vmatprep.subr.bf16.mxu0 %v1347
        %2462 = vmatpush1.bf16.msra.mxu0 %v1346
        %2463 = vmatprep.mubr.bf16.mxu0 %v1914
        %2464 = vmatmul.mubr.bf16.gmra.mrb[0].mxu0 %v1912
        %v2465 = vpop.f32.mrb[0].mxu0
        %v2466 = vadd.f32 %v2425, %v2465
        %v2467 = vpop.f32.mrb[0].mxu0
        %v2468 = vadd.f32 %v2427, %v2467
        %v2469 = vpop.f32.mrb[0].mxu0
        %v2470 = vpop.f32.mrb[0].mxu0
        %2471 = vdwg.mxu0
        %2472 = vmatprep.subr.bf16.mxu0 %v1355
        %2473 = vmatpush1.bf16.msra.mxu0 %v1354
        %2474 = vmatprep.subr.bf16.mxu0 %v1363
        %2475 = vmatpush1.bf16.msra.mxu0 %v1362
        %2476 = vmatprep.subr.bf16.mxu0 %v1371
        %2477 = vmatpush1.bf16.msra.mxu0 %v1370
        %2478 = vmatprep.subr.bf16.mxu0 %v1379
        %2479 = vmatpush1.bf16.msra.mxu0 %v1378
        %2480 = vmatprep.subr.bf16.mxu0 %v1387
        %2481 = vmatpush1.bf16.msra.mxu0 %v1386
        %2482 = vmatprep.subr.bf16.mxu0 %v1395
        %2483 = vmatpush1.bf16.msra.mxu0 %v1394
        %2484 = vmatprep.subr.bf16.mxu0 %v1403
        %2485 = vmatpush1.bf16.msra.mxu0 %v1402
        %2486 = vmatprep.subr.bf16.mxu0 %v1411
        %2487 = vmatpush1.bf16.msra.mxu0 %v1410
        %2488 = vmatprep.subr.bf16.mxu0 %v1419
        %2489 = vmatpush1.bf16.msra.mxu0 %v1418
        %2490 = vmatprep.subr.bf16.mxu0 %v1427
        %2491 = vmatpush1.bf16.msra.mxu0 %v1426
        %2492 = vmatprep.subr.bf16.mxu0 %v1435
        %2493 = vmatpush1.bf16.msra.mxu0 %v1434
        %2494 = vmatprep.subr.bf16.mxu0 %v1443
        %2495 = vmatpush1.bf16.msra.mxu0 %v1442
        %2496 = vmatprep.subr.bf16.mxu0 %v1451
        %2497 = vmatpush1.bf16.msra.mxu0 %v1450
        %2498 = vmatprep.subr.bf16.mxu0 %v1459
        %2499 = vmatpush1.bf16.msra.mxu0 %v1458
        %2500 = vmatprep.subr.bf16.mxu0 %v1467
        %2501 = vmatpush1.bf16.msra.mxu0 %v1466
        %2502 = vmatprep.subr.bf16.mxu0 %v1475
        %2503 = vmatpush1.bf16.msra.mxu0 %v1474
        %2504 = vmatprep.mubr.bf16.mxu0 %v1952
        %2505 = vmatmul.mubr.bf16.gmra.mrb[0].mxu0 %v1938
        %v2506 = vpop.f32.mrb[0].mxu0
        %v2507 = vadd.f32 %v2466, %v2506
        %v2508 = vpop.f32.mrb[0].mxu0
        %v2509 = vadd.f32 %v2468, %v2508
        %v2510 = vpop.f32.mrb[0].mxu0
        %v2511 = vpop.f32.mrb[0].mxu0
        %2512 = vdwg.mxu0
        %2513 = vmatprep.subr.bf16.mxu0 %v1483
        %2514 = vmatpush1.bf16.msra.mxu0 %v1482
        %2515 = vmatprep.subr.bf16.mxu0 %v1491
        %2516 = vmatpush1.bf16.msra.mxu0 %v1490
        %2517 = vmatprep.subr.bf16.mxu0 %v1499
        %2518 = vmatpush1.bf16.msra.mxu0 %v1498
        %2519 = vmatprep.subr.bf16.mxu0 %v1507
        %2520 = vmatpush1.bf16.msra.mxu0 %v1506
        %2521 = vmatprep.subr.bf16.mxu0 %v1515
        %2522 = vmatpush1.bf16.msra.mxu0 %v1514
        %2523 = vmatprep.subr.bf16.mxu0 %v1523
        %2524 = vmatpush1.bf16.msra.mxu0 %v1522
        %2525 = vmatprep.subr.bf16.mxu0 %v1531
        %2526 = vmatpush1.bf16.msra.mxu0 %v1530
        %2527 = vmatprep.subr.bf16.mxu0 %v1539
        %2528 = vmatpush1.bf16.msra.mxu0 %v1538
        %2529 = vmatprep.subr.bf16.mxu0 %v1547
        %2530 = vmatpush1.bf16.msra.mxu0 %v1546
        %2531 = vmatprep.subr.bf16.mxu0 %v1555
        %2532 = vmatpush1.bf16.msra.mxu0 %v1554
        %2533 = vmatprep.subr.bf16.mxu0 %v1563
        %2534 = vmatpush1.bf16.msra.mxu0 %v1562
        %2535 = vmatprep.subr.bf16.mxu0 %v1571
        %2536 = vmatpush1.bf16.msra.mxu0 %v1570
        %2537 = vmatprep.subr.bf16.mxu0 %v1579
        %2538 = vmatpush1.bf16.msra.mxu0 %v1578
        %2539 = vmatprep.subr.bf16.mxu0 %v1587
        %2540 = vmatpush1.bf16.msra.mxu0 %v1586
        %2541 = vmatprep.subr.bf16.mxu0 %v1595
        %2542 = vmatpush1.bf16.msra.mxu0 %v1594
        %2543 = vmatprep.subr.bf16.mxu0 %v1603
        %2544 = vmatpush1.bf16.msra.mxu0 %v1602
        %2545 = vmatprep.mubr.bf16.mxu0 %v1962
        %2546 = vmatmul.mubr.bf16.gmra.mrb[0].mxu0 %v1960
        %v2547 = vpop.f32.mrb[0].mxu0
        %v2548 = vadd.f32 %v2507, %v2547
        %v2549 = vpop.f32.mrb[0].mxu0
        %v2550 = vadd.f32 %v2509, %v2549
        %v2551 = vpop.f32.mrb[0].mxu0
        %v2552 = vpop.f32.mrb[0].mxu0
        %2553 = vdwg.mxu0
        %2554 = vmatprep.subr.bf16.mxu0 %v1611
        %2555 = vmatpush1.bf16.msra.mxu0 %v1610
        %2556 = vmatprep.subr.bf16.mxu0 %v1619
        %2557 = vmatpush1.bf16.msra.mxu0 %v1618
        %2558 = vmatprep.subr.bf16.mxu0 %v1627
        %2559 = vmatpush1.bf16.msra.mxu0 %v1626
        %2560 = vmatprep.subr.bf16.mxu0 %v1635
        %2561 = vmatpush1.bf16.msra.mxu0 %v1634
        %2562 = vmatprep.subr.bf16.mxu0 %v1643
        %2563 = vmatpush1.bf16.msra.mxu0 %v1642
        %2564 = vmatprep.subr.bf16.mxu0 %v1651
        %2565 = vmatpush1.bf16.msra.mxu0 %v1650
        %2566 = vmatprep.subr.bf16.mxu0 %v1659
        %2567 = vmatpush1.bf16.msra.mxu0 %v1658
        %2568 = vmatprep.subr.bf16.mxu0 %v1667
        %2569 = vmatpush1.bf16.msra.mxu0 %v1666
        %2570 = vmatprep.subr.bf16.mxu0 %v1675
        %2571 = vmatpush1.bf16.msra.mxu0 %v1674
        %2572 = vmatprep.subr.bf16.mxu0 %v1683
        %2573 = vmatpush1.bf16.msra.mxu0 %v1682
        %2574 = vmatprep.subr.bf16.mxu0 %v1691
        %2575 = vmatpush1.bf16.msra.mxu0 %v1690
        %2576 = vmatprep.subr.bf16.mxu0 %v1699
        %2577 = vmatpush1.bf16.msra.mxu0 %v1698
        %2578 = vmatprep.subr.bf16.mxu0 %v1707
        %2579 = vmatpush1.bf16.msra.mxu0 %v1706
        %2580 = vmatprep.subr.bf16.mxu0 %v1715
        %2581 = vmatpush1.bf16.msra.mxu0 %v1714
        %2582 = vmatprep.subr.bf16.mxu0 %v1723
        %2583 = vmatpush1.bf16.msra.mxu0 %v1722
        %2584 = vmatprep.subr.bf16.mxu0 %v1731
        %2585 = vmatpush1.bf16.msra.mxu0 %v1730
        %2586 = vmatprep.mubr.bf16.mxu0 %v1959
        %2587 = vmatmul.mubr.bf16.gmra.mrb[0].mxu0 %v1945
        %v2588 = vpop.f32.mrb[0].mxu0
        %v2589 = vadd.f32 %v2548, %v2588
        %v2590 = vpop.f32.mrb[0].mxu0
        %v2591 = vadd.f32 %v2550, %v2590
        %v2592 = vpop.f32.mrb[0].mxu0
        %v2593 = vpop.f32.mrb[0].mxu0
        %2594 = vdwg.mxu0
        %2595 = vmatprep.subr.bf16.mxu0 %v1739
        %2596 = vmatpush1.bf16.msra.mxu0 %v1738
        %2597 = vmatprep.subr.bf16.mxu0 %v1747
        %2598 = vmatpush1.bf16.msra.mxu0 %v1746
        %2599 = vmatprep.subr.bf16.mxu0 %v1755
        %2600 = vmatpush1.bf16.msra.mxu0 %v1754
        %2601 = vmatprep.subr.bf16.mxu0 %v1763
        %2602 = vmatpush1.bf16.msra.mxu0 %v1762
        %2603 = vmatprep.subr.bf16.mxu0 %v1771
        %2604 = vmatpush1.bf16.msra.mxu0 %v1770
        %2605 = vmatprep.subr.bf16.mxu0 %v1779
        %2606 = vmatpush1.bf16.msra.mxu0 %v1778
        %2607 = vmatprep.subr.bf16.mxu0 %v1787
        %2608 = vmatpush1.bf16.msra.mxu0 %v1786
        %2609 = vmatprep.subr.bf16.mxu0 %v1795
        %2610 = vmatpush1.bf16.msra.mxu0 %v1794
        %2611 = vmatprep.subr.bf16.mxu0 %v1803
        %2612 = vmatpush1.bf16.msra.mxu0 %v1802
        %2613 = vmatprep.subr.bf16.mxu0 %v1811
        %2614 = vmatpush1.bf16.msra.mxu0 %v1810
        %2615 = vmatprep.subr.bf16.mxu0 %v1819
        %2616 = vmatpush1.bf16.msra.mxu0 %v1818
        %2617 = vmatprep.subr.bf16.mxu0 %v1827
        %2618 = vmatpush1.bf16.msra.mxu0 %v1826
        %2619 = vmatprep.subr.bf16.mxu0 %v1835
        %2620 = vmatpush1.bf16.msra.mxu0 %v1834
        %2621 = vmatprep.subr.bf16.mxu0 %v1843
        %2622 = vmatpush1.bf16.msra.mxu0 %v1842
        %2623 = vmatprep.subr.bf16.mxu0 %v1851
        %2624 = vmatpush1.bf16.msra.mxu0 %v1850
        %2625 = vmatprep.subr.bf16.mxu0 %v1859
        %2626 = vmatpush1.bf16.msra.mxu0 %v1858
        %2627 = vmatprep.mubr.bf16.mxu0 %v1963
        %2628 = vmatmul.mubr.bf16.gmra.mrb[0].mxu0 %v1961
        %v2629 = vpop.f32.mrb[0].mxu0
        %v2630 = vadd.f32 %v2589, %v2629
        %v2631 = vpop.f32.mrb[0].mxu0
        %v2632 = vadd.f32 %v2591, %v2631
        %v2633 = vpop.f32.mrb[0].mxu0
        %v2634 = vpop.f32.mrb[0].mxu0
        %2635 = vdwg.mxu0
        %2636 = vmatprep.subr.bf16.mxu0 %v845
        %2637 = vmatpush1.bf16.msra.mxu0 %v844
        %2638 = vmatprep.subr.bf16.mxu0 %v853
        %2639 = vmatpush1.bf16.msra.mxu0 %v852
        %2640 = vmatprep.subr.bf16.mxu0 %v861
        %2641 = vmatpush1.bf16.msra.mxu0 %v860
        %2642 = vmatprep.subr.bf16.mxu0 %v869
        %2643 = vmatpush1.bf16.msra.mxu0 %v868
        %2644 = vmatprep.subr.bf16.mxu0 %v877
        %2645 = vmatpush1.bf16.msra.mxu0 %v876
        %2646 = vmatprep.subr.bf16.mxu0 %v885
        %2647 = vmatpush1.bf16.msra.mxu0 %v884
        %2648 = vmatprep.subr.bf16.mxu0 %v893
        %2649 = vmatpush1.bf16.msra.mxu0 %v892
        %2650 = vmatprep.subr.bf16.mxu0 %v901
        %2651 = vmatpush1.bf16.msra.mxu0 %v900
        %2652 = vmatprep.subr.bf16.mxu0 %v909
        %2653 = vmatpush1.bf16.msra.mxu0 %v908
        %2654 = vmatprep.subr.bf16.mxu0 %v917
        %2655 = vmatpush1.bf16.msra.mxu0 %v916
        %2656 = vmatprep.subr.bf16.mxu0 %v925
        %2657 = vmatpush1.bf16.msra.mxu0 %v924
        %2658 = vmatprep.subr.bf16.mxu0 %v933
        %2659 = vmatpush1.bf16.msra.mxu0 %v932
        %2660 = vmatprep.subr.bf16.mxu0 %v941
        %2661 = vmatpush1.bf16.msra.mxu0 %v940
        %2662 = vmatprep.subr.bf16.mxu0 %v949
        %2663 = vmatpush1.bf16.msra.mxu0 %v948
        %2664 = vmatprep.subr.bf16.mxu0 %v957
        %2665 = vmatpush1.bf16.msra.mxu0 %v956
        %2666 = vmatprep.subr.bf16.mxu0 %v965
        %2667 = vmatpush1.bf16.msra.mxu0 %v964
        %2668 = vmatprep.mubr.bf16.mxu0 %v1903
        %2669 = vmatmul.mubr.bf16.gmra.mrb[0].mxu0 %v1889
        %v2670 = vpop.f32.mrb[0].mxu0
        %v2671 = vadd.f32 0.0, %v2670
        %v2672 = vpop.f32.mrb[0].mxu0
        %v2673 = vadd.f32 0.0, %v2672
        %v2674 = vpop.f32.mrb[0].mxu0
        %v2675 = vpop.f32.mrb[0].mxu0
        %2676 = vdwg.mxu0
        %2677 = vmatprep.subr.bf16.mxu0 %v973
        %2678 = vmatpush1.bf16.msra.mxu0 %v972
        %2679 = vmatprep.subr.bf16.mxu0 %v981
        %2680 = vmatpush1.bf16.msra.mxu0 %v980
        %2681 = vmatprep.subr.bf16.mxu0 %v989
        %2682 = vmatpush1.bf16.msra.mxu0 %v988
        %2683 = vmatprep.subr.bf16.mxu0 %v997
        %2684 = vmatpush1.bf16.msra.mxu0 %v996
        %2685 = vmatprep.subr.bf16.mxu0 %v1005
        %2686 = vmatpush1.bf16.msra.mxu0 %v1004
        %2687 = vmatprep.subr.bf16.mxu0 %v1013
        %2688 = vmatpush1.bf16.msra.mxu0 %v1012
        %2689 = vmatprep.subr.bf16.mxu0 %v1021
        %2690 = vmatpush1.bf16.msra.mxu0 %v1020
        %2691 = vmatprep.subr.bf16.mxu0 %v1029
        %2692 = vmatpush1.bf16.msra.mxu0 %v1028
        %2693 = vmatprep.subr.bf16.mxu0 %v1037
        %2694 = vmatpush1.bf16.msra.mxu0 %v1036
        %2695 = vmatprep.subr.bf16.mxu0 %v1045
        %2696 = vmatpush1.bf16.msra.mxu0 %v1044
        %2697 = vmatprep.subr.bf16.mxu0 %v1053
        %2698 = vmatpush1.bf16.msra.mxu0 %v1052
        %2699 = vmatprep.subr.bf16.mxu0 %v1061
        %2700 = vmatpush1.bf16.msra.mxu0 %v1060
        %2701 = vmatprep.subr.bf16.mxu0 %v1069
        %2702 = vmatpush1.bf16.msra.mxu0 %v1068
        %2703 = vmatprep.subr.bf16.mxu0 %v1077
        %2704 = vmatpush1.bf16.msra.mxu0 %v1076
        %2705 = vmatprep.subr.bf16.mxu0 %v1085
        %2706 = vmatpush1.bf16.msra.mxu0 %v1084
        %2707 = vmatprep.subr.bf16.mxu0 %v1093
        %2708 = vmatpush1.bf16.msra.mxu0 %v1092
        %2709 = vmatprep.mubr.bf16.mxu0 %v1913
        %2710 = vmatmul.mubr.bf16.gmra.mrb[0].mxu0 %v1911
        %v2711 = vpop.f32.mrb[0].mxu0
        %v2712 = vadd.f32 %v2671, %v2711
        %v2713 = vpop.f32.mrb[0].mxu0
        %v2714 = vadd.f32 %v2673, %v2713
        %v2715 = vpop.f32.mrb[0].mxu0
        %v2716 = vpop.f32.mrb[0].mxu0
        %2717 = vdwg.mxu0
        %2718 = vmatprep.subr.bf16.mxu0 %v1101
        %2719 = vmatpush1.bf16.msra.mxu0 %v1100
        %2720 = vmatprep.subr.bf16.mxu0 %v1109
        %2721 = vmatpush1.bf16.msra.mxu0 %v1108
        %2722 = vmatprep.subr.bf16.mxu0 %v1117
        %2723 = vmatpush1.bf16.msra.mxu0 %v1116
        %2724 = vmatprep.subr.bf16.mxu0 %v1125
        %2725 = vmatpush1.bf16.msra.mxu0 %v1124
        %2726 = vmatprep.subr.bf16.mxu0 %v1133
        %2727 = vmatpush1.bf16.msra.mxu0 %v1132
        %2728 = vmatprep.subr.bf16.mxu0 %v1141
        %2729 = vmatpush1.bf16.msra.mxu0 %v1140
        %2730 = vmatprep.subr.bf16.mxu0 %v1149
        %2731 = vmatpush1.bf16.msra.mxu0 %v1148
        %2732 = vmatprep.subr.bf16.mxu0 %v1157
        %2733 = vmatpush1.bf16.msra.mxu0 %v1156
        %2734 = vmatprep.subr.bf16.mxu0 %v1165
        %2735 = vmatpush1.bf16.msra.mxu0 %v1164
        %2736 = vmatprep.subr.bf16.mxu0 %v1173
        %2737 = vmatpush1.bf16.msra.mxu0 %v1172
        %2738 = vmatprep.subr.bf16.mxu0 %v1181
        %2739 = vmatpush1.bf16.msra.mxu0 %v1180
        %2740 = vmatprep.subr.bf16.mxu0 %v1189
        %2741 = vmatpush1.bf16.msra.mxu0 %v1188
        %2742 = vmatprep.subr.bf16.mxu0 %v1197
        %2743 = vmatpush1.bf16.msra.mxu0 %v1196
        %2744 = vmatprep.subr.bf16.mxu0 %v1205
        %2745 = vmatpush1.bf16.msra.mxu0 %v1204
        %2746 = vmatprep.subr.bf16.mxu0 %v1213
        %2747 = vmatpush1.bf16.msra.mxu0 %v1212
        %2748 = vmatprep.subr.bf16.mxu0 %v1221
        %2749 = vmatpush1.bf16.msra.mxu0 %v1220
        %2750 = vmatprep.mubr.bf16.mxu0 %v1910
        %2751 = vmatmul.mubr.bf16.gmra.mrb[0].mxu0 %v1896
        %v2752 = vpop.f32.mrb[0].mxu0
        %v2753 = vadd.f32 %v2712, %v2752
        %v2754 = vpop.f32.mrb[0].mxu0
        %v2755 = vadd.f32 %v2714, %v2754
        %v2756 = vpop.f32.mrb[0].mxu0
        %v2757 = vpop.f32.mrb[0].mxu0
        %2758 = vdwg.mxu0
        %2759 = vmatprep.subr.bf16.mxu0 %v1229
        %2760 = vmatpush1.bf16.msra.mxu0 %v1228
        %2761 = vmatprep.subr.bf16.mxu0 %v1237
        %2762 = vmatpush1.bf16.msra.mxu0 %v1236
        %2763 = vmatprep.subr.bf16.mxu0 %v1245
        %2764 = vmatpush1.bf16.msra.mxu0 %v1244
        %2765 = vmatprep.subr.bf16.mxu0 %v1253
        %2766 = vmatpush1.bf16.msra.mxu0 %v1252
        %2767 = vmatprep.subr.bf16.mxu0 %v1261
        %2768 = vmatpush1.bf16.msra.mxu0 %v1260
        %2769 = vmatprep.subr.bf16.mxu0 %v1269
        %2770 = vmatpush1.bf16.msra.mxu0 %v1268
        %2771 = vmatprep.subr.bf16.mxu0 %v1277
        %2772 = vmatpush1.bf16.msra.mxu0 %v1276
        %2773 = vmatprep.subr.bf16.mxu0 %v1285
        %2774 = vmatpush1.bf16.msra.mxu0 %v1284
        %2775 = vmatprep.subr.bf16.mxu0 %v1293
        %2776 = vmatpush1.bf16.msra.mxu0 %v1292
        %2777 = vmatprep.subr.bf16.mxu0 %v1301
        %2778 = vmatpush1.bf16.msra.mxu0 %v1300
        %2779 = vmatprep.subr.bf16.mxu0 %v1309
        %2780 = vmatpush1.bf16.msra.mxu0 %v1308
        %2781 = vmatprep.subr.bf16.mxu0 %v1317
        %2782 = vmatpush1.bf16.msra.mxu0 %v1316
        %2783 = vmatprep.subr.bf16.mxu0 %v1325
        %2784 = vmatpush1.bf16.msra.mxu0 %v1324
        %2785 = vmatprep.subr.bf16.mxu0 %v1333
        %2786 = vmatpush1.bf16.msra.mxu0 %v1332
        %2787 = vmatprep.subr.bf16.mxu0 %v1341
        %2788 = vmatpush1.bf16.msra.mxu0 %v1340
        %2789 = vmatprep.subr.bf16.mxu0 %v1349
        %2790 = vmatpush1.bf16.msra.mxu0 %v1348
        %2791 = vmatprep.mubr.bf16.mxu0 %v1914
        %2792 = vmatmul.mubr.bf16.gmra.mrb[0].mxu0 %v1912
        %v2793 = vpop.f32.mrb[0].mxu0
        %v2794 = vadd.f32 %v2753, %v2793
        %v2795 = vpop.f32.mrb[0].mxu0
        %v2796 = vadd.f32 %v2755, %v2795
        %v2797 = vpop.f32.mrb[0].mxu0
        %v2798 = vpop.f32.mrb[0].mxu0
        %2799 = vdwg.mxu0
        %2800 = vmatprep.subr.bf16.mxu0 %v1357
        %2801 = vmatpush1.bf16.msra.mxu0 %v1356
        %2802 = vmatprep.subr.bf16.mxu0 %v1365
        %2803 = vmatpush1.bf16.msra.mxu0 %v1364
        %2804 = vmatprep.subr.bf16.mxu0 %v1373
        %2805 = vmatpush1.bf16.msra.mxu0 %v1372
        %2806 = vmatprep.subr.bf16.mxu0 %v1381
        %2807 = vmatpush1.bf16.msra.mxu0 %v1380
        %2808 = vmatprep.subr.bf16.mxu0 %v1389
        %2809 = vmatpush1.bf16.msra.mxu0 %v1388
        %2810 = vmatprep.subr.bf16.mxu0 %v1397
        %2811 = vmatpush1.bf16.msra.mxu0 %v1396
        %2812 = vmatprep.subr.bf16.mxu0 %v1405
        %2813 = vmatpush1.bf16.msra.mxu0 %v1404
        %2814 = vmatprep.subr.bf16.mxu0 %v1413
        %2815 = vmatpush1.bf16.msra.mxu0 %v1412
        %2816 = vmatprep.subr.bf16.mxu0 %v1421
        %2817 = vmatpush1.bf16.msra.mxu0 %v1420
        %2818 = vmatprep.subr.bf16.mxu0 %v1429
        %2819 = vmatpush1.bf16.msra.mxu0 %v1428
        %2820 = vmatprep.subr.bf16.mxu0 %v1437
        %2821 = vmatpush1.bf16.msra.mxu0 %v1436
        %2822 = vmatprep.subr.bf16.mxu0 %v1445
        %2823 = vmatpush1.bf16.msra.mxu0 %v1444
        %2824 = vmatprep.subr.bf16.mxu0 %v1453
        %2825 = vmatpush1.bf16.msra.mxu0 %v1452
        %2826 = vmatprep.subr.bf16.mxu0 %v1461
        %2827 = vmatpush1.bf16.msra.mxu0 %v1460
        %2828 = vmatprep.subr.bf16.mxu0 %v1469
        %2829 = vmatpush1.bf16.msra.mxu0 %v1468
        %2830 = vmatprep.subr.bf16.mxu0 %v1477
        %2831 = vmatpush1.bf16.msra.mxu0 %v1476
        %2832 = vmatprep.mubr.bf16.mxu0 %v1952
        %2833 = vmatmul.mubr.bf16.gmra.mrb[0].mxu0 %v1938
        %v2834 = vpop.f32.mrb[0].mxu0
        %v2835 = vadd.f32 %v2794, %v2834
        %v2836 = vpop.f32.mrb[0].mxu0
        %v2837 = vadd.f32 %v2796, %v2836
        %v2838 = vpop.f32.mrb[0].mxu0
        %v2839 = vpop.f32.mrb[0].mxu0
        %2840 = vdwg.mxu0
        %2841 = vmatprep.subr.bf16.mxu0 %v1485
        %2842 = vmatpush1.bf16.msra.mxu0 %v1484
        %2843 = vmatprep.subr.bf16.mxu0 %v1493
        %2844 = vmatpush1.bf16.msra.mxu0 %v1492
        %2845 = vmatprep.subr.bf16.mxu0 %v1501
        %2846 = vmatpush1.bf16.msra.mxu0 %v1500
        %2847 = vmatprep.subr.bf16.mxu0 %v1509
        %2848 = vmatpush1.bf16.msra.mxu0 %v1508
        %2849 = vmatprep.subr.bf16.mxu0 %v1517
        %2850 = vmatpush1.bf16.msra.mxu0 %v1516
        %2851 = vmatprep.subr.bf16.mxu0 %v1525
        %2852 = vmatpush1.bf16.msra.mxu0 %v1524
        %2853 = vmatprep.subr.bf16.mxu0 %v1533
        %2854 = vmatpush1.bf16.msra.mxu0 %v1532
        %2855 = vmatprep.subr.bf16.mxu0 %v1541
        %2856 = vmatpush1.bf16.msra.mxu0 %v1540
        %2857 = vmatprep.subr.bf16.mxu0 %v1549
        %2858 = vmatpush1.bf16.msra.mxu0 %v1548
        %2859 = vmatprep.subr.bf16.mxu0 %v1557
        %2860 = vmatpush1.bf16.msra.mxu0 %v1556
        %2861 = vmatprep.subr.bf16.mxu0 %v1565
        %2862 = vmatpush1.bf16.msra.mxu0 %v1564
        %2863 = vmatprep.subr.bf16.mxu0 %v1573
        %2864 = vmatpush1.bf16.msra.mxu0 %v1572
        %2865 = vmatprep.subr.bf16.mxu0 %v1581
        %2866 = vmatpush1.bf16.msra.mxu0 %v1580
        %2867 = vmatprep.subr.bf16.mxu0 %v1589
        %2868 = vmatpush1.bf16.msra.mxu0 %v1588
        %2869 = vmatprep.subr.bf16.mxu0 %v1597
        %2870 = vmatpush1.bf16.msra.mxu0 %v1596
        %2871 = vmatprep.subr.bf16.mxu0 %v1605
        %2872 = vmatpush1.bf16.msra.mxu0 %v1604
        %2873 = vmatprep.mubr.bf16.mxu0 %v1962
        %2874 = vmatmul.mubr.bf16.gmra.mrb[0].mxu0 %v1960
        %v2875 = vpop.f32.mrb[0].mxu0
        %v2876 = vadd.f32 %v2835, %v2875
        %v2877 = vpop.f32.mrb[0].mxu0
        %v2878 = vadd.f32 %v2837, %v2877
        %v2879 = vpop.f32.mrb[0].mxu0
        %v2880 = vpop.f32.mrb[0].mxu0
        %2881 = vdwg.mxu0
        %2882 = vmatprep.subr.bf16.mxu0 %v1613
        %2883 = vmatpush1.bf16.msra.mxu0 %v1612
        %2884 = vmatprep.subr.bf16.mxu0 %v1621
        %2885 = vmatpush1.bf16.msra.mxu0 %v1620
        %2886 = vmatprep.subr.bf16.mxu0 %v1629
        %2887 = vmatpush1.bf16.msra.mxu0 %v1628
        %2888 = vmatprep.subr.bf16.mxu0 %v1637
        %2889 = vmatpush1.bf16.msra.mxu0 %v1636
        %2890 = vmatprep.subr.bf16.mxu0 %v1645
        %2891 = vmatpush1.bf16.msra.mxu0 %v1644
        %2892 = vmatprep.subr.bf16.mxu0 %v1653
        %2893 = vmatpush1.bf16.msra.mxu0 %v1652
        %2894 = vmatprep.subr.bf16.mxu0 %v1661
        %2895 = vmatpush1.bf16.msra.mxu0 %v1660
        %2896 = vmatprep.subr.bf16.mxu0 %v1669
        %2897 = vmatpush1.bf16.msra.mxu0 %v1668
        %2898 = vmatprep.subr.bf16.mxu0 %v1677
        %2899 = vmatpush1.bf16.msra.mxu0 %v1676
        %2900 = vmatprep.subr.bf16.mxu0 %v1685
        %2901 = vmatpush1.bf16.msra.mxu0 %v1684
        %2902 = vmatprep.subr.bf16.mxu0 %v1693
        %2903 = vmatpush1.bf16.msra.mxu0 %v1692
        %2904 = vmatprep.subr.bf16.mxu0 %v1701
        %2905 = vmatpush1.bf16.msra.mxu0 %v1700
        %2906 = vmatprep.subr.bf16.mxu0 %v1709
        %2907 = vmatpush1.bf16.msra.mxu0 %v1708
        %2908 = vmatprep.subr.bf16.mxu0 %v1717
        %2909 = vmatpush1.bf16.msra.mxu0 %v1716
        %2910 = vmatprep.subr.bf16.mxu0 %v1725
        %2911 = vmatpush1.bf16.msra.mxu0 %v1724
        %2912 = vmatprep.subr.bf16.mxu0 %v1733
        %2913 = vmatpush1.bf16.msra.mxu0 %v1732
        %2914 = vmatprep.mubr.bf16.mxu0 %v1959
        %2915 = vmatmul.mubr.bf16.gmra.mrb[0].mxu0 %v1945
        %v2916 = vpop.f32.mrb[0].mxu0
        %v2917 = vadd.f32 %v2876, %v2916
        %v2918 = vpop.f32.mrb[0].mxu0
        %v2919 = vadd.f32 %v2878, %v2918
        %v2920 = vpop.f32.mrb[0].mxu0
        %v2921 = vpop.f32.mrb[0].mxu0
        %2922 = vdwg.mxu0
        %2923 = vmatprep.subr.bf16.mxu0 %v1741
        %2924 = vmatpush1.bf16.msra.mxu0 %v1740
        %2925 = vmatprep.subr.bf16.mxu0 %v1749
        %2926 = vmatpush1.bf16.msra.mxu0 %v1748
        %2927 = vmatprep.subr.bf16.mxu0 %v1757
        %2928 = vmatpush1.bf16.msra.mxu0 %v1756
        %2929 = vmatprep.subr.bf16.mxu0 %v1765
        %2930 = vmatpush1.bf16.msra.mxu0 %v1764
        %2931 = vmatprep.subr.bf16.mxu0 %v1773
        %2932 = vmatpush1.bf16.msra.mxu0 %v1772
        %2933 = vmatprep.subr.bf16.mxu0 %v1781
        %2934 = vmatpush1.bf16.msra.mxu0 %v1780
        %2935 = vmatprep.subr.bf16.mxu0 %v1789
        %2936 = vmatpush1.bf16.msra.mxu0 %v1788
        %2937 = vmatprep.subr.bf16.mxu0 %v1797
        %2938 = vmatpush1.bf16.msra.mxu0 %v1796
        %2939 = vmatprep.subr.bf16.mxu0 %v1805
        %2940 = vmatpush1.bf16.msra.mxu0 %v1804
        %2941 = vmatprep.subr.bf16.mxu0 %v1813
        %2942 = vmatpush1.bf16.msra.mxu0 %v1812
        %2943 = vmatprep.subr.bf16.mxu0 %v1821
        %2944 = vmatpush1.bf16.msra.mxu0 %v1820
        %2945 = vmatprep.subr.bf16.mxu0 %v1829
        %2946 = vmatpush1.bf16.msra.mxu0 %v1828
        %2947 = vmatprep.subr.bf16.mxu0 %v1837
        %2948 = vmatpush1.bf16.msra.mxu0 %v1836
        %2949 = vmatprep.subr.bf16.mxu0 %v1845
        %2950 = vmatpush1.bf16.msra.mxu0 %v1844
        %2951 = vmatprep.subr.bf16.mxu0 %v1853
        %2952 = vmatpush1.bf16.msra.mxu0 %v1852
        %2953 = vmatprep.subr.bf16.mxu0 %v1861
        %2954 = vmatpush1.bf16.msra.mxu0 %v1860
        %2955 = vmatprep.mubr.bf16.mxu0 %v1963
        %2956 = vmatmul.mubr.bf16.gmra.mrb[0].mxu0 %v1961
        %v2957 = vpop.f32.mrb[0].mxu0
        %v2958 = vadd.f32 %v2917, %v2957
        %v2959 = vpop.f32.mrb[0].mxu0
        %v2960 = vadd.f32 %v2919, %v2959
        %v2961 = vpop.f32.mrb[0].mxu0
        %v2962 = vpop.f32.mrb[0].mxu0
        %2963 = vdwg.mxu0
        %2964 = vmatprep.subr.bf16.mxu0 %v847
        %2965 = vmatpush1.bf16.msra.mxu0 %v846
        %2966 = vmatprep.subr.bf16.mxu0 %v855
        %2967 = vmatpush1.bf16.msra.mxu0 %v854
        %2968 = vmatprep.subr.bf16.mxu0 %v863
        %2969 = vmatpush1.bf16.msra.mxu0 %v862
        %2970 = vmatprep.subr.bf16.mxu0 %v871
        %2971 = vmatpush1.bf16.msra.mxu0 %v870
        %2972 = vmatprep.subr.bf16.mxu0 %v879
        %2973 = vmatpush1.bf16.msra.mxu0 %v878
        %2974 = vmatprep.subr.bf16.mxu0 %v887
        %2975 = vmatpush1.bf16.msra.mxu0 %v886
        %2976 = vmatprep.subr.bf16.mxu0 %v895
        %2977 = vmatpush1.bf16.msra.mxu0 %v894
        %2978 = vmatprep.subr.bf16.mxu0 %v903
        %2979 = vmatpush1.bf16.msra.mxu0 %v902
        %2980 = vmatprep.subr.bf16.mxu0 %v911
        %2981 = vmatpush1.bf16.msra.mxu0 %v910
        %2982 = vmatprep.subr.bf16.mxu0 %v919
        %2983 = vmatpush1.bf16.msra.mxu0 %v918
        %2984 = vmatprep.subr.bf16.mxu0 %v927
        %2985 = vmatpush1.bf16.msra.mxu0 %v926
        %2986 = vmatprep.subr.bf16.mxu0 %v935
        %2987 = vmatpush1.bf16.msra.mxu0 %v934
        %2988 = vmatprep.subr.bf16.mxu0 %v943
        %2989 = vmatpush1.bf16.msra.mxu0 %v942
        %2990 = vmatprep.subr.bf16.mxu0 %v951
        %2991 = vmatpush1.bf16.msra.mxu0 %v950
        %2992 = vmatprep.subr.bf16.mxu0 %v959
        %2993 = vmatpush1.bf16.msra.mxu0 %v958
        %2994 = vmatprep.subr.bf16.mxu0 %v967
        %2995 = vmatpush1.bf16.msra.mxu0 %v966
        %2996 = vmatprep.mubr.bf16.mxu0 %v1903
        %2997 = vmatmul.mubr.bf16.gmra.mrb[0].mxu0 %v1889
        %v2998 = vpop.f32.mrb[0].mxu0
        %v2999 = vadd.f32 0.0, %v2998
        %v3000 = vpop.f32.mrb[0].mxu0
        %v3001 = vadd.f32 0.0, %v3000
        %v3002 = vpop.f32.mrb[0].mxu0
        %v3003 = vpop.f32.mrb[0].mxu0
        %3004 = vdwg.mxu0
        %3005 = vmatprep.subr.bf16.mxu0 %v975
        %3006 = vmatpush1.bf16.msra.mxu0 %v974
        %3007 = vmatprep.subr.bf16.mxu0 %v983
        %3008 = vmatpush1.bf16.msra.mxu0 %v982
        %3009 = vmatprep.subr.bf16.mxu0 %v991
        %3010 = vmatpush1.bf16.msra.mxu0 %v990
        %3011 = vmatprep.subr.bf16.mxu0 %v999
        %3012 = vmatpush1.bf16.msra.mxu0 %v998
        %3013 = vmatprep.subr.bf16.mxu0 %v1007
        %3014 = vmatpush1.bf16.msra.mxu0 %v1006
        %3015 = vmatprep.subr.bf16.mxu0 %v1015
        %3016 = vmatpush1.bf16.msra.mxu0 %v1014
        %3017 = vmatprep.subr.bf16.mxu0 %v1023
        %3018 = vmatpush1.bf16.msra.mxu0 %v1022
        %3019 = vmatprep.subr.bf16.mxu0 %v1031
        %3020 = vmatpush1.bf16.msra.mxu0 %v1030
        %3021 = vmatprep.subr.bf16.mxu0 %v1039
        %3022 = vmatpush1.bf16.msra.mxu0 %v1038
        %3023 = vmatprep.subr.bf16.mxu0 %v1047
        %3024 = vmatpush1.bf16.msra.mxu0 %v1046
        %3025 = vmatprep.subr.bf16.mxu0 %v1055
        %3026 = vmatpush1.bf16.msra.mxu0 %v1054
        %3027 = vmatprep.subr.bf16.mxu0 %v1063
        %3028 = vmatpush1.bf16.msra.mxu0 %v1062
        %3029 = vmatprep.subr.bf16.mxu0 %v1071
        %3030 = vmatpush1.bf16.msra.mxu0 %v1070
        %3031 = vmatprep.subr.bf16.mxu0 %v1079
        %3032 = vmatpush1.bf16.msra.mxu0 %v1078
        %3033 = vmatprep.subr.bf16.mxu0 %v1087
        %3034 = vmatpush1.bf16.msra.mxu0 %v1086
        %3035 = vmatprep.subr.bf16.mxu0 %v1095
        %3036 = vmatpush1.bf16.msra.mxu0 %v1094
        %3037 = vmatprep.mubr.bf16.mxu0 %v1913
        %3038 = vmatmul.mubr.bf16.gmra.mrb[0].mxu0 %v1911
        %v3039 = vpop.f32.mrb[0].mxu0
        %v3040 = vadd.f32 %v2999, %v3039
        %v3041 = vpop.f32.mrb[0].mxu0
        %v3042 = vadd.f32 %v3001, %v3041
        %v3043 = vpop.f32.mrb[0].mxu0
        %v3044 = vpop.f32.mrb[0].mxu0
        %3045 = vdwg.mxu0
        %3046 = vmatprep.subr.bf16.mxu0 %v1103
        %3047 = vmatpush1.bf16.msra.mxu0 %v1102
        %3048 = vmatprep.subr.bf16.mxu0 %v1111
        %3049 = vmatpush1.bf16.msra.mxu0 %v1110
        %3050 = vmatprep.subr.bf16.mxu0 %v1119
        %3051 = vmatpush1.bf16.msra.mxu0 %v1118
        %3052 = vmatprep.subr.bf16.mxu0 %v1127
        %3053 = vmatpush1.bf16.msra.mxu0 %v1126
        %3054 = vmatprep.subr.bf16.mxu0 %v1135
        %3055 = vmatpush1.bf16.msra.mxu0 %v1134
        %3056 = vmatprep.subr.bf16.mxu0 %v1143
        %3057 = vmatpush1.bf16.msra.mxu0 %v1142
        %3058 = vmatprep.subr.bf16.mxu0 %v1151
        %3059 = vmatpush1.bf16.msra.mxu0 %v1150
        %3060 = vmatprep.subr.bf16.mxu0 %v1159
        %3061 = vmatpush1.bf16.msra.mxu0 %v1158
        %3062 = vmatprep.subr.bf16.mxu0 %v1167
        %3063 = vmatpush1.bf16.msra.mxu0 %v1166
        %3064 = vmatprep.subr.bf16.mxu0 %v1175
        %3065 = vmatpush1.bf16.msra.mxu0 %v1174
        %3066 = vmatprep.subr.bf16.mxu0 %v1183
        %3067 = vmatpush1.bf16.msra.mxu0 %v1182
        %3068 = vmatprep.subr.bf16.mxu0 %v1191
        %3069 = vmatpush1.bf16.msra.mxu0 %v1190
        %3070 = vmatprep.subr.bf16.mxu0 %v1199
        %3071 = vmatpush1.bf16.msra.mxu0 %v1198
        %3072 = vmatprep.subr.bf16.mxu0 %v1207
        %3073 = vmatpush1.bf16.msra.mxu0 %v1206
        %3074 = vmatprep.subr.bf16.mxu0 %v1215
        %3075 = vmatpush1.bf16.msra.mxu0 %v1214
        %3076 = vmatprep.subr.bf16.mxu0 %v1223
        %3077 = vmatpush1.bf16.msra.mxu0 %v1222
        %3078 = vmatprep.mubr.bf16.mxu0 %v1910
        %3079 = vmatmul.mubr.bf16.gmra.mrb[0].mxu0 %v1896
        %v3080 = vpop.f32.mrb[0].mxu0
        %v3081 = vadd.f32 %v3040, %v3080
        %v3082 = vpop.f32.mrb[0].mxu0
        %v3083 = vadd.f32 %v3042, %v3082
        %v3084 = vpop.f32.mrb[0].mxu0
        %v3085 = vpop.f32.mrb[0].mxu0
        %3086 = vdwg.mxu0
        %3087 = vmatprep.subr.bf16.mxu0 %v1231
        %3088 = vmatpush1.bf16.msra.mxu0 %v1230
        %3089 = vmatprep.subr.bf16.mxu0 %v1239
        %3090 = vmatpush1.bf16.msra.mxu0 %v1238
        %3091 = vmatprep.subr.bf16.mxu0 %v1247
        %3092 = vmatpush1.bf16.msra.mxu0 %v1246
        %3093 = vmatprep.subr.bf16.mxu0 %v1255
        %3094 = vmatpush1.bf16.msra.mxu0 %v1254
        %3095 = vmatprep.subr.bf16.mxu0 %v1263
        %3096 = vmatpush1.bf16.msra.mxu0 %v1262
        %3097 = vmatprep.subr.bf16.mxu0 %v1271
        %3098 = vmatpush1.bf16.msra.mxu0 %v1270
        %3099 = vmatprep.subr.bf16.mxu0 %v1279
        %3100 = vmatpush1.bf16.msra.mxu0 %v1278
        %3101 = vmatprep.subr.bf16.mxu0 %v1287
        %3102 = vmatpush1.bf16.msra.mxu0 %v1286
        %3103 = vmatprep.subr.bf16.mxu0 %v1295
        %3104 = vmatpush1.bf16.msra.mxu0 %v1294
        %3105 = vmatprep.subr.bf16.mxu0 %v1303
        %3106 = vmatpush1.bf16.msra.mxu0 %v1302
        %3107 = vmatprep.subr.bf16.mxu0 %v1311
        %3108 = vmatpush1.bf16.msra.mxu0 %v1310
        %3109 = vmatprep.subr.bf16.mxu0 %v1319
        %3110 = vmatpush1.bf16.msra.mxu0 %v1318
        %3111 = vmatprep.subr.bf16.mxu0 %v1327
        %3112 = vmatpush1.bf16.msra.mxu0 %v1326
        %3113 = vmatprep.subr.bf16.mxu0 %v1335
        %3114 = vmatpush1.bf16.msra.mxu0 %v1334
        %3115 = vmatprep.subr.bf16.mxu0 %v1343
        %3116 = vmatpush1.bf16.msra.mxu0 %v1342
        %3117 = vmatprep.subr.bf16.mxu0 %v1351
        %3118 = vmatpush1.bf16.msra.mxu0 %v1350
        %3119 = vmatprep.mubr.bf16.mxu0 %v1914
        %3120 = vmatmul.mubr.bf16.gmra.mrb[0].mxu0 %v1912
        %v3121 = vpop.f32.mrb[0].mxu0
        %v3122 = vadd.f32 %v3081, %v3121
        %v3123 = vpop.f32.mrb[0].mxu0
        %v3124 = vadd.f32 %v3083, %v3123
        %v3125 = vpop.f32.mrb[0].mxu0
        %v3126 = vpop.f32.mrb[0].mxu0
        %3127 = vdwg.mxu0
        %3128 = vmatprep.subr.bf16.mxu0 %v1359
        %3129 = vmatpush1.bf16.msra.mxu0 %v1358
        %3130 = vmatprep.subr.bf16.mxu0 %v1367
        %3131 = vmatpush1.bf16.msra.mxu0 %v1366
        %3132 = vmatprep.subr.bf16.mxu0 %v1375
        %3133 = vmatpush1.bf16.msra.mxu0 %v1374
        %3134 = vmatprep.subr.bf16.mxu0 %v1383
        %3135 = vmatpush1.bf16.msra.mxu0 %v1382
        %3136 = vmatprep.subr.bf16.mxu0 %v1391
        %3137 = vmatpush1.bf16.msra.mxu0 %v1390
        %3138 = vmatprep.subr.bf16.mxu0 %v1399
        %3139 = vmatpush1.bf16.msra.mxu0 %v1398
        %3140 = vmatprep.subr.bf16.mxu0 %v1407
        %3141 = vmatpush1.bf16.msra.mxu0 %v1406
        %3142 = vmatprep.subr.bf16.mxu0 %v1415
        %3143 = vmatpush1.bf16.msra.mxu0 %v1414
        %3144 = vmatprep.subr.bf16.mxu0 %v1423
        %3145 = vmatpush1.bf16.msra.mxu0 %v1422
        %3146 = vmatprep.subr.bf16.mxu0 %v1431
        %3147 = vmatpush1.bf16.msra.mxu0 %v1430
        %3148 = vmatprep.subr.bf16.mxu0 %v1439
        %3149 = vmatpush1.bf16.msra.mxu0 %v1438
        %3150 = vmatprep.subr.bf16.mxu0 %v1447
        %3151 = vmatpush1.bf16.msra.mxu0 %v1446
        %3152 = vmatprep.subr.bf16.mxu0 %v1455
        %3153 = vmatpush1.bf16.msra.mxu0 %v1454
        %3154 = vmatprep.subr.bf16.mxu0 %v1463
        %3155 = vmatpush1.bf16.msra.mxu0 %v1462
        %3156 = vmatprep.subr.bf16.mxu0 %v1471
        %3157 = vmatpush1.bf16.msra.mxu0 %v1470
        %3158 = vmatprep.subr.bf16.mxu0 %v1479
        %3159 = vmatpush1.bf16.msra.mxu0 %v1478
        %3160 = vmatprep.mubr.bf16.mxu0 %v1952
        %3161 = vmatmul.mubr.bf16.gmra.mrb[0].mxu0 %v1938
        %v3162 = vpop.f32.mrb[0].mxu0
        %v3163 = vadd.f32 %v3122, %v3162
        %v3164 = vpop.f32.mrb[0].mxu0
        %v3165 = vadd.f32 %v3124, %v3164
        %v3166 = vpop.f32.mrb[0].mxu0
        %v3167 = vpop.f32.mrb[0].mxu0
        %3168 = vdwg.mxu0
        %3169 = vmatprep.subr.bf16.mxu0 %v1487
        %3170 = vmatpush1.bf16.msra.mxu0 %v1486
        %3171 = vmatprep.subr.bf16.mxu0 %v1495
        %3172 = vmatpush1.bf16.msra.mxu0 %v1494
        %3173 = vmatprep.subr.bf16.mxu0 %v1503
        %3174 = vmatpush1.bf16.msra.mxu0 %v1502
        %3175 = vmatprep.subr.bf16.mxu0 %v1511
        %3176 = vmatpush1.bf16.msra.mxu0 %v1510
        %3177 = vmatprep.subr.bf16.mxu0 %v1519
        %3178 = vmatpush1.bf16.msra.mxu0 %v1518
        %3179 = vmatprep.subr.bf16.mxu0 %v1527
        %3180 = vmatpush1.bf16.msra.mxu0 %v1526
        %3181 = vmatprep.subr.bf16.mxu0 %v1535
        %3182 = vmatpush1.bf16.msra.mxu0 %v1534
        %3183 = vmatprep.subr.bf16.mxu0 %v1543
        %3184 = vmatpush1.bf16.msra.mxu0 %v1542
        %3185 = vmatprep.subr.bf16.mxu0 %v1551
        %3186 = vmatpush1.bf16.msra.mxu0 %v1550
        %3187 = vmatprep.subr.bf16.mxu0 %v1559
        %3188 = vmatpush1.bf16.msra.mxu0 %v1558
        %3189 = vmatprep.subr.bf16.mxu0 %v1567
        %3190 = vmatpush1.bf16.msra.mxu0 %v1566
        %3191 = vmatprep.subr.bf16.mxu0 %v1575
        %3192 = vmatpush1.bf16.msra.mxu0 %v1574
        %3193 = vmatprep.subr.bf16.mxu0 %v1583
        %3194 = vmatpush1.bf16.msra.mxu0 %v1582
        %3195 = vmatprep.subr.bf16.mxu0 %v1591
        %3196 = vmatpush1.bf16.msra.mxu0 %v1590
        %3197 = vmatprep.subr.bf16.mxu0 %v1599
        %3198 = vmatpush1.bf16.msra.mxu0 %v1598
        %3199 = vmatprep.subr.bf16.mxu0 %v1607
        %3200 = vmatpush1.bf16.msra.mxu0 %v1606
        %3201 = vmatprep.mubr.bf16.mxu0 %v1962
        %3202 = vmatmul.mubr.bf16.gmra.mrb[0].mxu0 %v1960
        %v3203 = vpop.f32.mrb[0].mxu0
        %v3204 = vadd.f32 %v3163, %v3203
        %v3205 = vpop.f32.mrb[0].mxu0
        %v3206 = vadd.f32 %v3165, %v3205
        %v3207 = vpop.f32.mrb[0].mxu0
        %v3208 = vpop.f32.mrb[0].mxu0
        %3209 = vdwg.mxu0
        %3210 = vmatprep.subr.bf16.mxu0 %v1615
        %3211 = vmatpush1.bf16.msra.mxu0 %v1614
        %3212 = vmatprep.subr.bf16.mxu0 %v1623
        %3213 = vmatpush1.bf16.msra.mxu0 %v1622
        %3214 = vmatprep.subr.bf16.mxu0 %v1631
        %3215 = vmatpush1.bf16.msra.mxu0 %v1630
        %3216 = vmatprep.subr.bf16.mxu0 %v1639
        %3217 = vmatpush1.bf16.msra.mxu0 %v1638
        %3218 = vmatprep.subr.bf16.mxu0 %v1647
        %3219 = vmatpush1.bf16.msra.mxu0 %v1646
        %3220 = vmatprep.subr.bf16.mxu0 %v1655
        %3221 = vmatpush1.bf16.msra.mxu0 %v1654
        %3222 = vmatprep.subr.bf16.mxu0 %v1663
        %3223 = vmatpush1.bf16.msra.mxu0 %v1662
        %3224 = vmatprep.subr.bf16.mxu0 %v1671
        %3225 = vmatpush1.bf16.msra.mxu0 %v1670
        %3226 = vmatprep.subr.bf16.mxu0 %v1679
        %3227 = vmatpush1.bf16.msra.mxu0 %v1678
        %3228 = vmatprep.subr.bf16.mxu0 %v1687
        %3229 = vmatpush1.bf16.msra.mxu0 %v1686
        %3230 = vmatprep.subr.bf16.mxu0 %v1695
        %3231 = vmatpush1.bf16.msra.mxu0 %v1694
        %3232 = vmatprep.subr.bf16.mxu0 %v1703
        %3233 = vmatpush1.bf16.msra.mxu0 %v1702
        %3234 = vmatprep.subr.bf16.mxu0 %v1711
        %3235 = vmatpush1.bf16.msra.mxu0 %v1710
        %3236 = vmatprep.subr.bf16.mxu0 %v1719
        %3237 = vmatpush1.bf16.msra.mxu0 %v1718
        %3238 = vmatprep.subr.bf16.mxu0 %v1727
        %3239 = vmatpush1.bf16.msra.mxu0 %v1726
        %3240 = vmatprep.subr.bf16.mxu0 %v1735
        %3241 = vmatpush1.bf16.msra.mxu0 %v1734
        %3242 = vmatprep.mubr.bf16.mxu0 %v1959
        %3243 = vmatmul.mubr.bf16.gmra.mrb[0].mxu0 %v1945
        %v3244 = vpop.f32.mrb[0].mxu0
        %v3245 = vadd.f32 %v3204, %v3244
        %v3246 = vpop.f32.mrb[0].mxu0
        %v3247 = vadd.f32 %v3206, %v3246
        %v3248 = vpop.f32.mrb[0].mxu0
        %v3249 = vpop.f32.mrb[0].mxu0
        %3250 = vdwg.mxu0
        %3251 = vmatprep.subr.bf16.mxu0 %v1743
        %3252 = vmatpush1.bf16.msra.mxu0 %v1742
        %3253 = vmatprep.subr.bf16.mxu0 %v1751
        %3254 = vmatpush1.bf16.msra.mxu0 %v1750
        %3255 = vmatprep.subr.bf16.mxu0 %v1759
        %3256 = vmatpush1.bf16.msra.mxu0 %v1758
        %3257 = vmatprep.subr.bf16.mxu0 %v1767
        %3258 = vmatpush1.bf16.msra.mxu0 %v1766
        %3259 = vmatprep.subr.bf16.mxu0 %v1775
        %3260 = vmatpush1.bf16.msra.mxu0 %v1774
        %3261 = vmatprep.subr.bf16.mxu0 %v1783
        %3262 = vmatpush1.bf16.msra.mxu0 %v1782
        %3263 = vmatprep.subr.bf16.mxu0 %v1791
        %3264 = vmatpush1.bf16.msra.mxu0 %v1790
        %3265 = vmatprep.subr.bf16.mxu0 %v1799
        %3266 = vmatpush1.bf16.msra.mxu0 %v1798
        %3267 = vmatprep.subr.bf16.mxu0 %v1807
        %3268 = vmatpush1.bf16.msra.mxu0 %v1806
        %3269 = vmatprep.subr.bf16.mxu0 %v1815
        %3270 = vmatpush1.bf16.msra.mxu0 %v1814
        %3271 = vmatprep.subr.bf16.mxu0 %v1823
        %3272 = vmatpush1.bf16.msra.mxu0 %v1822
        %3273 = vmatprep.subr.bf16.mxu0 %v1831
        %3274 = vmatpush1.bf16.msra.mxu0 %v1830
        %3275 = vmatprep.subr.bf16.mxu0 %v1839
        %3276 = vmatpush1.bf16.msra.mxu0 %v1838
        %3277 = vmatprep.subr.bf16.mxu0 %v1847
        %3278 = vmatpush1.bf16.msra.mxu0 %v1846
        %3279 = vmatprep.subr.bf16.mxu0 %v1855
        %3280 = vmatpush1.bf16.msra.mxu0 %v1854
        %3281 = vmatprep.subr.bf16.mxu0 %v1863
        %3282 = vmatpush1.bf16.msra.mxu0 %v1862
        %3283 = vmatprep.mubr.bf16.mxu0 %v1963
        %3284 = vmatmul.mubr.bf16.gmra.mrb[0].mxu0 %v1961
        %v3285 = vpop.f32.mrb[0].mxu0
        %v3286 = vadd.f32 %v3245, %v3285
        %v3287 = vpop.f32.mrb[0].mxu0
        %v3288 = vadd.f32 %v3247, %v3287
        %v3289 = vpop.f32.mrb[0].mxu0
        %v3290 = vpop.f32.mrb[0].mxu0
        %3291 = vdwg.mxu0
        %v3300 = vcombine.low %v2302, %v2304
        %v3301 = vcombine.low %v2630, %v2632
        %v3303 = vunpack.c.l.s4 1983009808
        %v3304 = vunpack.c.0.s8 %v3303
        %v3305 = vlaneseq
        %v3306 = vshrl.u32 %v3305, 7
        %v3307 = vsub.s32 %v3304, %v3306
        %v3308 = vrot.slane %v3300, %v3307
        %v3310 = vunpack.c.l.s4 1983009808
        %v3311 = vunpack.c.0.s8 %v3310
        %v3312 = vlaneseq
        %v3313 = vshrl.u32 %v3312, 7
        %v3314 = vsub.s32 %v3311, %v3313
        %v3315 = vrot.slane %v3301, %v3314
        %v3316 = vcombine.low %v3308, %v3315
        %v3317 = vcombine.low %v2958, %v2960
        %v3318 = vcombine.low %v3286, %v3288
        %v3320 = vunpack.c.l.s4 1983009808
        %v3321 = vunpack.c.0.s8 %v3320
        %v3322 = vlaneseq
        %v3323 = vshrl.u32 %v3322, 7
        %v3324 = vsub.s32 %v3321, %v3323
        %v3325 = vrot.slane %v3317, %v3324
        %v3327 = vunpack.c.l.s4 1983009808
        %v3328 = vunpack.c.0.s8 %v3327
        %v3329 = vlaneseq
        %v3330 = vshrl.u32 %v3329, 7
        %v3331 = vsub.s32 %v3328, %v3330
        %v3332 = vrot.slane %v3318, %v3331
        %v3333 = vcombine.low %v3325, %v3332
        %v3336 = vadd.f32 %v324, %v3316
        %v3337 = vadd.f32 %v325, %v3333
        %3338 = vst [vmem:[#allocation2] sm:$0xff] %v3336
        %3339 = vst [vmem:[#allocation2 + $0x8] sm:$0xff] %v3337
        %p3340 = scmp.eq.s32.totalorder %s24, 3
        // Predicated region
        $region65: #{convlstm_forward.5} parent=43 // pred_check
          %p3341 = pneg %p3340
        $region66: #{convlstm_forward.5} parent=43 // pred_check_branch
          %3343 = sbr.rel (%p3341) target = $region68
        $region67: #{convlstm_forward.5} parent=43 // pred_region
          %v3344 = vld [vmem:[#allocation2] sm:$0xff]
          %v3345 = vld [vmem:[#allocation2 + $0x8] sm:$0xff]
          %v3346 = vld [vmem:[#allocation6] sm:$0xff]
          %v3348 = vlaneseq
          %v3349 = vshrl.u32 %v3348, 7
          %v3350 = vsub.s32 0, %v3349
          %v3351 = vrot.slane %v3346, %v3350
          %v3352 = vlaneseq
          %v3353 = vshrl.u32 %v3352, 7
          %v3354 = vsub.s32 1, %v3353
          %v3355 = vrot.slane %v3346, %v3354
          %v3356 = vlaneseq
          %v3357 = vshrl.u32 %v3356, 7
          %v3358 = vsub.s32 2, %v3357
          %v3359 = vrot.slane %v3346, %v3358
          %v3360 = vlaneseq
          %v3361 = vshrl.u32 %v3360, 7
          %v3362 = vsub.s32 3, %v3361
          %v3363 = vrot.slane %v3346, %v3362
          %v3364 = vlaneseq
          %v3365 = vshrl.u32 %v3364, 7
          %v3366 = vsub.s32 4, %v3365
          %v3367 = vrot.slane %v3346, %v3366
          %v3368 = vlaneseq
          %v3369 = vshrl.u32 %v3368, 7
          %v3370 = vsub.s32 5, %v3369
          %v3371 = vrot.slane %v3346, %v3370
          %v3372 = vlaneseq
          %v3373 = vshrl.u32 %v3372, 7
          %v3374 = vsub.s32 6, %v3373
          %v3375 = vrot.slane %v3346, %v3374
          %v3376 = vlaneseq
          %v3377 = vshrl.u32 %v3376, 7
          %v3378 = vsub.s32 7, %v3377
          %v3379 = vrot.slane %v3346, %v3378
          %v3380 = vcombine.low %v3351, %v3355
          %v3381 = vcombine.low %v3359, %v3363
          %v3383 = vunpack.c.l.s4 1983009808
          %v3384 = vunpack.c.0.s8 %v3383
          %v3385 = vlaneseq
          %v3386 = vshrl.u32 %v3385, 7
          %v3387 = vsub.s32 %v3384, %v3386
          %v3388 = vrot.slane %v3380, %v3387
          %v3390 = vunpack.c.l.s4 1983009808
          %v3391 = vunpack.c.0.s8 %v3390
          %v3392 = vlaneseq
          %v3393 = vshrl.u32 %v3392, 7
          %v3394 = vsub.s32 %v3391, %v3393
          %v3395 = vrot.slane %v3381, %v3394
          %v3396 = vcombine.low %v3388, %v3395
          %v3397 = vcombine.low %v3367, %v3371
          %v3398 = vcombine.low %v3375, %v3379
          %v3400 = vunpack.c.l.s4 1983009808
          %v3401 = vunpack.c.0.s8 %v3400
          %v3402 = vlaneseq
          %v3403 = vshrl.u32 %v3402, 7
          %v3404 = vsub.s32 %v3401, %v3403
          %v3405 = vrot.slane %v3397, %v3404
          %v3407 = vunpack.c.l.s4 1983009808
          %v3408 = vunpack.c.0.s8 %v3407
          %v3409 = vlaneseq
          %v3410 = vshrl.u32 %v3409, 7
          %v3411 = vsub.s32 %v3408, %v3410
          %v3412 = vrot.slane %v3398, %v3411
          %v3413 = vcombine.low %v3405, %v3412
          %v3416 = vmul.f32 %v3344, %v3396
          %v3417 = vmul.f32 %v3345, %v3413
          %v3418 = vld [vmem:[#allocation8] sm:$0xff]
          %v3420 = vlaneseq
          %v3421 = vshrl.u32 %v3420, 7
          %v3422 = vsub.s32 0, %v3421
          %v3423 = vrot.slane %v3418, %v3422
          %v3424 = vlaneseq
          %v3425 = vshrl.u32 %v3424, 7
          %v3426 = vsub.s32 1, %v3425
          %v3427 = vrot.slane %v3418, %v3426
          %v3428 = vlaneseq
          %v3429 = vshrl.u32 %v3428, 7
          %v3430 = vsub.s32 2, %v3429
          %v3431 = vrot.slane %v3418, %v3430
          %v3432 = vlaneseq
          %v3433 = vshrl.u32 %v3432, 7
          %v3434 = vsub.s32 3, %v3433
          %v3435 = vrot.slane %v3418, %v3434
          %v3436 = vlaneseq
          %v3437 = vshrl.u32 %v3436, 7
          %v3438 = vsub.s32 4, %v3437
          %v3439 = vrot.slane %v3418, %v3438
          %v3440 = vlaneseq
          %v3441 = vshrl.u32 %v3440, 7
          %v3442 = vsub.s32 5, %v3441
          %v3443 = vrot.slane %v3418, %v3442
          %v3444 = vlaneseq
          %v3445 = vshrl.u32 %v3444, 7
          %v3446 = vsub.s32 6, %v3445
          %v3447 = vrot.slane %v3418, %v3446
          %v3448 = vlaneseq
          %v3449 = vshrl.u32 %v3448, 7
          %v3450 = vsub.s32 7, %v3449
          %v3451 = vrot.slane %v3418, %v3450
          %v3452 = vcombine.low %v3423, %v3427
          %v3453 = vcombine.low %v3431, %v3435
          %v3455 = vunpack.c.l.s4 1983009808
          %v3456 = vunpack.c.0.s8 %v3455
          %v3457 = vlaneseq
          %v3458 = vshrl.u32 %v3457, 7
          %v3459 = vsub.s32 %v3456, %v3458
          %v3460 = vrot.slane %v3452, %v3459
          %v3462 = vunpack.c.l.s4 1983009808
          %v3463 = vunpack.c.0.s8 %v3462
          %v3464 = vlaneseq
          %v3465 = vshrl.u32 %v3464, 7
          %v3466 = vsub.s32 %v3463, %v3465
          %v3467 = vrot.slane %v3453, %v3466
          %v3468 = vcombine.low %v3460, %v3467
          %v3469 = vcombine.low %v3439, %v3443
          %v3470 = vcombine.low %v3447, %v3451
          %v3472 = vunpack.c.l.s4 1983009808
          %v3473 = vunpack.c.0.s8 %v3472
          %v3474 = vlaneseq
          %v3475 = vshrl.u32 %v3474, 7
          %v3476 = vsub.s32 %v3473, %v3475
          %v3477 = vrot.slane %v3469, %v3476
          %v3479 = vunpack.c.l.s4 1983009808
          %v3480 = vunpack.c.0.s8 %v3479
          %v3481 = vlaneseq
          %v3482 = vshrl.u32 %v3481, 7
          %v3483 = vsub.s32 %v3480, %v3482
          %v3484 = vrot.slane %v3470, %v3483
          %v3485 = vcombine.low %v3477, %v3484
          %v3488 = vadd.f32 %v3416, %v3468
          %v3489 = vadd.f32 %v3417, %v3485
          %v3490 = vld [vmem:[#allocation9] sm:$0xff]
          %v3492 = vlaneseq
          %v3493 = vshrl.u32 %v3492, 7
          %v3494 = vsub.s32 0, %v3493
          %v3495 = vrot.slane %v3490, %v3494
          %v3496 = vlaneseq
          %v3497 = vshrl.u32 %v3496, 7
          %v3498 = vsub.s32 1, %v3497
          %v3499 = vrot.slane %v3490, %v3498
          %v3500 = vlaneseq
          %v3501 = vshrl.u32 %v3500, 7
          %v3502 = vsub.s32 2, %v3501
          %v3503 = vrot.slane %v3490, %v3502
          %v3504 = vlaneseq
          %v3505 = vshrl.u32 %v3504, 7
          %v3506 = vsub.s32 3, %v3505
          %v3507 = vrot.slane %v3490, %v3506
          %v3508 = vlaneseq
          %v3509 = vshrl.u32 %v3508, 7
          %v3510 = vsub.s32 4, %v3509
          %v3511 = vrot.slane %v3490, %v3510
          %v3512 = vlaneseq
          %v3513 = vshrl.u32 %v3512, 7
          %v3514 = vsub.s32 5, %v3513
          %v3515 = vrot.slane %v3490, %v3514
          %v3516 = vlaneseq
          %v3517 = vshrl.u32 %v3516, 7
          %v3518 = vsub.s32 6, %v3517
          %v3519 = vrot.slane %v3490, %v3518
          %v3520 = vlaneseq
          %v3521 = vshrl.u32 %v3520, 7
          %v3522 = vsub.s32 7, %v3521
          %v3523 = vrot.slane %v3490, %v3522
          %v3524 = vcombine.low %v3495, %v3499
          %v3525 = vcombine.low %v3503, %v3507
          %v3527 = vunpack.c.l.s4 1983009808
          %v3528 = vunpack.c.0.s8 %v3527
          %v3529 = vlaneseq
          %v3530 = vshrl.u32 %v3529, 7
          %v3531 = vsub.s32 %v3528, %v3530
          %v3532 = vrot.slane %v3524, %v3531
          %v3534 = vunpack.c.l.s4 1983009808
          %v3535 = vunpack.c.0.s8 %v3534
          %v3536 = vlaneseq
          %v3537 = vshrl.u32 %v3536, 7
          %v3538 = vsub.s32 %v3535, %v3537
          %v3539 = vrot.slane %v3525, %v3538
          %v3540 = vcombine.low %v3532, %v3539
          %v3541 = vcombine.low %v3511, %v3515
          %v3542 = vcombine.low %v3519, %v3523
          %v3544 = vunpack.c.l.s4 1983009808
          %v3545 = vunpack.c.0.s8 %v3544
          %v3546 = vlaneseq
          %v3547 = vshrl.u32 %v3546, 7
          %v3548 = vsub.s32 %v3545, %v3547
          %v3549 = vrot.slane %v3541, %v3548
          %v3551 = vunpack.c.l.s4 1983009808
          %v3552 = vunpack.c.0.s8 %v3551
          %v3553 = vlaneseq
          %v3554 = vshrl.u32 %v3553, 7
          %v3555 = vsub.s32 %v3552, %v3554
          %v3556 = vrot.slane %v3542, %v3555
          %v3557 = vcombine.low %v3549, %v3556
          %v3560 = vmul.f32 %v3488, %v3540
          %v3561 = vmul.f32 %v3489, %v3557
          %v3564 = vcombine.high %v3560, %v3560
          %v3566 = vunpack.c.l.s4 1983009808
          %v3567 = vunpack.c.0.s8 %v3566
          %v3568 = vlaneseq
          %v3569 = vshrl.u32 %v3568, 7
          %v3570 = vsub.s32 %v3567, %v3569
          %v3571 = vrot.slane %v3560, %v3570
          %v3573 = vunpack.c.l.s4 1983009808
          %v3574 = vunpack.c.0.s8 %v3573
          %v3575 = vlaneseq
          %v3576 = vshrl.u32 %v3575, 7
          %v3577 = vsub.s32 %v3574, %v3576
          %v3578 = vrot.slane %v3564, %v3577
          %v3579 = vcombine.high %v3571, %v3571
          %v3580 = vcombine.high %v3578, %v3578
          %v3581 = vcombine.high %v3561, %v3561
          %v3583 = vunpack.c.l.s4 1983009808
          %v3584 = vunpack.c.0.s8 %v3583
          %v3585 = vlaneseq
          %v3586 = vshrl.u32 %v3585, 7
          %v3587 = vsub.s32 %v3584, %v3586
          %v3588 = vrot.slane %v3561, %v3587
          %v3590 = vunpack.c.l.s4 1983009808
          %v3591 = vunpack.c.0.s8 %v3590
          %v3592 = vlaneseq
          %v3593 = vshrl.u32 %v3592, 7
          %v3594 = vsub.s32 %v3591, %v3593
          %v3595 = vrot.slane %v3581, %v3594
          %v3596 = vcombine.high %v3588, %v3588
          %v3597 = vcombine.high %v3595, %v3595
          %vm3606 = vcmask 1041408
          %v3607 = vsel %vm3606, %v3571, 0.0
          %v3608 = vsel %vm3606, %v3579, 0.0
          %v3609 = vadd.f32 %v3607, %v3608
          %v3610 = vsel %vm3606, %v3578, 0.0
          %v3611 = vadd.f32 %v3609, %v3610
          %v3612 = vsel %vm3606, %v3580, 0.0
          %v3613 = vadd.f32 %v3611, %v3612
          %v3614 = vsel %vm3606, %v3588, 0.0
          %v3615 = vadd.f32 %v3613, %v3614
          %v3616 = vsel %vm3606, %v3596, 0.0
          %v3617 = vadd.f32 %v3615, %v3616
          %v3618 = vsel %vm3606, %v3595, 0.0
          %v3619 = vadd.f32 %v3617, %v3618
          %v3620 = vsel %vm3606, %v3597, 0.0
          %v3621 = vadd.f32 %v3619, %v3620
          %3622 = vadd.xlane.f32.xlu0 %v3621
          %v3623 = vpop.xlane.xlu0 %3622
          %v3624 = vld [vmem:[#allocation3] sm:$0x1]
          %v3626 = vlaneseq
          %v3627 = vshrl.u32 %v3626, 7
          %v3628 = vsub.s32 0, %v3627
          %v3629 = vrot.slane %v3624, %v3628
          %v3631 = vadd.f32 %v3623, %v3629
          %vm3632 = vcmask 1024
          %3633 = vst.msk [vmem:[%s6] sm:$0x3] %vm3632, %v3631
        $region68: #{convlstm_forward.5} parent=43 // pred_fallthru
          _
        // Predicated region
        $region69: #{convlstm_forward.5} parent=43 // pred_check
          %p3634 = pneg %p173
        $region70: #{convlstm_forward.5} parent=43 // pred_check_branch
          %3636 = sbr.rel (%p3634) target = $region72
        $region71: #{convlstm_forward.5} parent=43 // pred_region
          _
        $region72: #{convlstm_forward.5} parent=43 // pred_fallthru
          _
        // Predicated region
        $region73: #{convlstm_forward.5} parent=43 // pred_check
          %p3637 = pneg %p173
        $region74: #{convlstm_forward.5} parent=43 // pred_check_branch
          %3639 = sbr.rel (%p3637) target = $region76
        $region75: #{convlstm_forward.5} parent=43 // pred_region
          _
        $region76: #{convlstm_forward.5} parent=43 // pred_fallthru
          _
      $region44: #{convlstm_forward.5} parent=5 // pred_fallthru
        _
      %p3640 = scmp.le.s32.totalorder 2, %s19
      // Predicated region
      $region77: #{convlstm_forward.5} parent=5 // pred_check
        %p3641 = pneg %p3640
      $region78: #{convlstm_forward.5} parent=5 // pred_check_branch
        %3643 = sbr.rel (%p3641) target = $region80
      $region79: #{convlstm_forward.5} parent=5 // pred_region
        %s3644 = ssub.s32 %s19, 2
      $region80: #{convlstm_forward.5} parent=5 // pred_fallthru
        _
    $region6: #{convlstm_forward.5} parent=1 // loop_footer
      %s23 = sadd.s32 1, %s19
    $region7: #{convlstm_forward.5} parent=1 // loop_footer_branch
      %18 = sbr.rel target = $region3
    $region8: #{convlstm_forward.5} parent=1 // loop_exit
      _
    %3645 = vsyncpa [#allocation5], 1
    %s3646 = scalar_lea.sflag [#allocation5], 1
    %3647 = vsyncpa %s3646, 1
    %3648 = vsyncpa [#allocation7], 1
    %3649 = vsyncpa [#allocation10], 1

</llo_original>
